<compile_context>
chip_gen: v7x
topology: tpu7x:2x2x1
jax: 0.10.0
libtpu: 0.0.40
codegen_flags: <defaults>
</compile_context>

<pallas_src>
import functools

import jax
import jax.numpy as jnp
from jax.experimental import pallas as pl
from jax.experimental.pallas import tpu as pltpu


def _pyramid_fused_kernel(x_ref, w_ref, b_ref, a_ref, o_ref, pad_ref, *, dilations):
    """All four PyramidConv branches fused; one batch sample per grid step.

    Ref shapes (NHWC-style, channels lane-dense):
      x_ref : (S, H, W, C)        pre-split input chunks sx[0..S-1]
      w_ref : (S, 9, 1, 1, C)     BN-scale-folded depthwise taps, row-major (a, b)
      b_ref : (S, 1, 1, C)        folded BN bias
      a_ref : (S, 1, 1, C)        PReLU slope
      o_ref : (S, H, W, C)        sp_1..sp_S (channel concat = trailing reshape outside)
      pad_ref (scratch) : (H + 2*dmax, W + 2*dmax, C) f32 shared halo buffer
    """
    S, H, W, C = x_ref.shape

    for k, d in enumerate(dilations):
        W2 = W + 2 * d

        # Fused residual add: branch k>0 consumes branch k-1's output directly
        # from the output VMEM block (no HBM round trip, no extra scratch).
        xin = x_ref[k].astype(jnp.float32)
        if k > 0:
            xin = xin + o_ref[k - 1].astype(jnp.float32)

        # Zero only the border strips of the region this dilation touches; the
        # interior [d:d+H, d:d+W] is fully overwritten right below.  The shared
        # scratch persists across branches and grid steps, so every cell the taps
        # read is written here -- no program_id guard needed, stays correct under
        # megacore "parallel" sharding.
        pad_ref[0:d, 0:W2, :] = jnp.zeros((d, W2, C), jnp.float32)
        pad_ref[d + H:2 * d + H, 0:W2, :] = jnp.zeros((d, W2, C), jnp.float32)
        pad_ref[d:d + H, 0:d, :] = jnp.zeros((H, d, C), jnp.float32)
        pad_ref[d:d + H, d + W:W2, :] = jnp.zeros((H, d, C), jnp.float32)
        pad_ref[d:d + H, d:d + W, :] = xin

        # Depthwise dilated 3x3 conv on the VPU with f32 accumulation.
        # 3 row-band loads; the three W-shifted taps per band are in-register
        # slices.  The accumulator is seeded with tap0*w0 + bias.
        bias = b_ref[k].astype(jnp.float32)                       # (1, 1, C)
        acc = None
        for a in range(3):
            band = pad_ref[a * d:a * d + H, 0:W2, :]              # (H, W+2d, C)
            for b in range(3):
                tap = band[:, b * d:b * d + W, :]                 # (H, W, C)
                term = tap * w_ref[k, 3 * a + b].astype(jnp.float32)
                acc = (term + bias) if acc is None else (acc + term)

        alpha = a_ref[k].astype(jnp.float32)                      # (1, 1, C)
        y = jnp.where(acc >= 0.0, acc, acc * alpha)
        o_ref[k] = y.astype(o_ref.dtype)


def pyramid_conv(x, params, dilations=(1, 2, 4, 6), eps=1e-5):
    """x: (N, C, H, W); params: list of dicts (w, gamma, beta, mean, var, alpha) per branch.

    Returns (N, C, H, W), matching PyramidConv.forward (inference-mode BN)."""
    N, C, H, W = x.shape
    scales = len(dilations)
    width = C // scales
    assert width * scales == C
    dmax = max(dilations)

    # Fold inference BatchNorm into the depthwise conv weights / bias; stack branches.
    w_list, b_list, a_list = [], [], []
    for p in params:
        s = p["gamma"] / jnp.sqrt(p["var"] + eps)                         # (width,)
        w_eff = p["w"][:, 0] * s[:, None, None]                           # (width, 3, 3)
        w_list.append(jnp.transpose(w_eff, (1, 2, 0)).reshape(9, 1, 1, width))
        b_list.append((p["beta"] - p["mean"] * s).reshape(1, 1, width))
        alpha = jnp.broadcast_to(jnp.asarray(p["alpha"], jnp.float32).reshape(-1), (width,))
        a_list.append(alpha.reshape(1, 1, width))
    w_all = jnp.stack(w_list).astype(jnp.float32)                         # (S, 9, 1, 1, width)
    b_all = jnp.stack(b_list).astype(jnp.float32)                         # (S, 1, 1, width)
    a_all = jnp.stack(a_list).astype(jnp.float32)                         # (S, 1, 1, width)

    # Layout plumbing (once each way): NCHW -> (N, S, H, W, width) so channels sit
    # on lanes in-kernel and the branch concat is just the trailing reshape.
    x5 = jnp.transpose(x.reshape(N, scales, width, H, W), (0, 1, 3, 4, 2))

    act_spec = pl.BlockSpec((pl.Squeezed(), scales, H, W, width),
                            lambda n: (n, 0, 0, 0, 0))
    kernel = functools.partial(_pyramid_fused_kernel, dilations=tuple(dilations))

    out5 = pl.pallas_call(
        kernel,
        out_shape=jax.ShapeDtypeStruct((N, scales, H, W, width), x.dtype),
        grid_spec=pltpu.PrefetchScalarGridSpec(
            num_scalar_prefetch=0,
            grid=(N,),
            in_specs=[
                act_spec,
                pl.BlockSpec((scales, 9, 1, 1, width), lambda n: (0, 0, 0, 0, 0)),
                pl.BlockSpec((scales, 1, 1, width), lambda n: (0, 0, 0, 0)),
                pl.BlockSpec((scales, 1, 1, width), lambda n: (0, 0, 0, 0)),
            ],
            out_specs=act_spec,
            scratch_shapes=[
                pltpu.VMEM((H + 2 * dmax, W + 2 * dmax, width), jnp.float32),
            ],
        ),
        compiler_params=pltpu.CompilerParams(
            dimension_semantics=("parallel",),
        ),
    )(x5, w_all, b_all, a_all)

    return jnp.transpose(out5, (0, 1, 4, 2, 3)).reshape(N, C, H, W)


def pyramid_conv_reference(x, params, dilations=(1, 2, 4, 6), eps=1e-5):
    """Pure-JAX reference (lax depthwise conv + BN(eval) + PReLU), NCHW."""
    width = params[0]["w"].shape[0]
    chunks = [x[:, i * width:(i + 1) * width] for i in range(len(dilations))]
    sp = None
    outs = []
    for i, d in enumerate(dilations):
        p = params[i]
        inp = chunks[i] if sp is None else chunks[i] + sp
        conv = jax.lax.conv_general_dilated(
            inp, p["w"], window_strides=(1, 1),
            padding=((d, d), (d, d)), rhs_dilation=(d, d),
            dimension_numbers=("NCHW", "OIHW", "NCHW"),
            feature_group_count=width)
        s = p["gamma"] / jnp.sqrt(p["var"] + eps)
        y = conv * s[None, :, None, None] + (p["beta"] - p["mean"] * s)[None, :, None, None]
        sp = jnp.where(y >= 0, y, p["alpha"] * y)
        outs.append(sp)
    return jnp.concatenate(outs, axis=1)


if __name__ == "__main__":
    key = jax.random.PRNGKey(0)
    channel, scales = 160, 4          # groups=40 in the module forces width == 40 (depthwise)
    width = channel // scales
    N, H, W = 2, 16, 16
    dilations = (1, 2, 4, 6)

    keys = jax.random.split(key, 1 + len(dilations))
    x = jax.random.normal(keys[0], (N, channel, H, W), dtype=jnp.float32)

    params = []
    for i in range(len(dilations)):
        kw, kg, kb, km, kv = jax.random.split(keys[1 + i], 5)
        params.append(dict(
            w=jax.random.normal(kw, (width, 1, 3, 3), jnp.float32) * 0.2,   # Conv2d grouped weight
            gamma=jax.random.uniform(kg, (width,), jnp.float32, 0.5, 1.5),  # BN weight
            beta=jax.random.normal(kb, (width,), jnp.float32) * 0.1,        # BN bias
            mean=jax.random.normal(km, (width,), jnp.float32) * 0.1,        # BN running_mean
            var=jax.random.uniform(kv, (width,), jnp.float32, 0.5, 1.5),    # BN running_var
            alpha=jnp.float32(0.25),                                        # PReLU (single param)
        ))

    fn = jax.jit(pyramid_conv)
    out = jax.block_until_ready(fn(x, params))

    ref = pyramid_conv_reference(x, params)
    assert out.shape == (N, channel, H, W), out.shape
    assert jnp.allclose(out, ref, atol=1e-4, rtol=1e-4), float(jnp.max(jnp.abs(out - ref)))

    print("KERNEL_OK")
</pallas_src>

<mosaic_0001>
module attributes {stable_mosaic.version = 11 : i64} {
  func.func @_pyramid_fused_kernel(%arg0: i32, %arg1: memref<1x4x16x16x40xf32, #tpu.memory_space<vmem>>, %arg2: memref<4x9x1x1x40xf32, #tpu.memory_space<vmem>>, %arg3: memref<4x1x1x40xf32, #tpu.memory_space<vmem>>, %arg4: memref<4x1x1x40xf32, #tpu.memory_space<vmem>>, %arg5: memref<1x4x16x16x40xf32, #tpu.memory_space<vmem>>, %arg6: memref<28x28x40xf32, #tpu.memory_space<vmem>>) attributes {dimension_semantics = [#tpu.dimension_semantics<parallel>], iteration_bounds = array<i64: 2>, scalar_prefetch = 0 : i64, scratch_operands = 1 : i64, tpu.core_type = #tpu.core_type<tc>, window_params = [{transform_indices = @transform_0, window_bounds = array<i64: 1, 4, 16, 16, 40>}, {pipeline_mode = #tpu.pipeline_mode<synchronous>, transform_indices = @transform_1, window_bounds = array<i64: 4, 9, 1, 1, 40>}, {pipeline_mode = #tpu.pipeline_mode<synchronous>, transform_indices = @transform_2, window_bounds = array<i64: 4, 1, 1, 40>}, {pipeline_mode = #tpu.pipeline_mode<synchronous>, transform_indices = @transform_3, window_bounds = array<i64: 4, 1, 1, 40>}, {transform_indices = @transform_4, window_bounds = array<i64: 1, 4, 16, 16, 40>}]} {
    %c0 = arith.constant 0 : index
    %c0_0 = arith.constant 0 : index
    %c0_1 = arith.constant 0 : index
    %c0_2 = arith.constant 0 : index
    %c0_3 = arith.constant 0 : index
    %0 = vector.load %arg1[%c0, %c0_0, %c0_1, %c0_2, %c0_3] : memref<1x4x16x16x40xf32, #tpu.memory_space<vmem>>, vector<1x1x16x16x40xf32>
    %1 = vector.shape_cast %0 : vector<1x1x16x16x40xf32> to vector<16x16x40xf32>
    %cst = arith.constant 0.000000e+00 : f32
    %2 = vector.broadcast %cst : f32 to vector<1x18x40xf32>
    %c0_4 = arith.constant 0 : index
    %c0_5 = arith.constant 0 : index
    %c0_6 = arith.constant 0 : index
    %3 = vector.load %arg6[%c0_4, %c0_5, %c0_6] : memref<28x28x40xf32, #tpu.memory_space<vmem>>, vector<1x18x40xf32>
    tpu.vector_store %arg6[%c0_4, %c0_5, %c0_6], %2 {strides = array<i32>} : memref<28x28x40xf32, #tpu.memory_space<vmem>>, vector<1x18x40xf32>,
    %cst_7 = arith.constant 0.000000e+00 : f32
    %4 = vector.broadcast %cst_7 : f32 to vector<1x18x40xf32>
    %c17 = arith.constant 17 : index
    %c0_8 = arith.constant 0 : index
    %c0_9 = arith.constant 0 : index
    %5 = vector.load %arg6[%c17, %c0_8, %c0_9] : memref<28x28x40xf32, #tpu.memory_space<vmem>>, vector<1x18x40xf32>
    tpu.vector_store %arg6[%c17, %c0_8, %c0_9], %4 {strides = array<i32>} : memref<28x28x40xf32, #tpu.memory_space<vmem>>, vector<1x18x40xf32>,
    %cst_10 = arith.constant 0.000000e+00 : f32
    %6 = vector.broadcast %cst_10 : f32 to vector<16x1x40xf32>
    %c1 = arith.constant 1 : index
    %c0_11 = arith.constant 0 : index
    %c0_12 = arith.constant 0 : index
    %7 = vector.load %arg6[%c1, %c0_11, %c0_12] : memref<28x28x40xf32, #tpu.memory_space<vmem>>, vector<16x1x40xf32>
    tpu.vector_store %arg6[%c1, %c0_11, %c0_12], %6 {strides = array<i32>} : memref<28x28x40xf32, #tpu.memory_space<vmem>>, vector<16x1x40xf32>,
    %cst_13 = arith.constant 0.000000e+00 : f32
    %8 = vector.broadcast %cst_13 : f32 to vector<16x1x40xf32>
    %c1_14 = arith.constant 1 : index
    %c17_15 = arith.constant 17 : index
    %c0_16 = arith.constant 0 : index
    %9 = vector.load %arg6[%c1_14, %c17_15, %c0_16] : memref<28x28x40xf32, #tpu.memory_space<vmem>>, vector<16x1x40xf32>
    tpu.vector_store %arg6[%c1_14, %c17_15, %c0_16], %8 {strides = array<i32>} : memref<28x28x40xf32, #tpu.memory_space<vmem>>, vector<16x1x40xf32>,
    %c1_17 = arith.constant 1 : index
    %c1_18 = arith.constant 1 : index
    %c0_19 = arith.constant 0 : index
    %10 = vector.load %arg6[%c1_17, %c1_18, %c0_19] : memref<28x28x40xf32, #tpu.memory_space<vmem>>, vector<16x16x40xf32>
    tpu.vector_store %arg6[%c1_17, %c1_18, %c0_19], %1 {strides = array<i32>} : memref<28x28x40xf32, #tpu.memory_space<vmem>>, vector<16x16x40xf32>,
    %c0_20 = arith.constant 0 : index
    %c0_21 = arith.constant 0 : index
    %c0_22 = arith.constant 0 : index
    %c0_23 = arith.constant 0 : index
    %11 = vector.load %arg3[%c0_20, %c0_21, %c0_22, %c0_23] : memref<4x1x1x40xf32, #tpu.memory_space<vmem>>, vector<1x1x1x40xf32>
    %12 = vector.shape_cast %11 : vector<1x1x1x40xf32> to vector<1x1x40xf32>
    %c0_24 = arith.constant 0 : index
    %c0_25 = arith.constant 0 : index
    %c0_26 = arith.constant 0 : index
    %13 = vector.load %arg6[%c0_24, %c0_25, %c0_26] : memref<28x28x40xf32, #tpu.memory_space<vmem>>, vector<16x18x40xf32>
    %14 = vector.extract_strided_slice %13 {offsets = [0, 0, 0], sizes = [16, 16, 40], strides = [1, 1, 1]} : vector<16x18x40xf32> to vector<16x16x40xf32>
    %c0_27 = arith.constant 0 : index
    %c0_28 = arith.constant 0 : index
    %c0_29 = arith.constant 0 : index
    %c0_30 = arith.constant 0 : index
    %c0_31 = arith.constant 0 : index
    %15 = vector.load %arg2[%c0_27, %c0_28, %c0_29, %c0_30, %c0_31] : memref<4x9x1x1x40xf32, #tpu.memory_space<vmem>>, vector<1x1x1x1x40xf32>
    %16 = vector.shape_cast %15 : vector<1x1x1x1x40xf32> to vector<1x1x40xf32>
    %17 = vector.broadcast %16 : vector<1x1x40xf32> to vector<16x16x40xf32>
    %18 = arith.mulf %14, %17 : vector<16x16x40xf32>
    %19 = vector.broadcast %12 : vector<1x1x40xf32> to vector<16x16x40xf32>
    %20 = arith.addf %18, %19 : vector<16x16x40xf32>
    %21 = vector.extract_strided_slice %13 {offsets = [0, 1, 0], sizes = [16, 16, 40], strides = [1, 1, 1]} : vector<16x18x40xf32> to vector<16x16x40xf32>
    %c0_32 = arith.constant 0 : index
    %c1_33 = arith.constant 1 : index
    %c0_34 = arith.constant 0 : index
    %c0_35 = arith.constant 0 : index
    %c0_36 = arith.constant 0 : index
    %22 = vector.load %arg2[%c0_32, %c1_33, %c0_34, %c0_35, %c0_36] : memref<4x9x1x1x40xf32, #tpu.memory_space<vmem>>, vector<1x1x1x1x40xf32>
    %23 = vector.shape_cast %22 : vector<1x1x1x1x40xf32> to vector<1x1x40xf32>
    %24 = vector.broadcast %23 : vector<1x1x40xf32> to vector<16x16x40xf32>
    %25 = arith.mulf %21, %24 : vector<16x16x40xf32>
    %26 = arith.addf %20, %25 : vector<16x16x40xf32>
    %27 = vector.extract_strided_slice %13 {offsets = [0, 2, 0], sizes = [16, 16, 40], strides = [1, 1, 1]} : vector<16x18x40xf32> to vector<16x16x40xf32>
    %c0_37 = arith.constant 0 : index
    %c2 = arith.constant 2 : index
    %c0_38 = arith.constant 0 : index
    %c0_39 = arith.constant 0 : index
    %c0_40 = arith.constant 0 : index
    %28 = vector.load %arg2[%c0_37, %c2, %c0_38, %c0_39, %c0_40] : memref<4x9x1x1x40xf32, #tpu.memory_space<vmem>>, vector<1x1x1x1x40xf32>
    %29 = vector.shape_cast %28 : vector<1x1x1x1x40xf32> to vector<1x1x40xf32>
    %30 = vector.broadcast %29 : vector<1x1x40xf32> to vector<16x16x40xf32>
    %31 = arith.mulf %27, %30 : vector<16x16x40xf32>
    %32 = arith.addf %26, %31 : vector<16x16x40xf32>
    %c1_41 = arith.constant 1 : index
    %c0_42 = arith.constant 0 : index
    %c0_43 = arith.constant 0 : index
    %33 = vector.load %arg6[%c1_41, %c0_42, %c0_43] : memref<28x28x40xf32, #tpu.memory_space<vmem>>, vector<16x18x40xf32>
    %34 = vector.extract_strided_slice %33 {offsets = [0, 0, 0], sizes = [16, 16, 40], strides = [1, 1, 1]} : vector<16x18x40xf32> to vector<16x16x40xf32>
    %c0_44 = arith.constant 0 : index
    %c3 = arith.constant 3 : index
    %c0_45 = arith.constant 0 : index
    %c0_46 = arith.constant 0 : index
    %c0_47 = arith.constant 0 : index
    %35 = vector.load %arg2[%c0_44, %c3, %c0_45, %c0_46, %c0_47] : memref<4x9x1x1x40xf32, #tpu.memory_space<vmem>>, vector<1x1x1x1x40xf32>
    %36 = vector.shape_cast %35 : vector<1x1x1x1x40xf32> to vector<1x1x40xf32>
    %37 = vector.broadcast %36 : vector<1x1x40xf32> to vector<16x16x40xf32>
    %38 = arith.mulf %34, %37 : vector<16x16x40xf32>
    %39 = arith.addf %32, %38 : vector<16x16x40xf32>
    %40 = vector.extract_strided_slice %33 {offsets = [0, 1, 0], sizes = [16, 16, 40], strides = [1, 1, 1]} : vector<16x18x40xf32> to vector<16x16x40xf32>
    %c0_48 = arith.constant 0 : index
    %c4 = arith.constant 4 : index
    %c0_49 = arith.constant 0 : index
    %c0_50 = arith.constant 0 : index
    %c0_51 = arith.constant 0 : index
    %41 = vector.load %arg2[%c0_48, %c4, %c0_49, %c0_50, %c0_51] : memref<4x9x1x1x40xf32, #tpu.memory_space<vmem>>, vector<1x1x1x1x40xf32>
    %42 = vector.shape_cast %41 : vector<1x1x1x1x40xf32> to vector<1x1x40xf32>
    %43 = vector.broadcast %42 : vector<1x1x40xf32> to vector<16x16x40xf32>
    %44 = arith.mulf %40, %43 : vector<16x16x40xf32>
    %45 = arith.addf %39, %44 : vector<16x16x40xf32>
    %46 = vector.extract_strided_slice %33 {offsets = [0, 2, 0], sizes = [16, 16, 40], strides = [1, 1, 1]} : vector<16x18x40xf32> to vector<16x16x40xf32>
    %c0_52 = arith.constant 0 : index
    %c5 = arith.constant 5 : index
    %c0_53 = arith.constant 0 : index
    %c0_54 = arith.constant 0 : index
    %c0_55 = arith.constant 0 : index
    %47 = vector.load %arg2[%c0_52, %c5, %c0_53, %c0_54, %c0_55] : memref<4x9x1x1x40xf32, #tpu.memory_space<vmem>>, vector<1x1x1x1x40xf32>
    %48 = vector.shape_cast %47 : vector<1x1x1x1x40xf32> to vector<1x1x40xf32>
    %49 = vector.broadcast %48 : vector<1x1x40xf32> to vector<16x16x40xf32>
    %50 = arith.mulf %46, %49 : vector<16x16x40xf32>
    %51 = arith.addf %45, %50 : vector<16x16x40xf32>
    %c2_56 = arith.constant 2 : index
    %c0_57 = arith.constant 0 : index
    %c0_58 = arith.constant 0 : index
    %52 = vector.load %arg6[%c2_56, %c0_57, %c0_58] : memref<28x28x40xf32, #tpu.memory_space<vmem>>, vector<16x18x40xf32>
    %53 = vector.extract_strided_slice %52 {offsets = [0, 0, 0], sizes = [16, 16, 40], strides = [1, 1, 1]} : vector<16x18x40xf32> to vector<16x16x40xf32>
    %c0_59 = arith.constant 0 : index
    %c6 = arith.constant 6 : index
    %c0_60 = arith.constant 0 : index
    %c0_61 = arith.constant 0 : index
    %c0_62 = arith.constant 0 : index
    %54 = vector.load %arg2[%c0_59, %c6, %c0_60, %c0_61, %c0_62] : memref<4x9x1x1x40xf32, #tpu.memory_space<vmem>>, vector<1x1x1x1x40xf32>
    %55 = vector.shape_cast %54 : vector<1x1x1x1x40xf32> to vector<1x1x40xf32>
    %56 = vector.broadcast %55 : vector<1x1x40xf32> to vector<16x16x40xf32>
    %57 = arith.mulf %53, %56 : vector<16x16x40xf32>
    %58 = arith.addf %51, %57 : vector<16x16x40xf32>
    %59 = vector.extract_strided_slice %52 {offsets = [0, 1, 0], sizes = [16, 16, 40], strides = [1, 1, 1]} : vector<16x18x40xf32> to vector<16x16x40xf32>
    %c0_63 = arith.constant 0 : index
    %c7 = arith.constant 7 : index
    %c0_64 = arith.constant 0 : index
    %c0_65 = arith.constant 0 : index
    %c0_66 = arith.constant 0 : index
    %60 = vector.load %arg2[%c0_63, %c7, %c0_64, %c0_65, %c0_66] : memref<4x9x1x1x40xf32, #tpu.memory_space<vmem>>, vector<1x1x1x1x40xf32>
    %61 = vector.shape_cast %60 : vector<1x1x1x1x40xf32> to vector<1x1x40xf32>
    %62 = vector.broadcast %61 : vector<1x1x40xf32> to vector<16x16x40xf32>
    %63 = arith.mulf %59, %62 : vector<16x16x40xf32>
    %64 = arith.addf %58, %63 : vector<16x16x40xf32>
    %65 = vector.extract_strided_slice %52 {offsets = [0, 2, 0], sizes = [16, 16, 40], strides = [1, 1, 1]} : vector<16x18x40xf32> to vector<16x16x40xf32>
    %c0_67 = arith.constant 0 : index
    %c8 = arith.constant 8 : index
    %c0_68 = arith.constant 0 : index
    %c0_69 = arith.constant 0 : index
    %c0_70 = arith.constant 0 : index
    %66 = vector.load %arg2[%c0_67, %c8, %c0_68, %c0_69, %c0_70] : memref<4x9x1x1x40xf32, #tpu.memory_space<vmem>>, vector<1x1x1x1x40xf32>
    %67 = vector.shape_cast %66 : vector<1x1x1x1x40xf32> to vector<1x1x40xf32>
    %68 = vector.broadcast %67 : vector<1x1x40xf32> to vector<16x16x40xf32>
    %69 = arith.mulf %65, %68 : vector<16x16x40xf32>
    %70 = arith.addf %64, %69 : vector<16x16x40xf32>
    %c0_71 = arith.constant 0 : index
    %c0_72 = arith.constant 0 : index
    %c0_73 = arith.constant 0 : index
    %c0_74 = arith.constant 0 : index
    %71 = vector.load %arg4[%c0_71, %c0_72, %c0_73, %c0_74] : memref<4x1x1x40xf32, #tpu.memory_space<vmem>>, vector<1x1x1x40xf32>
    %72 = vector.shape_cast %71 : vector<1x1x1x40xf32> to vector<1x1x40xf32>
    %cst_75 = arith.constant 0.000000e+00 : f32
    %73 = vector.broadcast %cst_75 : f32 to vector<16x16x40xf32>
    %74 = arith.cmpf oge, %70, %73 : vector<16x16x40xf32>
    %75 = vector.broadcast %72 : vector<1x1x40xf32> to vector<16x16x40xf32>
    %76 = arith.mulf %70, %75 : vector<16x16x40xf32>
    %77 = arith.select %74, %70, %76 : vector<16x16x40xi1>, vector<16x16x40xf32>
    %c0_76 = arith.constant 0 : index
    %c0_77 = arith.constant 0 : index
    %c0_78 = arith.constant 0 : index
    %c0_79 = arith.constant 0 : index
    %c0_80 = arith.constant 0 : index
    %78 = vector.load %arg5[%c0_76, %c0_77, %c0_78, %c0_79, %c0_80] : memref<1x4x16x16x40xf32, #tpu.memory_space<vmem>>, vector<1x1x16x16x40xf32>
    %79 = vector.shape_cast %78 : vector<1x1x16x16x40xf32> to vector<16x16x40xf32>
    %80 = vector.shape_cast %77 : vector<16x16x40xf32> to vector<1x1x16x16x40xf32>
    tpu.vector_store %arg5[%c0_76, %c0_77, %c0_78, %c0_79, %c0_80], %80 {strides = array<i32>} : memref<1x4x16x16x40xf32, #tpu.memory_space<vmem>>, vector<1x1x16x16x40xf32>,
    %c0_81 = arith.constant 0 : index
    %c1_82 = arith.constant 1 : index
    %c0_83 = arith.constant 0 : index
    %c0_84 = arith.constant 0 : index
    %c0_85 = arith.constant 0 : index
    %81 = vector.load %arg1[%c0_81, %c1_82, %c0_83, %c0_84, %c0_85] : memref<1x4x16x16x40xf32, #tpu.memory_space<vmem>>, vector<1x1x16x16x40xf32>
    %82 = vector.shape_cast %81 : vector<1x1x16x16x40xf32> to vector<16x16x40xf32>
    %c0_86 = arith.constant 0 : index
    %c0_87 = arith.constant 0 : index
    %c0_88 = arith.constant 0 : index
    %c0_89 = arith.constant 0 : index
    %c0_90 = arith.constant 0 : index
    %83 = vector.load %arg5[%c0_86, %c0_87, %c0_88, %c0_89, %c0_90] : memref<1x4x16x16x40xf32, #tpu.memory_space<vmem>>, vector<1x1x16x16x40xf32>
    %84 = vector.shape_cast %83 : vector<1x1x16x16x40xf32> to vector<16x16x40xf32>
    %85 = arith.addf %82, %84 : vector<16x16x40xf32>
    %cst_91 = arith.constant 0.000000e+00 : f32
    %86 = vector.broadcast %cst_91 : f32 to vector<2x20x40xf32>
    %c0_92 = arith.constant 0 : index
    %c0_93 = arith.constant 0 : index
    %c0_94 = arith.constant 0 : index
    %87 = vector.load %arg6[%c0_92, %c0_93, %c0_94] : memref<28x28x40xf32, #tpu.memory_space<vmem>>, vector<2x20x40xf32>
    tpu.vector_store %arg6[%c0_92, %c0_93, %c0_94], %86 {strides = array<i32>} : memref<28x28x40xf32, #tpu.memory_space<vmem>>, vector<2x20x40xf32>,
    %cst_95 = arith.constant 0.000000e+00 : f32
    %88 = vector.broadcast %cst_95 : f32 to vector<2x20x40xf32>
    %c18 = arith.constant 18 : index
    %c0_96 = arith.constant 0 : index
    %c0_97 = arith.constant 0 : index
    %89 = vector.load %arg6[%c18, %c0_96, %c0_97] : memref<28x28x40xf32, #tpu.memory_space<vmem>>, vector<2x20x40xf32>
    tpu.vector_store %arg6[%c18, %c0_96, %c0_97], %88 {strides = array<i32>} : memref<28x28x40xf32, #tpu.memory_space<vmem>>, vector<2x20x40xf32>,
    %cst_98 = arith.constant 0.000000e+00 : f32
    %90 = vector.broadcast %cst_98 : f32 to vector<16x2x40xf32>
    %c2_99 = arith.constant 2 : index
    %c0_100 = arith.constant 0 : index
    %c0_101 = arith.constant 0 : index
    %91 = vector.load %arg6[%c2_99, %c0_100, %c0_101] : memref<28x28x40xf32, #tpu.memory_space<vmem>>, vector<16x2x40xf32>
    tpu.vector_store %arg6[%c2_99, %c0_100, %c0_101], %90 {strides = array<i32>} : memref<28x28x40xf32, #tpu.memory_space<vmem>>, vector<16x2x40xf32>,
    %cst_102 = arith.constant 0.000000e+00 : f32
    %92 = vector.broadcast %cst_102 : f32 to vector<16x2x40xf32>
    %c2_103 = arith.constant 2 : index
    %c18_104 = arith.constant 18 : index
    %c0_105 = arith.constant 0 : index
    %93 = vector.load %arg6[%c2_103, %c18_104, %c0_105] : memref<28x28x40xf32, #tpu.memory_space<vmem>>, vector<16x2x40xf32>
    tpu.vector_store %arg6[%c2_103, %c18_104, %c0_105], %92 {strides = array<i32>} : memref<28x28x40xf32, #tpu.memory_space<vmem>>, vector<16x2x40xf32>,
    %c2_106 = arith.constant 2 : index
    %c2_107 = arith.constant 2 : index
    %c0_108 = arith.constant 0 : index
    %94 = vector.load %arg6[%c2_106, %c2_107, %c0_108] : memref<28x28x40xf32, #tpu.memory_space<vmem>>, vector<16x16x40xf32>
    tpu.vector_store %arg6[%c2_106, %c2_107, %c0_108], %85 {strides = array<i32>} : memref<28x28x40xf32, #tpu.memory_space<vmem>>, vector<16x16x40xf32>,
    %c1_109 = arith.constant 1 : index
    %c0_110 = arith.constant 0 : index
    %c0_111 = arith.constant 0 : index
    %c0_112 = arith.constant 0 : index
    %95 = vector.load %arg3[%c1_109, %c0_110, %c0_111, %c0_112] : memref<4x1x1x40xf32, #tpu.memory_space<vmem>>, vector<1x1x1x40xf32>
    %96 = vector.shape_cast %95 : vector<1x1x1x40xf32> to vector<1x1x40xf32>
    %c0_113 = arith.constant 0 : index
    %c0_114 = arith.constant 0 : index
    %c0_115 = arith.constant 0 : index
    %97 = vector.load %arg6[%c0_113, %c0_114, %c0_115] : memref<28x28x40xf32, #tpu.memory_space<vmem>>, vector<16x20x40xf32>
    %98 = vector.extract_strided_slice %97 {offsets = [0, 0, 0], sizes = [16, 16, 40], strides = [1, 1, 1]} : vector<16x20x40xf32> to vector<16x16x40xf32>
    %c1_116 = arith.constant 1 : index
    %c0_117 = arith.constant 0 : index
    %c0_118 = arith.constant 0 : index
    %c0_119 = arith.constant 0 : index
    %c0_120 = arith.constant 0 : index
    %99 = vector.load %arg2[%c1_116, %c0_117, %c0_118, %c0_119, %c0_120] : memref<4x9x1x1x40xf32, #tpu.memory_space<vmem>>, vector<1x1x1x1x40xf32>
    %100 = vector.shape_cast %99 : vector<1x1x1x1x40xf32> to vector<1x1x40xf32>
    %101 = vector.broadcast %100 : vector<1x1x40xf32> to vector<16x16x40xf32>
    %102 = arith.mulf %98, %101 : vector<16x16x40xf32>
    %103 = vector.broadcast %96 : vector<1x1x40xf32> to vector<16x16x40xf32>
    %104 = arith.addf %102, %103 : vector<16x16x40xf32>
    %105 = vector.extract_strided_slice %97 {offsets = [0, 2, 0], sizes = [16, 16, 40], strides = [1, 1, 1]} : vector<16x20x40xf32> to vector<16x16x40xf32>
    %c1_121 = arith.constant 1 : index
    %c1_122 = arith.constant 1 : index
    %c0_123 = arith.constant 0 : index
    %c0_124 = arith.constant 0 : index
    %c0_125 = arith.constant 0 : index
    %106 = vector.load %arg2[%c1_121, %c1_122, %c0_123, %c0_124, %c0_125] : memref<4x9x1x1x40xf32, #tpu.memory_space<vmem>>, vector<1x1x1x1x40xf32>
    %107 = vector.shape_cast %106 : vector<1x1x1x1x40xf32> to vector<1x1x40xf32>
    %108 = vector.broadcast %107 : vector<1x1x40xf32> to vector<16x16x40xf32>
    %109 = arith.mulf %105, %108 : vector<16x16x40xf32>
    %110 = arith.addf %104, %109 : vector<16x16x40xf32>
    %111 = vector.extract_strided_slice %97 {offsets = [0, 4, 0], sizes = [16, 16, 40], strides = [1, 1, 1]} : vector<16x20x40xf32> to vector<16x16x40xf32>
    %c1_126 = arith.constant 1 : index
    %c2_127 = arith.constant 2 : index
    %c0_128 = arith.constant 0 : index
    %c0_129 = arith.constant 0 : index
    %c0_130 = arith.constant 0 : index
    %112 = vector.load %arg2[%c1_126, %c2_127, %c0_128, %c0_129, %c0_130] : memref<4x9x1x1x40xf32, #tpu.memory_space<vmem>>, vector<1x1x1x1x40xf32>
    %113 = vector.shape_cast %112 : vector<1x1x1x1x40xf32> to vector<1x1x40xf32>
    %114 = vector.broadcast %113 : vector<1x1x40xf32> to vector<16x16x40xf32>
    %115 = arith.mulf %111, %114 : vector<16x16x40xf32>
    %116 = arith.addf %110, %115 : vector<16x16x40xf32>
    %c2_131 = arith.constant 2 : index
    %c0_132 = arith.constant 0 : index
    %c0_133 = arith.constant 0 : index
    %117 = vector.load %arg6[%c2_131, %c0_132, %c0_133] : memref<28x28x40xf32, #tpu.memory_space<vmem>>, vector<16x20x40xf32>
    %118 = vector.extract_strided_slice %117 {offsets = [0, 0, 0], sizes = [16, 16, 40], strides = [1, 1, 1]} : vector<16x20x40xf32> to vector<16x16x40xf32>
    %c1_134 = arith.constant 1 : index
    %c3_135 = arith.constant 3 : index
    %c0_136 = arith.constant 0 : index
    %c0_137 = arith.constant 0 : index
    %c0_138 = arith.constant 0 : index
    %119 = vector.load %arg2[%c1_134, %c3_135, %c0_136, %c0_137, %c0_138] : memref<4x9x1x1x40xf32, #tpu.memory_space<vmem>>, vector<1x1x1x1x40xf32>
    %120 = vector.shape_cast %119 : vector<1x1x1x1x40xf32> to vector<1x1x40xf32>
    %121 = vector.broadcast %120 : vector<1x1x40xf32> to vector<16x16x40xf32>
    %122 = arith.mulf %118, %121 : vector<16x16x40xf32>
    %123 = arith.addf %116, %122 : vector<16x16x40xf32>
    %124 = vector.extract_strided_slice %117 {offsets = [0, 2, 0], sizes = [16, 16, 40], strides = [1, 1, 1]} : vector<16x20x40xf32> to vector<16x16x40xf32>
    %c1_139 = arith.constant 1 : index
    %c4_140 = arith.constant 4 : index
    %c0_141 = arith.constant 0 : index
    %c0_142 = arith.constant 0 : index
    %c0_143 = arith.constant 0 : index
    %125 = vector.load %arg2[%c1_139, %c4_140, %c0_141, %c0_142, %c0_143] : memref<4x9x1x1x40xf32, #tpu.memory_space<vmem>>, vector<1x1x1x1x40xf32>
    %126 = vector.shape_cast %125 : vector<1x1x1x1x40xf32> to vector<1x1x40xf32>
    %127 = vector.broadcast %126 : vector<1x1x40xf32> to vector<16x16x40xf32>
    %128 = arith.mulf %124, %127 : vector<16x16x40xf32>
    %129 = arith.addf %123, %128 : vector<16x16x40xf32>
    %130 = vector.extract_strided_slice %117 {offsets = [0, 4, 0], sizes = [16, 16, 40], strides = [1, 1, 1]} : vector<16x20x40xf32> to vector<16x16x40xf32>
    %c1_144 = arith.constant 1 : index
    %c5_145 = arith.constant 5 : index
    %c0_146 = arith.constant 0 : index
    %c0_147 = arith.constant 0 : index
    %c0_148 = arith.constant 0 : index
    %131 = vector.load %arg2[%c1_144, %c5_145, %c0_146, %c0_147, %c0_148] : memref<4x9x1x1x40xf32, #tpu.memory_space<vmem>>, vector<1x1x1x1x40xf32>
    %132 = vector.shape_cast %131 : vector<1x1x1x1x40xf32> to vector<1x1x40xf32>
    %133 = vector.broadcast %132 : vector<1x1x40xf32> to vector<16x16x40xf32>
    %134 = arith.mulf %130, %133 : vector<16x16x40xf32>
    %135 = arith.addf %129, %134 : vector<16x16x40xf32>
    %c4_149 = arith.constant 4 : index
    %c0_150 = arith.constant 0 : index
    %c0_151 = arith.constant 0 : index
    %136 = vector.load %arg6[%c4_149, %c0_150, %c0_151] : memref<28x28x40xf32, #tpu.memory_space<vmem>>, vector<16x20x40xf32>
    %137 = vector.extract_strided_slice %136 {offsets = [0, 0, 0], sizes = [16, 16, 40], strides = [1, 1, 1]} : vector<16x20x40xf32> to vector<16x16x40xf32>
    %c1_152 = arith.constant 1 : index
    %c6_153 = arith.constant 6 : index
    %c0_154 = arith.constant 0 : index
    %c0_155 = arith.constant 0 : index
    %c0_156 = arith.constant 0 : index
    %138 = vector.load %arg2[%c1_152, %c6_153, %c0_154, %c0_155, %c0_156] : memref<4x9x1x1x40xf32, #tpu.memory_space<vmem>>, vector<1x1x1x1x40xf32>
    %139 = vector.shape_cast %138 : vector<1x1x1x1x40xf32> to vector<1x1x40xf32>
    %140 = vector.broadcast %139 : vector<1x1x40xf32> to vector<16x16x40xf32>
    %141 = arith.mulf %137, %140 : vector<16x16x40xf32>
    %142 = arith.addf %135, %141 : vector<16x16x40xf32>
    %143 = vector.extract_strided_slice %136 {offsets = [0, 2, 0], sizes = [16, 16, 40], strides = [1, 1, 1]} : vector<16x20x40xf32> to vector<16x16x40xf32>
    %c1_157 = arith.constant 1 : index
    %c7_158 = arith.constant 7 : index
    %c0_159 = arith.constant 0 : index
    %c0_160 = arith.constant 0 : index
    %c0_161 = arith.constant 0 : index
    %144 = vector.load %arg2[%c1_157, %c7_158, %c0_159, %c0_160, %c0_161] : memref<4x9x1x1x40xf32, #tpu.memory_space<vmem>>, vector<1x1x1x1x40xf32>
    %145 = vector.shape_cast %144 : vector<1x1x1x1x40xf32> to vector<1x1x40xf32>
    %146 = vector.broadcast %145 : vector<1x1x40xf32> to vector<16x16x40xf32>
    %147 = arith.mulf %143, %146 : vector<16x16x40xf32>
    %148 = arith.addf %142, %147 : vector<16x16x40xf32>
    %149 = vector.extract_strided_slice %136 {offsets = [0, 4, 0], sizes = [16, 16, 40], strides = [1, 1, 1]} : vector<16x20x40xf32> to vector<16x16x40xf32>
    %c1_162 = arith.constant 1 : index
    %c8_163 = arith.constant 8 : index
    %c0_164 = arith.constant 0 : index
    %c0_165 = arith.constant 0 : index
    %c0_166 = arith.constant 0 : index
    %150 = vector.load %arg2[%c1_162, %c8_163, %c0_164, %c0_165, %c0_166] : memref<4x9x1x1x40xf32, #tpu.memory_space<vmem>>, vector<1x1x1x1x40xf32>
    %151 = vector.shape_cast %150 : vector<1x1x1x1x40xf32> to vector<1x1x40xf32>
    %152 = vector.broadcast %151 : vector<1x1x40xf32> to vector<16x16x40xf32>
    %153 = arith.mulf %149, %152 : vector<16x16x40xf32>
    %154 = arith.addf %148, %153 : vector<16x16x40xf32>
    %c1_167 = arith.constant 1 : index
    %c0_168 = arith.constant 0 : index
    %c0_169 = arith.constant 0 : index
    %c0_170 = arith.constant 0 : index
    %155 = vector.load %arg4[%c1_167, %c0_168, %c0_169, %c0_170] : memref<4x1x1x40xf32, #tpu.memory_space<vmem>>, vector<1x1x1x40xf32>
    %156 = vector.shape_cast %155 : vector<1x1x1x40xf32> to vector<1x1x40xf32>
    %cst_171 = arith.constant 0.000000e+00 : f32
    %157 = vector.broadcast %cst_171 : f32 to vector<16x16x40xf32>
    %158 = arith.cmpf oge, %154, %157 : vector<16x16x40xf32>
    %159 = vector.broadcast %156 : vector<1x1x40xf32> to vector<16x16x40xf32>
    %160 = arith.mulf %154, %159 : vector<16x16x40xf32>
    %161 = arith.select %158, %154, %160 : vector<16x16x40xi1>, vector<16x16x40xf32>
    %c0_172 = arith.constant 0 : index
    %c1_173 = arith.constant 1 : index
    %c0_174 = arith.constant 0 : index
    %c0_175 = arith.constant 0 : index
    %c0_176 = arith.constant 0 : index
    %162 = vector.load %arg5[%c0_172, %c1_173, %c0_174, %c0_175, %c0_176] : memref<1x4x16x16x40xf32, #tpu.memory_space<vmem>>, vector<1x1x16x16x40xf32>
    %163 = vector.shape_cast %162 : vector<1x1x16x16x40xf32> to vector<16x16x40xf32>
    %164 = vector.shape_cast %161 : vector<16x16x40xf32> to vector<1x1x16x16x40xf32>
    tpu.vector_store %arg5[%c0_172, %c1_173, %c0_174, %c0_175, %c0_176], %164 {strides = array<i32>} : memref<1x4x16x16x40xf32, #tpu.memory_space<vmem>>, vector<1x1x16x16x40xf32>,
    %c0_177 = arith.constant 0 : index
    %c2_178 = arith.constant 2 : index
    %c0_179 = arith.constant 0 : index
    %c0_180 = arith.constant 0 : index
    %c0_181 = arith.constant 0 : index
    %165 = vector.load %arg1[%c0_177, %c2_178, %c0_179, %c0_180, %c0_181] : memref<1x4x16x16x40xf32, #tpu.memory_space<vmem>>, vector<1x1x16x16x40xf32>
    %166 = vector.shape_cast %165 : vector<1x1x16x16x40xf32> to vector<16x16x40xf32>
    %c0_182 = arith.constant 0 : index
    %c1_183 = arith.constant 1 : index
    %c0_184 = arith.constant 0 : index
    %c0_185 = arith.constant 0 : index
    %c0_186 = arith.constant 0 : index
    %167 = vector.load %arg5[%c0_182, %c1_183, %c0_184, %c0_185, %c0_186] : memref<1x4x16x16x40xf32, #tpu.memory_space<vmem>>, vector<1x1x16x16x40xf32>
    %168 = vector.shape_cast %167 : vector<1x1x16x16x40xf32> to vector<16x16x40xf32>
    %169 = arith.addf %166, %168 : vector<16x16x40xf32>
    %cst_187 = arith.constant 0.000000e+00 : f32
    %170 = vector.broadcast %cst_187 : f32 to vector<4x24x40xf32>
    %c0_188 = arith.constant 0 : index
    %c0_189 = arith.constant 0 : index
    %c0_190 = arith.constant 0 : index
    %171 = vector.load %arg6[%c0_188, %c0_189, %c0_190] : memref<28x28x40xf32, #tpu.memory_space<vmem>>, vector<4x24x40xf32>
    tpu.vector_store %arg6[%c0_188, %c0_189, %c0_190], %170 {strides = array<i32>} : memref<28x28x40xf32, #tpu.memory_space<vmem>>, vector<4x24x40xf32>,
    %cst_191 = arith.constant 0.000000e+00 : f32
    %172 = vector.broadcast %cst_191 : f32 to vector<4x24x40xf32>
    %c20 = arith.constant 20 : index
    %c0_192 = arith.constant 0 : index
    %c0_193 = arith.constant 0 : index
    %173 = vector.load %arg6[%c20, %c0_192, %c0_193] : memref<28x28x40xf32, #tpu.memory_space<vmem>>, vector<4x24x40xf32>
    tpu.vector_store %arg6[%c20, %c0_192, %c0_193], %172 {strides = array<i32>} : memref<28x28x40xf32, #tpu.memory_space<vmem>>, vector<4x24x40xf32>,
    %cst_194 = arith.constant 0.000000e+00 : f32
    %174 = vector.broadcast %cst_194 : f32 to vector<16x4x40xf32>
    %c4_195 = arith.constant 4 : index
    %c0_196 = arith.constant 0 : index
    %c0_197 = arith.constant 0 : index
    %175 = vector.load %arg6[%c4_195, %c0_196, %c0_197] : memref<28x28x40xf32, #tpu.memory_space<vmem>>, vector<16x4x40xf32>
    tpu.vector_store %arg6[%c4_195, %c0_196, %c0_197], %174 {strides = array<i32>} : memref<28x28x40xf32, #tpu.memory_space<vmem>>, vector<16x4x40xf32>,
    %cst_198 = arith.constant 0.000000e+00 : f32
    %176 = vector.broadcast %cst_198 : f32 to vector<16x4x40xf32>
    %c4_199 = arith.constant 4 : index
    %c20_200 = arith.constant 20 : index
    %c0_201 = arith.constant 0 : index
    %177 = vector.load %arg6[%c4_199, %c20_200, %c0_201] : memref<28x28x40xf32, #tpu.memory_space<vmem>>, vector<16x4x40xf32>
    tpu.vector_store %arg6[%c4_199, %c20_200, %c0_201], %176 {strides = array<i32>} : memref<28x28x40xf32, #tpu.memory_space<vmem>>, vector<16x4x40xf32>,
    %c4_202 = arith.constant 4 : index
    %c4_203 = arith.constant 4 : index
    %c0_204 = arith.constant 0 : index
    %178 = vector.load %arg6[%c4_202, %c4_203, %c0_204] : memref<28x28x40xf32, #tpu.memory_space<vmem>>, vector<16x16x40xf32>
    tpu.vector_store %arg6[%c4_202, %c4_203, %c0_204], %169 {strides = array<i32>} : memref<28x28x40xf32, #tpu.memory_space<vmem>>, vector<16x16x40xf32>,
    %c2_205 = arith.constant 2 : index
    %c0_206 = arith.constant 0 : index
    %c0_207 = arith.constant 0 : index
    %c0_208 = arith.constant 0 : index
    %179 = vector.load %arg3[%c2_205, %c0_206, %c0_207, %c0_208] : memref<4x1x1x40xf32, #tpu.memory_space<vmem>>, vector<1x1x1x40xf32>
    %180 = vector.shape_cast %179 : vector<1x1x1x40xf32> to vector<1x1x40xf32>
    %c0_209 = arith.constant 0 : index
    %c0_210 = arith.constant 0 : index
    %c0_211 = arith.constant 0 : index
    %181 = vector.load %arg6[%c0_209, %c0_210, %c0_211] : memref<28x28x40xf32, #tpu.memory_space<vmem>>, vector<16x24x40xf32>
    %182 = vector.extract_strided_slice %181 {offsets = [0, 0, 0], sizes = [16, 16, 40], strides = [1, 1, 1]} : vector<16x24x40xf32> to vector<16x16x40xf32>
    %c2_212 = arith.constant 2 : index
    %c0_213 = arith.constant 0 : index
    %c0_214 = arith.constant 0 : index
    %c0_215 = arith.constant 0 : index
    %c0_216 = arith.constant 0 : index
    %183 = vector.load %arg2[%c2_212, %c0_213, %c0_214, %c0_215, %c0_216] : memref<4x9x1x1x40xf32, #tpu.memory_space<vmem>>, vector<1x1x1x1x40xf32>
    %184 = vector.shape_cast %183 : vector<1x1x1x1x40xf32> to vector<1x1x40xf32>
    %185 = vector.broadcast %184 : vector<1x1x40xf32> to vector<16x16x40xf32>
    %186 = arith.mulf %182, %185 : vector<16x16x40xf32>
    %187 = vector.broadcast %180 : vector<1x1x40xf32> to vector<16x16x40xf32>
    %188 = arith.addf %186, %187 : vector<16x16x40xf32>
    %189 = vector.extract_strided_slice %181 {offsets = [0, 4, 0], sizes = [16, 16, 40], strides = [1, 1, 1]} : vector<16x24x40xf32> to vector<16x16x40xf32>
    %c2_217 = arith.constant 2 : index
    %c1_218 = arith.constant 1 : index
    %c0_219 = arith.constant 0 : index
    %c0_220 = arith.constant 0 : index
    %c0_221 = arith.constant 0 : index
    %190 = vector.load %arg2[%c2_217, %c1_218, %c0_219, %c0_220, %c0_221] : memref<4x9x1x1x40xf32, #tpu.memory_space<vmem>>, vector<1x1x1x1x40xf32>
    %191 = vector.shape_cast %190 : vector<1x1x1x1x40xf32> to vector<1x1x40xf32>
    %192 = vector.broadcast %191 : vector<1x1x40xf32> to vector<16x16x40xf32>
    %193 = arith.mulf %189, %192 : vector<16x16x40xf32>
    %194 = arith.addf %188, %193 : vector<16x16x40xf32>
    %195 = vector.extract_strided_slice %181 {offsets = [0, 8, 0], sizes = [16, 16, 40], strides = [1, 1, 1]} : vector<16x24x40xf32> to vector<16x16x40xf32>
    %c2_222 = arith.constant 2 : index
    %c2_223 = arith.constant 2 : index
    %c0_224 = arith.constant 0 : index
    %c0_225 = arith.constant 0 : index
    %c0_226 = arith.constant 0 : index
    %196 = vector.load %arg2[%c2_222, %c2_223, %c0_224, %c0_225, %c0_226] : memref<4x9x1x1x40xf32, #tpu.memory_space<vmem>>, vector<1x1x1x1x40xf32>
    %197 = vector.shape_cast %196 : vector<1x1x1x1x40xf32> to vector<1x1x40xf32>
    %198 = vector.broadcast %197 : vector<1x1x40xf32> to vector<16x16x40xf32>
    %199 = arith.mulf %195, %198 : vector<16x16x40xf32>
    %200 = arith.addf %194, %199 : vector<16x16x40xf32>
    %c4_227 = arith.constant 4 : index
    %c0_228 = arith.constant 0 : index
    %c0_229 = arith.constant 0 : index
    %201 = vector.load %arg6[%c4_227, %c0_228, %c0_229] : memref<28x28x40xf32, #tpu.memory_space<vmem>>, vector<16x24x40xf32>
    %202 = vector.extract_strided_slice %201 {offsets = [0, 0, 0], sizes = [16, 16, 40], strides = [1, 1, 1]} : vector<16x24x40xf32> to vector<16x16x40xf32>
    %c2_230 = arith.constant 2 : index
    %c3_231 = arith.constant 3 : index
    %c0_232 = arith.constant 0 : index
    %c0_233 = arith.constant 0 : index
    %c0_234 = arith.constant 0 : index
    %203 = vector.load %arg2[%c2_230, %c3_231, %c0_232, %c0_233, %c0_234] : memref<4x9x1x1x40xf32, #tpu.memory_space<vmem>>, vector<1x1x1x1x40xf32>
    %204 = vector.shape_cast %203 : vector<1x1x1x1x40xf32> to vector<1x1x40xf32>
    %205 = vector.broadcast %204 : vector<1x1x40xf32> to vector<16x16x40xf32>
    %206 = arith.mulf %202, %205 : vector<16x16x40xf32>
    %207 = arith.addf %200, %206 : vector<16x16x40xf32>
    %208 = vector.extract_strided_slice %201 {offsets = [0, 4, 0], sizes = [16, 16, 40], strides = [1, 1, 1]} : vector<16x24x40xf32> to vector<16x16x40xf32>
    %c2_235 = arith.constant 2 : index
    %c4_236 = arith.constant 4 : index
    %c0_237 = arith.constant 0 : index
    %c0_238 = arith.constant 0 : index
    %c0_239 = arith.constant 0 : index
    %209 = vector.load %arg2[%c2_235, %c4_236, %c0_237, %c0_238, %c0_239] : memref<4x9x1x1x40xf32, #tpu.memory_space<vmem>>, vector<1x1x1x1x40xf32>
    %210 = vector.shape_cast %209 : vector<1x1x1x1x40xf32> to vector<1x1x40xf32>
    %211 = vector.broadcast %210 : vector<1x1x40xf32> to vector<16x16x40xf32>
    %212 = arith.mulf %208, %211 : vector<16x16x40xf32>
    %213 = arith.addf %207, %212 : vector<16x16x40xf32>
    %214 = vector.extract_strided_slice %201 {offsets = [0, 8, 0], sizes = [16, 16, 40], strides = [1, 1, 1]} : vector<16x24x40xf32> to vector<16x16x40xf32>
    %c2_240 = arith.constant 2 : index
    %c5_241 = arith.constant 5 : index
    %c0_242 = arith.constant 0 : index
    %c0_243 = arith.constant 0 : index
    %c0_244 = arith.constant 0 : index
    %215 = vector.load %arg2[%c2_240, %c5_241, %c0_242, %c0_243, %c0_244] : memref<4x9x1x1x40xf32, #tpu.memory_space<vmem>>, vector<1x1x1x1x40xf32>
    %216 = vector.shape_cast %215 : vector<1x1x1x1x40xf32> to vector<1x1x40xf32>
    %217 = vector.broadcast %216 : vector<1x1x40xf32> to vector<16x16x40xf32>
    %218 = arith.mulf %214, %217 : vector<16x16x40xf32>
    %219 = arith.addf %213, %218 : vector<16x16x40xf32>
    %c8_245 = arith.constant 8 : index
    %c0_246 = arith.constant 0 : index
    %c0_247 = arith.constant 0 : index
    %220 = vector.load %arg6[%c8_245, %c0_246, %c0_247] : memref<28x28x40xf32, #tpu.memory_space<vmem>>, vector<16x24x40xf32>
    %221 = vector.extract_strided_slice %220 {offsets = [0, 0, 0], sizes = [16, 16, 40], strides = [1, 1, 1]} : vector<16x24x40xf32> to vector<16x16x40xf32>
    %c2_248 = arith.constant 2 : index
    %c6_249 = arith.constant 6 : index
    %c0_250 = arith.constant 0 : index
    %c0_251 = arith.constant 0 : index
    %c0_252 = arith.constant 0 : index
    %222 = vector.load %arg2[%c2_248, %c6_249, %c0_250, %c0_251, %c0_252] : memref<4x9x1x1x40xf32, #tpu.memory_space<vmem>>, vector<1x1x1x1x40xf32>
    %223 = vector.shape_cast %222 : vector<1x1x1x1x40xf32> to vector<1x1x40xf32>
    %224 = vector.broadcast %223 : vector<1x1x40xf32> to vector<16x16x40xf32>
    %225 = arith.mulf %221, %224 : vector<16x16x40xf32>
    %226 = arith.addf %219, %225 : vector<16x16x40xf32>
    %227 = vector.extract_strided_slice %220 {offsets = [0, 4, 0], sizes = [16, 16, 40], strides = [1, 1, 1]} : vector<16x24x40xf32> to vector<16x16x40xf32>
    %c2_253 = arith.constant 2 : index
    %c7_254 = arith.constant 7 : index
    %c0_255 = arith.constant 0 : index
    %c0_256 = arith.constant 0 : index
    %c0_257 = arith.constant 0 : index
    %228 = vector.load %arg2[%c2_253, %c7_254, %c0_255, %c0_256, %c0_257] : memref<4x9x1x1x40xf32, #tpu.memory_space<vmem>>, vector<1x1x1x1x40xf32>
    %229 = vector.shape_cast %228 : vector<1x1x1x1x40xf32> to vector<1x1x40xf32>
    %230 = vector.broadcast %229 : vector<1x1x40xf32> to vector<16x16x40xf32>
    %231 = arith.mulf %227, %230 : vector<16x16x40xf32>
    %232 = arith.addf %226, %231 : vector<16x16x40xf32>
    %233 = vector.extract_strided_slice %220 {offsets = [0, 8, 0], sizes = [16, 16, 40], strides = [1, 1, 1]} : vector<16x24x40xf32> to vector<16x16x40xf32>
    %c2_258 = arith.constant 2 : index
    %c8_259 = arith.constant 8 : index
    %c0_260 = arith.constant 0 : index
    %c0_261 = arith.constant 0 : index
    %c0_262 = arith.constant 0 : index
    %234 = vector.load %arg2[%c2_258, %c8_259, %c0_260, %c0_261, %c0_262] : memref<4x9x1x1x40xf32, #tpu.memory_space<vmem>>, vector<1x1x1x1x40xf32>
    %235 = vector.shape_cast %234 : vector<1x1x1x1x40xf32> to vector<1x1x40xf32>
    %236 = vector.broadcast %235 : vector<1x1x40xf32> to vector<16x16x40xf32>
    %237 = arith.mulf %233, %236 : vector<16x16x40xf32>
    %238 = arith.addf %232, %237 : vector<16x16x40xf32>
    %c2_263 = arith.constant 2 : index
    %c0_264 = arith.constant 0 : index
    %c0_265 = arith.constant 0 : index
    %c0_266 = arith.constant 0 : index
    %239 = vector.load %arg4[%c2_263, %c0_264, %c0_265, %c0_266] : memref<4x1x1x40xf32, #tpu.memory_space<vmem>>, vector<1x1x1x40xf32>
    %240 = vector.shape_cast %239 : vector<1x1x1x40xf32> to vector<1x1x40xf32>
    %cst_267 = arith.constant 0.000000e+00 : f32
    %241 = vector.broadcast %cst_267 : f32 to vector<16x16x40xf32>
    %242 = arith.cmpf oge, %238, %241 : vector<16x16x40xf32>
    %243 = vector.broadcast %240 : vector<1x1x40xf32> to vector<16x16x40xf32>
    %244 = arith.mulf %238, %243 : vector<16x16x40xf32>
    %245 = arith.select %242, %238, %244 : vector<16x16x40xi1>, vector<16x16x40xf32>
    %c0_268 = arith.constant 0 : index
    %c2_269 = arith.constant 2 : index
    %c0_270 = arith.constant 0 : index
    %c0_271 = arith.constant 0 : index
    %c0_272 = arith.constant 0 : index
    %246 = vector.load %arg5[%c0_268, %c2_269, %c0_270, %c0_271, %c0_272] : memref<1x4x16x16x40xf32, #tpu.memory_space<vmem>>, vector<1x1x16x16x40xf32>
    %247 = vector.shape_cast %246 : vector<1x1x16x16x40xf32> to vector<16x16x40xf32>
    %248 = vector.shape_cast %245 : vector<16x16x40xf32> to vector<1x1x16x16x40xf32>
    tpu.vector_store %arg5[%c0_268, %c2_269, %c0_270, %c0_271, %c0_272], %248 {strides = array<i32>} : memref<1x4x16x16x40xf32, #tpu.memory_space<vmem>>, vector<1x1x16x16x40xf32>,
    %c0_273 = arith.constant 0 : index
    %c3_274 = arith.constant 3 : index
    %c0_275 = arith.constant 0 : index
    %c0_276 = arith.constant 0 : index
    %c0_277 = arith.constant 0 : index
    %249 = vector.load %arg1[%c0_273, %c3_274, %c0_275, %c0_276, %c0_277] : memref<1x4x16x16x40xf32, #tpu.memory_space<vmem>>, vector<1x1x16x16x40xf32>
    %250 = vector.shape_cast %249 : vector<1x1x16x16x40xf32> to vector<16x16x40xf32>
    %c0_278 = arith.constant 0 : index
    %c2_279 = arith.constant 2 : index
    %c0_280 = arith.constant 0 : index
    %c0_281 = arith.constant 0 : index
    %c0_282 = arith.constant 0 : index
    %251 = vector.load %arg5[%c0_278, %c2_279, %c0_280, %c0_281, %c0_282] : memref<1x4x16x16x40xf32, #tpu.memory_space<vmem>>, vector<1x1x16x16x40xf32>
    %252 = vector.shape_cast %251 : vector<1x1x16x16x40xf32> to vector<16x16x40xf32>
    %253 = arith.addf %250, %252 : vector<16x16x40xf32>
    %cst_283 = arith.constant 0.000000e+00 : f32
    %254 = vector.broadcast %cst_283 : f32 to vector<6x28x40xf32>
    %c0_284 = arith.constant 0 : index
    %c0_285 = arith.constant 0 : index
    %c0_286 = arith.constant 0 : index
    %255 = vector.load %arg6[%c0_284, %c0_285, %c0_286] : memref<28x28x40xf32, #tpu.memory_space<vmem>>, vector<6x28x40xf32>
    tpu.vector_store %arg6[%c0_284, %c0_285, %c0_286], %254 {strides = array<i32>} : memref<28x28x40xf32, #tpu.memory_space<vmem>>, vector<6x28x40xf32>,
    %cst_287 = arith.constant 0.000000e+00 : f32
    %256 = vector.broadcast %cst_287 : f32 to vector<6x28x40xf32>
    %c22 = arith.constant 22 : index
    %c0_288 = arith.constant 0 : index
    %c0_289 = arith.constant 0 : index
    %257 = vector.load %arg6[%c22, %c0_288, %c0_289] : memref<28x28x40xf32, #tpu.memory_space<vmem>>, vector<6x28x40xf32>
    tpu.vector_store %arg6[%c22, %c0_288, %c0_289], %256 {strides = array<i32>} : memref<28x28x40xf32, #tpu.memory_space<vmem>>, vector<6x28x40xf32>,
    %cst_290 = arith.constant 0.000000e+00 : f32
    %258 = vector.broadcast %cst_290 : f32 to vector<16x6x40xf32>
    %c6_291 = arith.constant 6 : index
    %c0_292 = arith.constant 0 : index
    %c0_293 = arith.constant 0 : index
    %259 = vector.load %arg6[%c6_291, %c0_292, %c0_293] : memref<28x28x40xf32, #tpu.memory_space<vmem>>, vector<16x6x40xf32>
    tpu.vector_store %arg6[%c6_291, %c0_292, %c0_293], %258 {strides = array<i32>} : memref<28x28x40xf32, #tpu.memory_space<vmem>>, vector<16x6x40xf32>,
    %cst_294 = arith.constant 0.000000e+00 : f32
    %260 = vector.broadcast %cst_294 : f32 to vector<16x6x40xf32>
    %c6_295 = arith.constant 6 : index
    %c22_296 = arith.constant 22 : index
    %c0_297 = arith.constant 0 : index
    %261 = vector.load %arg6[%c6_295, %c22_296, %c0_297] : memref<28x28x40xf32, #tpu.memory_space<vmem>>, vector<16x6x40xf32>
    tpu.vector_store %arg6[%c6_295, %c22_296, %c0_297], %260 {strides = array<i32>} : memref<28x28x40xf32, #tpu.memory_space<vmem>>, vector<16x6x40xf32>,
    %c6_298 = arith.constant 6 : index
    %c6_299 = arith.constant 6 : index
    %c0_300 = arith.constant 0 : index
    %262 = vector.load %arg6[%c6_298, %c6_299, %c0_300] : memref<28x28x40xf32, #tpu.memory_space<vmem>>, vector<16x16x40xf32>
    tpu.vector_store %arg6[%c6_298, %c6_299, %c0_300], %253 {strides = array<i32>} : memref<28x28x40xf32, #tpu.memory_space<vmem>>, vector<16x16x40xf32>,
    %c3_301 = arith.constant 3 : index
    %c0_302 = arith.constant 0 : index
    %c0_303 = arith.constant 0 : index
    %c0_304 = arith.constant 0 : index
    %263 = vector.load %arg3[%c3_301, %c0_302, %c0_303, %c0_304] : memref<4x1x1x40xf32, #tpu.memory_space<vmem>>, vector<1x1x1x40xf32>
    %264 = vector.shape_cast %263 : vector<1x1x1x40xf32> to vector<1x1x40xf32>
    %c0_305 = arith.constant 0 : index
    %c0_306 = arith.constant 0 : index
    %c0_307 = arith.constant 0 : index
    %265 = vector.load %arg6[%c0_305, %c0_306, %c0_307] : memref<28x28x40xf32, #tpu.memory_space<vmem>>, vector<16x28x40xf32>
    %266 = vector.extract_strided_slice %265 {offsets = [0, 0, 0], sizes = [16, 16, 40], strides = [1, 1, 1]} : vector<16x28x40xf32> to vector<16x16x40xf32>
    %c3_308 = arith.constant 3 : index
    %c0_309 = arith.constant 0 : index
    %c0_310 = arith.constant 0 : index
    %c0_311 = arith.constant 0 : index
    %c0_312 = arith.constant 0 : index
    %267 = vector.load %arg2[%c3_308, %c0_309, %c0_310, %c0_311, %c0_312] : memref<4x9x1x1x40xf32, #tpu.memory_space<vmem>>, vector<1x1x1x1x40xf32>
    %268 = vector.shape_cast %267 : vector<1x1x1x1x40xf32> to vector<1x1x40xf32>
    %269 = vector.broadcast %268 : vector<1x1x40xf32> to vector<16x16x40xf32>
    %270 = arith.mulf %266, %269 : vector<16x16x40xf32>
    %271 = vector.broadcast %264 : vector<1x1x40xf32> to vector<16x16x40xf32>
    %272 = arith.addf %270, %271 : vector<16x16x40xf32>
    %273 = vector.extract_strided_slice %265 {offsets = [0, 6, 0], sizes = [16, 16, 40], strides = [1, 1, 1]} : vector<16x28x40xf32> to vector<16x16x40xf32>
    %c3_313 = arith.constant 3 : index
    %c1_314 = arith.constant 1 : index
    %c0_315 = arith.constant 0 : index
    %c0_316 = arith.constant 0 : index
    %c0_317 = arith.constant 0 : index
    %274 = vector.load %arg2[%c3_313, %c1_314, %c0_315, %c0_316, %c0_317] : memref<4x9x1x1x40xf32, #tpu.memory_space<vmem>>, vector<1x1x1x1x40xf32>
    %275 = vector.shape_cast %274 : vector<1x1x1x1x40xf32> to vector<1x1x40xf32>
    %276 = vector.broadcast %275 : vector<1x1x40xf32> to vector<16x16x40xf32>
    %277 = arith.mulf %273, %276 : vector<16x16x40xf32>
    %278 = arith.addf %272, %277 : vector<16x16x40xf32>
    %279 = vector.extract_strided_slice %265 {offsets = [0, 12, 0], sizes = [16, 16, 40], strides = [1, 1, 1]} : vector<16x28x40xf32> to vector<16x16x40xf32>
    %c3_318 = arith.constant 3 : index
    %c2_319 = arith.constant 2 : index
    %c0_320 = arith.constant 0 : index
    %c0_321 = arith.constant 0 : index
    %c0_322 = arith.constant 0 : index
    %280 = vector.load %arg2[%c3_318, %c2_319, %c0_320, %c0_321, %c0_322] : memref<4x9x1x1x40xf32, #tpu.memory_space<vmem>>, vector<1x1x1x1x40xf32>
    %281 = vector.shape_cast %280 : vector<1x1x1x1x40xf32> to vector<1x1x40xf32>
    %282 = vector.broadcast %281 : vector<1x1x40xf32> to vector<16x16x40xf32>
    %283 = arith.mulf %279, %282 : vector<16x16x40xf32>
    %284 = arith.addf %278, %283 : vector<16x16x40xf32>
    %c6_323 = arith.constant 6 : index
    %c0_324 = arith.constant 0 : index
    %c0_325 = arith.constant 0 : index
    %285 = vector.load %arg6[%c6_323, %c0_324, %c0_325] : memref<28x28x40xf32, #tpu.memory_space<vmem>>, vector<16x28x40xf32>
    %286 = vector.extract_strided_slice %285 {offsets = [0, 0, 0], sizes = [16, 16, 40], strides = [1, 1, 1]} : vector<16x28x40xf32> to vector<16x16x40xf32>
    %c3_326 = arith.constant 3 : index
    %c3_327 = arith.constant 3 : index
    %c0_328 = arith.constant 0 : index
    %c0_329 = arith.constant 0 : index
    %c0_330 = arith.constant 0 : index
    %287 = vector.load %arg2[%c3_326, %c3_327, %c0_328, %c0_329, %c0_330] : memref<4x9x1x1x40xf32, #tpu.memory_space<vmem>>, vector<1x1x1x1x40xf32>
    %288 = vector.shape_cast %287 : vector<1x1x1x1x40xf32> to vector<1x1x40xf32>
    %289 = vector.broadcast %288 : vector<1x1x40xf32> to vector<16x16x40xf32>
    %290 = arith.mulf %286, %289 : vector<16x16x40xf32>
    %291 = arith.addf %284, %290 : vector<16x16x40xf32>
    %292 = vector.extract_strided_slice %285 {offsets = [0, 6, 0], sizes = [16, 16, 40], strides = [1, 1, 1]} : vector<16x28x40xf32> to vector<16x16x40xf32>
    %c3_331 = arith.constant 3 : index
    %c4_332 = arith.constant 4 : index
    %c0_333 = arith.constant 0 : index
    %c0_334 = arith.constant 0 : index
    %c0_335 = arith.constant 0 : index
    %293 = vector.load %arg2[%c3_331, %c4_332, %c0_333, %c0_334, %c0_335] : memref<4x9x1x1x40xf32, #tpu.memory_space<vmem>>, vector<1x1x1x1x40xf32>
    %294 = vector.shape_cast %293 : vector<1x1x1x1x40xf32> to vector<1x1x40xf32>
    %295 = vector.broadcast %294 : vector<1x1x40xf32> to vector<16x16x40xf32>
    %296 = arith.mulf %292, %295 : vector<16x16x40xf32>
    %297 = arith.addf %291, %296 : vector<16x16x40xf32>
    %298 = vector.extract_strided_slice %285 {offsets = [0, 12, 0], sizes = [16, 16, 40], strides = [1, 1, 1]} : vector<16x28x40xf32> to vector<16x16x40xf32>
    %c3_336 = arith.constant 3 : index
    %c5_337 = arith.constant 5 : index
    %c0_338 = arith.constant 0 : index
    %c0_339 = arith.constant 0 : index
    %c0_340 = arith.constant 0 : index
    %299 = vector.load %arg2[%c3_336, %c5_337, %c0_338, %c0_339, %c0_340] : memref<4x9x1x1x40xf32, #tpu.memory_space<vmem>>, vector<1x1x1x1x40xf32>
    %300 = vector.shape_cast %299 : vector<1x1x1x1x40xf32> to vector<1x1x40xf32>
    %301 = vector.broadcast %300 : vector<1x1x40xf32> to vector<16x16x40xf32>
    %302 = arith.mulf %298, %301 : vector<16x16x40xf32>
    %303 = arith.addf %297, %302 : vector<16x16x40xf32>
    %c12 = arith.constant 12 : index
    %c0_341 = arith.constant 0 : index
    %c0_342 = arith.constant 0 : index
    %304 = vector.load %arg6[%c12, %c0_341, %c0_342] : memref<28x28x40xf32, #tpu.memory_space<vmem>>, vector<16x28x40xf32>
    %305 = vector.extract_strided_slice %304 {offsets = [0, 0, 0], sizes = [16, 16, 40], strides = [1, 1, 1]} : vector<16x28x40xf32> to vector<16x16x40xf32>
    %c3_343 = arith.constant 3 : index
    %c6_344 = arith.constant 6 : index
    %c0_345 = arith.constant 0 : index
    %c0_346 = arith.constant 0 : index
    %c0_347 = arith.constant 0 : index
    %306 = vector.load %arg2[%c3_343, %c6_344, %c0_345, %c0_346, %c0_347] : memref<4x9x1x1x40xf32, #tpu.memory_space<vmem>>, vector<1x1x1x1x40xf32>
    %307 = vector.shape_cast %306 : vector<1x1x1x1x40xf32> to vector<1x1x40xf32>
    %308 = vector.broadcast %307 : vector<1x1x40xf32> to vector<16x16x40xf32>
    %309 = arith.mulf %305, %308 : vector<16x16x40xf32>
    %310 = arith.addf %303, %309 : vector<16x16x40xf32>
    %311 = vector.extract_strided_slice %304 {offsets = [0, 6, 0], sizes = [16, 16, 40], strides = [1, 1, 1]} : vector<16x28x40xf32> to vector<16x16x40xf32>
    %c3_348 = arith.constant 3 : index
    %c7_349 = arith.constant 7 : index
    %c0_350 = arith.constant 0 : index
    %c0_351 = arith.constant 0 : index
    %c0_352 = arith.constant 0 : index
    %312 = vector.load %arg2[%c3_348, %c7_349, %c0_350, %c0_351, %c0_352] : memref<4x9x1x1x40xf32, #tpu.memory_space<vmem>>, vector<1x1x1x1x40xf32>
    %313 = vector.shape_cast %312 : vector<1x1x1x1x40xf32> to vector<1x1x40xf32>
    %314 = vector.broadcast %313 : vector<1x1x40xf32> to vector<16x16x40xf32>
    %315 = arith.mulf %311, %314 : vector<16x16x40xf32>
    %316 = arith.addf %310, %315 : vector<16x16x40xf32>
    %317 = vector.extract_strided_slice %304 {offsets = [0, 12, 0], sizes = [16, 16, 40], strides = [1, 1, 1]} : vector<16x28x40xf32> to vector<16x16x40xf32>
    %c3_353 = arith.constant 3 : index
    %c8_354 = arith.constant 8 : index
    %c0_355 = arith.constant 0 : index
    %c0_356 = arith.constant 0 : index
    %c0_357 = arith.constant 0 : index
    %318 = vector.load %arg2[%c3_353, %c8_354, %c0_355, %c0_356, %c0_357] : memref<4x9x1x1x40xf32, #tpu.memory_space<vmem>>, vector<1x1x1x1x40xf32>
    %319 = vector.shape_cast %318 : vector<1x1x1x1x40xf32> to vector<1x1x40xf32>
    %320 = vector.broadcast %319 : vector<1x1x40xf32> to vector<16x16x40xf32>
    %321 = arith.mulf %317, %320 : vector<16x16x40xf32>
    %322 = arith.addf %316, %321 : vector<16x16x40xf32>
    %c3_358 = arith.constant 3 : index
    %c0_359 = arith.constant 0 : index
    %c0_360 = arith.constant 0 : index
    %c0_361 = arith.constant 0 : index
    %323 = vector.load %arg4[%c3_358, %c0_359, %c0_360, %c0_361] : memref<4x1x1x40xf32, #tpu.memory_space<vmem>>, vector<1x1x1x40xf32>
    %324 = vector.shape_cast %323 : vector<1x1x1x40xf32> to vector<1x1x40xf32>
    %cst_362 = arith.constant 0.000000e+00 : f32
    %325 = vector.broadcast %cst_362 : f32 to vector<16x16x40xf32>
    %326 = arith.cmpf oge, %322, %325 : vector<16x16x40xf32>
    %327 = vector.broadcast %324 : vector<1x1x40xf32> to vector<16x16x40xf32>
    %328 = arith.mulf %322, %327 : vector<16x16x40xf32>
    %329 = arith.select %326, %322, %328 : vector<16x16x40xi1>, vector<16x16x40xf32>
    %c0_363 = arith.constant 0 : index
    %c3_364 = arith.constant 3 : index
    %c0_365 = arith.constant 0 : index
    %c0_366 = arith.constant 0 : index
    %c0_367 = arith.constant 0 : index
    %330 = vector.load %arg5[%c0_363, %c3_364, %c0_365, %c0_366, %c0_367] : memref<1x4x16x16x40xf32, #tpu.memory_space<vmem>>, vector<1x1x16x16x40xf32>
    %331 = vector.shape_cast %330 : vector<1x1x16x16x40xf32> to vector<16x16x40xf32>
    %332 = vector.shape_cast %329 : vector<16x16x40xf32> to vector<1x1x16x16x40xf32>
    tpu.vector_store %arg5[%c0_363, %c3_364, %c0_365, %c0_366, %c0_367], %332 {strides = array<i32>} : memref<1x4x16x16x40xf32, #tpu.memory_space<vmem>>, vector<1x1x16x16x40xf32>,
    return
  }
  func.func @transform_0(%arg0: i32) -> (i32, i32, i32, i32, i32) {
    %c0_i32 = arith.constant 0 : i32
    %c0_i32_0 = arith.constant 0 : i32
    %c0_i32_1 = arith.constant 0 : i32
    %c0_i32_2 = arith.constant 0 : i32
    %c0_i32_3 = arith.constant 0 : i32
    return %arg0, %c0_i32, %c0_i32_0, %c0_i32_1, %c0_i32_2 : i32, i32, i32, i32, i32
  }
  func.func @transform_1(%arg0: i32) -> (i32, i32, i32, i32, i32) {
    %c0_i32 = arith.constant 0 : i32
    %c0_i32_0 = arith.constant 0 : i32
    %c0_i32_1 = arith.constant 0 : i32
    %c0_i32_2 = arith.constant 0 : i32
    %c0_i32_3 = arith.constant 0 : i32
    %c0_i32_4 = arith.constant 0 : i32
    return %c0_i32, %c0_i32_0, %c0_i32_1, %c0_i32_2, %c0_i32_3 : i32, i32, i32, i32, i32
  }
  func.func @transform_2(%arg0: i32) -> (i32, i32, i32, i32) {
    %c0_i32 = arith.constant 0 : i32
    %c0_i32_0 = arith.constant 0 : i32
    %c0_i32_1 = arith.constant 0 : i32
    %c0_i32_2 = arith.constant 0 : i32
    %c0_i32_3 = arith.constant 0 : i32
    return %c0_i32, %c0_i32_0, %c0_i32_1, %c0_i32_2 : i32, i32, i32, i32
  }
  func.func @transform_3(%arg0: i32) -> (i32, i32, i32, i32) {
    %c0_i32 = arith.constant 0 : i32
    %c0_i32_0 = arith.constant 0 : i32
    %c0_i32_1 = arith.constant 0 : i32
    %c0_i32_2 = arith.constant 0 : i32
    %c0_i32_3 = arith.constant 0 : i32
    return %c0_i32, %c0_i32_0, %c0_i32_1, %c0_i32_2 : i32, i32, i32, i32
  }
  func.func @transform_4(%arg0: i32) -> (i32, i32, i32, i32, i32) {
    %c0_i32 = arith.constant 0 : i32
    %c0_i32_0 = arith.constant 0 : i32
    %c0_i32_1 = arith.constant 0 : i32
    %c0_i32_2 = arith.constant 0 : i32
    %c0_i32_3 = arith.constant 0 : i32
    return %arg0, %c0_i32, %c0_i32_0, %c0_i32_1, %c0_i32_2 : i32, i32, i32, i32, i32
  }
}

</mosaic_0001>

<llo_original>
// kernel: pyramid_conv.1
$region0: #{pyramid_conv.1}
  #allocation0 [shape = 'u32[]', space=smem, size = 0x4, offset = 0x4, fixed_abs, tag = 'smem constant byte address 0x4 - core index']
  #allocation1 [shape = 'u32[144,128]{1,0:T(1,128)}', space=vmem, size = 0x12000, scoped, tag = 'internal scratch']
  #allocation2 [shape = 'f32[28,28,40]{2,1,0:T(8,128)}', space=vmem, size = 0x70000, scoped, tag = 'scratch operand']
  %s0 = inlined_call_operand.vmem [shape: f32[2,4,16,16,40], index: 0, kind: input, shape index: {}]
  %s1 = inlined_call_operand.vmem [shape: f32[4,9,1,1,40], index: 1, kind: input, shape index: {}]
  %s2 = inlined_call_operand.vmem [shape: f32[4,1,1,40], index: 2, kind: input, shape index: {}]
  %s3 = inlined_call_operand.vmem [shape: f32[4,1,1,40], index: 3, kind: input, shape index: {}]
  %s4 = inlined_call_operand.vmem [shape: f32[2,4,16,16,40], index: 4, kind: output, shape index: {}]
  %s5 = sld [smem:[#allocation0]]
  $region49: #{pyramid_conv.1} parent=0
    _
  %s7 = ssub.s32 1, %s5
  %s8 = scalar_select 0, %s7, %s5
  loop: start=0, step=1, limit=4
  $region2: #{pyramid_conv.1} parent=0 // loop_pre_header
    _
  $region3: #{pyramid_conv.1} parent=0 // loop_header
    %s10 = sphi 0, %s14
    %p11 = scmp.ge.s32.totalorder %s10, 4
    %s20 = sphi 0, %s22
    %s23 = sphi 0, %s20
    %s24 = sphi 0, %s23
    %s40 = sphi 0, %s24
    %s44 = sphi 0, %s44
    %s46 = sphi 0, %s44
    %s47 = sphi 0, %s46
    %s61 = sphi 0, %s47
    %s65 = sphi 0, %s65
    %s67 = sphi 0, %s65
    %s68 = sphi 0, %s67
    %s82 = sphi 0, %s68
    %s86 = sphi 0, %s86
    %s88 = sphi 0, %s86
    %s89 = sphi 0, %s88
    %s103 = sphi 0, %s89
    %s109 = sphi 0, %s111
    %s112 = sphi 0, %s109
    %s113 = sphi 0, %s112
    %s129 = sphi 0, %s113
  $region4: #{pyramid_conv.1} parent=0 // loop_header_branch
    %13 = sbr.rel (%p11) target = $region8
  $region5: #{pyramid_conv.1} parent=0 // loop_body
    %s15 = ssub.s32 %s10, 1
    %s16 = ssub.s32 %s10, 2
    %s17 = sadd.s32 %s10, 1
    %s18 = ssub.s32 %s10, %s17
    %p19 = scmp.eq.s32.totalorder %s18, 0
    %s21 = sadd.s32 %s20, 1
    %s22 = scalar_select %p19, %s20, %s21
    %p25 = pneg %p19
    %p26 = scmp.eq.s32.totalorder %s10, 1
    %p27 = por %p25, %p26
    %p28 = scmp.ne.s32.totalorder %s20, %s23
    %p29 = scmp.eq.s32.totalorder %s10, 0
    %p30 = por %p28, %p29
    %p31 = scmp.ne.s32.totalorder %s20, %s23
    %p32 = scmp.eq.s32.totalorder %s15, 1
    %p33 = por %p31, %p32
    %p34 = scmp.ne.s32.totalorder %s23, %s24
    %p35 = scmp.eq.s32.totalorder %s15, 0
    %p36 = por %p34, %p35
    %p37 = scmp.ne.s32.totalorder %s23, %s24
    %p38 = scmp.eq.s32.totalorder %s16, 1
    %p39 = por %p37, %p38
    %p41 = scmp.ne.s32.totalorder %s24, %s40
    %p42 = scmp.eq.s32.totalorder %s16, 0
    %p43 = por %p41, %p42
    %s45 = sadd.s32 %s44, 1
    %p48 = scmp.eq.s32.totalorder %s10, 1
    %p49 = scmp.ne.s32.totalorder %s44, %s46
    %p50 = scmp.eq.s32.totalorder %s10, 0
    %p51 = por %p49, %p50
    %p52 = scmp.ne.s32.totalorder %s44, %s46
    %p53 = scmp.eq.s32.totalorder %s15, 1
    %p54 = por %p52, %p53
    %p55 = scmp.ne.s32.totalorder %s46, %s47
    %p56 = scmp.eq.s32.totalorder %s15, 0
    %p57 = por %p55, %p56
    %p58 = scmp.ne.s32.totalorder %s46, %s47
    %p59 = scmp.eq.s32.totalorder %s16, 1
    %p60 = por %p58, %p59
    %p62 = scmp.ne.s32.totalorder %s47, %s61
    %p63 = scmp.eq.s32.totalorder %s16, 0
    %p64 = por %p62, %p63
    %s66 = sadd.s32 %s65, 1
    %p69 = scmp.eq.s32.totalorder %s10, 1
    %p70 = scmp.ne.s32.totalorder %s65, %s67
    %p71 = scmp.eq.s32.totalorder %s10, 0
    %p72 = por %p70, %p71
    %p73 = scmp.ne.s32.totalorder %s65, %s67
    %p74 = scmp.eq.s32.totalorder %s15, 1
    %p75 = por %p73, %p74
    %p76 = scmp.ne.s32.totalorder %s67, %s68
    %p77 = scmp.eq.s32.totalorder %s15, 0
    %p78 = por %p76, %p77
    %p79 = scmp.ne.s32.totalorder %s67, %s68
    %p80 = scmp.eq.s32.totalorder %s16, 1
    %p81 = por %p79, %p80
    %p83 = scmp.ne.s32.totalorder %s68, %s82
    %p84 = scmp.eq.s32.totalorder %s16, 0
    %p85 = por %p83, %p84
    %s87 = sadd.s32 %s86, 1
    %p90 = scmp.eq.s32.totalorder %s10, 1
    %p91 = scmp.ne.s32.totalorder %s86, %s88
    %p92 = scmp.eq.s32.totalorder %s10, 0
    %p93 = por %p91, %p92
    %p94 = scmp.ne.s32.totalorder %s86, %s88
    %p95 = scmp.eq.s32.totalorder %s15, 1
    %p96 = por %p94, %p95
    %p97 = scmp.ne.s32.totalorder %s88, %s89
    %p98 = scmp.eq.s32.totalorder %s15, 0
    %p99 = por %p97, %p98
    %p100 = scmp.ne.s32.totalorder %s88, %s89
    %p101 = scmp.eq.s32.totalorder %s16, 1
    %p102 = por %p100, %p101
    %p104 = scmp.ne.s32.totalorder %s89, %s103
    %p105 = scmp.eq.s32.totalorder %s16, 0
    %p106 = por %p104, %p105
    %s107 = ssub.s32 %s10, %s17
    %p108 = scmp.eq.s32.totalorder %s107, 0
    %s110 = sadd.s32 %s109, 1
    %s111 = scalar_select %p108, %s109, %s110
    %p114 = pneg %p108
    %p115 = scmp.eq.s32.totalorder %s10, 1
    %p116 = por %p114, %p115
    %p117 = scmp.ne.s32.totalorder %s109, %s112
    %p118 = scmp.eq.s32.totalorder %s10, 0
    %p119 = por %p117, %p118
    %p120 = scmp.ne.s32.totalorder %s109, %s112
    %p121 = scmp.eq.s32.totalorder %s15, 1
    %p122 = por %p120, %p121
    %p123 = scmp.ne.s32.totalorder %s112, %s113
    %p124 = scmp.eq.s32.totalorder %s15, 0
    %p125 = por %p123, %p124
    %p126 = scmp.ne.s32.totalorder %s112, %s113
    %p127 = scmp.eq.s32.totalorder %s16, 1
    %p128 = por %p126, %p127
    %p130 = scmp.ne.s32.totalorder %s113, %s129
    %p131 = scmp.eq.s32.totalorder %s16, 0
    %p132 = por %p130, %p131
    %p133 = scmp.le.s32.totalorder 1, %s10
    %p134 = scmp.lt.s32.totalorder %s10, 3
    %p135 = pnand %p133, %p134
    %p136 = pneg %p135
    // Predicated region
    $region9: #{pyramid_conv.1} parent=5 // pred_check
      _
    $region10: #{pyramid_conv.1} parent=5 // pred_check_branch
      %138 = sbr.rel (%p135) target = $region12
    $region11: #{pyramid_conv.1} parent=5 // pred_region
      %s139 = ssub.s32 %s10, 1
      // Predicated region
      $region13: #{pyramid_conv.1} parent=11 // pred_check
        %p140 = pneg %p57
      $region14: #{pyramid_conv.1} parent=11 // pred_check_branch
        %142 = sbr.rel (%p140) target = $region16
      $region15: #{pyramid_conv.1} parent=11 // pred_region
        _
      $region16: #{pyramid_conv.1} parent=11 // pred_fallthru
        _
      // Predicated region
      $region17: #{pyramid_conv.1} parent=11 // pred_check
        %p143 = pneg %p78
      $region18: #{pyramid_conv.1} parent=11 // pred_check_branch
        %145 = sbr.rel (%p143) target = $region20
      $region19: #{pyramid_conv.1} parent=11 // pred_region
        _
      $region20: #{pyramid_conv.1} parent=11 // pred_fallthru
        _
      // Predicated region
      $region21: #{pyramid_conv.1} parent=11 // pred_check
        %p146 = pneg %p99
      $region22: #{pyramid_conv.1} parent=11 // pred_check_branch
        %148 = sbr.rel (%p146) target = $region24
      $region23: #{pyramid_conv.1} parent=11 // pred_region
        _
      $region24: #{pyramid_conv.1} parent=11 // pred_fallthru
        _
    $region12: #{pyramid_conv.1} parent=5 // pred_fallthru
      _
    %p149 = scmp.lt.s32.totalorder %s10, 2
    // Predicated region
    $region25: #{pyramid_conv.1} parent=5 // pred_check
      %p150 = pneg %p149
    $region26: #{pyramid_conv.1} parent=5 // pred_check_branch
      %152 = sbr.rel (%p150) target = $region28
    $region27: #{pyramid_conv.1} parent=5 // pred_region
      // Predicated region
      $region29: #{pyramid_conv.1} parent=27 // pred_check
        %p153 = pneg %p30
      $region30: #{pyramid_conv.1} parent=27 // pred_check_branch
        %155 = sbr.rel (%p153) target = $region32
      $region31: #{pyramid_conv.1} parent=27 // pred_region
        %p156 = scmp.lt.s32.totalorder %s10, 1
        %s157 = scalar_select %p156, %s10, 1
        %s158 = smul.addr %s157, 128
        %s159 = smul.addr %s158, 8
        %s160 = scalar_lea.vmem %s0, %s159
      $region32: #{pyramid_conv.1} parent=27 // pred_fallthru
        _
    $region28: #{pyramid_conv.1} parent=5 // pred_fallthru
      _
    %p161 = scmp.le.s32.totalorder 1, %s10
    %p162 = scmp.lt.s32.totalorder %s10, 3
    %p163 = pnand %p161, %p162
    %p164 = pneg %p163
    // Predicated region
    $region33: #{pyramid_conv.1} parent=5 // pred_check
      _
    $region34: #{pyramid_conv.1} parent=5 // pred_check_branch
      %166 = sbr.rel (%p163) target = $region36
    $region35: #{pyramid_conv.1} parent=5 // pred_region
      %s167 = ssub.s32 %s10, 1
      %p168 = scmp.lt.s32.totalorder %s15, 1
      %s169 = scalar_select %p168, %s15, 1
      %s170 = smul.addr %s169, 128
      %s171 = smul.addr %s170, 8
      %s172 = scalar_lea.vmem %s0, %s171
      %p173 = pneg %p36
      %p174 = pneg %p33
      %p175 = pneg %p57
      %p176 = pneg %p54
      %p177 = pneg %p78
      %p178 = pneg %p75
      %p179 = pneg %p99
      %p180 = pneg %p96
      %p181 = pneg %p125
      %p182 = pneg %p122
      %p183 = scmp.lt.s32.totalorder %s15, 1
      %s184 = scalar_select %p183, %s15, 1
      %s185 = smul.addr %s184, 128
      %s186 = smul.addr %s185, 8
      %s187 = scalar_lea.vmem %s4, %s186
      %p188 = scmp.lt.s32.totalorder %s15, 1
      %s189 = scalar_select %p188, %s15, 1
      %s190 = smul.addr %s189, 128
      %s191 = smul.addr %s190, 8
      %s192 = scalar_lea.vmem %s0, %s191
      %p193 = scmp.lt.s32.totalorder %s15, 1
      %s194 = scalar_select %p193, %s15, 1
      %s195 = smul.addr %s194, 128
      %s196 = smul.addr %s195, 8
      %s197 = scalar_lea.vmem %s4, %s196
      %v198 = vld [vmem:[%s192] sm:$0xff]
      %v199 = vld [vmem:[%s192 + $0x8] sm:$0xff]
      %v200 = vld [vmem:[%s192 + $0x10] sm:$0xff]
      %v201 = vld [vmem:[%s192 + $0x18] sm:$0xff]
      %v202 = vld [vmem:[%s192 + $0x20] sm:$0xff]
      %v203 = vld [vmem:[%s192 + $0x28] sm:$0xff]
      %v204 = vld [vmem:[%s192 + $0x30] sm:$0xff]
      %v205 = vld [vmem:[%s192 + $0x38] sm:$0xff]
      %v206 = vld [vmem:[%s192 + $0x40] sm:$0xff]
      %v207 = vld [vmem:[%s192 + $0x48] sm:$0xff]
      %v208 = vld [vmem:[%s192 + $0x50] sm:$0xff]
      %v209 = vld [vmem:[%s192 + $0x58] sm:$0xff]
      %v210 = vld [vmem:[%s192 + $0x60] sm:$0xff]
      %v211 = vld [vmem:[%s192 + $0x68] sm:$0xff]
      %v212 = vld [vmem:[%s192 + $0x70] sm:$0xff]
      %v213 = vld [vmem:[%s192 + $0x78] sm:$0xff]
      %v214 = vld [vmem:[%s192 + $0x80] sm:$0xff]
      %v215 = vld [vmem:[%s192 + $0x88] sm:$0xff]
      %v216 = vld [vmem:[%s192 + $0x90] sm:$0xff]
      %v217 = vld [vmem:[%s192 + $0x98] sm:$0xff]
      %v218 = vld [vmem:[%s192 + $0xa0] sm:$0xff]
      %v219 = vld [vmem:[%s192 + $0xa8] sm:$0xff]
      %v220 = vld [vmem:[%s192 + $0xb0] sm:$0xff]
      %v221 = vld [vmem:[%s192 + $0xb8] sm:$0xff]
      %v222 = vld [vmem:[%s192 + $0xc0] sm:$0xff]
      %v223 = vld [vmem:[%s192 + $0xc8] sm:$0xff]
      %v224 = vld [vmem:[%s192 + $0xd0] sm:$0xff]
      %v225 = vld [vmem:[%s192 + $0xd8] sm:$0xff]
      %v226 = vld [vmem:[%s192 + $0xe0] sm:$0xff]
      %v227 = vld [vmem:[%s192 + $0xe8] sm:$0xff]
      %v228 = vld [vmem:[%s192 + $0xf0] sm:$0xff]
      %v229 = vld [vmem:[%s192 + $0xf8] sm:$0xff]
      %vm230 = vcmask 326656
      %231 = vst.msk [vmem:[#allocation2] sm:$0xff] %vm230, 0.0
      %232 = vst.msk [vmem:[#allocation2 + $0x8] sm:$0xff] %vm230, 0.0
      %vm233 = vcmask 320512
      %234 = vst.msk [vmem:[#allocation2 + $0x10] sm:$0x3] %vm233, 0.0
      %s235 = scalar_lea.vmem [#allocation2], 544
      %236 = vst.msk [vmem:[%s235] sm:$0xff] %vm230, 0.0
      %237 = vst.msk [vmem:[%s235 + $0x8] sm:$0xff] %vm230, 0.0
      %238 = vst.msk [vmem:[%s235 + $0x10] sm:$0x3] %vm233, 0.0
      %s239 = scalar_lea.vmem [#allocation2], 32
      %vm240 = vcmask 319488
      %241 = vst.msk [vmem:[%s239] sm:$0x1] %vm240, 0.0
      %242 = vst.msk [vmem:[%s239 + $0x20] sm:$0x1] %vm240, 0.0
      %243 = vst.msk [vmem:[%s239 + $0x40] sm:$0x1] %vm240, 0.0
      %244 = vst.msk [vmem:[%s239 + $0x60] sm:$0x1] %vm240, 0.0
      %245 = vst.msk [vmem:[%s239 + $0x80] sm:$0x1] %vm240, 0.0
      %246 = vst.msk [vmem:[%s239 + $0xa0] sm:$0x1] %vm240, 0.0
      %247 = vst.msk [vmem:[%s239 + $0xc0] sm:$0x1] %vm240, 0.0
      %248 = vst.msk [vmem:[%s239 + $0xe0] sm:$0x1] %vm240, 0.0
      %249 = vst.msk [vmem:[%s239 + $0x100] sm:$0x1] %vm240, 0.0
      %250 = vst.msk [vmem:[%s239 + $0x120] sm:$0x1] %vm240, 0.0
      %251 = vst.msk [vmem:[%s239 + $0x140] sm:$0x1] %vm240, 0.0
      %252 = vst.msk [vmem:[%s239 + $0x160] sm:$0x1] %vm240, 0.0
      %253 = vst.msk [vmem:[%s239 + $0x180] sm:$0x1] %vm240, 0.0
      %254 = vst.msk [vmem:[%s239 + $0x1a0] sm:$0x1] %vm240, 0.0
      %255 = vst.msk [vmem:[%s239 + $0x1c0] sm:$0x1] %vm240, 0.0
      %256 = vst.msk [vmem:[%s239 + $0x1e0] sm:$0x1] %vm240, 0.0
      %257 = vst.msk [vmem:[%s239 + $0x11] sm:$0x1] %vm240, 0.0
      %258 = vst.msk [vmem:[%s239 + $0x31] sm:$0x1] %vm240, 0.0
      %259 = vst.msk [vmem:[%s239 + $0x51] sm:$0x1] %vm240, 0.0
      %260 = vst.msk [vmem:[%s239 + $0x71] sm:$0x1] %vm240, 0.0
      %261 = vst.msk [vmem:[%s239 + $0x91] sm:$0x1] %vm240, 0.0
      %262 = vst.msk [vmem:[%s239 + $0xb1] sm:$0x1] %vm240, 0.0
      %263 = vst.msk [vmem:[%s239 + $0xd1] sm:$0x1] %vm240, 0.0
      %264 = vst.msk [vmem:[%s239 + $0xf1] sm:$0x1] %vm240, 0.0
      %265 = vst.msk [vmem:[%s239 + $0x111] sm:$0x1] %vm240, 0.0
      %266 = vst.msk [vmem:[%s239 + $0x131] sm:$0x1] %vm240, 0.0
      %267 = vst.msk [vmem:[%s239 + $0x151] sm:$0x1] %vm240, 0.0
      %268 = vst.msk [vmem:[%s239 + $0x171] sm:$0x1] %vm240, 0.0
      %269 = vst.msk [vmem:[%s239 + $0x191] sm:$0x1] %vm240, 0.0
      %270 = vst.msk [vmem:[%s239 + $0x1b1] sm:$0x1] %vm240, 0.0
      %271 = vst.msk [vmem:[%s239 + $0x1d1] sm:$0x1] %vm240, 0.0
      %272 = vst.msk [vmem:[%s239 + $0x1f1] sm:$0x1] %vm240, 0.0
      %273 = vst.msk [vmem:[%s239 + $0x1] sm:$0xff] %vm230, %v198
      %274 = vst.msk [vmem:[%s239 + $0x9] sm:$0xff] %vm230, %v199
      %275 = vst.msk [vmem:[%s239 + $0x21] sm:$0xff] %vm230, %v200
      %276 = vst.msk [vmem:[%s239 + $0x29] sm:$0xff] %vm230, %v201
      %277 = vst.msk [vmem:[%s239 + $0x41] sm:$0xff] %vm230, %v202
      %278 = vst.msk [vmem:[%s239 + $0x49] sm:$0xff] %vm230, %v203
      %279 = vst.msk [vmem:[%s239 + $0x61] sm:$0xff] %vm230, %v204
      %280 = vst.msk [vmem:[%s239 + $0x69] sm:$0xff] %vm230, %v205
      %281 = vst.msk [vmem:[%s239 + $0x81] sm:$0xff] %vm230, %v206
      %282 = vst.msk [vmem:[%s239 + $0x89] sm:$0xff] %vm230, %v207
      %283 = vst.msk [vmem:[%s239 + $0xa1] sm:$0xff] %vm230, %v208
      %284 = vst.msk [vmem:[%s239 + $0xa9] sm:$0xff] %vm230, %v209
      %285 = vst.msk [vmem:[%s239 + $0xc1] sm:$0xff] %vm230, %v210
      %286 = vst.msk [vmem:[%s239 + $0xc9] sm:$0xff] %vm230, %v211
      %287 = vst.msk [vmem:[%s239 + $0xe1] sm:$0xff] %vm230, %v212
      %288 = vst.msk [vmem:[%s239 + $0xe9] sm:$0xff] %vm230, %v213
      %289 = vst.msk [vmem:[%s239 + $0x101] sm:$0xff] %vm230, %v214
      %290 = vst.msk [vmem:[%s239 + $0x109] sm:$0xff] %vm230, %v215
      %291 = vst.msk [vmem:[%s239 + $0x121] sm:$0xff] %vm230, %v216
      %292 = vst.msk [vmem:[%s239 + $0x129] sm:$0xff] %vm230, %v217
      %293 = vst.msk [vmem:[%s239 + $0x141] sm:$0xff] %vm230, %v218
      %294 = vst.msk [vmem:[%s239 + $0x149] sm:$0xff] %vm230, %v219
      %295 = vst.msk [vmem:[%s239 + $0x161] sm:$0xff] %vm230, %v220
      %296 = vst.msk [vmem:[%s239 + $0x169] sm:$0xff] %vm230, %v221
      %297 = vst.msk [vmem:[%s239 + $0x181] sm:$0xff] %vm230, %v222
      %298 = vst.msk [vmem:[%s239 + $0x189] sm:$0xff] %vm230, %v223
      %299 = vst.msk [vmem:[%s239 + $0x1a1] sm:$0xff] %vm230, %v224
      %300 = vst.msk [vmem:[%s239 + $0x1a9] sm:$0xff] %vm230, %v225
      %301 = vst.msk [vmem:[%s239 + $0x1c1] sm:$0xff] %vm230, %v226
      %302 = vst.msk [vmem:[%s239 + $0x1c9] sm:$0xff] %vm230, %v227
      %303 = vst.msk [vmem:[%s239 + $0x1e1] sm:$0xff] %vm230, %v228
      %304 = vst.msk [vmem:[%s239 + $0x1e9] sm:$0xff] %vm230, %v229
      %v305 = vld [vmem:[%s2] sm:$0x1]
      %v306 = vld [vmem:[#allocation2] sm:$0xff]
      %v307 = vld [vmem:[#allocation2 + $0x8] sm:$0xff]
      %v308 = vld [vmem:[#allocation2 + $0x10] sm:$0x3]
      %v309 = vld [vmem:[#allocation2 + $0x20] sm:$0xff]
      %v310 = vld [vmem:[#allocation2 + $0x28] sm:$0xff]
      %v311 = vld [vmem:[#allocation2 + $0x30] sm:$0x3]
      %v312 = vld [vmem:[#allocation2 + $0x40] sm:$0xff]
      %v313 = vld [vmem:[#allocation2 + $0x48] sm:$0xff]
      %v314 = vld [vmem:[#allocation2 + $0x50] sm:$0x3]
      %v315 = vld [vmem:[#allocation2 + $0x60] sm:$0xff]
      %v316 = vld [vmem:[#allocation2 + $0x68] sm:$0xff]
      %v317 = vld [vmem:[#allocation2 + $0x70] sm:$0x3]
      %v318 = vld [vmem:[#allocation2 + $0x80] sm:$0xff]
      %v319 = vld [vmem:[#allocation2 + $0x88] sm:$0xff]
      %v320 = vld [vmem:[#allocation2 + $0x90] sm:$0x3]
      %v321 = vld [vmem:[#allocation2 + $0xa0] sm:$0xff]
      %v322 = vld [vmem:[#allocation2 + $0xa8] sm:$0xff]
      %v323 = vld [vmem:[#allocation2 + $0xb0] sm:$0x3]
      %v324 = vld [vmem:[#allocation2 + $0xc0] sm:$0xff]
      %v325 = vld [vmem:[#allocation2 + $0xc8] sm:$0xff]
      %v326 = vld [vmem:[#allocation2 + $0xd0] sm:$0x3]
      %v327 = vld [vmem:[#allocation2 + $0xe0] sm:$0xff]
      %v328 = vld [vmem:[#allocation2 + $0xe8] sm:$0xff]
      %v329 = vld [vmem:[#allocation2 + $0xf0] sm:$0x3]
      %v330 = vld [vmem:[#allocation2 + $0x100] sm:$0xff]
      %v331 = vld [vmem:[#allocation2 + $0x108] sm:$0xff]
      %v332 = vld [vmem:[#allocation2 + $0x110] sm:$0x3]
      %v333 = vld [vmem:[#allocation2 + $0x120] sm:$0xff]
      %v334 = vld [vmem:[#allocation2 + $0x128] sm:$0xff]
      %v335 = vld [vmem:[#allocation2 + $0x130] sm:$0x3]
      %v336 = vld [vmem:[#allocation2 + $0x140] sm:$0xff]
      %v337 = vld [vmem:[#allocation2 + $0x148] sm:$0xff]
      %v338 = vld [vmem:[#allocation2 + $0x150] sm:$0x3]
      %v339 = vld [vmem:[#allocation2 + $0x160] sm:$0xff]
      %v340 = vld [vmem:[#allocation2 + $0x168] sm:$0xff]
      %v341 = vld [vmem:[#allocation2 + $0x170] sm:$0x3]
      %v342 = vld [vmem:[#allocation2 + $0x180] sm:$0xff]
      %v343 = vld [vmem:[#allocation2 + $0x188] sm:$0xff]
      %v344 = vld [vmem:[#allocation2 + $0x190] sm:$0x3]
      %v345 = vld [vmem:[#allocation2 + $0x1a0] sm:$0xff]
      %v346 = vld [vmem:[#allocation2 + $0x1a8] sm:$0xff]
      %v347 = vld [vmem:[#allocation2 + $0x1b0] sm:$0x3]
      %v348 = vld [vmem:[#allocation2 + $0x1c0] sm:$0xff]
      %v349 = vld [vmem:[#allocation2 + $0x1c8] sm:$0xff]
      %v350 = vld [vmem:[#allocation2 + $0x1d0] sm:$0x3]
      %v351 = vld [vmem:[#allocation2 + $0x1e0] sm:$0xff]
      %v352 = vld [vmem:[#allocation2 + $0x1e8] sm:$0xff]
      %v353 = vld [vmem:[#allocation2 + $0x1f0] sm:$0x3]
      %v354 = vld [vmem:[%s1] sm:$0x1]
      %v356 = vlaneseq
      %v357 = vshrl.u32 %v356, 7
      %v358 = vsub.s32 0, %v357
      %v359 = vrot.slane %v354, %v358
      %v361 = vmul.f32 %v306, %v359
      %v362 = vmul.f32 %v307, %v359
      %v363 = vmul.f32 %v309, %v359
      %v364 = vmul.f32 %v310, %v359
      %v365 = vmul.f32 %v312, %v359
      %v366 = vmul.f32 %v313, %v359
      %v367 = vmul.f32 %v315, %v359
      %v368 = vmul.f32 %v316, %v359
      %v369 = vmul.f32 %v318, %v359
      %v370 = vmul.f32 %v319, %v359
      %v371 = vmul.f32 %v321, %v359
      %v372 = vmul.f32 %v322, %v359
      %v373 = vmul.f32 %v324, %v359
      %v374 = vmul.f32 %v325, %v359
      %v375 = vmul.f32 %v327, %v359
      %v376 = vmul.f32 %v328, %v359
      %v377 = vmul.f32 %v330, %v359
      %v378 = vmul.f32 %v331, %v359
      %v379 = vmul.f32 %v333, %v359
      %v380 = vmul.f32 %v334, %v359
      %v381 = vmul.f32 %v336, %v359
      %v382 = vmul.f32 %v337, %v359
      %v383 = vmul.f32 %v339, %v359
      %v384 = vmul.f32 %v340, %v359
      %v385 = vmul.f32 %v342, %v359
      %v386 = vmul.f32 %v343, %v359
      %v387 = vmul.f32 %v345, %v359
      %v388 = vmul.f32 %v346, %v359
      %v389 = vmul.f32 %v348, %v359
      %v390 = vmul.f32 %v349, %v359
      %v391 = vmul.f32 %v351, %v359
      %v392 = vmul.f32 %v352, %v359
      %v394 = vlaneseq
      %v395 = vshrl.u32 %v394, 7
      %v396 = vsub.s32 0, %v395
      %v397 = vrot.slane %v305, %v396
      %v399 = vadd.f32 %v361, %v397
      %v400 = vadd.f32 %v362, %v397
      %v401 = vadd.f32 %v363, %v397
      %v402 = vadd.f32 %v364, %v397
      %v403 = vadd.f32 %v365, %v397
      %v404 = vadd.f32 %v366, %v397
      %v405 = vadd.f32 %v367, %v397
      %v406 = vadd.f32 %v368, %v397
      %v407 = vadd.f32 %v369, %v397
      %v408 = vadd.f32 %v370, %v397
      %v409 = vadd.f32 %v371, %v397
      %v410 = vadd.f32 %v372, %v397
      %v411 = vadd.f32 %v373, %v397
      %v412 = vadd.f32 %v374, %v397
      %v413 = vadd.f32 %v375, %v397
      %v414 = vadd.f32 %v376, %v397
      %v415 = vadd.f32 %v377, %v397
      %v416 = vadd.f32 %v378, %v397
      %v417 = vadd.f32 %v379, %v397
      %v418 = vadd.f32 %v380, %v397
      %v419 = vadd.f32 %v381, %v397
      %v420 = vadd.f32 %v382, %v397
      %v421 = vadd.f32 %v383, %v397
      %v422 = vadd.f32 %v384, %v397
      %v423 = vadd.f32 %v385, %v397
      %v424 = vadd.f32 %v386, %v397
      %v425 = vadd.f32 %v387, %v397
      %v426 = vadd.f32 %v388, %v397
      %v427 = vadd.f32 %v389, %v397
      %v428 = vadd.f32 %v390, %v397
      %v429 = vadd.f32 %v391, %v397
      %v430 = vadd.f32 %v392, %v397
      %s431 = scalar_lea.vmem %s1, 1
      %v432 = vld [vmem:[%s431] sm:$0x1]
      %v434 = vlaneseq
      %v435 = vshrl.u32 %v434, 7
      %v436 = vsub.s32 0, %v435
      %v437 = vrot.slane %v432, %v436
      %v439 = vmul.f32 %v306, %v437
      %v440 = vmul.f32 %v307, %v437
      %v441 = vmul.f32 %v308, %v437
      %v442 = vmul.f32 %v309, %v437
      %v443 = vmul.f32 %v310, %v437
      %v444 = vmul.f32 %v311, %v437
      %v445 = vmul.f32 %v312, %v437
      %v446 = vmul.f32 %v313, %v437
      %v447 = vmul.f32 %v314, %v437
      %v448 = vmul.f32 %v315, %v437
      %v449 = vmul.f32 %v316, %v437
      %v450 = vmul.f32 %v317, %v437
      %v451 = vmul.f32 %v318, %v437
      %v452 = vmul.f32 %v319, %v437
      %v453 = vmul.f32 %v320, %v437
      %v454 = vmul.f32 %v321, %v437
      %v455 = vmul.f32 %v322, %v437
      %v456 = vmul.f32 %v323, %v437
      %v457 = vmul.f32 %v324, %v437
      %v458 = vmul.f32 %v325, %v437
      %v459 = vmul.f32 %v326, %v437
      %v460 = vmul.f32 %v327, %v437
      %v461 = vmul.f32 %v328, %v437
      %v462 = vmul.f32 %v329, %v437
      %v463 = vmul.f32 %v330, %v437
      %v464 = vmul.f32 %v331, %v437
      %v465 = vmul.f32 %v332, %v437
      %v466 = vmul.f32 %v333, %v437
      %v467 = vmul.f32 %v334, %v437
      %v468 = vmul.f32 %v335, %v437
      %v469 = vmul.f32 %v336, %v437
      %v470 = vmul.f32 %v337, %v437
      %v471 = vmul.f32 %v338, %v437
      %v472 = vmul.f32 %v339, %v437
      %v473 = vmul.f32 %v340, %v437
      %v474 = vmul.f32 %v341, %v437
      %v475 = vmul.f32 %v342, %v437
      %v476 = vmul.f32 %v343, %v437
      %v477 = vmul.f32 %v344, %v437
      %v478 = vmul.f32 %v345, %v437
      %v479 = vmul.f32 %v346, %v437
      %v480 = vmul.f32 %v347, %v437
      %v481 = vmul.f32 %v348, %v437
      %v482 = vmul.f32 %v349, %v437
      %v483 = vmul.f32 %v350, %v437
      %v484 = vmul.f32 %v351, %v437
      %v485 = vmul.f32 %v352, %v437
      %v486 = vmul.f32 %v353, %v437
      %vm535 = vcmask 1046528
      %v536 = vrot.slane %v439, 1
      %v537 = vrot.slane %v440, 1
      %v538 = vsel %vm535, %v536, %v537
      %v539 = vrot.slane %v441, 1
      %v540 = vsel %vm535, %v537, %v539
      %v541 = vrot.slane %v442, 1
      %v542 = vrot.slane %v443, 1
      %v543 = vsel %vm535, %v541, %v542
      %v544 = vrot.slane %v444, 1
      %v545 = vsel %vm535, %v542, %v544
      %v546 = vrot.slane %v445, 1
      %v547 = vrot.slane %v446, 1
      %v548 = vsel %vm535, %v546, %v547
      %v549 = vrot.slane %v447, 1
      %v550 = vsel %vm535, %v547, %v549
      %v551 = vrot.slane %v448, 1
      %v552 = vrot.slane %v449, 1
      %v553 = vsel %vm535, %v551, %v552
      %v554 = vrot.slane %v450, 1
      %v555 = vsel %vm535, %v552, %v554
      %v556 = vrot.slane %v451, 1
      %v557 = vrot.slane %v452, 1
      %v558 = vsel %vm535, %v556, %v557
      %v559 = vrot.slane %v453, 1
      %v560 = vsel %vm535, %v557, %v559
      %v561 = vrot.slane %v454, 1
      %v562 = vrot.slane %v455, 1
      %v563 = vsel %vm535, %v561, %v562
      %v564 = vrot.slane %v456, 1
      %v565 = vsel %vm535, %v562, %v564
      %v566 = vrot.slane %v457, 1
      %v567 = vrot.slane %v458, 1
      %v568 = vsel %vm535, %v566, %v567
      %v569 = vrot.slane %v459, 1
      %v570 = vsel %vm535, %v567, %v569
      %v571 = vrot.slane %v460, 1
      %v572 = vrot.slane %v461, 1
      %v573 = vsel %vm535, %v571, %v572
      %v574 = vrot.slane %v462, 1
      %v575 = vsel %vm535, %v572, %v574
      %v576 = vrot.slane %v463, 1
      %v577 = vrot.slane %v464, 1
      %v578 = vsel %vm535, %v576, %v577
      %v579 = vrot.slane %v465, 1
      %v580 = vsel %vm535, %v577, %v579
      %v581 = vrot.slane %v466, 1
      %v582 = vrot.slane %v467, 1
      %v583 = vsel %vm535, %v581, %v582
      %v584 = vrot.slane %v468, 1
      %v585 = vsel %vm535, %v582, %v584
      %v586 = vrot.slane %v469, 1
      %v587 = vrot.slane %v470, 1
      %v588 = vsel %vm535, %v586, %v587
      %v589 = vrot.slane %v471, 1
      %v590 = vsel %vm535, %v587, %v589
      %v591 = vrot.slane %v472, 1
      %v592 = vrot.slane %v473, 1
      %v593 = vsel %vm535, %v591, %v592
      %v594 = vrot.slane %v474, 1
      %v595 = vsel %vm535, %v592, %v594
      %v596 = vrot.slane %v475, 1
      %v597 = vrot.slane %v476, 1
      %v598 = vsel %vm535, %v596, %v597
      %v599 = vrot.slane %v477, 1
      %v600 = vsel %vm535, %v597, %v599
      %v601 = vrot.slane %v478, 1
      %v602 = vrot.slane %v479, 1
      %v603 = vsel %vm535, %v601, %v602
      %v604 = vrot.slane %v480, 1
      %v605 = vsel %vm535, %v602, %v604
      %v606 = vrot.slane %v481, 1
      %v607 = vrot.slane %v482, 1
      %v608 = vsel %vm535, %v606, %v607
      %v609 = vrot.slane %v483, 1
      %v610 = vsel %vm535, %v607, %v609
      %v611 = vrot.slane %v484, 1
      %v612 = vrot.slane %v485, 1
      %v613 = vsel %vm535, %v611, %v612
      %v614 = vrot.slane %v486, 1
      %v615 = vsel %vm535, %v612, %v614
      %v648 = vadd.f32 %v399, %v538
      %v649 = vadd.f32 %v400, %v540
      %v650 = vadd.f32 %v401, %v543
      %v651 = vadd.f32 %v402, %v545
      %v652 = vadd.f32 %v403, %v548
      %v653 = vadd.f32 %v404, %v550
      %v654 = vadd.f32 %v405, %v553
      %v655 = vadd.f32 %v406, %v555
      %v656 = vadd.f32 %v407, %v558
      %v657 = vadd.f32 %v408, %v560
      %v658 = vadd.f32 %v409, %v563
      %v659 = vadd.f32 %v410, %v565
      %v660 = vadd.f32 %v411, %v568
      %v661 = vadd.f32 %v412, %v570
      %v662 = vadd.f32 %v413, %v573
      %v663 = vadd.f32 %v414, %v575
      %v664 = vadd.f32 %v415, %v578
      %v665 = vadd.f32 %v416, %v580
      %v666 = vadd.f32 %v417, %v583
      %v667 = vadd.f32 %v418, %v585
      %v668 = vadd.f32 %v419, %v588
      %v669 = vadd.f32 %v420, %v590
      %v670 = vadd.f32 %v421, %v593
      %v671 = vadd.f32 %v422, %v595
      %v672 = vadd.f32 %v423, %v598
      %v673 = vadd.f32 %v424, %v600
      %v674 = vadd.f32 %v425, %v603
      %v675 = vadd.f32 %v426, %v605
      %v676 = vadd.f32 %v427, %v608
      %v677 = vadd.f32 %v428, %v610
      %v678 = vadd.f32 %v429, %v613
      %v679 = vadd.f32 %v430, %v615
      %s680 = scalar_lea.vmem %s1, 2
      %v681 = vld [vmem:[%s680] sm:$0x1]
      %v683 = vlaneseq
      %v684 = vshrl.u32 %v683, 7
      %v685 = vsub.s32 0, %v684
      %v686 = vrot.slane %v681, %v685
      %v688 = vmul.f32 %v306, %v686
      %v689 = vmul.f32 %v307, %v686
      %v690 = vmul.f32 %v308, %v686
      %v691 = vmul.f32 %v309, %v686
      %v692 = vmul.f32 %v310, %v686
      %v693 = vmul.f32 %v311, %v686
      %v694 = vmul.f32 %v312, %v686
      %v695 = vmul.f32 %v313, %v686
      %v696 = vmul.f32 %v314, %v686
      %v697 = vmul.f32 %v315, %v686
      %v698 = vmul.f32 %v316, %v686
      %v699 = vmul.f32 %v317, %v686
      %v700 = vmul.f32 %v318, %v686
      %v701 = vmul.f32 %v319, %v686
      %v702 = vmul.f32 %v320, %v686
      %v703 = vmul.f32 %v321, %v686
      %v704 = vmul.f32 %v322, %v686
      %v705 = vmul.f32 %v323, %v686
      %v706 = vmul.f32 %v324, %v686
      %v707 = vmul.f32 %v325, %v686
      %v708 = vmul.f32 %v326, %v686
      %v709 = vmul.f32 %v327, %v686
      %v710 = vmul.f32 %v328, %v686
      %v711 = vmul.f32 %v329, %v686
      %v712 = vmul.f32 %v330, %v686
      %v713 = vmul.f32 %v331, %v686
      %v714 = vmul.f32 %v332, %v686
      %v715 = vmul.f32 %v333, %v686
      %v716 = vmul.f32 %v334, %v686
      %v717 = vmul.f32 %v335, %v686
      %v718 = vmul.f32 %v336, %v686
      %v719 = vmul.f32 %v337, %v686
      %v720 = vmul.f32 %v338, %v686
      %v721 = vmul.f32 %v339, %v686
      %v722 = vmul.f32 %v340, %v686
      %v723 = vmul.f32 %v341, %v686
      %v724 = vmul.f32 %v342, %v686
      %v725 = vmul.f32 %v343, %v686
      %v726 = vmul.f32 %v344, %v686
      %v727 = vmul.f32 %v345, %v686
      %v728 = vmul.f32 %v346, %v686
      %v729 = vmul.f32 %v347, %v686
      %v730 = vmul.f32 %v348, %v686
      %v731 = vmul.f32 %v349, %v686
      %v732 = vmul.f32 %v350, %v686
      %v733 = vmul.f32 %v351, %v686
      %v734 = vmul.f32 %v352, %v686
      %v735 = vmul.f32 %v353, %v686
      %vm784 = vcmask 1045504
      %v785 = vrot.slane %v688, 2
      %v786 = vrot.slane %v689, 2
      %v787 = vsel %vm784, %v785, %v786
      %v788 = vrot.slane %v690, 2
      %v789 = vsel %vm784, %v786, %v788
      %v790 = vrot.slane %v691, 2
      %v791 = vrot.slane %v692, 2
      %v792 = vsel %vm784, %v790, %v791
      %v793 = vrot.slane %v693, 2
      %v794 = vsel %vm784, %v791, %v793
      %v795 = vrot.slane %v694, 2
      %v796 = vrot.slane %v695, 2
      %v797 = vsel %vm784, %v795, %v796
      %v798 = vrot.slane %v696, 2
      %v799 = vsel %vm784, %v796, %v798
      %v800 = vrot.slane %v697, 2
      %v801 = vrot.slane %v698, 2
      %v802 = vsel %vm784, %v800, %v801
      %v803 = vrot.slane %v699, 2
      %v804 = vsel %vm784, %v801, %v803
      %v805 = vrot.slane %v700, 2
      %v806 = vrot.slane %v701, 2
      %v807 = vsel %vm784, %v805, %v806
      %v808 = vrot.slane %v702, 2
      %v809 = vsel %vm784, %v806, %v808
      %v810 = vrot.slane %v703, 2
      %v811 = vrot.slane %v704, 2
      %v812 = vsel %vm784, %v810, %v811
      %v813 = vrot.slane %v705, 2
      %v814 = vsel %vm784, %v811, %v813
      %v815 = vrot.slane %v706, 2
      %v816 = vrot.slane %v707, 2
      %v817 = vsel %vm784, %v815, %v816
      %v818 = vrot.slane %v708, 2
      %v819 = vsel %vm784, %v816, %v818
      %v820 = vrot.slane %v709, 2
      %v821 = vrot.slane %v710, 2
      %v822 = vsel %vm784, %v820, %v821
      %v823 = vrot.slane %v711, 2
      %v824 = vsel %vm784, %v821, %v823
      %v825 = vrot.slane %v712, 2
      %v826 = vrot.slane %v713, 2
      %v827 = vsel %vm784, %v825, %v826
      %v828 = vrot.slane %v714, 2
      %v829 = vsel %vm784, %v826, %v828
      %v830 = vrot.slane %v715, 2
      %v831 = vrot.slane %v716, 2
      %v832 = vsel %vm784, %v830, %v831
      %v833 = vrot.slane %v717, 2
      %v834 = vsel %vm784, %v831, %v833
      %v835 = vrot.slane %v718, 2
      %v836 = vrot.slane %v719, 2
      %v837 = vsel %vm784, %v835, %v836
      %v838 = vrot.slane %v720, 2
      %v839 = vsel %vm784, %v836, %v838
      %v840 = vrot.slane %v721, 2
      %v841 = vrot.slane %v722, 2
      %v842 = vsel %vm784, %v840, %v841
      %v843 = vrot.slane %v723, 2
      %v844 = vsel %vm784, %v841, %v843
      %v845 = vrot.slane %v724, 2
      %v846 = vrot.slane %v725, 2
      %v847 = vsel %vm784, %v845, %v846
      %v848 = vrot.slane %v726, 2
      %v849 = vsel %vm784, %v846, %v848
      %v850 = vrot.slane %v727, 2
      %v851 = vrot.slane %v728, 2
      %v852 = vsel %vm784, %v850, %v851
      %v853 = vrot.slane %v729, 2
      %v854 = vsel %vm784, %v851, %v853
      %v855 = vrot.slane %v730, 2
      %v856 = vrot.slane %v731, 2
      %v857 = vsel %vm784, %v855, %v856
      %v858 = vrot.slane %v732, 2
      %v859 = vsel %vm784, %v856, %v858
      %v860 = vrot.slane %v733, 2
      %v861 = vrot.slane %v734, 2
      %v862 = vsel %vm784, %v860, %v861
      %v863 = vrot.slane %v735, 2
      %v864 = vsel %vm784, %v861, %v863
      %v897 = vadd.f32 %v648, %v787
      %v898 = vadd.f32 %v649, %v789
      %v899 = vadd.f32 %v650, %v792
      %v900 = vadd.f32 %v651, %v794
      %v901 = vadd.f32 %v652, %v797
      %v902 = vadd.f32 %v653, %v799
      %v903 = vadd.f32 %v654, %v802
      %v904 = vadd.f32 %v655, %v804
      %v905 = vadd.f32 %v656, %v807
      %v906 = vadd.f32 %v657, %v809
      %v907 = vadd.f32 %v658, %v812
      %v908 = vadd.f32 %v659, %v814
      %v909 = vadd.f32 %v660, %v817
      %v910 = vadd.f32 %v661, %v819
      %v911 = vadd.f32 %v662, %v822
      %v912 = vadd.f32 %v663, %v824
      %v913 = vadd.f32 %v664, %v827
      %v914 = vadd.f32 %v665, %v829
      %v915 = vadd.f32 %v666, %v832
      %v916 = vadd.f32 %v667, %v834
      %v917 = vadd.f32 %v668, %v837
      %v918 = vadd.f32 %v669, %v839
      %v919 = vadd.f32 %v670, %v842
      %v920 = vadd.f32 %v671, %v844
      %v921 = vadd.f32 %v672, %v847
      %v922 = vadd.f32 %v673, %v849
      %v923 = vadd.f32 %v674, %v852
      %v924 = vadd.f32 %v675, %v854
      %v925 = vadd.f32 %v676, %v857
      %v926 = vadd.f32 %v677, %v859
      %v927 = vadd.f32 %v678, %v862
      %v928 = vadd.f32 %v679, %v864
      %v929 = vld [vmem:[%s239] sm:$0xff]
      %v930 = vld [vmem:[%s239 + $0x8] sm:$0xff]
      %v931 = vld [vmem:[%s239 + $0x10] sm:$0x3]
      %v932 = vld [vmem:[%s239 + $0x20] sm:$0xff]
      %v933 = vld [vmem:[%s239 + $0x28] sm:$0xff]
      %v934 = vld [vmem:[%s239 + $0x30] sm:$0x3]
      %v935 = vld [vmem:[%s239 + $0x40] sm:$0xff]
      %v936 = vld [vmem:[%s239 + $0x48] sm:$0xff]
      %v937 = vld [vmem:[%s239 + $0x50] sm:$0x3]
      %v938 = vld [vmem:[%s239 + $0x60] sm:$0xff]
      %v939 = vld [vmem:[%s239 + $0x68] sm:$0xff]
      %v940 = vld [vmem:[%s239 + $0x70] sm:$0x3]
      %v941 = vld [vmem:[%s239 + $0x80] sm:$0xff]
      %v942 = vld [vmem:[%s239 + $0x88] sm:$0xff]
      %v943 = vld [vmem:[%s239 + $0x90] sm:$0x3]
      %v944 = vld [vmem:[%s239 + $0xa0] sm:$0xff]
      %v945 = vld [vmem:[%s239 + $0xa8] sm:$0xff]
      %v946 = vld [vmem:[%s239 + $0xb0] sm:$0x3]
      %v947 = vld [vmem:[%s239 + $0xc0] sm:$0xff]
      %v948 = vld [vmem:[%s239 + $0xc8] sm:$0xff]
      %v949 = vld [vmem:[%s239 + $0xd0] sm:$0x3]
      %v950 = vld [vmem:[%s239 + $0xe0] sm:$0xff]
      %v951 = vld [vmem:[%s239 + $0xe8] sm:$0xff]
      %v952 = vld [vmem:[%s239 + $0xf0] sm:$0x3]
      %v953 = vld [vmem:[%s239 + $0x100] sm:$0xff]
      %v954 = vld [vmem:[%s239 + $0x108] sm:$0xff]
      %v955 = vld [vmem:[%s239 + $0x110] sm:$0x3]
      %v956 = vld [vmem:[%s239 + $0x120] sm:$0xff]
      %v957 = vld [vmem:[%s239 + $0x128] sm:$0xff]
      %v958 = vld [vmem:[%s239 + $0x130] sm:$0x3]
      %v959 = vld [vmem:[%s239 + $0x140] sm:$0xff]
      %v960 = vld [vmem:[%s239 + $0x148] sm:$0xff]
      %v961 = vld [vmem:[%s239 + $0x150] sm:$0x3]
      %v962 = vld [vmem:[%s239 + $0x160] sm:$0xff]
      %v963 = vld [vmem:[%s239 + $0x168] sm:$0xff]
      %v964 = vld [vmem:[%s239 + $0x170] sm:$0x3]
      %v965 = vld [vmem:[%s239 + $0x180] sm:$0xff]
      %v966 = vld [vmem:[%s239 + $0x188] sm:$0xff]
      %v967 = vld [vmem:[%s239 + $0x190] sm:$0x3]
      %v968 = vld [vmem:[%s239 + $0x1a0] sm:$0xff]
      %v969 = vld [vmem:[%s239 + $0x1a8] sm:$0xff]
      %v970 = vld [vmem:[%s239 + $0x1b0] sm:$0x3]
      %v971 = vld [vmem:[%s239 + $0x1c0] sm:$0xff]
      %v972 = vld [vmem:[%s239 + $0x1c8] sm:$0xff]
      %v973 = vld [vmem:[%s239 + $0x1d0] sm:$0x3]
      %v974 = vld [vmem:[%s239 + $0x1e0] sm:$0xff]
      %v975 = vld [vmem:[%s239 + $0x1e8] sm:$0xff]
      %v976 = vld [vmem:[%s239 + $0x1f0] sm:$0x3]
      %s977 = scalar_lea.vmem %s1, 3
      %v978 = vld [vmem:[%s977] sm:$0x1]
      %v980 = vlaneseq
      %v981 = vshrl.u32 %v980, 7
      %v982 = vsub.s32 0, %v981
      %v983 = vrot.slane %v978, %v982
      %v985 = vmul.f32 %v929, %v983
      %v986 = vmul.f32 %v930, %v983
      %v987 = vmul.f32 %v932, %v983
      %v988 = vmul.f32 %v933, %v983
      %v989 = vmul.f32 %v935, %v983
      %v990 = vmul.f32 %v936, %v983
      %v991 = vmul.f32 %v938, %v983
      %v992 = vmul.f32 %v939, %v983
      %v993 = vmul.f32 %v941, %v983
      %v994 = vmul.f32 %v942, %v983
      %v995 = vmul.f32 %v944, %v983
      %v996 = vmul.f32 %v945, %v983
      %v997 = vmul.f32 %v947, %v983
      %v998 = vmul.f32 %v948, %v983
      %v999 = vmul.f32 %v950, %v983
      %v1000 = vmul.f32 %v951, %v983
      %v1001 = vmul.f32 %v953, %v983
      %v1002 = vmul.f32 %v954, %v983
      %v1003 = vmul.f32 %v956, %v983
      %v1004 = vmul.f32 %v957, %v983
      %v1005 = vmul.f32 %v959, %v983
      %v1006 = vmul.f32 %v960, %v983
      %v1007 = vmul.f32 %v962, %v983
      %v1008 = vmul.f32 %v963, %v983
      %v1009 = vmul.f32 %v965, %v983
      %v1010 = vmul.f32 %v966, %v983
      %v1011 = vmul.f32 %v968, %v983
      %v1012 = vmul.f32 %v969, %v983
      %v1013 = vmul.f32 %v971, %v983
      %v1014 = vmul.f32 %v972, %v983
      %v1015 = vmul.f32 %v974, %v983
      %v1016 = vmul.f32 %v975, %v983
      %v1017 = vadd.f32 %v897, %v985
      %v1018 = vadd.f32 %v898, %v986
      %v1019 = vadd.f32 %v899, %v987
      %v1020 = vadd.f32 %v900, %v988
      %v1021 = vadd.f32 %v901, %v989
      %v1022 = vadd.f32 %v902, %v990
      %v1023 = vadd.f32 %v903, %v991
      %v1024 = vadd.f32 %v904, %v992
      %v1025 = vadd.f32 %v905, %v993
      %v1026 = vadd.f32 %v906, %v994
      %v1027 = vadd.f32 %v907, %v995
      %v1028 = vadd.f32 %v908, %v996
      %v1029 = vadd.f32 %v909, %v997
      %v1030 = vadd.f32 %v910, %v998
      %v1031 = vadd.f32 %v911, %v999
      %v1032 = vadd.f32 %v912, %v1000
      %v1033 = vadd.f32 %v913, %v1001
      %v1034 = vadd.f32 %v914, %v1002
      %v1035 = vadd.f32 %v915, %v1003
      %v1036 = vadd.f32 %v916, %v1004
      %v1037 = vadd.f32 %v917, %v1005
      %v1038 = vadd.f32 %v918, %v1006
      %v1039 = vadd.f32 %v919, %v1007
      %v1040 = vadd.f32 %v920, %v1008
      %v1041 = vadd.f32 %v921, %v1009
      %v1042 = vadd.f32 %v922, %v1010
      %v1043 = vadd.f32 %v923, %v1011
      %v1044 = vadd.f32 %v924, %v1012
      %v1045 = vadd.f32 %v925, %v1013
      %v1046 = vadd.f32 %v926, %v1014
      %v1047 = vadd.f32 %v927, %v1015
      %v1048 = vadd.f32 %v928, %v1016
      %s1049 = scalar_lea.vmem %s1, 4
      %v1050 = vld [vmem:[%s1049] sm:$0x1]
      %v1052 = vlaneseq
      %v1053 = vshrl.u32 %v1052, 7
      %v1054 = vsub.s32 0, %v1053
      %v1055 = vrot.slane %v1050, %v1054
      %v1057 = vmul.f32 %v929, %v1055
      %v1058 = vmul.f32 %v930, %v1055
      %v1059 = vmul.f32 %v931, %v1055
      %v1060 = vmul.f32 %v932, %v1055
      %v1061 = vmul.f32 %v933, %v1055
      %v1062 = vmul.f32 %v934, %v1055
      %v1063 = vmul.f32 %v935, %v1055
      %v1064 = vmul.f32 %v936, %v1055
      %v1065 = vmul.f32 %v937, %v1055
      %v1066 = vmul.f32 %v938, %v1055
      %v1067 = vmul.f32 %v939, %v1055
      %v1068 = vmul.f32 %v940, %v1055
      %v1069 = vmul.f32 %v941, %v1055
      %v1070 = vmul.f32 %v942, %v1055
      %v1071 = vmul.f32 %v943, %v1055
      %v1072 = vmul.f32 %v944, %v1055
      %v1073 = vmul.f32 %v945, %v1055
      %v1074 = vmul.f32 %v946, %v1055
      %v1075 = vmul.f32 %v947, %v1055
      %v1076 = vmul.f32 %v948, %v1055
      %v1077 = vmul.f32 %v949, %v1055
      %v1078 = vmul.f32 %v950, %v1055
      %v1079 = vmul.f32 %v951, %v1055
      %v1080 = vmul.f32 %v952, %v1055
      %v1081 = vmul.f32 %v953, %v1055
      %v1082 = vmul.f32 %v954, %v1055
      %v1083 = vmul.f32 %v955, %v1055
      %v1084 = vmul.f32 %v956, %v1055
      %v1085 = vmul.f32 %v957, %v1055
      %v1086 = vmul.f32 %v958, %v1055
      %v1087 = vmul.f32 %v959, %v1055
      %v1088 = vmul.f32 %v960, %v1055
      %v1089 = vmul.f32 %v961, %v1055
      %v1090 = vmul.f32 %v962, %v1055
      %v1091 = vmul.f32 %v963, %v1055
      %v1092 = vmul.f32 %v964, %v1055
      %v1093 = vmul.f32 %v965, %v1055
      %v1094 = vmul.f32 %v966, %v1055
      %v1095 = vmul.f32 %v967, %v1055
      %v1096 = vmul.f32 %v968, %v1055
      %v1097 = vmul.f32 %v969, %v1055
      %v1098 = vmul.f32 %v970, %v1055
      %v1099 = vmul.f32 %v971, %v1055
      %v1100 = vmul.f32 %v972, %v1055
      %v1101 = vmul.f32 %v973, %v1055
      %v1102 = vmul.f32 %v974, %v1055
      %v1103 = vmul.f32 %v975, %v1055
      %v1104 = vmul.f32 %v976, %v1055
      %v1153 = vrot.slane %v1057, 1
      %v1154 = vrot.slane %v1058, 1
      %v1155 = vsel %vm535, %v1153, %v1154
      %v1156 = vrot.slane %v1059, 1
      %v1157 = vsel %vm535, %v1154, %v1156
      %v1158 = vrot.slane %v1060, 1
      %v1159 = vrot.slane %v1061, 1
      %v1160 = vsel %vm535, %v1158, %v1159
      %v1161 = vrot.slane %v1062, 1
      %v1162 = vsel %vm535, %v1159, %v1161
      %v1163 = vrot.slane %v1063, 1
      %v1164 = vrot.slane %v1064, 1
      %v1165 = vsel %vm535, %v1163, %v1164
      %v1166 = vrot.slane %v1065, 1
      %v1167 = vsel %vm535, %v1164, %v1166
      %v1168 = vrot.slane %v1066, 1
      %v1169 = vrot.slane %v1067, 1
      %v1170 = vsel %vm535, %v1168, %v1169
      %v1171 = vrot.slane %v1068, 1
      %v1172 = vsel %vm535, %v1169, %v1171
      %v1173 = vrot.slane %v1069, 1
      %v1174 = vrot.slane %v1070, 1
      %v1175 = vsel %vm535, %v1173, %v1174
      %v1176 = vrot.slane %v1071, 1
      %v1177 = vsel %vm535, %v1174, %v1176
      %v1178 = vrot.slane %v1072, 1
      %v1179 = vrot.slane %v1073, 1
      %v1180 = vsel %vm535, %v1178, %v1179
      %v1181 = vrot.slane %v1074, 1
      %v1182 = vsel %vm535, %v1179, %v1181
      %v1183 = vrot.slane %v1075, 1
      %v1184 = vrot.slane %v1076, 1
      %v1185 = vsel %vm535, %v1183, %v1184
      %v1186 = vrot.slane %v1077, 1
      %v1187 = vsel %vm535, %v1184, %v1186
      %v1188 = vrot.slane %v1078, 1
      %v1189 = vrot.slane %v1079, 1
      %v1190 = vsel %vm535, %v1188, %v1189
      %v1191 = vrot.slane %v1080, 1
      %v1192 = vsel %vm535, %v1189, %v1191
      %v1193 = vrot.slane %v1081, 1
      %v1194 = vrot.slane %v1082, 1
      %v1195 = vsel %vm535, %v1193, %v1194
      %v1196 = vrot.slane %v1083, 1
      %v1197 = vsel %vm535, %v1194, %v1196
      %v1198 = vrot.slane %v1084, 1
      %v1199 = vrot.slane %v1085, 1
      %v1200 = vsel %vm535, %v1198, %v1199
      %v1201 = vrot.slane %v1086, 1
      %v1202 = vsel %vm535, %v1199, %v1201
      %v1203 = vrot.slane %v1087, 1
      %v1204 = vrot.slane %v1088, 1
      %v1205 = vsel %vm535, %v1203, %v1204
      %v1206 = vrot.slane %v1089, 1
      %v1207 = vsel %vm535, %v1204, %v1206
      %v1208 = vrot.slane %v1090, 1
      %v1209 = vrot.slane %v1091, 1
      %v1210 = vsel %vm535, %v1208, %v1209
      %v1211 = vrot.slane %v1092, 1
      %v1212 = vsel %vm535, %v1209, %v1211
      %v1213 = vrot.slane %v1093, 1
      %v1214 = vrot.slane %v1094, 1
      %v1215 = vsel %vm535, %v1213, %v1214
      %v1216 = vrot.slane %v1095, 1
      %v1217 = vsel %vm535, %v1214, %v1216
      %v1218 = vrot.slane %v1096, 1
      %v1219 = vrot.slane %v1097, 1
      %v1220 = vsel %vm535, %v1218, %v1219
      %v1221 = vrot.slane %v1098, 1
      %v1222 = vsel %vm535, %v1219, %v1221
      %v1223 = vrot.slane %v1099, 1
      %v1224 = vrot.slane %v1100, 1
      %v1225 = vsel %vm535, %v1223, %v1224
      %v1226 = vrot.slane %v1101, 1
      %v1227 = vsel %vm535, %v1224, %v1226
      %v1228 = vrot.slane %v1102, 1
      %v1229 = vrot.slane %v1103, 1
      %v1230 = vsel %vm535, %v1228, %v1229
      %v1231 = vrot.slane %v1104, 1
      %v1232 = vsel %vm535, %v1229, %v1231
      %v1265 = vadd.f32 %v1017, %v1155
      %v1266 = vadd.f32 %v1018, %v1157
      %v1267 = vadd.f32 %v1019, %v1160
      %v1268 = vadd.f32 %v1020, %v1162
      %v1269 = vadd.f32 %v1021, %v1165
      %v1270 = vadd.f32 %v1022, %v1167
      %v1271 = vadd.f32 %v1023, %v1170
      %v1272 = vadd.f32 %v1024, %v1172
      %v1273 = vadd.f32 %v1025, %v1175
      %v1274 = vadd.f32 %v1026, %v1177
      %v1275 = vadd.f32 %v1027, %v1180
      %v1276 = vadd.f32 %v1028, %v1182
      %v1277 = vadd.f32 %v1029, %v1185
      %v1278 = vadd.f32 %v1030, %v1187
      %v1279 = vadd.f32 %v1031, %v1190
      %v1280 = vadd.f32 %v1032, %v1192
      %v1281 = vadd.f32 %v1033, %v1195
      %v1282 = vadd.f32 %v1034, %v1197
      %v1283 = vadd.f32 %v1035, %v1200
      %v1284 = vadd.f32 %v1036, %v1202
      %v1285 = vadd.f32 %v1037, %v1205
      %v1286 = vadd.f32 %v1038, %v1207
      %v1287 = vadd.f32 %v1039, %v1210
      %v1288 = vadd.f32 %v1040, %v1212
      %v1289 = vadd.f32 %v1041, %v1215
      %v1290 = vadd.f32 %v1042, %v1217
      %v1291 = vadd.f32 %v1043, %v1220
      %v1292 = vadd.f32 %v1044, %v1222
      %v1293 = vadd.f32 %v1045, %v1225
      %v1294 = vadd.f32 %v1046, %v1227
      %v1295 = vadd.f32 %v1047, %v1230
      %v1296 = vadd.f32 %v1048, %v1232
      %s1297 = scalar_lea.vmem %s1, 5
      %v1298 = vld [vmem:[%s1297] sm:$0x1]
      %v1300 = vlaneseq
      %v1301 = vshrl.u32 %v1300, 7
      %v1302 = vsub.s32 0, %v1301
      %v1303 = vrot.slane %v1298, %v1302
      %v1305 = vmul.f32 %v929, %v1303
      %v1306 = vmul.f32 %v930, %v1303
      %v1307 = vmul.f32 %v931, %v1303
      %v1308 = vmul.f32 %v932, %v1303
      %v1309 = vmul.f32 %v933, %v1303
      %v1310 = vmul.f32 %v934, %v1303
      %v1311 = vmul.f32 %v935, %v1303
      %v1312 = vmul.f32 %v936, %v1303
      %v1313 = vmul.f32 %v937, %v1303
      %v1314 = vmul.f32 %v938, %v1303
      %v1315 = vmul.f32 %v939, %v1303
      %v1316 = vmul.f32 %v940, %v1303
      %v1317 = vmul.f32 %v941, %v1303
      %v1318 = vmul.f32 %v942, %v1303
      %v1319 = vmul.f32 %v943, %v1303
      %v1320 = vmul.f32 %v944, %v1303
      %v1321 = vmul.f32 %v945, %v1303
      %v1322 = vmul.f32 %v946, %v1303
      %v1323 = vmul.f32 %v947, %v1303
      %v1324 = vmul.f32 %v948, %v1303
      %v1325 = vmul.f32 %v949, %v1303
      %v1326 = vmul.f32 %v950, %v1303
      %v1327 = vmul.f32 %v951, %v1303
      %v1328 = vmul.f32 %v952, %v1303
      %v1329 = vmul.f32 %v953, %v1303
      %v1330 = vmul.f32 %v954, %v1303
      %v1331 = vmul.f32 %v955, %v1303
      %v1332 = vmul.f32 %v956, %v1303
      %v1333 = vmul.f32 %v957, %v1303
      %v1334 = vmul.f32 %v958, %v1303
      %v1335 = vmul.f32 %v959, %v1303
      %v1336 = vmul.f32 %v960, %v1303
      %v1337 = vmul.f32 %v961, %v1303
      %v1338 = vmul.f32 %v962, %v1303
      %v1339 = vmul.f32 %v963, %v1303
      %v1340 = vmul.f32 %v964, %v1303
      %v1341 = vmul.f32 %v965, %v1303
      %v1342 = vmul.f32 %v966, %v1303
      %v1343 = vmul.f32 %v967, %v1303
      %v1344 = vmul.f32 %v968, %v1303
      %v1345 = vmul.f32 %v969, %v1303
      %v1346 = vmul.f32 %v970, %v1303
      %v1347 = vmul.f32 %v971, %v1303
      %v1348 = vmul.f32 %v972, %v1303
      %v1349 = vmul.f32 %v973, %v1303
      %v1350 = vmul.f32 %v974, %v1303
      %v1351 = vmul.f32 %v975, %v1303
      %v1352 = vmul.f32 %v976, %v1303
      %v1401 = vrot.slane %v1305, 2
      %v1402 = vrot.slane %v1306, 2
      %v1403 = vsel %vm784, %v1401, %v1402
      %v1404 = vrot.slane %v1307, 2
      %v1405 = vsel %vm784, %v1402, %v1404
      %v1406 = vrot.slane %v1308, 2
      %v1407 = vrot.slane %v1309, 2
      %v1408 = vsel %vm784, %v1406, %v1407
      %v1409 = vrot.slane %v1310, 2
      %v1410 = vsel %vm784, %v1407, %v1409
      %v1411 = vrot.slane %v1311, 2
      %v1412 = vrot.slane %v1312, 2
      %v1413 = vsel %vm784, %v1411, %v1412
      %v1414 = vrot.slane %v1313, 2
      %v1415 = vsel %vm784, %v1412, %v1414
      %v1416 = vrot.slane %v1314, 2
      %v1417 = vrot.slane %v1315, 2
      %v1418 = vsel %vm784, %v1416, %v1417
      %v1419 = vrot.slane %v1316, 2
      %v1420 = vsel %vm784, %v1417, %v1419
      %v1421 = vrot.slane %v1317, 2
      %v1422 = vrot.slane %v1318, 2
      %v1423 = vsel %vm784, %v1421, %v1422
      %v1424 = vrot.slane %v1319, 2
      %v1425 = vsel %vm784, %v1422, %v1424
      %v1426 = vrot.slane %v1320, 2
      %v1427 = vrot.slane %v1321, 2
      %v1428 = vsel %vm784, %v1426, %v1427
      %v1429 = vrot.slane %v1322, 2
      %v1430 = vsel %vm784, %v1427, %v1429
      %v1431 = vrot.slane %v1323, 2
      %v1432 = vrot.slane %v1324, 2
      %v1433 = vsel %vm784, %v1431, %v1432
      %v1434 = vrot.slane %v1325, 2
      %v1435 = vsel %vm784, %v1432, %v1434
      %v1436 = vrot.slane %v1326, 2
      %v1437 = vrot.slane %v1327, 2
      %v1438 = vsel %vm784, %v1436, %v1437
      %v1439 = vrot.slane %v1328, 2
      %v1440 = vsel %vm784, %v1437, %v1439
      %v1441 = vrot.slane %v1329, 2
      %v1442 = vrot.slane %v1330, 2
      %v1443 = vsel %vm784, %v1441, %v1442
      %v1444 = vrot.slane %v1331, 2
      %v1445 = vsel %vm784, %v1442, %v1444
      %v1446 = vrot.slane %v1332, 2
      %v1447 = vrot.slane %v1333, 2
      %v1448 = vsel %vm784, %v1446, %v1447
      %v1449 = vrot.slane %v1334, 2
      %v1450 = vsel %vm784, %v1447, %v1449
      %v1451 = vrot.slane %v1335, 2
      %v1452 = vrot.slane %v1336, 2
      %v1453 = vsel %vm784, %v1451, %v1452
      %v1454 = vrot.slane %v1337, 2
      %v1455 = vsel %vm784, %v1452, %v1454
      %v1456 = vrot.slane %v1338, 2
      %v1457 = vrot.slane %v1339, 2
      %v1458 = vsel %vm784, %v1456, %v1457
      %v1459 = vrot.slane %v1340, 2
      %v1460 = vsel %vm784, %v1457, %v1459
      %v1461 = vrot.slane %v1341, 2
      %v1462 = vrot.slane %v1342, 2
      %v1463 = vsel %vm784, %v1461, %v1462
      %v1464 = vrot.slane %v1343, 2
      %v1465 = vsel %vm784, %v1462, %v1464
      %v1466 = vrot.slane %v1344, 2
      %v1467 = vrot.slane %v1345, 2
      %v1468 = vsel %vm784, %v1466, %v1467
      %v1469 = vrot.slane %v1346, 2
      %v1470 = vsel %vm784, %v1467, %v1469
      %v1471 = vrot.slane %v1347, 2
      %v1472 = vrot.slane %v1348, 2
      %v1473 = vsel %vm784, %v1471, %v1472
      %v1474 = vrot.slane %v1349, 2
      %v1475 = vsel %vm784, %v1472, %v1474
      %v1476 = vrot.slane %v1350, 2
      %v1477 = vrot.slane %v1351, 2
      %v1478 = vsel %vm784, %v1476, %v1477
      %v1479 = vrot.slane %v1352, 2
      %v1480 = vsel %vm784, %v1477, %v1479
      %v1513 = vadd.f32 %v1265, %v1403
      %v1514 = vadd.f32 %v1266, %v1405
      %v1515 = vadd.f32 %v1267, %v1408
      %v1516 = vadd.f32 %v1268, %v1410
      %v1517 = vadd.f32 %v1269, %v1413
      %v1518 = vadd.f32 %v1270, %v1415
      %v1519 = vadd.f32 %v1271, %v1418
      %v1520 = vadd.f32 %v1272, %v1420
      %v1521 = vadd.f32 %v1273, %v1423
      %v1522 = vadd.f32 %v1274, %v1425
      %v1523 = vadd.f32 %v1275, %v1428
      %v1524 = vadd.f32 %v1276, %v1430
      %v1525 = vadd.f32 %v1277, %v1433
      %v1526 = vadd.f32 %v1278, %v1435
      %v1527 = vadd.f32 %v1279, %v1438
      %v1528 = vadd.f32 %v1280, %v1440
      %v1529 = vadd.f32 %v1281, %v1443
      %v1530 = vadd.f32 %v1282, %v1445
      %v1531 = vadd.f32 %v1283, %v1448
      %v1532 = vadd.f32 %v1284, %v1450
      %v1533 = vadd.f32 %v1285, %v1453
      %v1534 = vadd.f32 %v1286, %v1455
      %v1535 = vadd.f32 %v1287, %v1458
      %v1536 = vadd.f32 %v1288, %v1460
      %v1537 = vadd.f32 %v1289, %v1463
      %v1538 = vadd.f32 %v1290, %v1465
      %v1539 = vadd.f32 %v1291, %v1468
      %v1540 = vadd.f32 %v1292, %v1470
      %v1541 = vadd.f32 %v1293, %v1473
      %v1542 = vadd.f32 %v1294, %v1475
      %v1543 = vadd.f32 %v1295, %v1478
      %v1544 = vadd.f32 %v1296, %v1480
      %s1545 = scalar_lea.vmem [#allocation2], 64
      %v1546 = vld [vmem:[%s1545] sm:$0xff]
      %v1547 = vld [vmem:[%s1545 + $0x8] sm:$0xff]
      %v1548 = vld [vmem:[%s1545 + $0x10] sm:$0x3]
      %v1549 = vld [vmem:[%s1545 + $0x20] sm:$0xff]
      %v1550 = vld [vmem:[%s1545 + $0x28] sm:$0xff]
      %v1551 = vld [vmem:[%s1545 + $0x30] sm:$0x3]
      %v1552 = vld [vmem:[%s1545 + $0x40] sm:$0xff]
      %v1553 = vld [vmem:[%s1545 + $0x48] sm:$0xff]
      %v1554 = vld [vmem:[%s1545 + $0x50] sm:$0x3]
      %v1555 = vld [vmem:[%s1545 + $0x60] sm:$0xff]
      %v1556 = vld [vmem:[%s1545 + $0x68] sm:$0xff]
      %v1557 = vld [vmem:[%s1545 + $0x70] sm:$0x3]
      %v1558 = vld [vmem:[%s1545 + $0x80] sm:$0xff]
      %v1559 = vld [vmem:[%s1545 + $0x88] sm:$0xff]
      %v1560 = vld [vmem:[%s1545 + $0x90] sm:$0x3]
      %v1561 = vld [vmem:[%s1545 + $0xa0] sm:$0xff]
      %v1562 = vld [vmem:[%s1545 + $0xa8] sm:$0xff]
      %v1563 = vld [vmem:[%s1545 + $0xb0] sm:$0x3]
      %v1564 = vld [vmem:[%s1545 + $0xc0] sm:$0xff]
      %v1565 = vld [vmem:[%s1545 + $0xc8] sm:$0xff]
      %v1566 = vld [vmem:[%s1545 + $0xd0] sm:$0x3]
      %v1567 = vld [vmem:[%s1545 + $0xe0] sm:$0xff]
      %v1568 = vld [vmem:[%s1545 + $0xe8] sm:$0xff]
      %v1569 = vld [vmem:[%s1545 + $0xf0] sm:$0x3]
      %v1570 = vld [vmem:[%s1545 + $0x100] sm:$0xff]
      %v1571 = vld [vmem:[%s1545 + $0x108] sm:$0xff]
      %v1572 = vld [vmem:[%s1545 + $0x110] sm:$0x3]
      %v1573 = vld [vmem:[%s1545 + $0x120] sm:$0xff]
      %v1574 = vld [vmem:[%s1545 + $0x128] sm:$0xff]
      %v1575 = vld [vmem:[%s1545 + $0x130] sm:$0x3]
      %v1576 = vld [vmem:[%s1545 + $0x140] sm:$0xff]
      %v1577 = vld [vmem:[%s1545 + $0x148] sm:$0xff]
      %v1578 = vld [vmem:[%s1545 + $0x150] sm:$0x3]
      %v1579 = vld [vmem:[%s1545 + $0x160] sm:$0xff]
      %v1580 = vld [vmem:[%s1545 + $0x168] sm:$0xff]
      %v1581 = vld [vmem:[%s1545 + $0x170] sm:$0x3]
      %v1582 = vld [vmem:[%s1545 + $0x180] sm:$0xff]
      %v1583 = vld [vmem:[%s1545 + $0x188] sm:$0xff]
      %v1584 = vld [vmem:[%s1545 + $0x190] sm:$0x3]
      %v1585 = vld [vmem:[%s1545 + $0x1a0] sm:$0xff]
      %v1586 = vld [vmem:[%s1545 + $0x1a8] sm:$0xff]
      %v1587 = vld [vmem:[%s1545 + $0x1b0] sm:$0x3]
      %v1588 = vld [vmem:[%s1545 + $0x1c0] sm:$0xff]
      %v1589 = vld [vmem:[%s1545 + $0x1c8] sm:$0xff]
      %v1590 = vld [vmem:[%s1545 + $0x1d0] sm:$0x3]
      %v1591 = vld [vmem:[%s1545 + $0x1e0] sm:$0xff]
      %v1592 = vld [vmem:[%s1545 + $0x1e8] sm:$0xff]
      %v1593 = vld [vmem:[%s1545 + $0x1f0] sm:$0x3]
      %s1594 = scalar_lea.vmem %s1, 6
      %v1595 = vld [vmem:[%s1594] sm:$0x1]
      %v1597 = vlaneseq
      %v1598 = vshrl.u32 %v1597, 7
      %v1599 = vsub.s32 0, %v1598
      %v1600 = vrot.slane %v1595, %v1599
      %v1602 = vmul.f32 %v1546, %v1600
      %v1603 = vmul.f32 %v1547, %v1600
      %v1604 = vmul.f32 %v1549, %v1600
      %v1605 = vmul.f32 %v1550, %v1600
      %v1606 = vmul.f32 %v1552, %v1600
      %v1607 = vmul.f32 %v1553, %v1600
      %v1608 = vmul.f32 %v1555, %v1600
      %v1609 = vmul.f32 %v1556, %v1600
      %v1610 = vmul.f32 %v1558, %v1600
      %v1611 = vmul.f32 %v1559, %v1600
      %v1612 = vmul.f32 %v1561, %v1600
      %v1613 = vmul.f32 %v1562, %v1600
      %v1614 = vmul.f32 %v1564, %v1600
      %v1615 = vmul.f32 %v1565, %v1600
      %v1616 = vmul.f32 %v1567, %v1600
      %v1617 = vmul.f32 %v1568, %v1600
      %v1618 = vmul.f32 %v1570, %v1600
      %v1619 = vmul.f32 %v1571, %v1600
      %v1620 = vmul.f32 %v1573, %v1600
      %v1621 = vmul.f32 %v1574, %v1600
      %v1622 = vmul.f32 %v1576, %v1600
      %v1623 = vmul.f32 %v1577, %v1600
      %v1624 = vmul.f32 %v1579, %v1600
      %v1625 = vmul.f32 %v1580, %v1600
      %v1626 = vmul.f32 %v1582, %v1600
      %v1627 = vmul.f32 %v1583, %v1600
      %v1628 = vmul.f32 %v1585, %v1600
      %v1629 = vmul.f32 %v1586, %v1600
      %v1630 = vmul.f32 %v1588, %v1600
      %v1631 = vmul.f32 %v1589, %v1600
      %v1632 = vmul.f32 %v1591, %v1600
      %v1633 = vmul.f32 %v1592, %v1600
      %v1634 = vadd.f32 %v1513, %v1602
      %v1635 = vadd.f32 %v1514, %v1603
      %v1636 = vadd.f32 %v1515, %v1604
      %v1637 = vadd.f32 %v1516, %v1605
      %v1638 = vadd.f32 %v1517, %v1606
      %v1639 = vadd.f32 %v1518, %v1607
      %v1640 = vadd.f32 %v1519, %v1608
      %v1641 = vadd.f32 %v1520, %v1609
      %v1642 = vadd.f32 %v1521, %v1610
      %v1643 = vadd.f32 %v1522, %v1611
      %v1644 = vadd.f32 %v1523, %v1612
      %v1645 = vadd.f32 %v1524, %v1613
      %v1646 = vadd.f32 %v1525, %v1614
      %v1647 = vadd.f32 %v1526, %v1615
      %v1648 = vadd.f32 %v1527, %v1616
      %v1649 = vadd.f32 %v1528, %v1617
      %v1650 = vadd.f32 %v1529, %v1618
      %v1651 = vadd.f32 %v1530, %v1619
      %v1652 = vadd.f32 %v1531, %v1620
      %v1653 = vadd.f32 %v1532, %v1621
      %v1654 = vadd.f32 %v1533, %v1622
      %v1655 = vadd.f32 %v1534, %v1623
      %v1656 = vadd.f32 %v1535, %v1624
      %v1657 = vadd.f32 %v1536, %v1625
      %v1658 = vadd.f32 %v1537, %v1626
      %v1659 = vadd.f32 %v1538, %v1627
      %v1660 = vadd.f32 %v1539, %v1628
      %v1661 = vadd.f32 %v1540, %v1629
      %v1662 = vadd.f32 %v1541, %v1630
      %v1663 = vadd.f32 %v1542, %v1631
      %v1664 = vadd.f32 %v1543, %v1632
      %v1665 = vadd.f32 %v1544, %v1633
      %s1666 = scalar_lea.vmem %s1, 7
      %v1667 = vld [vmem:[%s1666] sm:$0x1]
      %v1669 = vlaneseq
      %v1670 = vshrl.u32 %v1669, 7
      %v1671 = vsub.s32 0, %v1670
      %v1672 = vrot.slane %v1667, %v1671
      %v1674 = vmul.f32 %v1546, %v1672
      %v1675 = vmul.f32 %v1547, %v1672
      %v1676 = vmul.f32 %v1548, %v1672
      %v1677 = vmul.f32 %v1549, %v1672
      %v1678 = vmul.f32 %v1550, %v1672
      %v1679 = vmul.f32 %v1551, %v1672
      %v1680 = vmul.f32 %v1552, %v1672
      %v1681 = vmul.f32 %v1553, %v1672
      %v1682 = vmul.f32 %v1554, %v1672
      %v1683 = vmul.f32 %v1555, %v1672
      %v1684 = vmul.f32 %v1556, %v1672
      %v1685 = vmul.f32 %v1557, %v1672
      %v1686 = vmul.f32 %v1558, %v1672
      %v1687 = vmul.f32 %v1559, %v1672
      %v1688 = vmul.f32 %v1560, %v1672
      %v1689 = vmul.f32 %v1561, %v1672
      %v1690 = vmul.f32 %v1562, %v1672
      %v1691 = vmul.f32 %v1563, %v1672
      %v1692 = vmul.f32 %v1564, %v1672
      %v1693 = vmul.f32 %v1565, %v1672
      %v1694 = vmul.f32 %v1566, %v1672
      %v1695 = vmul.f32 %v1567, %v1672
      %v1696 = vmul.f32 %v1568, %v1672
      %v1697 = vmul.f32 %v1569, %v1672
      %v1698 = vmul.f32 %v1570, %v1672
      %v1699 = vmul.f32 %v1571, %v1672
      %v1700 = vmul.f32 %v1572, %v1672
      %v1701 = vmul.f32 %v1573, %v1672
      %v1702 = vmul.f32 %v1574, %v1672
      %v1703 = vmul.f32 %v1575, %v1672
      %v1704 = vmul.f32 %v1576, %v1672
      %v1705 = vmul.f32 %v1577, %v1672
      %v1706 = vmul.f32 %v1578, %v1672
      %v1707 = vmul.f32 %v1579, %v1672
      %v1708 = vmul.f32 %v1580, %v1672
      %v1709 = vmul.f32 %v1581, %v1672
      %v1710 = vmul.f32 %v1582, %v1672
      %v1711 = vmul.f32 %v1583, %v1672
      %v1712 = vmul.f32 %v1584, %v1672
      %v1713 = vmul.f32 %v1585, %v1672
      %v1714 = vmul.f32 %v1586, %v1672
      %v1715 = vmul.f32 %v1587, %v1672
      %v1716 = vmul.f32 %v1588, %v1672
      %v1717 = vmul.f32 %v1589, %v1672
      %v1718 = vmul.f32 %v1590, %v1672
      %v1719 = vmul.f32 %v1591, %v1672
      %v1720 = vmul.f32 %v1592, %v1672
      %v1721 = vmul.f32 %v1593, %v1672
      %v1770 = vrot.slane %v1674, 1
      %v1771 = vrot.slane %v1675, 1
      %v1772 = vsel %vm535, %v1770, %v1771
      %v1773 = vrot.slane %v1676, 1
      %v1774 = vsel %vm535, %v1771, %v1773
      %v1775 = vrot.slane %v1677, 1
      %v1776 = vrot.slane %v1678, 1
      %v1777 = vsel %vm535, %v1775, %v1776
      %v1778 = vrot.slane %v1679, 1
      %v1779 = vsel %vm535, %v1776, %v1778
      %v1780 = vrot.slane %v1680, 1
      %v1781 = vrot.slane %v1681, 1
      %v1782 = vsel %vm535, %v1780, %v1781
      %v1783 = vrot.slane %v1682, 1
      %v1784 = vsel %vm535, %v1781, %v1783
      %v1785 = vrot.slane %v1683, 1
      %v1786 = vrot.slane %v1684, 1
      %v1787 = vsel %vm535, %v1785, %v1786
      %v1788 = vrot.slane %v1685, 1
      %v1789 = vsel %vm535, %v1786, %v1788
      %v1790 = vrot.slane %v1686, 1
      %v1791 = vrot.slane %v1687, 1
      %v1792 = vsel %vm535, %v1790, %v1791
      %v1793 = vrot.slane %v1688, 1
      %v1794 = vsel %vm535, %v1791, %v1793
      %v1795 = vrot.slane %v1689, 1
      %v1796 = vrot.slane %v1690, 1
      %v1797 = vsel %vm535, %v1795, %v1796
      %v1798 = vrot.slane %v1691, 1
      %v1799 = vsel %vm535, %v1796, %v1798
      %v1800 = vrot.slane %v1692, 1
      %v1801 = vrot.slane %v1693, 1
      %v1802 = vsel %vm535, %v1800, %v1801
      %v1803 = vrot.slane %v1694, 1
      %v1804 = vsel %vm535, %v1801, %v1803
      %v1805 = vrot.slane %v1695, 1
      %v1806 = vrot.slane %v1696, 1
      %v1807 = vsel %vm535, %v1805, %v1806
      %v1808 = vrot.slane %v1697, 1
      %v1809 = vsel %vm535, %v1806, %v1808
      %v1810 = vrot.slane %v1698, 1
      %v1811 = vrot.slane %v1699, 1
      %v1812 = vsel %vm535, %v1810, %v1811
      %v1813 = vrot.slane %v1700, 1
      %v1814 = vsel %vm535, %v1811, %v1813
      %v1815 = vrot.slane %v1701, 1
      %v1816 = vrot.slane %v1702, 1
      %v1817 = vsel %vm535, %v1815, %v1816
      %v1818 = vrot.slane %v1703, 1
      %v1819 = vsel %vm535, %v1816, %v1818
      %v1820 = vrot.slane %v1704, 1
      %v1821 = vrot.slane %v1705, 1
      %v1822 = vsel %vm535, %v1820, %v1821
      %v1823 = vrot.slane %v1706, 1
      %v1824 = vsel %vm535, %v1821, %v1823
      %v1825 = vrot.slane %v1707, 1
      %v1826 = vrot.slane %v1708, 1
      %v1827 = vsel %vm535, %v1825, %v1826
      %v1828 = vrot.slane %v1709, 1
      %v1829 = vsel %vm535, %v1826, %v1828
      %v1830 = vrot.slane %v1710, 1
      %v1831 = vrot.slane %v1711, 1
      %v1832 = vsel %vm535, %v1830, %v1831
      %v1833 = vrot.slane %v1712, 1
      %v1834 = vsel %vm535, %v1831, %v1833
      %v1835 = vrot.slane %v1713, 1
      %v1836 = vrot.slane %v1714, 1
      %v1837 = vsel %vm535, %v1835, %v1836
      %v1838 = vrot.slane %v1715, 1
      %v1839 = vsel %vm535, %v1836, %v1838
      %v1840 = vrot.slane %v1716, 1
      %v1841 = vrot.slane %v1717, 1
      %v1842 = vsel %vm535, %v1840, %v1841
      %v1843 = vrot.slane %v1718, 1
      %v1844 = vsel %vm535, %v1841, %v1843
      %v1845 = vrot.slane %v1719, 1
      %v1846 = vrot.slane %v1720, 1
      %v1847 = vsel %vm535, %v1845, %v1846
      %v1848 = vrot.slane %v1721, 1
      %v1849 = vsel %vm535, %v1846, %v1848
      %v1882 = vadd.f32 %v1634, %v1772
      %v1883 = vadd.f32 %v1635, %v1774
      %v1884 = vadd.f32 %v1636, %v1777
      %v1885 = vadd.f32 %v1637, %v1779
      %v1886 = vadd.f32 %v1638, %v1782
      %v1887 = vadd.f32 %v1639, %v1784
      %v1888 = vadd.f32 %v1640, %v1787
      %v1889 = vadd.f32 %v1641, %v1789
      %v1890 = vadd.f32 %v1642, %v1792
      %v1891 = vadd.f32 %v1643, %v1794
      %v1892 = vadd.f32 %v1644, %v1797
      %v1893 = vadd.f32 %v1645, %v1799
      %v1894 = vadd.f32 %v1646, %v1802
      %v1895 = vadd.f32 %v1647, %v1804
      %v1896 = vadd.f32 %v1648, %v1807
      %v1897 = vadd.f32 %v1649, %v1809
      %v1898 = vadd.f32 %v1650, %v1812
      %v1899 = vadd.f32 %v1651, %v1814
      %v1900 = vadd.f32 %v1652, %v1817
      %v1901 = vadd.f32 %v1653, %v1819
      %v1902 = vadd.f32 %v1654, %v1822
      %v1903 = vadd.f32 %v1655, %v1824
      %v1904 = vadd.f32 %v1656, %v1827
      %v1905 = vadd.f32 %v1657, %v1829
      %v1906 = vadd.f32 %v1658, %v1832
      %v1907 = vadd.f32 %v1659, %v1834
      %v1908 = vadd.f32 %v1660, %v1837
      %v1909 = vadd.f32 %v1661, %v1839
      %v1910 = vadd.f32 %v1662, %v1842
      %v1911 = vadd.f32 %v1663, %v1844
      %v1912 = vadd.f32 %v1664, %v1847
      %v1913 = vadd.f32 %v1665, %v1849
      %s1914 = scalar_lea.vmem %s1, 8
      %v1915 = vld [vmem:[%s1914] sm:$0x1]
      %v1917 = vlaneseq
      %v1918 = vshrl.u32 %v1917, 7
      %v1919 = vsub.s32 0, %v1918
      %v1920 = vrot.slane %v1915, %v1919
      %v1922 = vmul.f32 %v1546, %v1920
      %v1923 = vmul.f32 %v1547, %v1920
      %v1924 = vmul.f32 %v1548, %v1920
      %v1925 = vmul.f32 %v1549, %v1920
      %v1926 = vmul.f32 %v1550, %v1920
      %v1927 = vmul.f32 %v1551, %v1920
      %v1928 = vmul.f32 %v1552, %v1920
      %v1929 = vmul.f32 %v1553, %v1920
      %v1930 = vmul.f32 %v1554, %v1920
      %v1931 = vmul.f32 %v1555, %v1920
      %v1932 = vmul.f32 %v1556, %v1920
      %v1933 = vmul.f32 %v1557, %v1920
      %v1934 = vmul.f32 %v1558, %v1920
      %v1935 = vmul.f32 %v1559, %v1920
      %v1936 = vmul.f32 %v1560, %v1920
      %v1937 = vmul.f32 %v1561, %v1920
      %v1938 = vmul.f32 %v1562, %v1920
      %v1939 = vmul.f32 %v1563, %v1920
      %v1940 = vmul.f32 %v1564, %v1920
      %v1941 = vmul.f32 %v1565, %v1920
      %v1942 = vmul.f32 %v1566, %v1920
      %v1943 = vmul.f32 %v1567, %v1920
      %v1944 = vmul.f32 %v1568, %v1920
      %v1945 = vmul.f32 %v1569, %v1920
      %v1946 = vmul.f32 %v1570, %v1920
      %v1947 = vmul.f32 %v1571, %v1920
      %v1948 = vmul.f32 %v1572, %v1920
      %v1949 = vmul.f32 %v1573, %v1920
      %v1950 = vmul.f32 %v1574, %v1920
      %v1951 = vmul.f32 %v1575, %v1920
      %v1952 = vmul.f32 %v1576, %v1920
      %v1953 = vmul.f32 %v1577, %v1920
      %v1954 = vmul.f32 %v1578, %v1920
      %v1955 = vmul.f32 %v1579, %v1920
      %v1956 = vmul.f32 %v1580, %v1920
      %v1957 = vmul.f32 %v1581, %v1920
      %v1958 = vmul.f32 %v1582, %v1920
      %v1959 = vmul.f32 %v1583, %v1920
      %v1960 = vmul.f32 %v1584, %v1920
      %v1961 = vmul.f32 %v1585, %v1920
      %v1962 = vmul.f32 %v1586, %v1920
      %v1963 = vmul.f32 %v1587, %v1920
      %v1964 = vmul.f32 %v1588, %v1920
      %v1965 = vmul.f32 %v1589, %v1920
      %v1966 = vmul.f32 %v1590, %v1920
      %v1967 = vmul.f32 %v1591, %v1920
      %v1968 = vmul.f32 %v1592, %v1920
      %v1969 = vmul.f32 %v1593, %v1920
      %v2018 = vrot.slane %v1922, 2
      %v2019 = vrot.slane %v1923, 2
      %v2020 = vsel %vm784, %v2018, %v2019
      %v2021 = vrot.slane %v1924, 2
      %v2022 = vsel %vm784, %v2019, %v2021
      %v2023 = vrot.slane %v1925, 2
      %v2024 = vrot.slane %v1926, 2
      %v2025 = vsel %vm784, %v2023, %v2024
      %v2026 = vrot.slane %v1927, 2
      %v2027 = vsel %vm784, %v2024, %v2026
      %v2028 = vrot.slane %v1928, 2
      %v2029 = vrot.slane %v1929, 2
      %v2030 = vsel %vm784, %v2028, %v2029
      %v2031 = vrot.slane %v1930, 2
      %v2032 = vsel %vm784, %v2029, %v2031
      %v2033 = vrot.slane %v1931, 2
      %v2034 = vrot.slane %v1932, 2
      %v2035 = vsel %vm784, %v2033, %v2034
      %v2036 = vrot.slane %v1933, 2
      %v2037 = vsel %vm784, %v2034, %v2036
      %v2038 = vrot.slane %v1934, 2
      %v2039 = vrot.slane %v1935, 2
      %v2040 = vsel %vm784, %v2038, %v2039
      %v2041 = vrot.slane %v1936, 2
      %v2042 = vsel %vm784, %v2039, %v2041
      %v2043 = vrot.slane %v1937, 2
      %v2044 = vrot.slane %v1938, 2
      %v2045 = vsel %vm784, %v2043, %v2044
      %v2046 = vrot.slane %v1939, 2
      %v2047 = vsel %vm784, %v2044, %v2046
      %v2048 = vrot.slane %v1940, 2
      %v2049 = vrot.slane %v1941, 2
      %v2050 = vsel %vm784, %v2048, %v2049
      %v2051 = vrot.slane %v1942, 2
      %v2052 = vsel %vm784, %v2049, %v2051
      %v2053 = vrot.slane %v1943, 2
      %v2054 = vrot.slane %v1944, 2
      %v2055 = vsel %vm784, %v2053, %v2054
      %v2056 = vrot.slane %v1945, 2
      %v2057 = vsel %vm784, %v2054, %v2056
      %v2058 = vrot.slane %v1946, 2
      %v2059 = vrot.slane %v1947, 2
      %v2060 = vsel %vm784, %v2058, %v2059
      %v2061 = vrot.slane %v1948, 2
      %v2062 = vsel %vm784, %v2059, %v2061
      %v2063 = vrot.slane %v1949, 2
      %v2064 = vrot.slane %v1950, 2
      %v2065 = vsel %vm784, %v2063, %v2064
      %v2066 = vrot.slane %v1951, 2
      %v2067 = vsel %vm784, %v2064, %v2066
      %v2068 = vrot.slane %v1952, 2
      %v2069 = vrot.slane %v1953, 2
      %v2070 = vsel %vm784, %v2068, %v2069
      %v2071 = vrot.slane %v1954, 2
      %v2072 = vsel %vm784, %v2069, %v2071
      %v2073 = vrot.slane %v1955, 2
      %v2074 = vrot.slane %v1956, 2
      %v2075 = vsel %vm784, %v2073, %v2074
      %v2076 = vrot.slane %v1957, 2
      %v2077 = vsel %vm784, %v2074, %v2076
      %v2078 = vrot.slane %v1958, 2
      %v2079 = vrot.slane %v1959, 2
      %v2080 = vsel %vm784, %v2078, %v2079
      %v2081 = vrot.slane %v1960, 2
      %v2082 = vsel %vm784, %v2079, %v2081
      %v2083 = vrot.slane %v1961, 2
      %v2084 = vrot.slane %v1962, 2
      %v2085 = vsel %vm784, %v2083, %v2084
      %v2086 = vrot.slane %v1963, 2
      %v2087 = vsel %vm784, %v2084, %v2086
      %v2088 = vrot.slane %v1964, 2
      %v2089 = vrot.slane %v1965, 2
      %v2090 = vsel %vm784, %v2088, %v2089
      %v2091 = vrot.slane %v1966, 2
      %v2092 = vsel %vm784, %v2089, %v2091
      %v2093 = vrot.slane %v1967, 2
      %v2094 = vrot.slane %v1968, 2
      %v2095 = vsel %vm784, %v2093, %v2094
      %v2096 = vrot.slane %v1969, 2
      %v2097 = vsel %vm784, %v2094, %v2096
      %v2130 = vadd.f32 %v1882, %v2020
      %v2131 = vadd.f32 %v1883, %v2022
      %v2132 = vadd.f32 %v1884, %v2025
      %v2133 = vadd.f32 %v1885, %v2027
      %v2134 = vadd.f32 %v1886, %v2030
      %v2135 = vadd.f32 %v1887, %v2032
      %v2136 = vadd.f32 %v1888, %v2035
      %v2137 = vadd.f32 %v1889, %v2037
      %v2138 = vadd.f32 %v1890, %v2040
      %v2139 = vadd.f32 %v1891, %v2042
      %v2140 = vadd.f32 %v1892, %v2045
      %v2141 = vadd.f32 %v1893, %v2047
      %v2142 = vadd.f32 %v1894, %v2050
      %v2143 = vadd.f32 %v1895, %v2052
      %v2144 = vadd.f32 %v1896, %v2055
      %v2145 = vadd.f32 %v1897, %v2057
      %v2146 = vadd.f32 %v1898, %v2060
      %v2147 = vadd.f32 %v1899, %v2062
      %v2148 = vadd.f32 %v1900, %v2065
      %v2149 = vadd.f32 %v1901, %v2067
      %v2150 = vadd.f32 %v1902, %v2070
      %v2151 = vadd.f32 %v1903, %v2072
      %v2152 = vadd.f32 %v1904, %v2075
      %v2153 = vadd.f32 %v1905, %v2077
      %v2154 = vadd.f32 %v1906, %v2080
      %v2155 = vadd.f32 %v1907, %v2082
      %v2156 = vadd.f32 %v1908, %v2085
      %v2157 = vadd.f32 %v1909, %v2087
      %v2158 = vadd.f32 %v1910, %v2090
      %v2159 = vadd.f32 %v1911, %v2092
      %v2160 = vadd.f32 %v1912, %v2095
      %v2161 = vadd.f32 %v1913, %v2097
      %v2162 = vld [vmem:[%s3] sm:$0x1]
      %vm2163 = vcmp.ge.f32.partialorder %v2130, 0.0
      %vm2164 = vcmp.ge.f32.partialorder %v2131, 0.0
      %vm2165 = vcmp.ge.f32.partialorder %v2132, 0.0
      %vm2166 = vcmp.ge.f32.partialorder %v2133, 0.0
      %vm2167 = vcmp.ge.f32.partialorder %v2134, 0.0
      %vm2168 = vcmp.ge.f32.partialorder %v2135, 0.0
      %vm2169 = vcmp.ge.f32.partialorder %v2136, 0.0
      %vm2170 = vcmp.ge.f32.partialorder %v2137, 0.0
      %vm2171 = vcmp.ge.f32.partialorder %v2138, 0.0
      %vm2172 = vcmp.ge.f32.partialorder %v2139, 0.0
      %vm2173 = vcmp.ge.f32.partialorder %v2140, 0.0
      %vm2174 = vcmp.ge.f32.partialorder %v2141, 0.0
      %vm2175 = vcmp.ge.f32.partialorder %v2142, 0.0
      %vm2176 = vcmp.ge.f32.partialorder %v2143, 0.0
      %vm2177 = vcmp.ge.f32.partialorder %v2144, 0.0
      %vm2178 = vcmp.ge.f32.partialorder %v2145, 0.0
      %vm2179 = vcmp.ge.f32.partialorder %v2146, 0.0
      %vm2180 = vcmp.ge.f32.partialorder %v2147, 0.0
      %vm2181 = vcmp.ge.f32.partialorder %v2148, 0.0
      %vm2182 = vcmp.ge.f32.partialorder %v2149, 0.0
      %vm2183 = vcmp.ge.f32.partialorder %v2150, 0.0
      %vm2184 = vcmp.ge.f32.partialorder %v2151, 0.0
      %vm2185 = vcmp.ge.f32.partialorder %v2152, 0.0
      %vm2186 = vcmp.ge.f32.partialorder %v2153, 0.0
      %vm2187 = vcmp.ge.f32.partialorder %v2154, 0.0
      %vm2188 = vcmp.ge.f32.partialorder %v2155, 0.0
      %vm2189 = vcmp.ge.f32.partialorder %v2156, 0.0
      %vm2190 = vcmp.ge.f32.partialorder %v2157, 0.0
      %vm2191 = vcmp.ge.f32.partialorder %v2158, 0.0
      %vm2192 = vcmp.ge.f32.partialorder %v2159, 0.0
      %vm2193 = vcmp.ge.f32.partialorder %v2160, 0.0
      %vm2194 = vcmp.ge.f32.partialorder %v2161, 0.0
      %v2196 = vlaneseq
      %v2197 = vshrl.u32 %v2196, 7
      %v2198 = vsub.s32 0, %v2197
      %v2199 = vrot.slane %v2162, %v2198
      %v2201 = vmul.f32 %v2130, %v2199
      %v2202 = vmul.f32 %v2131, %v2199
      %v2203 = vmul.f32 %v2132, %v2199
      %v2204 = vmul.f32 %v2133, %v2199
      %v2205 = vmul.f32 %v2134, %v2199
      %v2206 = vmul.f32 %v2135, %v2199
      %v2207 = vmul.f32 %v2136, %v2199
      %v2208 = vmul.f32 %v2137, %v2199
      %v2209 = vmul.f32 %v2138, %v2199
      %v2210 = vmul.f32 %v2139, %v2199
      %v2211 = vmul.f32 %v2140, %v2199
      %v2212 = vmul.f32 %v2141, %v2199
      %v2213 = vmul.f32 %v2142, %v2199
      %v2214 = vmul.f32 %v2143, %v2199
      %v2215 = vmul.f32 %v2144, %v2199
      %v2216 = vmul.f32 %v2145, %v2199
      %v2217 = vmul.f32 %v2146, %v2199
      %v2218 = vmul.f32 %v2147, %v2199
      %v2219 = vmul.f32 %v2148, %v2199
      %v2220 = vmul.f32 %v2149, %v2199
      %v2221 = vmul.f32 %v2150, %v2199
      %v2222 = vmul.f32 %v2151, %v2199
      %v2223 = vmul.f32 %v2152, %v2199
      %v2224 = vmul.f32 %v2153, %v2199
      %v2225 = vmul.f32 %v2154, %v2199
      %v2226 = vmul.f32 %v2155, %v2199
      %v2227 = vmul.f32 %v2156, %v2199
      %v2228 = vmul.f32 %v2157, %v2199
      %v2229 = vmul.f32 %v2158, %v2199
      %v2230 = vmul.f32 %v2159, %v2199
      %v2231 = vmul.f32 %v2160, %v2199
      %v2232 = vmul.f32 %v2161, %v2199
      %v2233 = vsel %vm2163, %v2130, %v2201
      %v2234 = vsel %vm2164, %v2131, %v2202
      %v2235 = vsel %vm2165, %v2132, %v2203
      %v2236 = vsel %vm2166, %v2133, %v2204
      %v2237 = vsel %vm2167, %v2134, %v2205
      %v2238 = vsel %vm2168, %v2135, %v2206
      %v2239 = vsel %vm2169, %v2136, %v2207
      %v2240 = vsel %vm2170, %v2137, %v2208
      %v2241 = vsel %vm2171, %v2138, %v2209
      %v2242 = vsel %vm2172, %v2139, %v2210
      %v2243 = vsel %vm2173, %v2140, %v2211
      %v2244 = vsel %vm2174, %v2141, %v2212
      %v2245 = vsel %vm2175, %v2142, %v2213
      %v2246 = vsel %vm2176, %v2143, %v2214
      %v2247 = vsel %vm2177, %v2144, %v2215
      %v2248 = vsel %vm2178, %v2145, %v2216
      %v2249 = vsel %vm2179, %v2146, %v2217
      %v2250 = vsel %vm2180, %v2147, %v2218
      %v2251 = vsel %vm2181, %v2148, %v2219
      %v2252 = vsel %vm2182, %v2149, %v2220
      %v2253 = vsel %vm2183, %v2150, %v2221
      %v2254 = vsel %vm2184, %v2151, %v2222
      %v2255 = vsel %vm2185, %v2152, %v2223
      %v2256 = vsel %vm2186, %v2153, %v2224
      %v2257 = vsel %vm2187, %v2154, %v2225
      %v2258 = vsel %vm2188, %v2155, %v2226
      %v2259 = vsel %vm2189, %v2156, %v2227
      %v2260 = vsel %vm2190, %v2157, %v2228
      %v2261 = vsel %vm2191, %v2158, %v2229
      %v2262 = vsel %vm2192, %v2159, %v2230
      %v2263 = vsel %vm2193, %v2160, %v2231
      %v2264 = vsel %vm2194, %v2161, %v2232
      %2265 = vst.msk [vmem:[%s197] sm:$0xff] %vm230, %v2233
      %2266 = vst.msk [vmem:[%s197 + $0x8] sm:$0xff] %vm230, %v2234
      %2267 = vst.msk [vmem:[%s197 + $0x10] sm:$0xff] %vm230, %v2235
      %2268 = vst.msk [vmem:[%s197 + $0x18] sm:$0xff] %vm230, %v2236
      %2269 = vst.msk [vmem:[%s197 + $0x20] sm:$0xff] %vm230, %v2237
      %2270 = vst.msk [vmem:[%s197 + $0x28] sm:$0xff] %vm230, %v2238
      %2271 = vst.msk [vmem:[%s197 + $0x30] sm:$0xff] %vm230, %v2239
      %2272 = vst.msk [vmem:[%s197 + $0x38] sm:$0xff] %vm230, %v2240
      %2273 = vst.msk [vmem:[%s197 + $0x40] sm:$0xff] %vm230, %v2241
      %2274 = vst.msk [vmem:[%s197 + $0x48] sm:$0xff] %vm230, %v2242
      %2275 = vst.msk [vmem:[%s197 + $0x50] sm:$0xff] %vm230, %v2243
      %2276 = vst.msk [vmem:[%s197 + $0x58] sm:$0xff] %vm230, %v2244
      %2277 = vst.msk [vmem:[%s197 + $0x60] sm:$0xff] %vm230, %v2245
      %2278 = vst.msk [vmem:[%s197 + $0x68] sm:$0xff] %vm230, %v2246
      %2279 = vst.msk [vmem:[%s197 + $0x70] sm:$0xff] %vm230, %v2247
      %2280 = vst.msk [vmem:[%s197 + $0x78] sm:$0xff] %vm230, %v2248
      %2281 = vst.msk [vmem:[%s197 + $0x80] sm:$0xff] %vm230, %v2249
      %2282 = vst.msk [vmem:[%s197 + $0x88] sm:$0xff] %vm230, %v2250
      %2283 = vst.msk [vmem:[%s197 + $0x90] sm:$0xff] %vm230, %v2251
      %2284 = vst.msk [vmem:[%s197 + $0x98] sm:$0xff] %vm230, %v2252
      %2285 = vst.msk [vmem:[%s197 + $0xa0] sm:$0xff] %vm230, %v2253
      %2286 = vst.msk [vmem:[%s197 + $0xa8] sm:$0xff] %vm230, %v2254
      %2287 = vst.msk [vmem:[%s197 + $0xb0] sm:$0xff] %vm230, %v2255
      %2288 = vst.msk [vmem:[%s197 + $0xb8] sm:$0xff] %vm230, %v2256
      %2289 = vst.msk [vmem:[%s197 + $0xc0] sm:$0xff] %vm230, %v2257
      %2290 = vst.msk [vmem:[%s197 + $0xc8] sm:$0xff] %vm230, %v2258
      %2291 = vst.msk [vmem:[%s197 + $0xd0] sm:$0xff] %vm230, %v2259
      %2292 = vst.msk [vmem:[%s197 + $0xd8] sm:$0xff] %vm230, %v2260
      %2293 = vst.msk [vmem:[%s197 + $0xe0] sm:$0xff] %vm230, %v2261
      %2294 = vst.msk [vmem:[%s197 + $0xe8] sm:$0xff] %vm230, %v2262
      %2295 = vst.msk [vmem:[%s197 + $0xf0] sm:$0xff] %vm230, %v2263
      %2296 = vst.msk [vmem:[%s197 + $0xf8] sm:$0xff] %vm230, %v2264
      %s2297 = scalar_lea.vmem %s192, 256
      %v2298 = vld [vmem:[%s2297] sm:$0xff]
      %v2299 = vld [vmem:[%s2297 + $0x8] sm:$0xff]
      %v2300 = vld [vmem:[%s2297 + $0x10] sm:$0xff]
      %v2301 = vld [vmem:[%s2297 + $0x18] sm:$0xff]
      %v2302 = vld [vmem:[%s2297 + $0x20] sm:$0xff]
      %v2303 = vld [vmem:[%s2297 + $0x28] sm:$0xff]
      %v2304 = vld [vmem:[%s2297 + $0x30] sm:$0xff]
      %v2305 = vld [vmem:[%s2297 + $0x38] sm:$0xff]
      %v2306 = vld [vmem:[%s2297 + $0x40] sm:$0xff]
      %v2307 = vld [vmem:[%s2297 + $0x48] sm:$0xff]
      %v2308 = vld [vmem:[%s2297 + $0x50] sm:$0xff]
      %v2309 = vld [vmem:[%s2297 + $0x58] sm:$0xff]
      %v2310 = vld [vmem:[%s2297 + $0x60] sm:$0xff]
      %v2311 = vld [vmem:[%s2297 + $0x68] sm:$0xff]
      %v2312 = vld [vmem:[%s2297 + $0x70] sm:$0xff]
      %v2313 = vld [vmem:[%s2297 + $0x78] sm:$0xff]
      %v2314 = vld [vmem:[%s2297 + $0x80] sm:$0xff]
      %v2315 = vld [vmem:[%s2297 + $0x88] sm:$0xff]
      %v2316 = vld [vmem:[%s2297 + $0x90] sm:$0xff]
      %v2317 = vld [vmem:[%s2297 + $0x98] sm:$0xff]
      %v2318 = vld [vmem:[%s2297 + $0xa0] sm:$0xff]
      %v2319 = vld [vmem:[%s2297 + $0xa8] sm:$0xff]
      %v2320 = vld [vmem:[%s2297 + $0xb0] sm:$0xff]
      %v2321 = vld [vmem:[%s2297 + $0xb8] sm:$0xff]
      %v2322 = vld [vmem:[%s2297 + $0xc0] sm:$0xff]
      %v2323 = vld [vmem:[%s2297 + $0xc8] sm:$0xff]
      %v2324 = vld [vmem:[%s2297 + $0xd0] sm:$0xff]
      %v2325 = vld [vmem:[%s2297 + $0xd8] sm:$0xff]
      %v2326 = vld [vmem:[%s2297 + $0xe0] sm:$0xff]
      %v2327 = vld [vmem:[%s2297 + $0xe8] sm:$0xff]
      %v2328 = vld [vmem:[%s2297 + $0xf0] sm:$0xff]
      %v2329 = vld [vmem:[%s2297 + $0xf8] sm:$0xff]
      %v2330 = vld [vmem:[%s197] sm:$0xff]
      %v2331 = vld [vmem:[%s197 + $0x8] sm:$0xff]
      %v2332 = vld [vmem:[%s197 + $0x10] sm:$0xff]
      %v2333 = vld [vmem:[%s197 + $0x18] sm:$0xff]
      %v2334 = vld [vmem:[%s197 + $0x20] sm:$0xff]
      %v2335 = vld [vmem:[%s197 + $0x28] sm:$0xff]
      %v2336 = vld [vmem:[%s197 + $0x30] sm:$0xff]
      %v2337 = vld [vmem:[%s197 + $0x38] sm:$0xff]
      %v2338 = vld [vmem:[%s197 + $0x40] sm:$0xff]
      %v2339 = vld [vmem:[%s197 + $0x48] sm:$0xff]
      %v2340 = vld [vmem:[%s197 + $0x50] sm:$0xff]
      %v2341 = vld [vmem:[%s197 + $0x58] sm:$0xff]
      %v2342 = vld [vmem:[%s197 + $0x60] sm:$0xff]
      %v2343 = vld [vmem:[%s197 + $0x68] sm:$0xff]
      %v2344 = vld [vmem:[%s197 + $0x70] sm:$0xff]
      %v2345 = vld [vmem:[%s197 + $0x78] sm:$0xff]
      %v2346 = vld [vmem:[%s197 + $0x80] sm:$0xff]
      %v2347 = vld [vmem:[%s197 + $0x88] sm:$0xff]
      %v2348 = vld [vmem:[%s197 + $0x90] sm:$0xff]
      %v2349 = vld [vmem:[%s197 + $0x98] sm:$0xff]
      %v2350 = vld [vmem:[%s197 + $0xa0] sm:$0xff]
      %v2351 = vld [vmem:[%s197 + $0xa8] sm:$0xff]
      %v2352 = vld [vmem:[%s197 + $0xb0] sm:$0xff]
      %v2353 = vld [vmem:[%s197 + $0xb8] sm:$0xff]
      %v2354 = vld [vmem:[%s197 + $0xc0] sm:$0xff]
      %v2355 = vld [vmem:[%s197 + $0xc8] sm:$0xff]
      %v2356 = vld [vmem:[%s197 + $0xd0] sm:$0xff]
      %v2357 = vld [vmem:[%s197 + $0xd8] sm:$0xff]
      %v2358 = vld [vmem:[%s197 + $0xe0] sm:$0xff]
      %v2359 = vld [vmem:[%s197 + $0xe8] sm:$0xff]
      %v2360 = vld [vmem:[%s197 + $0xf0] sm:$0xff]
      %v2361 = vld [vmem:[%s197 + $0xf8] sm:$0xff]
      %v2362 = vadd.f32 %v2298, %v2330
      %v2363 = vadd.f32 %v2299, %v2331
      %v2364 = vadd.f32 %v2300, %v2332
      %v2365 = vadd.f32 %v2301, %v2333
      %v2366 = vadd.f32 %v2302, %v2334
      %v2367 = vadd.f32 %v2303, %v2335
      %v2368 = vadd.f32 %v2304, %v2336
      %v2369 = vadd.f32 %v2305, %v2337
      %v2370 = vadd.f32 %v2306, %v2338
      %v2371 = vadd.f32 %v2307, %v2339
      %v2372 = vadd.f32 %v2308, %v2340
      %v2373 = vadd.f32 %v2309, %v2341
      %v2374 = vadd.f32 %v2310, %v2342
      %v2375 = vadd.f32 %v2311, %v2343
      %v2376 = vadd.f32 %v2312, %v2344
      %v2377 = vadd.f32 %v2313, %v2345
      %v2378 = vadd.f32 %v2314, %v2346
      %v2379 = vadd.f32 %v2315, %v2347
      %v2380 = vadd.f32 %v2316, %v2348
      %v2381 = vadd.f32 %v2317, %v2349
      %v2382 = vadd.f32 %v2318, %v2350
      %v2383 = vadd.f32 %v2319, %v2351
      %v2384 = vadd.f32 %v2320, %v2352
      %v2385 = vadd.f32 %v2321, %v2353
      %v2386 = vadd.f32 %v2322, %v2354
      %v2387 = vadd.f32 %v2323, %v2355
      %v2388 = vadd.f32 %v2324, %v2356
      %v2389 = vadd.f32 %v2325, %v2357
      %v2390 = vadd.f32 %v2326, %v2358
      %v2391 = vadd.f32 %v2327, %v2359
      %v2392 = vadd.f32 %v2328, %v2360
      %v2393 = vadd.f32 %v2329, %v2361
      %2394 = vst.msk [vmem:[#allocation2] sm:$0xff] %vm230, 0.0
      %2395 = vst.msk [vmem:[#allocation2 + $0x8] sm:$0xff] %vm230, 0.0
      %vm2396 = vcmask 322560
      %2397 = vst.msk [vmem:[#allocation2 + $0x10] sm:$0xf] %vm2396, 0.0
      %2398 = vst.msk [vmem:[#allocation2 + $0x20] sm:$0xff] %vm230, 0.0
      %2399 = vst.msk [vmem:[#allocation2 + $0x28] sm:$0xff] %vm230, 0.0
      %2400 = vst.msk [vmem:[#allocation2 + $0x30] sm:$0xf] %vm2396, 0.0
      %s2401 = scalar_lea.vmem [#allocation2], 576
      %2402 = vst.msk [vmem:[%s2401] sm:$0xff] %vm230, 0.0
      %2403 = vst.msk [vmem:[%s2401 + $0x8] sm:$0xff] %vm230, 0.0
      %2404 = vst.msk [vmem:[%s2401 + $0x10] sm:$0xf] %vm2396, 0.0
      %2405 = vst.msk [vmem:[%s2401 + $0x20] sm:$0xff] %vm230, 0.0
      %2406 = vst.msk [vmem:[%s2401 + $0x28] sm:$0xff] %vm230, 0.0
      %2407 = vst.msk [vmem:[%s2401 + $0x30] sm:$0xf] %vm2396, 0.0
      %2408 = vst.msk [vmem:[%s1545] sm:$0x3] %vm233, 0.0
      %2409 = vst.msk [vmem:[%s1545 + $0x20] sm:$0x3] %vm233, 0.0
      %2410 = vst.msk [vmem:[%s1545 + $0x40] sm:$0x3] %vm233, 0.0
      %2411 = vst.msk [vmem:[%s1545 + $0x60] sm:$0x3] %vm233, 0.0
      %2412 = vst.msk [vmem:[%s1545 + $0x80] sm:$0x3] %vm233, 0.0
      %2413 = vst.msk [vmem:[%s1545 + $0xa0] sm:$0x3] %vm233, 0.0
      %2414 = vst.msk [vmem:[%s1545 + $0xc0] sm:$0x3] %vm233, 0.0
      %2415 = vst.msk [vmem:[%s1545 + $0xe0] sm:$0x3] %vm233, 0.0
      %2416 = vst.msk [vmem:[%s1545 + $0x100] sm:$0x3] %vm233, 0.0
      %2417 = vst.msk [vmem:[%s1545 + $0x120] sm:$0x3] %vm233, 0.0
      %2418 = vst.msk [vmem:[%s1545 + $0x140] sm:$0x3] %vm233, 0.0
      %2419 = vst.msk [vmem:[%s1545 + $0x160] sm:$0x3] %vm233, 0.0
      %2420 = vst.msk [vmem:[%s1545 + $0x180] sm:$0x3] %vm233, 0.0
      %2421 = vst.msk [vmem:[%s1545 + $0x1a0] sm:$0x3] %vm233, 0.0
      %2422 = vst.msk [vmem:[%s1545 + $0x1c0] sm:$0x3] %vm233, 0.0
      %2423 = vst.msk [vmem:[%s1545 + $0x1e0] sm:$0x3] %vm233, 0.0
      %2424 = vst.msk [vmem:[%s1545 + $0x12] sm:$0x3] %vm233, 0.0
      %2425 = vst.msk [vmem:[%s1545 + $0x32] sm:$0x3] %vm233, 0.0
      %2426 = vst.msk [vmem:[%s1545 + $0x52] sm:$0x3] %vm233, 0.0
      %2427 = vst.msk [vmem:[%s1545 + $0x72] sm:$0x3] %vm233, 0.0
      %2428 = vst.msk [vmem:[%s1545 + $0x92] sm:$0x3] %vm233, 0.0
      %2429 = vst.msk [vmem:[%s1545 + $0xb2] sm:$0x3] %vm233, 0.0
      %2430 = vst.msk [vmem:[%s1545 + $0xd2] sm:$0x3] %vm233, 0.0
      %2431 = vst.msk [vmem:[%s1545 + $0xf2] sm:$0x3] %vm233, 0.0
      %2432 = vst.msk [vmem:[%s1545 + $0x112] sm:$0x3] %vm233, 0.0
      %2433 = vst.msk [vmem:[%s1545 + $0x132] sm:$0x3] %vm233, 0.0
      %2434 = vst.msk [vmem:[%s1545 + $0x152] sm:$0x3] %vm233, 0.0
      %2435 = vst.msk [vmem:[%s1545 + $0x172] sm:$0x3] %vm233, 0.0
      %2436 = vst.msk [vmem:[%s1545 + $0x192] sm:$0x3] %vm233, 0.0
      %2437 = vst.msk [vmem:[%s1545 + $0x1b2] sm:$0x3] %vm233, 0.0
      %2438 = vst.msk [vmem:[%s1545 + $0x1d2] sm:$0x3] %vm233, 0.0
      %2439 = vst.msk [vmem:[%s1545 + $0x1f2] sm:$0x3] %vm233, 0.0
      %2440 = vst.msk [vmem:[%s1545 + $0x2] sm:$0xff] %vm230, %v2362
      %2441 = vst.msk [vmem:[%s1545 + $0xa] sm:$0xff] %vm230, %v2363
      %2442 = vst.msk [vmem:[%s1545 + $0x22] sm:$0xff] %vm230, %v2364
      %2443 = vst.msk [vmem:[%s1545 + $0x2a] sm:$0xff] %vm230, %v2365
      %2444 = vst.msk [vmem:[%s1545 + $0x42] sm:$0xff] %vm230, %v2366
      %2445 = vst.msk [vmem:[%s1545 + $0x4a] sm:$0xff] %vm230, %v2367
      %2446 = vst.msk [vmem:[%s1545 + $0x62] sm:$0xff] %vm230, %v2368
      %2447 = vst.msk [vmem:[%s1545 + $0x6a] sm:$0xff] %vm230, %v2369
      %2448 = vst.msk [vmem:[%s1545 + $0x82] sm:$0xff] %vm230, %v2370
      %2449 = vst.msk [vmem:[%s1545 + $0x8a] sm:$0xff] %vm230, %v2371
      %2450 = vst.msk [vmem:[%s1545 + $0xa2] sm:$0xff] %vm230, %v2372
      %2451 = vst.msk [vmem:[%s1545 + $0xaa] sm:$0xff] %vm230, %v2373
      %2452 = vst.msk [vmem:[%s1545 + $0xc2] sm:$0xff] %vm230, %v2374
      %2453 = vst.msk [vmem:[%s1545 + $0xca] sm:$0xff] %vm230, %v2375
      %2454 = vst.msk [vmem:[%s1545 + $0xe2] sm:$0xff] %vm230, %v2376
      %2455 = vst.msk [vmem:[%s1545 + $0xea] sm:$0xff] %vm230, %v2377
      %2456 = vst.msk [vmem:[%s1545 + $0x102] sm:$0xff] %vm230, %v2378
      %2457 = vst.msk [vmem:[%s1545 + $0x10a] sm:$0xff] %vm230, %v2379
      %2458 = vst.msk [vmem:[%s1545 + $0x122] sm:$0xff] %vm230, %v2380
      %2459 = vst.msk [vmem:[%s1545 + $0x12a] sm:$0xff] %vm230, %v2381
      %2460 = vst.msk [vmem:[%s1545 + $0x142] sm:$0xff] %vm230, %v2382
      %2461 = vst.msk [vmem:[%s1545 + $0x14a] sm:$0xff] %vm230, %v2383
      %2462 = vst.msk [vmem:[%s1545 + $0x162] sm:$0xff] %vm230, %v2384
      %2463 = vst.msk [vmem:[%s1545 + $0x16a] sm:$0xff] %vm230, %v2385
      %2464 = vst.msk [vmem:[%s1545 + $0x182] sm:$0xff] %vm230, %v2386
      %2465 = vst.msk [vmem:[%s1545 + $0x18a] sm:$0xff] %vm230, %v2387
      %2466 = vst.msk [vmem:[%s1545 + $0x1a2] sm:$0xff] %vm230, %v2388
      %2467 = vst.msk [vmem:[%s1545 + $0x1aa] sm:$0xff] %vm230, %v2389
      %2468 = vst.msk [vmem:[%s1545 + $0x1c2] sm:$0xff] %vm230, %v2390
      %2469 = vst.msk [vmem:[%s1545 + $0x1ca] sm:$0xff] %vm230, %v2391
      %2470 = vst.msk [vmem:[%s1545 + $0x1e2] sm:$0xff] %vm230, %v2392
      %2471 = vst.msk [vmem:[%s1545 + $0x1ea] sm:$0xff] %vm230, %v2393
      %s2472 = scalar_lea.vmem %s2, 1
      %v2473 = vld [vmem:[%s2472] sm:$0x1]
      %v2474 = vld [vmem:[#allocation2] sm:$0xff]
      %v2475 = vld [vmem:[#allocation2 + $0x8] sm:$0xff]
      %v2476 = vld [vmem:[#allocation2 + $0x10] sm:$0xf]
      %v2477 = vld [vmem:[#allocation2 + $0x20] sm:$0xff]
      %v2478 = vld [vmem:[#allocation2 + $0x28] sm:$0xff]
      %v2479 = vld [vmem:[#allocation2 + $0x30] sm:$0xf]
      %v2480 = vld [vmem:[#allocation2 + $0x40] sm:$0xff]
      %v2481 = vld [vmem:[#allocation2 + $0x48] sm:$0xff]
      %v2482 = vld [vmem:[#allocation2 + $0x50] sm:$0xf]
      %v2483 = vld [vmem:[#allocation2 + $0x60] sm:$0xff]
      %v2484 = vld [vmem:[#allocation2 + $0x68] sm:$0xff]
      %v2485 = vld [vmem:[#allocation2 + $0x70] sm:$0xf]
      %v2486 = vld [vmem:[#allocation2 + $0x80] sm:$0xff]
      %v2487 = vld [vmem:[#allocation2 + $0x88] sm:$0xff]
      %v2488 = vld [vmem:[#allocation2 + $0x90] sm:$0xf]
      %v2489 = vld [vmem:[#allocation2 + $0xa0] sm:$0xff]
      %v2490 = vld [vmem:[#allocation2 + $0xa8] sm:$0xff]
      %v2491 = vld [vmem:[#allocation2 + $0xb0] sm:$0xf]
      %v2492 = vld [vmem:[#allocation2 + $0xc0] sm:$0xff]
      %v2493 = vld [vmem:[#allocation2 + $0xc8] sm:$0xff]
      %v2494 = vld [vmem:[#allocation2 + $0xd0] sm:$0xf]
      %v2495 = vld [vmem:[#allocation2 + $0xe0] sm:$0xff]
      %v2496 = vld [vmem:[#allocation2 + $0xe8] sm:$0xff]
      %v2497 = vld [vmem:[#allocation2 + $0xf0] sm:$0xf]
      %v2498 = vld [vmem:[#allocation2 + $0x100] sm:$0xff]
      %v2499 = vld [vmem:[#allocation2 + $0x108] sm:$0xff]
      %v2500 = vld [vmem:[#allocation2 + $0x110] sm:$0xf]
      %v2501 = vld [vmem:[#allocation2 + $0x120] sm:$0xff]
      %v2502 = vld [vmem:[#allocation2 + $0x128] sm:$0xff]
      %v2503 = vld [vmem:[#allocation2 + $0x130] sm:$0xf]
      %v2504 = vld [vmem:[#allocation2 + $0x140] sm:$0xff]
      %v2505 = vld [vmem:[#allocation2 + $0x148] sm:$0xff]
      %v2506 = vld [vmem:[#allocation2 + $0x150] sm:$0xf]
      %v2507 = vld [vmem:[#allocation2 + $0x160] sm:$0xff]
      %v2508 = vld [vmem:[#allocation2 + $0x168] sm:$0xff]
      %v2509 = vld [vmem:[#allocation2 + $0x170] sm:$0xf]
      %v2510 = vld [vmem:[#allocation2 + $0x180] sm:$0xff]
      %v2511 = vld [vmem:[#allocation2 + $0x188] sm:$0xff]
      %v2512 = vld [vmem:[#allocation2 + $0x190] sm:$0xf]
      %v2513 = vld [vmem:[#allocation2 + $0x1a0] sm:$0xff]
      %v2514 = vld [vmem:[#allocation2 + $0x1a8] sm:$0xff]
      %v2515 = vld [vmem:[#allocation2 + $0x1b0] sm:$0xf]
      %v2516 = vld [vmem:[#allocation2 + $0x1c0] sm:$0xff]
      %v2517 = vld [vmem:[#allocation2 + $0x1c8] sm:$0xff]
      %v2518 = vld [vmem:[#allocation2 + $0x1d0] sm:$0xf]
      %v2519 = vld [vmem:[#allocation2 + $0x1e0] sm:$0xff]
      %v2520 = vld [vmem:[#allocation2 + $0x1e8] sm:$0xff]
      %v2521 = vld [vmem:[#allocation2 + $0x1f0] sm:$0xf]
      %s2522 = scalar_lea.vmem %s1, 9
      %v2523 = vld [vmem:[%s2522] sm:$0x1]
      %v2525 = vlaneseq
      %v2526 = vshrl.u32 %v2525, 7
      %v2527 = vsub.s32 0, %v2526
      %v2528 = vrot.slane %v2523, %v2527
      %v2530 = vmul.f32 %v2474, %v2528
      %v2531 = vmul.f32 %v2475, %v2528
      %v2532 = vmul.f32 %v2477, %v2528
      %v2533 = vmul.f32 %v2478, %v2528
      %v2534 = vmul.f32 %v2480, %v2528
      %v2535 = vmul.f32 %v2481, %v2528
      %v2536 = vmul.f32 %v2483, %v2528
      %v2537 = vmul.f32 %v2484, %v2528
      %v2538 = vmul.f32 %v2486, %v2528
      %v2539 = vmul.f32 %v2487, %v2528
      %v2540 = vmul.f32 %v2489, %v2528
      %v2541 = vmul.f32 %v2490, %v2528
      %v2542 = vmul.f32 %v2492, %v2528
      %v2543 = vmul.f32 %v2493, %v2528
      %v2544 = vmul.f32 %v2495, %v2528
      %v2545 = vmul.f32 %v2496, %v2528
      %v2546 = vmul.f32 %v2498, %v2528
      %v2547 = vmul.f32 %v2499, %v2528
      %v2548 = vmul.f32 %v2501, %v2528
      %v2549 = vmul.f32 %v2502, %v2528
      %v2550 = vmul.f32 %v2504, %v2528
      %v2551 = vmul.f32 %v2505, %v2528
      %v2552 = vmul.f32 %v2507, %v2528
      %v2553 = vmul.f32 %v2508, %v2528
      %v2554 = vmul.f32 %v2510, %v2528
      %v2555 = vmul.f32 %v2511, %v2528
      %v2556 = vmul.f32 %v2513, %v2528
      %v2557 = vmul.f32 %v2514, %v2528
      %v2558 = vmul.f32 %v2516, %v2528
      %v2559 = vmul.f32 %v2517, %v2528
      %v2560 = vmul.f32 %v2519, %v2528
      %v2561 = vmul.f32 %v2520, %v2528
      %v2563 = vlaneseq
      %v2564 = vshrl.u32 %v2563, 7
      %v2565 = vsub.s32 0, %v2564
      %v2566 = vrot.slane %v2473, %v2565
      %v2568 = vadd.f32 %v2530, %v2566
      %v2569 = vadd.f32 %v2531, %v2566
      %v2570 = vadd.f32 %v2532, %v2566
      %v2571 = vadd.f32 %v2533, %v2566
      %v2572 = vadd.f32 %v2534, %v2566
      %v2573 = vadd.f32 %v2535, %v2566
      %v2574 = vadd.f32 %v2536, %v2566
      %v2575 = vadd.f32 %v2537, %v2566
      %v2576 = vadd.f32 %v2538, %v2566
      %v2577 = vadd.f32 %v2539, %v2566
      %v2578 = vadd.f32 %v2540, %v2566
      %v2579 = vadd.f32 %v2541, %v2566
      %v2580 = vadd.f32 %v2542, %v2566
      %v2581 = vadd.f32 %v2543, %v2566
      %v2582 = vadd.f32 %v2544, %v2566
      %v2583 = vadd.f32 %v2545, %v2566
      %v2584 = vadd.f32 %v2546, %v2566
      %v2585 = vadd.f32 %v2547, %v2566
      %v2586 = vadd.f32 %v2548, %v2566
      %v2587 = vadd.f32 %v2549, %v2566
      %v2588 = vadd.f32 %v2550, %v2566
      %v2589 = vadd.f32 %v2551, %v2566
      %v2590 = vadd.f32 %v2552, %v2566
      %v2591 = vadd.f32 %v2553, %v2566
      %v2592 = vadd.f32 %v2554, %v2566
      %v2593 = vadd.f32 %v2555, %v2566
      %v2594 = vadd.f32 %v2556, %v2566
      %v2595 = vadd.f32 %v2557, %v2566
      %v2596 = vadd.f32 %v2558, %v2566
      %v2597 = vadd.f32 %v2559, %v2566
      %v2598 = vadd.f32 %v2560, %v2566
      %v2599 = vadd.f32 %v2561, %v2566
      %s2600 = scalar_lea.vmem %s1, 10
      %v2601 = vld [vmem:[%s2600] sm:$0x1]
      %v2603 = vlaneseq
      %v2604 = vshrl.u32 %v2603, 7
      %v2605 = vsub.s32 0, %v2604
      %v2606 = vrot.slane %v2601, %v2605
      %v2608 = vmul.f32 %v2474, %v2606
      %v2609 = vmul.f32 %v2475, %v2606
      %v2610 = vmul.f32 %v2476, %v2606
      %v2611 = vmul.f32 %v2477, %v2606
      %v2612 = vmul.f32 %v2478, %v2606
      %v2613 = vmul.f32 %v2479, %v2606
      %v2614 = vmul.f32 %v2480, %v2606
      %v2615 = vmul.f32 %v2481, %v2606
      %v2616 = vmul.f32 %v2482, %v2606
      %v2617 = vmul.f32 %v2483, %v2606
      %v2618 = vmul.f32 %v2484, %v2606
      %v2619 = vmul.f32 %v2485, %v2606
      %v2620 = vmul.f32 %v2486, %v2606
      %v2621 = vmul.f32 %v2487, %v2606
      %v2622 = vmul.f32 %v2488, %v2606
      %v2623 = vmul.f32 %v2489, %v2606
      %v2624 = vmul.f32 %v2490, %v2606
      %v2625 = vmul.f32 %v2491, %v2606
      %v2626 = vmul.f32 %v2492, %v2606
      %v2627 = vmul.f32 %v2493, %v2606
      %v2628 = vmul.f32 %v2494, %v2606
      %v2629 = vmul.f32 %v2495, %v2606
      %v2630 = vmul.f32 %v2496, %v2606
      %v2631 = vmul.f32 %v2497, %v2606
      %v2632 = vmul.f32 %v2498, %v2606
      %v2633 = vmul.f32 %v2499, %v2606
      %v2634 = vmul.f32 %v2500, %v2606
      %v2635 = vmul.f32 %v2501, %v2606
      %v2636 = vmul.f32 %v2502, %v2606
      %v2637 = vmul.f32 %v2503, %v2606
      %v2638 = vmul.f32 %v2504, %v2606
      %v2639 = vmul.f32 %v2505, %v2606
      %v2640 = vmul.f32 %v2506, %v2606
      %v2641 = vmul.f32 %v2507, %v2606
      %v2642 = vmul.f32 %v2508, %v2606
      %v2643 = vmul.f32 %v2509, %v2606
      %v2644 = vmul.f32 %v2510, %v2606
      %v2645 = vmul.f32 %v2511, %v2606
      %v2646 = vmul.f32 %v2512, %v2606
      %v2647 = vmul.f32 %v2513, %v2606
      %v2648 = vmul.f32 %v2514, %v2606
      %v2649 = vmul.f32 %v2515, %v2606
      %v2650 = vmul.f32 %v2516, %v2606
      %v2651 = vmul.f32 %v2517, %v2606
      %v2652 = vmul.f32 %v2518, %v2606
      %v2653 = vmul.f32 %v2519, %v2606
      %v2654 = vmul.f32 %v2520, %v2606
      %v2655 = vmul.f32 %v2521, %v2606
      %v2704 = vrot.slane %v2608, 2
      %v2705 = vrot.slane %v2609, 2
      %v2706 = vsel %vm784, %v2704, %v2705
      %v2707 = vrot.slane %v2610, 2
      %v2708 = vsel %vm784, %v2705, %v2707
      %v2709 = vrot.slane %v2611, 2
      %v2710 = vrot.slane %v2612, 2
      %v2711 = vsel %vm784, %v2709, %v2710
      %v2712 = vrot.slane %v2613, 2
      %v2713 = vsel %vm784, %v2710, %v2712
      %v2714 = vrot.slane %v2614, 2
      %v2715 = vrot.slane %v2615, 2
      %v2716 = vsel %vm784, %v2714, %v2715
      %v2717 = vrot.slane %v2616, 2
      %v2718 = vsel %vm784, %v2715, %v2717
      %v2719 = vrot.slane %v2617, 2
      %v2720 = vrot.slane %v2618, 2
      %v2721 = vsel %vm784, %v2719, %v2720
      %v2722 = vrot.slane %v2619, 2
      %v2723 = vsel %vm784, %v2720, %v2722
      %v2724 = vrot.slane %v2620, 2
      %v2725 = vrot.slane %v2621, 2
      %v2726 = vsel %vm784, %v2724, %v2725
      %v2727 = vrot.slane %v2622, 2
      %v2728 = vsel %vm784, %v2725, %v2727
      %v2729 = vrot.slane %v2623, 2
      %v2730 = vrot.slane %v2624, 2
      %v2731 = vsel %vm784, %v2729, %v2730
      %v2732 = vrot.slane %v2625, 2
      %v2733 = vsel %vm784, %v2730, %v2732
      %v2734 = vrot.slane %v2626, 2
      %v2735 = vrot.slane %v2627, 2
      %v2736 = vsel %vm784, %v2734, %v2735
      %v2737 = vrot.slane %v2628, 2
      %v2738 = vsel %vm784, %v2735, %v2737
      %v2739 = vrot.slane %v2629, 2
      %v2740 = vrot.slane %v2630, 2
      %v2741 = vsel %vm784, %v2739, %v2740
      %v2742 = vrot.slane %v2631, 2
      %v2743 = vsel %vm784, %v2740, %v2742
      %v2744 = vrot.slane %v2632, 2
      %v2745 = vrot.slane %v2633, 2
      %v2746 = vsel %vm784, %v2744, %v2745
      %v2747 = vrot.slane %v2634, 2
      %v2748 = vsel %vm784, %v2745, %v2747
      %v2749 = vrot.slane %v2635, 2
      %v2750 = vrot.slane %v2636, 2
      %v2751 = vsel %vm784, %v2749, %v2750
      %v2752 = vrot.slane %v2637, 2
      %v2753 = vsel %vm784, %v2750, %v2752
      %v2754 = vrot.slane %v2638, 2
      %v2755 = vrot.slane %v2639, 2
      %v2756 = vsel %vm784, %v2754, %v2755
      %v2757 = vrot.slane %v2640, 2
      %v2758 = vsel %vm784, %v2755, %v2757
      %v2759 = vrot.slane %v2641, 2
      %v2760 = vrot.slane %v2642, 2
      %v2761 = vsel %vm784, %v2759, %v2760
      %v2762 = vrot.slane %v2643, 2
      %v2763 = vsel %vm784, %v2760, %v2762
      %v2764 = vrot.slane %v2644, 2
      %v2765 = vrot.slane %v2645, 2
      %v2766 = vsel %vm784, %v2764, %v2765
      %v2767 = vrot.slane %v2646, 2
      %v2768 = vsel %vm784, %v2765, %v2767
      %v2769 = vrot.slane %v2647, 2
      %v2770 = vrot.slane %v2648, 2
      %v2771 = vsel %vm784, %v2769, %v2770
      %v2772 = vrot.slane %v2649, 2
      %v2773 = vsel %vm784, %v2770, %v2772
      %v2774 = vrot.slane %v2650, 2
      %v2775 = vrot.slane %v2651, 2
      %v2776 = vsel %vm784, %v2774, %v2775
      %v2777 = vrot.slane %v2652, 2
      %v2778 = vsel %vm784, %v2775, %v2777
      %v2779 = vrot.slane %v2653, 2
      %v2780 = vrot.slane %v2654, 2
      %v2781 = vsel %vm784, %v2779, %v2780
      %v2782 = vrot.slane %v2655, 2
      %v2783 = vsel %vm784, %v2780, %v2782
      %v2816 = vadd.f32 %v2568, %v2706
      %v2817 = vadd.f32 %v2569, %v2708
      %v2818 = vadd.f32 %v2570, %v2711
      %v2819 = vadd.f32 %v2571, %v2713
      %v2820 = vadd.f32 %v2572, %v2716
      %v2821 = vadd.f32 %v2573, %v2718
      %v2822 = vadd.f32 %v2574, %v2721
      %v2823 = vadd.f32 %v2575, %v2723
      %v2824 = vadd.f32 %v2576, %v2726
      %v2825 = vadd.f32 %v2577, %v2728
      %v2826 = vadd.f32 %v2578, %v2731
      %v2827 = vadd.f32 %v2579, %v2733
      %v2828 = vadd.f32 %v2580, %v2736
      %v2829 = vadd.f32 %v2581, %v2738
      %v2830 = vadd.f32 %v2582, %v2741
      %v2831 = vadd.f32 %v2583, %v2743
      %v2832 = vadd.f32 %v2584, %v2746
      %v2833 = vadd.f32 %v2585, %v2748
      %v2834 = vadd.f32 %v2586, %v2751
      %v2835 = vadd.f32 %v2587, %v2753
      %v2836 = vadd.f32 %v2588, %v2756
      %v2837 = vadd.f32 %v2589, %v2758
      %v2838 = vadd.f32 %v2590, %v2761
      %v2839 = vadd.f32 %v2591, %v2763
      %v2840 = vadd.f32 %v2592, %v2766
      %v2841 = vadd.f32 %v2593, %v2768
      %v2842 = vadd.f32 %v2594, %v2771
      %v2843 = vadd.f32 %v2595, %v2773
      %v2844 = vadd.f32 %v2596, %v2776
      %v2845 = vadd.f32 %v2597, %v2778
      %v2846 = vadd.f32 %v2598, %v2781
      %v2847 = vadd.f32 %v2599, %v2783
      %s2848 = scalar_lea.vmem %s1, 11
      %v2849 = vld [vmem:[%s2848] sm:$0x1]
      %v2851 = vlaneseq
      %v2852 = vshrl.u32 %v2851, 7
      %v2853 = vsub.s32 0, %v2852
      %v2854 = vrot.slane %v2849, %v2853
      %v2856 = vmul.f32 %v2474, %v2854
      %v2857 = vmul.f32 %v2475, %v2854
      %v2858 = vmul.f32 %v2476, %v2854
      %v2859 = vmul.f32 %v2477, %v2854
      %v2860 = vmul.f32 %v2478, %v2854
      %v2861 = vmul.f32 %v2479, %v2854
      %v2862 = vmul.f32 %v2480, %v2854
      %v2863 = vmul.f32 %v2481, %v2854
      %v2864 = vmul.f32 %v2482, %v2854
      %v2865 = vmul.f32 %v2483, %v2854
      %v2866 = vmul.f32 %v2484, %v2854
      %v2867 = vmul.f32 %v2485, %v2854
      %v2868 = vmul.f32 %v2486, %v2854
      %v2869 = vmul.f32 %v2487, %v2854
      %v2870 = vmul.f32 %v2488, %v2854
      %v2871 = vmul.f32 %v2489, %v2854
      %v2872 = vmul.f32 %v2490, %v2854
      %v2873 = vmul.f32 %v2491, %v2854
      %v2874 = vmul.f32 %v2492, %v2854
      %v2875 = vmul.f32 %v2493, %v2854
      %v2876 = vmul.f32 %v2494, %v2854
      %v2877 = vmul.f32 %v2495, %v2854
      %v2878 = vmul.f32 %v2496, %v2854
      %v2879 = vmul.f32 %v2497, %v2854
      %v2880 = vmul.f32 %v2498, %v2854
      %v2881 = vmul.f32 %v2499, %v2854
      %v2882 = vmul.f32 %v2500, %v2854
      %v2883 = vmul.f32 %v2501, %v2854
      %v2884 = vmul.f32 %v2502, %v2854
      %v2885 = vmul.f32 %v2503, %v2854
      %v2886 = vmul.f32 %v2504, %v2854
      %v2887 = vmul.f32 %v2505, %v2854
      %v2888 = vmul.f32 %v2506, %v2854
      %v2889 = vmul.f32 %v2507, %v2854
      %v2890 = vmul.f32 %v2508, %v2854
      %v2891 = vmul.f32 %v2509, %v2854
      %v2892 = vmul.f32 %v2510, %v2854
      %v2893 = vmul.f32 %v2511, %v2854
      %v2894 = vmul.f32 %v2512, %v2854
      %v2895 = vmul.f32 %v2513, %v2854
      %v2896 = vmul.f32 %v2514, %v2854
      %v2897 = vmul.f32 %v2515, %v2854
      %v2898 = vmul.f32 %v2516, %v2854
      %v2899 = vmul.f32 %v2517, %v2854
      %v2900 = vmul.f32 %v2518, %v2854
      %v2901 = vmul.f32 %v2519, %v2854
      %v2902 = vmul.f32 %v2520, %v2854
      %v2903 = vmul.f32 %v2521, %v2854
      %vm2952 = vcmask 1043456
      %v2953 = vrot.slane %v2856, 4
      %v2954 = vrot.slane %v2857, 4
      %v2955 = vsel %vm2952, %v2953, %v2954
      %v2956 = vrot.slane %v2858, 4
      %v2957 = vsel %vm2952, %v2954, %v2956
      %v2958 = vrot.slane %v2859, 4
      %v2959 = vrot.slane %v2860, 4
      %v2960 = vsel %vm2952, %v2958, %v2959
      %v2961 = vrot.slane %v2861, 4
      %v2962 = vsel %vm2952, %v2959, %v2961
      %v2963 = vrot.slane %v2862, 4
      %v2964 = vrot.slane %v2863, 4
      %v2965 = vsel %vm2952, %v2963, %v2964
      %v2966 = vrot.slane %v2864, 4
      %v2967 = vsel %vm2952, %v2964, %v2966
      %v2968 = vrot.slane %v2865, 4
      %v2969 = vrot.slane %v2866, 4
      %v2970 = vsel %vm2952, %v2968, %v2969
      %v2971 = vrot.slane %v2867, 4
      %v2972 = vsel %vm2952, %v2969, %v2971
      %v2973 = vrot.slane %v2868, 4
      %v2974 = vrot.slane %v2869, 4
      %v2975 = vsel %vm2952, %v2973, %v2974
      %v2976 = vrot.slane %v2870, 4
      %v2977 = vsel %vm2952, %v2974, %v2976
      %v2978 = vrot.slane %v2871, 4
      %v2979 = vrot.slane %v2872, 4
      %v2980 = vsel %vm2952, %v2978, %v2979
      %v2981 = vrot.slane %v2873, 4
      %v2982 = vsel %vm2952, %v2979, %v2981
      %v2983 = vrot.slane %v2874, 4
      %v2984 = vrot.slane %v2875, 4
      %v2985 = vsel %vm2952, %v2983, %v2984
      %v2986 = vrot.slane %v2876, 4
      %v2987 = vsel %vm2952, %v2984, %v2986
      %v2988 = vrot.slane %v2877, 4
      %v2989 = vrot.slane %v2878, 4
      %v2990 = vsel %vm2952, %v2988, %v2989
      %v2991 = vrot.slane %v2879, 4
      %v2992 = vsel %vm2952, %v2989, %v2991
      %v2993 = vrot.slane %v2880, 4
      %v2994 = vrot.slane %v2881, 4
      %v2995 = vsel %vm2952, %v2993, %v2994
      %v2996 = vrot.slane %v2882, 4
      %v2997 = vsel %vm2952, %v2994, %v2996
      %v2998 = vrot.slane %v2883, 4
      %v2999 = vrot.slane %v2884, 4
      %v3000 = vsel %vm2952, %v2998, %v2999
      %v3001 = vrot.slane %v2885, 4
      %v3002 = vsel %vm2952, %v2999, %v3001
      %v3003 = vrot.slane %v2886, 4
      %v3004 = vrot.slane %v2887, 4
      %v3005 = vsel %vm2952, %v3003, %v3004
      %v3006 = vrot.slane %v2888, 4
      %v3007 = vsel %vm2952, %v3004, %v3006
      %v3008 = vrot.slane %v2889, 4
      %v3009 = vrot.slane %v2890, 4
      %v3010 = vsel %vm2952, %v3008, %v3009
      %v3011 = vrot.slane %v2891, 4
      %v3012 = vsel %vm2952, %v3009, %v3011
      %v3013 = vrot.slane %v2892, 4
      %v3014 = vrot.slane %v2893, 4
      %v3015 = vsel %vm2952, %v3013, %v3014
      %v3016 = vrot.slane %v2894, 4
      %v3017 = vsel %vm2952, %v3014, %v3016
      %v3018 = vrot.slane %v2895, 4
      %v3019 = vrot.slane %v2896, 4
      %v3020 = vsel %vm2952, %v3018, %v3019
      %v3021 = vrot.slane %v2897, 4
      %v3022 = vsel %vm2952, %v3019, %v3021
      %v3023 = vrot.slane %v2898, 4
      %v3024 = vrot.slane %v2899, 4
      %v3025 = vsel %vm2952, %v3023, %v3024
      %v3026 = vrot.slane %v2900, 4
      %v3027 = vsel %vm2952, %v3024, %v3026
      %v3028 = vrot.slane %v2901, 4
      %v3029 = vrot.slane %v2902, 4
      %v3030 = vsel %vm2952, %v3028, %v3029
      %v3031 = vrot.slane %v2903, 4
      %v3032 = vsel %vm2952, %v3029, %v3031
      %v3065 = vadd.f32 %v2816, %v2955
      %v3066 = vadd.f32 %v2817, %v2957
      %v3067 = vadd.f32 %v2818, %v2960
      %v3068 = vadd.f32 %v2819, %v2962
      %v3069 = vadd.f32 %v2820, %v2965
      %v3070 = vadd.f32 %v2821, %v2967
      %v3071 = vadd.f32 %v2822, %v2970
      %v3072 = vadd.f32 %v2823, %v2972
      %v3073 = vadd.f32 %v2824, %v2975
      %v3074 = vadd.f32 %v2825, %v2977
      %v3075 = vadd.f32 %v2826, %v2980
      %v3076 = vadd.f32 %v2827, %v2982
      %v3077 = vadd.f32 %v2828, %v2985
      %v3078 = vadd.f32 %v2829, %v2987
      %v3079 = vadd.f32 %v2830, %v2990
      %v3080 = vadd.f32 %v2831, %v2992
      %v3081 = vadd.f32 %v2832, %v2995
      %v3082 = vadd.f32 %v2833, %v2997
      %v3083 = vadd.f32 %v2834, %v3000
      %v3084 = vadd.f32 %v2835, %v3002
      %v3085 = vadd.f32 %v2836, %v3005
      %v3086 = vadd.f32 %v2837, %v3007
      %v3087 = vadd.f32 %v2838, %v3010
      %v3088 = vadd.f32 %v2839, %v3012
      %v3089 = vadd.f32 %v2840, %v3015
      %v3090 = vadd.f32 %v2841, %v3017
      %v3091 = vadd.f32 %v2842, %v3020
      %v3092 = vadd.f32 %v2843, %v3022
      %v3093 = vadd.f32 %v2844, %v3025
      %v3094 = vadd.f32 %v2845, %v3027
      %v3095 = vadd.f32 %v2846, %v3030
      %v3096 = vadd.f32 %v2847, %v3032
      %v3097 = vld [vmem:[%s1545] sm:$0xff]
      %v3098 = vld [vmem:[%s1545 + $0x8] sm:$0xff]
      %v3099 = vld [vmem:[%s1545 + $0x10] sm:$0xf]
      %v3100 = vld [vmem:[%s1545 + $0x20] sm:$0xff]
      %v3101 = vld [vmem:[%s1545 + $0x28] sm:$0xff]
      %v3102 = vld [vmem:[%s1545 + $0x30] sm:$0xf]
      %v3103 = vld [vmem:[%s1545 + $0x40] sm:$0xff]
      %v3104 = vld [vmem:[%s1545 + $0x48] sm:$0xff]
      %v3105 = vld [vmem:[%s1545 + $0x50] sm:$0xf]
      %v3106 = vld [vmem:[%s1545 + $0x60] sm:$0xff]
      %v3107 = vld [vmem:[%s1545 + $0x68] sm:$0xff]
      %v3108 = vld [vmem:[%s1545 + $0x70] sm:$0xf]
      %v3109 = vld [vmem:[%s1545 + $0x80] sm:$0xff]
      %v3110 = vld [vmem:[%s1545 + $0x88] sm:$0xff]
      %v3111 = vld [vmem:[%s1545 + $0x90] sm:$0xf]
      %v3112 = vld [vmem:[%s1545 + $0xa0] sm:$0xff]
      %v3113 = vld [vmem:[%s1545 + $0xa8] sm:$0xff]
      %v3114 = vld [vmem:[%s1545 + $0xb0] sm:$0xf]
      %v3115 = vld [vmem:[%s1545 + $0xc0] sm:$0xff]
      %v3116 = vld [vmem:[%s1545 + $0xc8] sm:$0xff]
      %v3117 = vld [vmem:[%s1545 + $0xd0] sm:$0xf]
      %v3118 = vld [vmem:[%s1545 + $0xe0] sm:$0xff]
      %v3119 = vld [vmem:[%s1545 + $0xe8] sm:$0xff]
      %v3120 = vld [vmem:[%s1545 + $0xf0] sm:$0xf]
      %v3121 = vld [vmem:[%s1545 + $0x100] sm:$0xff]
      %v3122 = vld [vmem:[%s1545 + $0x108] sm:$0xff]
      %v3123 = vld [vmem:[%s1545 + $0x110] sm:$0xf]
      %v3124 = vld [vmem:[%s1545 + $0x120] sm:$0xff]
      %v3125 = vld [vmem:[%s1545 + $0x128] sm:$0xff]
      %v3126 = vld [vmem:[%s1545 + $0x130] sm:$0xf]
      %v3127 = vld [vmem:[%s1545 + $0x140] sm:$0xff]
      %v3128 = vld [vmem:[%s1545 + $0x148] sm:$0xff]
      %v3129 = vld [vmem:[%s1545 + $0x150] sm:$0xf]
      %v3130 = vld [vmem:[%s1545 + $0x160] sm:$0xff]
      %v3131 = vld [vmem:[%s1545 + $0x168] sm:$0xff]
      %v3132 = vld [vmem:[%s1545 + $0x170] sm:$0xf]
      %v3133 = vld [vmem:[%s1545 + $0x180] sm:$0xff]
      %v3134 = vld [vmem:[%s1545 + $0x188] sm:$0xff]
      %v3135 = vld [vmem:[%s1545 + $0x190] sm:$0xf]
      %v3136 = vld [vmem:[%s1545 + $0x1a0] sm:$0xff]
      %v3137 = vld [vmem:[%s1545 + $0x1a8] sm:$0xff]
      %v3138 = vld [vmem:[%s1545 + $0x1b0] sm:$0xf]
      %v3139 = vld [vmem:[%s1545 + $0x1c0] sm:$0xff]
      %v3140 = vld [vmem:[%s1545 + $0x1c8] sm:$0xff]
      %v3141 = vld [vmem:[%s1545 + $0x1d0] sm:$0xf]
      %v3142 = vld [vmem:[%s1545 + $0x1e0] sm:$0xff]
      %v3143 = vld [vmem:[%s1545 + $0x1e8] sm:$0xff]
      %v3144 = vld [vmem:[%s1545 + $0x1f0] sm:$0xf]
      %s3145 = scalar_lea.vmem %s1, 12
      %v3146 = vld [vmem:[%s3145] sm:$0x1]
      %v3148 = vlaneseq
      %v3149 = vshrl.u32 %v3148, 7
      %v3150 = vsub.s32 0, %v3149
      %v3151 = vrot.slane %v3146, %v3150
      %v3153 = vmul.f32 %v3097, %v3151
      %v3154 = vmul.f32 %v3098, %v3151
      %v3155 = vmul.f32 %v3100, %v3151
      %v3156 = vmul.f32 %v3101, %v3151
      %v3157 = vmul.f32 %v3103, %v3151
      %v3158 = vmul.f32 %v3104, %v3151
      %v3159 = vmul.f32 %v3106, %v3151
      %v3160 = vmul.f32 %v3107, %v3151
      %v3161 = vmul.f32 %v3109, %v3151
      %v3162 = vmul.f32 %v3110, %v3151
      %v3163 = vmul.f32 %v3112, %v3151
      %v3164 = vmul.f32 %v3113, %v3151
      %v3165 = vmul.f32 %v3115, %v3151
      %v3166 = vmul.f32 %v3116, %v3151
      %v3167 = vmul.f32 %v3118, %v3151
      %v3168 = vmul.f32 %v3119, %v3151
      %v3169 = vmul.f32 %v3121, %v3151
      %v3170 = vmul.f32 %v3122, %v3151
      %v3171 = vmul.f32 %v3124, %v3151
      %v3172 = vmul.f32 %v3125, %v3151
      %v3173 = vmul.f32 %v3127, %v3151
      %v3174 = vmul.f32 %v3128, %v3151
      %v3175 = vmul.f32 %v3130, %v3151
      %v3176 = vmul.f32 %v3131, %v3151
      %v3177 = vmul.f32 %v3133, %v3151
      %v3178 = vmul.f32 %v3134, %v3151
      %v3179 = vmul.f32 %v3136, %v3151
      %v3180 = vmul.f32 %v3137, %v3151
      %v3181 = vmul.f32 %v3139, %v3151
      %v3182 = vmul.f32 %v3140, %v3151
      %v3183 = vmul.f32 %v3142, %v3151
      %v3184 = vmul.f32 %v3143, %v3151
      %v3185 = vadd.f32 %v3065, %v3153
      %v3186 = vadd.f32 %v3066, %v3154
      %v3187 = vadd.f32 %v3067, %v3155
      %v3188 = vadd.f32 %v3068, %v3156
      %v3189 = vadd.f32 %v3069, %v3157
      %v3190 = vadd.f32 %v3070, %v3158
      %v3191 = vadd.f32 %v3071, %v3159
      %v3192 = vadd.f32 %v3072, %v3160
      %v3193 = vadd.f32 %v3073, %v3161
      %v3194 = vadd.f32 %v3074, %v3162
      %v3195 = vadd.f32 %v3075, %v3163
      %v3196 = vadd.f32 %v3076, %v3164
      %v3197 = vadd.f32 %v3077, %v3165
      %v3198 = vadd.f32 %v3078, %v3166
      %v3199 = vadd.f32 %v3079, %v3167
      %v3200 = vadd.f32 %v3080, %v3168
      %v3201 = vadd.f32 %v3081, %v3169
      %v3202 = vadd.f32 %v3082, %v3170
      %v3203 = vadd.f32 %v3083, %v3171
      %v3204 = vadd.f32 %v3084, %v3172
      %v3205 = vadd.f32 %v3085, %v3173
      %v3206 = vadd.f32 %v3086, %v3174
      %v3207 = vadd.f32 %v3087, %v3175
      %v3208 = vadd.f32 %v3088, %v3176
      %v3209 = vadd.f32 %v3089, %v3177
      %v3210 = vadd.f32 %v3090, %v3178
      %v3211 = vadd.f32 %v3091, %v3179
      %v3212 = vadd.f32 %v3092, %v3180
      %v3213 = vadd.f32 %v3093, %v3181
      %v3214 = vadd.f32 %v3094, %v3182
      %v3215 = vadd.f32 %v3095, %v3183
      %v3216 = vadd.f32 %v3096, %v3184
      %s3217 = scalar_lea.vmem %s1, 13
      %v3218 = vld [vmem:[%s3217] sm:$0x1]
      %v3220 = vlaneseq
      %v3221 = vshrl.u32 %v3220, 7
      %v3222 = vsub.s32 0, %v3221
      %v3223 = vrot.slane %v3218, %v3222
      %v3225 = vmul.f32 %v3097, %v3223
      %v3226 = vmul.f32 %v3098, %v3223
      %v3227 = vmul.f32 %v3099, %v3223
      %v3228 = vmul.f32 %v3100, %v3223
      %v3229 = vmul.f32 %v3101, %v3223
      %v3230 = vmul.f32 %v3102, %v3223
      %v3231 = vmul.f32 %v3103, %v3223
      %v3232 = vmul.f32 %v3104, %v3223
      %v3233 = vmul.f32 %v3105, %v3223
      %v3234 = vmul.f32 %v3106, %v3223
      %v3235 = vmul.f32 %v3107, %v3223
      %v3236 = vmul.f32 %v3108, %v3223
      %v3237 = vmul.f32 %v3109, %v3223
      %v3238 = vmul.f32 %v3110, %v3223
      %v3239 = vmul.f32 %v3111, %v3223
      %v3240 = vmul.f32 %v3112, %v3223
      %v3241 = vmul.f32 %v3113, %v3223
      %v3242 = vmul.f32 %v3114, %v3223
      %v3243 = vmul.f32 %v3115, %v3223
      %v3244 = vmul.f32 %v3116, %v3223
      %v3245 = vmul.f32 %v3117, %v3223
      %v3246 = vmul.f32 %v3118, %v3223
      %v3247 = vmul.f32 %v3119, %v3223
      %v3248 = vmul.f32 %v3120, %v3223
      %v3249 = vmul.f32 %v3121, %v3223
      %v3250 = vmul.f32 %v3122, %v3223
      %v3251 = vmul.f32 %v3123, %v3223
      %v3252 = vmul.f32 %v3124, %v3223
      %v3253 = vmul.f32 %v3125, %v3223
      %v3254 = vmul.f32 %v3126, %v3223
      %v3255 = vmul.f32 %v3127, %v3223
      %v3256 = vmul.f32 %v3128, %v3223
      %v3257 = vmul.f32 %v3129, %v3223
      %v3258 = vmul.f32 %v3130, %v3223
      %v3259 = vmul.f32 %v3131, %v3223
      %v3260 = vmul.f32 %v3132, %v3223
      %v3261 = vmul.f32 %v3133, %v3223
      %v3262 = vmul.f32 %v3134, %v3223
      %v3263 = vmul.f32 %v3135, %v3223
      %v3264 = vmul.f32 %v3136, %v3223
      %v3265 = vmul.f32 %v3137, %v3223
      %v3266 = vmul.f32 %v3138, %v3223
      %v3267 = vmul.f32 %v3139, %v3223
      %v3268 = vmul.f32 %v3140, %v3223
      %v3269 = vmul.f32 %v3141, %v3223
      %v3270 = vmul.f32 %v3142, %v3223
      %v3271 = vmul.f32 %v3143, %v3223
      %v3272 = vmul.f32 %v3144, %v3223
      %v3321 = vrot.slane %v3225, 2
      %v3322 = vrot.slane %v3226, 2
      %v3323 = vsel %vm784, %v3321, %v3322
      %v3324 = vrot.slane %v3227, 2
      %v3325 = vsel %vm784, %v3322, %v3324
      %v3326 = vrot.slane %v3228, 2
      %v3327 = vrot.slane %v3229, 2
      %v3328 = vsel %vm784, %v3326, %v3327
      %v3329 = vrot.slane %v3230, 2
      %v3330 = vsel %vm784, %v3327, %v3329
      %v3331 = vrot.slane %v3231, 2
      %v3332 = vrot.slane %v3232, 2
      %v3333 = vsel %vm784, %v3331, %v3332
      %v3334 = vrot.slane %v3233, 2
      %v3335 = vsel %vm784, %v3332, %v3334
      %v3336 = vrot.slane %v3234, 2
      %v3337 = vrot.slane %v3235, 2
      %v3338 = vsel %vm784, %v3336, %v3337
      %v3339 = vrot.slane %v3236, 2
      %v3340 = vsel %vm784, %v3337, %v3339
      %v3341 = vrot.slane %v3237, 2
      %v3342 = vrot.slane %v3238, 2
      %v3343 = vsel %vm784, %v3341, %v3342
      %v3344 = vrot.slane %v3239, 2
      %v3345 = vsel %vm784, %v3342, %v3344
      %v3346 = vrot.slane %v3240, 2
      %v3347 = vrot.slane %v3241, 2
      %v3348 = vsel %vm784, %v3346, %v3347
      %v3349 = vrot.slane %v3242, 2
      %v3350 = vsel %vm784, %v3347, %v3349
      %v3351 = vrot.slane %v3243, 2
      %v3352 = vrot.slane %v3244, 2
      %v3353 = vsel %vm784, %v3351, %v3352
      %v3354 = vrot.slane %v3245, 2
      %v3355 = vsel %vm784, %v3352, %v3354
      %v3356 = vrot.slane %v3246, 2
      %v3357 = vrot.slane %v3247, 2
      %v3358 = vsel %vm784, %v3356, %v3357
      %v3359 = vrot.slane %v3248, 2
      %v3360 = vsel %vm784, %v3357, %v3359
      %v3361 = vrot.slane %v3249, 2
      %v3362 = vrot.slane %v3250, 2
      %v3363 = vsel %vm784, %v3361, %v3362
      %v3364 = vrot.slane %v3251, 2
      %v3365 = vsel %vm784, %v3362, %v3364
      %v3366 = vrot.slane %v3252, 2
      %v3367 = vrot.slane %v3253, 2
      %v3368 = vsel %vm784, %v3366, %v3367
      %v3369 = vrot.slane %v3254, 2
      %v3370 = vsel %vm784, %v3367, %v3369
      %v3371 = vrot.slane %v3255, 2
      %v3372 = vrot.slane %v3256, 2
      %v3373 = vsel %vm784, %v3371, %v3372
      %v3374 = vrot.slane %v3257, 2
      %v3375 = vsel %vm784, %v3372, %v3374
      %v3376 = vrot.slane %v3258, 2
      %v3377 = vrot.slane %v3259, 2
      %v3378 = vsel %vm784, %v3376, %v3377
      %v3379 = vrot.slane %v3260, 2
      %v3380 = vsel %vm784, %v3377, %v3379
      %v3381 = vrot.slane %v3261, 2
      %v3382 = vrot.slane %v3262, 2
      %v3383 = vsel %vm784, %v3381, %v3382
      %v3384 = vrot.slane %v3263, 2
      %v3385 = vsel %vm784, %v3382, %v3384
      %v3386 = vrot.slane %v3264, 2
      %v3387 = vrot.slane %v3265, 2
      %v3388 = vsel %vm784, %v3386, %v3387
      %v3389 = vrot.slane %v3266, 2
      %v3390 = vsel %vm784, %v3387, %v3389
      %v3391 = vrot.slane %v3267, 2
      %v3392 = vrot.slane %v3268, 2
      %v3393 = vsel %vm784, %v3391, %v3392
      %v3394 = vrot.slane %v3269, 2
      %v3395 = vsel %vm784, %v3392, %v3394
      %v3396 = vrot.slane %v3270, 2
      %v3397 = vrot.slane %v3271, 2
      %v3398 = vsel %vm784, %v3396, %v3397
      %v3399 = vrot.slane %v3272, 2
      %v3400 = vsel %vm784, %v3397, %v3399
      %v3433 = vadd.f32 %v3185, %v3323
      %v3434 = vadd.f32 %v3186, %v3325
      %v3435 = vadd.f32 %v3187, %v3328
      %v3436 = vadd.f32 %v3188, %v3330
      %v3437 = vadd.f32 %v3189, %v3333
      %v3438 = vadd.f32 %v3190, %v3335
      %v3439 = vadd.f32 %v3191, %v3338
      %v3440 = vadd.f32 %v3192, %v3340
      %v3441 = vadd.f32 %v3193, %v3343
      %v3442 = vadd.f32 %v3194, %v3345
      %v3443 = vadd.f32 %v3195, %v3348
      %v3444 = vadd.f32 %v3196, %v3350
      %v3445 = vadd.f32 %v3197, %v3353
      %v3446 = vadd.f32 %v3198, %v3355
      %v3447 = vadd.f32 %v3199, %v3358
      %v3448 = vadd.f32 %v3200, %v3360
      %v3449 = vadd.f32 %v3201, %v3363
      %v3450 = vadd.f32 %v3202, %v3365
      %v3451 = vadd.f32 %v3203, %v3368
      %v3452 = vadd.f32 %v3204, %v3370
      %v3453 = vadd.f32 %v3205, %v3373
      %v3454 = vadd.f32 %v3206, %v3375
      %v3455 = vadd.f32 %v3207, %v3378
      %v3456 = vadd.f32 %v3208, %v3380
      %v3457 = vadd.f32 %v3209, %v3383
      %v3458 = vadd.f32 %v3210, %v3385
      %v3459 = vadd.f32 %v3211, %v3388
      %v3460 = vadd.f32 %v3212, %v3390
      %v3461 = vadd.f32 %v3213, %v3393
      %v3462 = vadd.f32 %v3214, %v3395
      %v3463 = vadd.f32 %v3215, %v3398
      %v3464 = vadd.f32 %v3216, %v3400
      %s3465 = scalar_lea.vmem %s1, 14
      %v3466 = vld [vmem:[%s3465] sm:$0x1]
      %v3468 = vlaneseq
      %v3469 = vshrl.u32 %v3468, 7
      %v3470 = vsub.s32 0, %v3469
      %v3471 = vrot.slane %v3466, %v3470
      %v3473 = vmul.f32 %v3097, %v3471
      %v3474 = vmul.f32 %v3098, %v3471
      %v3475 = vmul.f32 %v3099, %v3471
      %v3476 = vmul.f32 %v3100, %v3471
      %v3477 = vmul.f32 %v3101, %v3471
      %v3478 = vmul.f32 %v3102, %v3471
      %v3479 = vmul.f32 %v3103, %v3471
      %v3480 = vmul.f32 %v3104, %v3471
      %v3481 = vmul.f32 %v3105, %v3471
      %v3482 = vmul.f32 %v3106, %v3471
      %v3483 = vmul.f32 %v3107, %v3471
      %v3484 = vmul.f32 %v3108, %v3471
      %v3485 = vmul.f32 %v3109, %v3471
      %v3486 = vmul.f32 %v3110, %v3471
      %v3487 = vmul.f32 %v3111, %v3471
      %v3488 = vmul.f32 %v3112, %v3471
      %v3489 = vmul.f32 %v3113, %v3471
      %v3490 = vmul.f32 %v3114, %v3471
      %v3491 = vmul.f32 %v3115, %v3471
      %v3492 = vmul.f32 %v3116, %v3471
      %v3493 = vmul.f32 %v3117, %v3471
      %v3494 = vmul.f32 %v3118, %v3471
      %v3495 = vmul.f32 %v3119, %v3471
      %v3496 = vmul.f32 %v3120, %v3471
      %v3497 = vmul.f32 %v3121, %v3471
      %v3498 = vmul.f32 %v3122, %v3471
      %v3499 = vmul.f32 %v3123, %v3471
      %v3500 = vmul.f32 %v3124, %v3471
      %v3501 = vmul.f32 %v3125, %v3471
      %v3502 = vmul.f32 %v3126, %v3471
      %v3503 = vmul.f32 %v3127, %v3471
      %v3504 = vmul.f32 %v3128, %v3471
      %v3505 = vmul.f32 %v3129, %v3471
      %v3506 = vmul.f32 %v3130, %v3471
      %v3507 = vmul.f32 %v3131, %v3471
      %v3508 = vmul.f32 %v3132, %v3471
      %v3509 = vmul.f32 %v3133, %v3471
      %v3510 = vmul.f32 %v3134, %v3471
      %v3511 = vmul.f32 %v3135, %v3471
      %v3512 = vmul.f32 %v3136, %v3471
      %v3513 = vmul.f32 %v3137, %v3471
      %v3514 = vmul.f32 %v3138, %v3471
      %v3515 = vmul.f32 %v3139, %v3471
      %v3516 = vmul.f32 %v3140, %v3471
      %v3517 = vmul.f32 %v3141, %v3471
      %v3518 = vmul.f32 %v3142, %v3471
      %v3519 = vmul.f32 %v3143, %v3471
      %v3520 = vmul.f32 %v3144, %v3471
      %v3569 = vrot.slane %v3473, 4
      %v3570 = vrot.slane %v3474, 4
      %v3571 = vsel %vm2952, %v3569, %v3570
      %v3572 = vrot.slane %v3475, 4
      %v3573 = vsel %vm2952, %v3570, %v3572
      %v3574 = vrot.slane %v3476, 4
      %v3575 = vrot.slane %v3477, 4
      %v3576 = vsel %vm2952, %v3574, %v3575
      %v3577 = vrot.slane %v3478, 4
      %v3578 = vsel %vm2952, %v3575, %v3577
      %v3579 = vrot.slane %v3479, 4
      %v3580 = vrot.slane %v3480, 4
      %v3581 = vsel %vm2952, %v3579, %v3580
      %v3582 = vrot.slane %v3481, 4
      %v3583 = vsel %vm2952, %v3580, %v3582
      %v3584 = vrot.slane %v3482, 4
      %v3585 = vrot.slane %v3483, 4
      %v3586 = vsel %vm2952, %v3584, %v3585
      %v3587 = vrot.slane %v3484, 4
      %v3588 = vsel %vm2952, %v3585, %v3587
      %v3589 = vrot.slane %v3485, 4
      %v3590 = vrot.slane %v3486, 4
      %v3591 = vsel %vm2952, %v3589, %v3590
      %v3592 = vrot.slane %v3487, 4
      %v3593 = vsel %vm2952, %v3590, %v3592
      %v3594 = vrot.slane %v3488, 4
      %v3595 = vrot.slane %v3489, 4
      %v3596 = vsel %vm2952, %v3594, %v3595
      %v3597 = vrot.slane %v3490, 4
      %v3598 = vsel %vm2952, %v3595, %v3597
      %v3599 = vrot.slane %v3491, 4
      %v3600 = vrot.slane %v3492, 4
      %v3601 = vsel %vm2952, %v3599, %v3600
      %v3602 = vrot.slane %v3493, 4
      %v3603 = vsel %vm2952, %v3600, %v3602
      %v3604 = vrot.slane %v3494, 4
      %v3605 = vrot.slane %v3495, 4
      %v3606 = vsel %vm2952, %v3604, %v3605
      %v3607 = vrot.slane %v3496, 4
      %v3608 = vsel %vm2952, %v3605, %v3607
      %v3609 = vrot.slane %v3497, 4
      %v3610 = vrot.slane %v3498, 4
      %v3611 = vsel %vm2952, %v3609, %v3610
      %v3612 = vrot.slane %v3499, 4
      %v3613 = vsel %vm2952, %v3610, %v3612
      %v3614 = vrot.slane %v3500, 4
      %v3615 = vrot.slane %v3501, 4
      %v3616 = vsel %vm2952, %v3614, %v3615
      %v3617 = vrot.slane %v3502, 4
      %v3618 = vsel %vm2952, %v3615, %v3617
      %v3619 = vrot.slane %v3503, 4
      %v3620 = vrot.slane %v3504, 4
      %v3621 = vsel %vm2952, %v3619, %v3620
      %v3622 = vrot.slane %v3505, 4
      %v3623 = vsel %vm2952, %v3620, %v3622
      %v3624 = vrot.slane %v3506, 4
      %v3625 = vrot.slane %v3507, 4
      %v3626 = vsel %vm2952, %v3624, %v3625
      %v3627 = vrot.slane %v3508, 4
      %v3628 = vsel %vm2952, %v3625, %v3627
      %v3629 = vrot.slane %v3509, 4
      %v3630 = vrot.slane %v3510, 4
      %v3631 = vsel %vm2952, %v3629, %v3630
      %v3632 = vrot.slane %v3511, 4
      %v3633 = vsel %vm2952, %v3630, %v3632
      %v3634 = vrot.slane %v3512, 4
      %v3635 = vrot.slane %v3513, 4
      %v3636 = vsel %vm2952, %v3634, %v3635
      %v3637 = vrot.slane %v3514, 4
      %v3638 = vsel %vm2952, %v3635, %v3637
      %v3639 = vrot.slane %v3515, 4
      %v3640 = vrot.slane %v3516, 4
      %v3641 = vsel %vm2952, %v3639, %v3640
      %v3642 = vrot.slane %v3517, 4
      %v3643 = vsel %vm2952, %v3640, %v3642
      %v3644 = vrot.slane %v3518, 4
      %v3645 = vrot.slane %v3519, 4
      %v3646 = vsel %vm2952, %v3644, %v3645
      %v3647 = vrot.slane %v3520, 4
      %v3648 = vsel %vm2952, %v3645, %v3647
      %v3681 = vadd.f32 %v3433, %v3571
      %v3682 = vadd.f32 %v3434, %v3573
      %v3683 = vadd.f32 %v3435, %v3576
      %v3684 = vadd.f32 %v3436, %v3578
      %v3685 = vadd.f32 %v3437, %v3581
      %v3686 = vadd.f32 %v3438, %v3583
      %v3687 = vadd.f32 %v3439, %v3586
      %v3688 = vadd.f32 %v3440, %v3588
      %v3689 = vadd.f32 %v3441, %v3591
      %v3690 = vadd.f32 %v3442, %v3593
      %v3691 = vadd.f32 %v3443, %v3596
      %v3692 = vadd.f32 %v3444, %v3598
      %v3693 = vadd.f32 %v3445, %v3601
      %v3694 = vadd.f32 %v3446, %v3603
      %v3695 = vadd.f32 %v3447, %v3606
      %v3696 = vadd.f32 %v3448, %v3608
      %v3697 = vadd.f32 %v3449, %v3611
      %v3698 = vadd.f32 %v3450, %v3613
      %v3699 = vadd.f32 %v3451, %v3616
      %v3700 = vadd.f32 %v3452, %v3618
      %v3701 = vadd.f32 %v3453, %v3621
      %v3702 = vadd.f32 %v3454, %v3623
      %v3703 = vadd.f32 %v3455, %v3626
      %v3704 = vadd.f32 %v3456, %v3628
      %v3705 = vadd.f32 %v3457, %v3631
      %v3706 = vadd.f32 %v3458, %v3633
      %v3707 = vadd.f32 %v3459, %v3636
      %v3708 = vadd.f32 %v3460, %v3638
      %v3709 = vadd.f32 %v3461, %v3641
      %v3710 = vadd.f32 %v3462, %v3643
      %v3711 = vadd.f32 %v3463, %v3646
      %v3712 = vadd.f32 %v3464, %v3648
      %s3713 = scalar_lea.vmem [#allocation2], 128
      %v3714 = vld [vmem:[%s3713] sm:$0xff]
      %v3715 = vld [vmem:[%s3713 + $0x8] sm:$0xff]
      %v3716 = vld [vmem:[%s3713 + $0x10] sm:$0xf]
      %v3717 = vld [vmem:[%s3713 + $0x20] sm:$0xff]
      %v3718 = vld [vmem:[%s3713 + $0x28] sm:$0xff]
      %v3719 = vld [vmem:[%s3713 + $0x30] sm:$0xf]
      %v3720 = vld [vmem:[%s3713 + $0x40] sm:$0xff]
      %v3721 = vld [vmem:[%s3713 + $0x48] sm:$0xff]
      %v3722 = vld [vmem:[%s3713 + $0x50] sm:$0xf]
      %v3723 = vld [vmem:[%s3713 + $0x60] sm:$0xff]
      %v3724 = vld [vmem:[%s3713 + $0x68] sm:$0xff]
      %v3725 = vld [vmem:[%s3713 + $0x70] sm:$0xf]
      %v3726 = vld [vmem:[%s3713 + $0x80] sm:$0xff]
      %v3727 = vld [vmem:[%s3713 + $0x88] sm:$0xff]
      %v3728 = vld [vmem:[%s3713 + $0x90] sm:$0xf]
      %v3729 = vld [vmem:[%s3713 + $0xa0] sm:$0xff]
      %v3730 = vld [vmem:[%s3713 + $0xa8] sm:$0xff]
      %v3731 = vld [vmem:[%s3713 + $0xb0] sm:$0xf]
      %v3732 = vld [vmem:[%s3713 + $0xc0] sm:$0xff]
      %v3733 = vld [vmem:[%s3713 + $0xc8] sm:$0xff]
      %v3734 = vld [vmem:[%s3713 + $0xd0] sm:$0xf]
      %v3735 = vld [vmem:[%s3713 + $0xe0] sm:$0xff]
      %v3736 = vld [vmem:[%s3713 + $0xe8] sm:$0xff]
      %v3737 = vld [vmem:[%s3713 + $0xf0] sm:$0xf]
      %v3738 = vld [vmem:[%s3713 + $0x100] sm:$0xff]
      %v3739 = vld [vmem:[%s3713 + $0x108] sm:$0xff]
      %v3740 = vld [vmem:[%s3713 + $0x110] sm:$0xf]
      %v3741 = vld [vmem:[%s3713 + $0x120] sm:$0xff]
      %v3742 = vld [vmem:[%s3713 + $0x128] sm:$0xff]
      %v3743 = vld [vmem:[%s3713 + $0x130] sm:$0xf]
      %v3744 = vld [vmem:[%s3713 + $0x140] sm:$0xff]
      %v3745 = vld [vmem:[%s3713 + $0x148] sm:$0xff]
      %v3746 = vld [vmem:[%s3713 + $0x150] sm:$0xf]
      %v3747 = vld [vmem:[%s3713 + $0x160] sm:$0xff]
      %v3748 = vld [vmem:[%s3713 + $0x168] sm:$0xff]
      %v3749 = vld [vmem:[%s3713 + $0x170] sm:$0xf]
      %v3750 = vld [vmem:[%s3713 + $0x180] sm:$0xff]
      %v3751 = vld [vmem:[%s3713 + $0x188] sm:$0xff]
      %v3752 = vld [vmem:[%s3713 + $0x190] sm:$0xf]
      %v3753 = vld [vmem:[%s3713 + $0x1a0] sm:$0xff]
      %v3754 = vld [vmem:[%s3713 + $0x1a8] sm:$0xff]
      %v3755 = vld [vmem:[%s3713 + $0x1b0] sm:$0xf]
      %v3756 = vld [vmem:[%s3713 + $0x1c0] sm:$0xff]
      %v3757 = vld [vmem:[%s3713 + $0x1c8] sm:$0xff]
      %v3758 = vld [vmem:[%s3713 + $0x1d0] sm:$0xf]
      %v3759 = vld [vmem:[%s3713 + $0x1e0] sm:$0xff]
      %v3760 = vld [vmem:[%s3713 + $0x1e8] sm:$0xff]
      %v3761 = vld [vmem:[%s3713 + $0x1f0] sm:$0xf]
      %s3762 = scalar_lea.vmem %s1, 15
      %v3763 = vld [vmem:[%s3762] sm:$0x1]
      %v3765 = vlaneseq
      %v3766 = vshrl.u32 %v3765, 7
      %v3767 = vsub.s32 0, %v3766
      %v3768 = vrot.slane %v3763, %v3767
      %v3770 = vmul.f32 %v3714, %v3768
      %v3771 = vmul.f32 %v3715, %v3768
      %v3772 = vmul.f32 %v3717, %v3768
      %v3773 = vmul.f32 %v3718, %v3768
      %v3774 = vmul.f32 %v3720, %v3768
      %v3775 = vmul.f32 %v3721, %v3768
      %v3776 = vmul.f32 %v3723, %v3768
      %v3777 = vmul.f32 %v3724, %v3768
      %v3778 = vmul.f32 %v3726, %v3768
      %v3779 = vmul.f32 %v3727, %v3768
      %v3780 = vmul.f32 %v3729, %v3768
      %v3781 = vmul.f32 %v3730, %v3768
      %v3782 = vmul.f32 %v3732, %v3768
      %v3783 = vmul.f32 %v3733, %v3768
      %v3784 = vmul.f32 %v3735, %v3768
      %v3785 = vmul.f32 %v3736, %v3768
      %v3786 = vmul.f32 %v3738, %v3768
      %v3787 = vmul.f32 %v3739, %v3768
      %v3788 = vmul.f32 %v3741, %v3768
      %v3789 = vmul.f32 %v3742, %v3768
      %v3790 = vmul.f32 %v3744, %v3768
      %v3791 = vmul.f32 %v3745, %v3768
      %v3792 = vmul.f32 %v3747, %v3768
      %v3793 = vmul.f32 %v3748, %v3768
      %v3794 = vmul.f32 %v3750, %v3768
      %v3795 = vmul.f32 %v3751, %v3768
      %v3796 = vmul.f32 %v3753, %v3768
      %v3797 = vmul.f32 %v3754, %v3768
      %v3798 = vmul.f32 %v3756, %v3768
      %v3799 = vmul.f32 %v3757, %v3768
      %v3800 = vmul.f32 %v3759, %v3768
      %v3801 = vmul.f32 %v3760, %v3768
      %v3802 = vadd.f32 %v3681, %v3770
      %v3803 = vadd.f32 %v3682, %v3771
      %v3804 = vadd.f32 %v3683, %v3772
      %v3805 = vadd.f32 %v3684, %v3773
      %v3806 = vadd.f32 %v3685, %v3774
      %v3807 = vadd.f32 %v3686, %v3775
      %v3808 = vadd.f32 %v3687, %v3776
      %v3809 = vadd.f32 %v3688, %v3777
      %v3810 = vadd.f32 %v3689, %v3778
      %v3811 = vadd.f32 %v3690, %v3779
      %v3812 = vadd.f32 %v3691, %v3780
      %v3813 = vadd.f32 %v3692, %v3781
      %v3814 = vadd.f32 %v3693, %v3782
      %v3815 = vadd.f32 %v3694, %v3783
      %v3816 = vadd.f32 %v3695, %v3784
      %v3817 = vadd.f32 %v3696, %v3785
      %v3818 = vadd.f32 %v3697, %v3786
      %v3819 = vadd.f32 %v3698, %v3787
      %v3820 = vadd.f32 %v3699, %v3788
      %v3821 = vadd.f32 %v3700, %v3789
      %v3822 = vadd.f32 %v3701, %v3790
      %v3823 = vadd.f32 %v3702, %v3791
      %v3824 = vadd.f32 %v3703, %v3792
      %v3825 = vadd.f32 %v3704, %v3793
      %v3826 = vadd.f32 %v3705, %v3794
      %v3827 = vadd.f32 %v3706, %v3795
      %v3828 = vadd.f32 %v3707, %v3796
      %v3829 = vadd.f32 %v3708, %v3797
      %v3830 = vadd.f32 %v3709, %v3798
      %v3831 = vadd.f32 %v3710, %v3799
      %v3832 = vadd.f32 %v3711, %v3800
      %v3833 = vadd.f32 %v3712, %v3801
      %s3834 = scalar_lea.vmem %s1, 16
      %v3835 = vld [vmem:[%s3834] sm:$0x1]
      %v3837 = vlaneseq
      %v3838 = vshrl.u32 %v3837, 7
      %v3839 = vsub.s32 0, %v3838
      %v3840 = vrot.slane %v3835, %v3839
      %v3842 = vmul.f32 %v3714, %v3840
      %v3843 = vmul.f32 %v3715, %v3840
      %v3844 = vmul.f32 %v3716, %v3840
      %v3845 = vmul.f32 %v3717, %v3840
      %v3846 = vmul.f32 %v3718, %v3840
      %v3847 = vmul.f32 %v3719, %v3840
      %v3848 = vmul.f32 %v3720, %v3840
      %v3849 = vmul.f32 %v3721, %v3840
      %v3850 = vmul.f32 %v3722, %v3840
      %v3851 = vmul.f32 %v3723, %v3840
      %v3852 = vmul.f32 %v3724, %v3840
      %v3853 = vmul.f32 %v3725, %v3840
      %v3854 = vmul.f32 %v3726, %v3840
      %v3855 = vmul.f32 %v3727, %v3840
      %v3856 = vmul.f32 %v3728, %v3840
      %v3857 = vmul.f32 %v3729, %v3840
      %v3858 = vmul.f32 %v3730, %v3840
      %v3859 = vmul.f32 %v3731, %v3840
      %v3860 = vmul.f32 %v3732, %v3840
      %v3861 = vmul.f32 %v3733, %v3840
      %v3862 = vmul.f32 %v3734, %v3840
      %v3863 = vmul.f32 %v3735, %v3840
      %v3864 = vmul.f32 %v3736, %v3840
      %v3865 = vmul.f32 %v3737, %v3840
      %v3866 = vmul.f32 %v3738, %v3840
      %v3867 = vmul.f32 %v3739, %v3840
      %v3868 = vmul.f32 %v3740, %v3840
      %v3869 = vmul.f32 %v3741, %v3840
      %v3870 = vmul.f32 %v3742, %v3840
      %v3871 = vmul.f32 %v3743, %v3840
      %v3872 = vmul.f32 %v3744, %v3840
      %v3873 = vmul.f32 %v3745, %v3840
      %v3874 = vmul.f32 %v3746, %v3840
      %v3875 = vmul.f32 %v3747, %v3840
      %v3876 = vmul.f32 %v3748, %v3840
      %v3877 = vmul.f32 %v3749, %v3840
      %v3878 = vmul.f32 %v3750, %v3840
      %v3879 = vmul.f32 %v3751, %v3840
      %v3880 = vmul.f32 %v3752, %v3840
      %v3881 = vmul.f32 %v3753, %v3840
      %v3882 = vmul.f32 %v3754, %v3840
      %v3883 = vmul.f32 %v3755, %v3840
      %v3884 = vmul.f32 %v3756, %v3840
      %v3885 = vmul.f32 %v3757, %v3840
      %v3886 = vmul.f32 %v3758, %v3840
      %v3887 = vmul.f32 %v3759, %v3840
      %v3888 = vmul.f32 %v3760, %v3840
      %v3889 = vmul.f32 %v3761, %v3840
      %v3938 = vrot.slane %v3842, 2
      %v3939 = vrot.slane %v3843, 2
      %v3940 = vsel %vm784, %v3938, %v3939
      %v3941 = vrot.slane %v3844, 2
      %v3942 = vsel %vm784, %v3939, %v3941
      %v3943 = vrot.slane %v3845, 2
      %v3944 = vrot.slane %v3846, 2
      %v3945 = vsel %vm784, %v3943, %v3944
      %v3946 = vrot.slane %v3847, 2
      %v3947 = vsel %vm784, %v3944, %v3946
      %v3948 = vrot.slane %v3848, 2
      %v3949 = vrot.slane %v3849, 2
      %v3950 = vsel %vm784, %v3948, %v3949
      %v3951 = vrot.slane %v3850, 2
      %v3952 = vsel %vm784, %v3949, %v3951
      %v3953 = vrot.slane %v3851, 2
      %v3954 = vrot.slane %v3852, 2
      %v3955 = vsel %vm784, %v3953, %v3954
      %v3956 = vrot.slane %v3853, 2
      %v3957 = vsel %vm784, %v3954, %v3956
      %v3958 = vrot.slane %v3854, 2
      %v3959 = vrot.slane %v3855, 2
      %v3960 = vsel %vm784, %v3958, %v3959
      %v3961 = vrot.slane %v3856, 2
      %v3962 = vsel %vm784, %v3959, %v3961
      %v3963 = vrot.slane %v3857, 2
      %v3964 = vrot.slane %v3858, 2
      %v3965 = vsel %vm784, %v3963, %v3964
      %v3966 = vrot.slane %v3859, 2
      %v3967 = vsel %vm784, %v3964, %v3966
      %v3968 = vrot.slane %v3860, 2
      %v3969 = vrot.slane %v3861, 2
      %v3970 = vsel %vm784, %v3968, %v3969
      %v3971 = vrot.slane %v3862, 2
      %v3972 = vsel %vm784, %v3969, %v3971
      %v3973 = vrot.slane %v3863, 2
      %v3974 = vrot.slane %v3864, 2
      %v3975 = vsel %vm784, %v3973, %v3974
      %v3976 = vrot.slane %v3865, 2
      %v3977 = vsel %vm784, %v3974, %v3976
      %v3978 = vrot.slane %v3866, 2
      %v3979 = vrot.slane %v3867, 2
      %v3980 = vsel %vm784, %v3978, %v3979
      %v3981 = vrot.slane %v3868, 2
      %v3982 = vsel %vm784, %v3979, %v3981
      %v3983 = vrot.slane %v3869, 2
      %v3984 = vrot.slane %v3870, 2
      %v3985 = vsel %vm784, %v3983, %v3984
      %v3986 = vrot.slane %v3871, 2
      %v3987 = vsel %vm784, %v3984, %v3986
      %v3988 = vrot.slane %v3872, 2
      %v3989 = vrot.slane %v3873, 2
      %v3990 = vsel %vm784, %v3988, %v3989
      %v3991 = vrot.slane %v3874, 2
      %v3992 = vsel %vm784, %v3989, %v3991
      %v3993 = vrot.slane %v3875, 2
      %v3994 = vrot.slane %v3876, 2
      %v3995 = vsel %vm784, %v3993, %v3994
      %v3996 = vrot.slane %v3877, 2
      %v3997 = vsel %vm784, %v3994, %v3996
      %v3998 = vrot.slane %v3878, 2
      %v3999 = vrot.slane %v3879, 2
      %v4000 = vsel %vm784, %v3998, %v3999
      %v4001 = vrot.slane %v3880, 2
      %v4002 = vsel %vm784, %v3999, %v4001
      %v4003 = vrot.slane %v3881, 2
      %v4004 = vrot.slane %v3882, 2
      %v4005 = vsel %vm784, %v4003, %v4004
      %v4006 = vrot.slane %v3883, 2
      %v4007 = vsel %vm784, %v4004, %v4006
      %v4008 = vrot.slane %v3884, 2
      %v4009 = vrot.slane %v3885, 2
      %v4010 = vsel %vm784, %v4008, %v4009
      %v4011 = vrot.slane %v3886, 2
      %v4012 = vsel %vm784, %v4009, %v4011
      %v4013 = vrot.slane %v3887, 2
      %v4014 = vrot.slane %v3888, 2
      %v4015 = vsel %vm784, %v4013, %v4014
      %v4016 = vrot.slane %v3889, 2
      %v4017 = vsel %vm784, %v4014, %v4016
      %v4050 = vadd.f32 %v3802, %v3940
      %v4051 = vadd.f32 %v3803, %v3942
      %v4052 = vadd.f32 %v3804, %v3945
      %v4053 = vadd.f32 %v3805, %v3947
      %v4054 = vadd.f32 %v3806, %v3950
      %v4055 = vadd.f32 %v3807, %v3952
      %v4056 = vadd.f32 %v3808, %v3955
      %v4057 = vadd.f32 %v3809, %v3957
      %v4058 = vadd.f32 %v3810, %v3960
      %v4059 = vadd.f32 %v3811, %v3962
      %v4060 = vadd.f32 %v3812, %v3965
      %v4061 = vadd.f32 %v3813, %v3967
      %v4062 = vadd.f32 %v3814, %v3970
      %v4063 = vadd.f32 %v3815, %v3972
      %v4064 = vadd.f32 %v3816, %v3975
      %v4065 = vadd.f32 %v3817, %v3977
      %v4066 = vadd.f32 %v3818, %v3980
      %v4067 = vadd.f32 %v3819, %v3982
      %v4068 = vadd.f32 %v3820, %v3985
      %v4069 = vadd.f32 %v3821, %v3987
      %v4070 = vadd.f32 %v3822, %v3990
      %v4071 = vadd.f32 %v3823, %v3992
      %v4072 = vadd.f32 %v3824, %v3995
      %v4073 = vadd.f32 %v3825, %v3997
      %v4074 = vadd.f32 %v3826, %v4000
      %v4075 = vadd.f32 %v3827, %v4002
      %v4076 = vadd.f32 %v3828, %v4005
      %v4077 = vadd.f32 %v3829, %v4007
      %v4078 = vadd.f32 %v3830, %v4010
      %v4079 = vadd.f32 %v3831, %v4012
      %v4080 = vadd.f32 %v3832, %v4015
      %v4081 = vadd.f32 %v3833, %v4017
      %s4082 = scalar_lea.vmem %s1, 17
      %v4083 = vld [vmem:[%s4082] sm:$0x1]
      %v4085 = vlaneseq
      %v4086 = vshrl.u32 %v4085, 7
      %v4087 = vsub.s32 0, %v4086
      %v4088 = vrot.slane %v4083, %v4087
      %v4090 = vmul.f32 %v3714, %v4088
      %v4091 = vmul.f32 %v3715, %v4088
      %v4092 = vmul.f32 %v3716, %v4088
      %v4093 = vmul.f32 %v3717, %v4088
      %v4094 = vmul.f32 %v3718, %v4088
      %v4095 = vmul.f32 %v3719, %v4088
      %v4096 = vmul.f32 %v3720, %v4088
      %v4097 = vmul.f32 %v3721, %v4088
      %v4098 = vmul.f32 %v3722, %v4088
      %v4099 = vmul.f32 %v3723, %v4088
      %v4100 = vmul.f32 %v3724, %v4088
      %v4101 = vmul.f32 %v3725, %v4088
      %v4102 = vmul.f32 %v3726, %v4088
      %v4103 = vmul.f32 %v3727, %v4088
      %v4104 = vmul.f32 %v3728, %v4088
      %v4105 = vmul.f32 %v3729, %v4088
      %v4106 = vmul.f32 %v3730, %v4088
      %v4107 = vmul.f32 %v3731, %v4088
      %v4108 = vmul.f32 %v3732, %v4088
      %v4109 = vmul.f32 %v3733, %v4088
      %v4110 = vmul.f32 %v3734, %v4088
      %v4111 = vmul.f32 %v3735, %v4088
      %v4112 = vmul.f32 %v3736, %v4088
      %v4113 = vmul.f32 %v3737, %v4088
      %v4114 = vmul.f32 %v3738, %v4088
      %v4115 = vmul.f32 %v3739, %v4088
      %v4116 = vmul.f32 %v3740, %v4088
      %v4117 = vmul.f32 %v3741, %v4088
      %v4118 = vmul.f32 %v3742, %v4088
      %v4119 = vmul.f32 %v3743, %v4088
      %v4120 = vmul.f32 %v3744, %v4088
      %v4121 = vmul.f32 %v3745, %v4088
      %v4122 = vmul.f32 %v3746, %v4088
      %v4123 = vmul.f32 %v3747, %v4088
      %v4124 = vmul.f32 %v3748, %v4088
      %v4125 = vmul.f32 %v3749, %v4088
      %v4126 = vmul.f32 %v3750, %v4088
      %v4127 = vmul.f32 %v3751, %v4088
      %v4128 = vmul.f32 %v3752, %v4088
      %v4129 = vmul.f32 %v3753, %v4088
      %v4130 = vmul.f32 %v3754, %v4088
      %v4131 = vmul.f32 %v3755, %v4088
      %v4132 = vmul.f32 %v3756, %v4088
      %v4133 = vmul.f32 %v3757, %v4088
      %v4134 = vmul.f32 %v3758, %v4088
      %v4135 = vmul.f32 %v3759, %v4088
      %v4136 = vmul.f32 %v3760, %v4088
      %v4137 = vmul.f32 %v3761, %v4088
      %v4186 = vrot.slane %v4090, 4
      %v4187 = vrot.slane %v4091, 4
      %v4188 = vsel %vm2952, %v4186, %v4187
      %v4189 = vrot.slane %v4092, 4
      %v4190 = vsel %vm2952, %v4187, %v4189
      %v4191 = vrot.slane %v4093, 4
      %v4192 = vrot.slane %v4094, 4
      %v4193 = vsel %vm2952, %v4191, %v4192
      %v4194 = vrot.slane %v4095, 4
      %v4195 = vsel %vm2952, %v4192, %v4194
      %v4196 = vrot.slane %v4096, 4
      %v4197 = vrot.slane %v4097, 4
      %v4198 = vsel %vm2952, %v4196, %v4197
      %v4199 = vrot.slane %v4098, 4
      %v4200 = vsel %vm2952, %v4197, %v4199
      %v4201 = vrot.slane %v4099, 4
      %v4202 = vrot.slane %v4100, 4
      %v4203 = vsel %vm2952, %v4201, %v4202
      %v4204 = vrot.slane %v4101, 4
      %v4205 = vsel %vm2952, %v4202, %v4204
      %v4206 = vrot.slane %v4102, 4
      %v4207 = vrot.slane %v4103, 4
      %v4208 = vsel %vm2952, %v4206, %v4207
      %v4209 = vrot.slane %v4104, 4
      %v4210 = vsel %vm2952, %v4207, %v4209
      %v4211 = vrot.slane %v4105, 4
      %v4212 = vrot.slane %v4106, 4
      %v4213 = vsel %vm2952, %v4211, %v4212
      %v4214 = vrot.slane %v4107, 4
      %v4215 = vsel %vm2952, %v4212, %v4214
      %v4216 = vrot.slane %v4108, 4
      %v4217 = vrot.slane %v4109, 4
      %v4218 = vsel %vm2952, %v4216, %v4217
      %v4219 = vrot.slane %v4110, 4
      %v4220 = vsel %vm2952, %v4217, %v4219
      %v4221 = vrot.slane %v4111, 4
      %v4222 = vrot.slane %v4112, 4
      %v4223 = vsel %vm2952, %v4221, %v4222
      %v4224 = vrot.slane %v4113, 4
      %v4225 = vsel %vm2952, %v4222, %v4224
      %v4226 = vrot.slane %v4114, 4
      %v4227 = vrot.slane %v4115, 4
      %v4228 = vsel %vm2952, %v4226, %v4227
      %v4229 = vrot.slane %v4116, 4
      %v4230 = vsel %vm2952, %v4227, %v4229
      %v4231 = vrot.slane %v4117, 4
      %v4232 = vrot.slane %v4118, 4
      %v4233 = vsel %vm2952, %v4231, %v4232
      %v4234 = vrot.slane %v4119, 4
      %v4235 = vsel %vm2952, %v4232, %v4234
      %v4236 = vrot.slane %v4120, 4
      %v4237 = vrot.slane %v4121, 4
      %v4238 = vsel %vm2952, %v4236, %v4237
      %v4239 = vrot.slane %v4122, 4
      %v4240 = vsel %vm2952, %v4237, %v4239
      %v4241 = vrot.slane %v4123, 4
      %v4242 = vrot.slane %v4124, 4
      %v4243 = vsel %vm2952, %v4241, %v4242
      %v4244 = vrot.slane %v4125, 4
      %v4245 = vsel %vm2952, %v4242, %v4244
      %v4246 = vrot.slane %v4126, 4
      %v4247 = vrot.slane %v4127, 4
      %v4248 = vsel %vm2952, %v4246, %v4247
      %v4249 = vrot.slane %v4128, 4
      %v4250 = vsel %vm2952, %v4247, %v4249
      %v4251 = vrot.slane %v4129, 4
      %v4252 = vrot.slane %v4130, 4
      %v4253 = vsel %vm2952, %v4251, %v4252
      %v4254 = vrot.slane %v4131, 4
      %v4255 = vsel %vm2952, %v4252, %v4254
      %v4256 = vrot.slane %v4132, 4
      %v4257 = vrot.slane %v4133, 4
      %v4258 = vsel %vm2952, %v4256, %v4257
      %v4259 = vrot.slane %v4134, 4
      %v4260 = vsel %vm2952, %v4257, %v4259
      %v4261 = vrot.slane %v4135, 4
      %v4262 = vrot.slane %v4136, 4
      %v4263 = vsel %vm2952, %v4261, %v4262
      %v4264 = vrot.slane %v4137, 4
      %v4265 = vsel %vm2952, %v4262, %v4264
      %v4298 = vadd.f32 %v4050, %v4188
      %v4299 = vadd.f32 %v4051, %v4190
      %v4300 = vadd.f32 %v4052, %v4193
      %v4301 = vadd.f32 %v4053, %v4195
      %v4302 = vadd.f32 %v4054, %v4198
      %v4303 = vadd.f32 %v4055, %v4200
      %v4304 = vadd.f32 %v4056, %v4203
      %v4305 = vadd.f32 %v4057, %v4205
      %v4306 = vadd.f32 %v4058, %v4208
      %v4307 = vadd.f32 %v4059, %v4210
      %v4308 = vadd.f32 %v4060, %v4213
      %v4309 = vadd.f32 %v4061, %v4215
      %v4310 = vadd.f32 %v4062, %v4218
      %v4311 = vadd.f32 %v4063, %v4220
      %v4312 = vadd.f32 %v4064, %v4223
      %v4313 = vadd.f32 %v4065, %v4225
      %v4314 = vadd.f32 %v4066, %v4228
      %v4315 = vadd.f32 %v4067, %v4230
      %v4316 = vadd.f32 %v4068, %v4233
      %v4317 = vadd.f32 %v4069, %v4235
      %v4318 = vadd.f32 %v4070, %v4238
      %v4319 = vadd.f32 %v4071, %v4240
      %v4320 = vadd.f32 %v4072, %v4243
      %v4321 = vadd.f32 %v4073, %v4245
      %v4322 = vadd.f32 %v4074, %v4248
      %v4323 = vadd.f32 %v4075, %v4250
      %v4324 = vadd.f32 %v4076, %v4253
      %v4325 = vadd.f32 %v4077, %v4255
      %v4326 = vadd.f32 %v4078, %v4258
      %v4327 = vadd.f32 %v4079, %v4260
      %v4328 = vadd.f32 %v4080, %v4263
      %v4329 = vadd.f32 %v4081, %v4265
      %s4330 = scalar_lea.vmem %s3, 1
      %v4331 = vld [vmem:[%s4330] sm:$0x1]
      %vm4332 = vcmp.ge.f32.partialorder %v4298, 0.0
      %vm4333 = vcmp.ge.f32.partialorder %v4299, 0.0
      %vm4334 = vcmp.ge.f32.partialorder %v4300, 0.0
      %vm4335 = vcmp.ge.f32.partialorder %v4301, 0.0
      %vm4336 = vcmp.ge.f32.partialorder %v4302, 0.0
      %vm4337 = vcmp.ge.f32.partialorder %v4303, 0.0
      %vm4338 = vcmp.ge.f32.partialorder %v4304, 0.0
      %vm4339 = vcmp.ge.f32.partialorder %v4305, 0.0
      %vm4340 = vcmp.ge.f32.partialorder %v4306, 0.0
      %vm4341 = vcmp.ge.f32.partialorder %v4307, 0.0
      %vm4342 = vcmp.ge.f32.partialorder %v4308, 0.0
      %vm4343 = vcmp.ge.f32.partialorder %v4309, 0.0
      %vm4344 = vcmp.ge.f32.partialorder %v4310, 0.0
      %vm4345 = vcmp.ge.f32.partialorder %v4311, 0.0
      %vm4346 = vcmp.ge.f32.partialorder %v4312, 0.0
      %vm4347 = vcmp.ge.f32.partialorder %v4313, 0.0
      %vm4348 = vcmp.ge.f32.partialorder %v4314, 0.0
      %vm4349 = vcmp.ge.f32.partialorder %v4315, 0.0
      %vm4350 = vcmp.ge.f32.partialorder %v4316, 0.0
      %vm4351 = vcmp.ge.f32.partialorder %v4317, 0.0
      %vm4352 = vcmp.ge.f32.partialorder %v4318, 0.0
      %vm4353 = vcmp.ge.f32.partialorder %v4319, 0.0
      %vm4354 = vcmp.ge.f32.partialorder %v4320, 0.0
      %vm4355 = vcmp.ge.f32.partialorder %v4321, 0.0
      %vm4356 = vcmp.ge.f32.partialorder %v4322, 0.0
      %vm4357 = vcmp.ge.f32.partialorder %v4323, 0.0
      %vm4358 = vcmp.ge.f32.partialorder %v4324, 0.0
      %vm4359 = vcmp.ge.f32.partialorder %v4325, 0.0
      %vm4360 = vcmp.ge.f32.partialorder %v4326, 0.0
      %vm4361 = vcmp.ge.f32.partialorder %v4327, 0.0
      %vm4362 = vcmp.ge.f32.partialorder %v4328, 0.0
      %vm4363 = vcmp.ge.f32.partialorder %v4329, 0.0
      %v4365 = vlaneseq
      %v4366 = vshrl.u32 %v4365, 7
      %v4367 = vsub.s32 0, %v4366
      %v4368 = vrot.slane %v4331, %v4367
      %v4370 = vmul.f32 %v4298, %v4368
      %v4371 = vmul.f32 %v4299, %v4368
      %v4372 = vmul.f32 %v4300, %v4368
      %v4373 = vmul.f32 %v4301, %v4368
      %v4374 = vmul.f32 %v4302, %v4368
      %v4375 = vmul.f32 %v4303, %v4368
      %v4376 = vmul.f32 %v4304, %v4368
      %v4377 = vmul.f32 %v4305, %v4368
      %v4378 = vmul.f32 %v4306, %v4368
      %v4379 = vmul.f32 %v4307, %v4368
      %v4380 = vmul.f32 %v4308, %v4368
      %v4381 = vmul.f32 %v4309, %v4368
      %v4382 = vmul.f32 %v4310, %v4368
      %v4383 = vmul.f32 %v4311, %v4368
      %v4384 = vmul.f32 %v4312, %v4368
      %v4385 = vmul.f32 %v4313, %v4368
      %v4386 = vmul.f32 %v4314, %v4368
      %v4387 = vmul.f32 %v4315, %v4368
      %v4388 = vmul.f32 %v4316, %v4368
      %v4389 = vmul.f32 %v4317, %v4368
      %v4390 = vmul.f32 %v4318, %v4368
      %v4391 = vmul.f32 %v4319, %v4368
      %v4392 = vmul.f32 %v4320, %v4368
      %v4393 = vmul.f32 %v4321, %v4368
      %v4394 = vmul.f32 %v4322, %v4368
      %v4395 = vmul.f32 %v4323, %v4368
      %v4396 = vmul.f32 %v4324, %v4368
      %v4397 = vmul.f32 %v4325, %v4368
      %v4398 = vmul.f32 %v4326, %v4368
      %v4399 = vmul.f32 %v4327, %v4368
      %v4400 = vmul.f32 %v4328, %v4368
      %v4401 = vmul.f32 %v4329, %v4368
      %v4402 = vsel %vm4332, %v4298, %v4370
      %v4403 = vsel %vm4333, %v4299, %v4371
      %v4404 = vsel %vm4334, %v4300, %v4372
      %v4405 = vsel %vm4335, %v4301, %v4373
      %v4406 = vsel %vm4336, %v4302, %v4374
      %v4407 = vsel %vm4337, %v4303, %v4375
      %v4408 = vsel %vm4338, %v4304, %v4376
      %v4409 = vsel %vm4339, %v4305, %v4377
      %v4410 = vsel %vm4340, %v4306, %v4378
      %v4411 = vsel %vm4341, %v4307, %v4379
      %v4412 = vsel %vm4342, %v4308, %v4380
      %v4413 = vsel %vm4343, %v4309, %v4381
      %v4414 = vsel %vm4344, %v4310, %v4382
      %v4415 = vsel %vm4345, %v4311, %v4383
      %v4416 = vsel %vm4346, %v4312, %v4384
      %v4417 = vsel %vm4347, %v4313, %v4385
      %v4418 = vsel %vm4348, %v4314, %v4386
      %v4419 = vsel %vm4349, %v4315, %v4387
      %v4420 = vsel %vm4350, %v4316, %v4388
      %v4421 = vsel %vm4351, %v4317, %v4389
      %v4422 = vsel %vm4352, %v4318, %v4390
      %v4423 = vsel %vm4353, %v4319, %v4391
      %v4424 = vsel %vm4354, %v4320, %v4392
      %v4425 = vsel %vm4355, %v4321, %v4393
      %v4426 = vsel %vm4356, %v4322, %v4394
      %v4427 = vsel %vm4357, %v4323, %v4395
      %v4428 = vsel %vm4358, %v4324, %v4396
      %v4429 = vsel %vm4359, %v4325, %v4397
      %v4430 = vsel %vm4360, %v4326, %v4398
      %v4431 = vsel %vm4361, %v4327, %v4399
      %v4432 = vsel %vm4362, %v4328, %v4400
      %v4433 = vsel %vm4363, %v4329, %v4401
      %s4434 = scalar_lea.vmem %s197, 256
      %4435 = vst.msk [vmem:[%s4434] sm:$0xff] %vm230, %v4402
      %4436 = vst.msk [vmem:[%s4434 + $0x8] sm:$0xff] %vm230, %v4403
      %4437 = vst.msk [vmem:[%s4434 + $0x10] sm:$0xff] %vm230, %v4404
      %4438 = vst.msk [vmem:[%s4434 + $0x18] sm:$0xff] %vm230, %v4405
      %4439 = vst.msk [vmem:[%s4434 + $0x20] sm:$0xff] %vm230, %v4406
      %4440 = vst.msk [vmem:[%s4434 + $0x28] sm:$0xff] %vm230, %v4407
      %4441 = vst.msk [vmem:[%s4434 + $0x30] sm:$0xff] %vm230, %v4408
      %4442 = vst.msk [vmem:[%s4434 + $0x38] sm:$0xff] %vm230, %v4409
      %4443 = vst.msk [vmem:[%s4434 + $0x40] sm:$0xff] %vm230, %v4410
      %4444 = vst.msk [vmem:[%s4434 + $0x48] sm:$0xff] %vm230, %v4411
      %4445 = vst.msk [vmem:[%s4434 + $0x50] sm:$0xff] %vm230, %v4412
      %4446 = vst.msk [vmem:[%s4434 + $0x58] sm:$0xff] %vm230, %v4413
      %4447 = vst.msk [vmem:[%s4434 + $0x60] sm:$0xff] %vm230, %v4414
      %4448 = vst.msk [vmem:[%s4434 + $0x68] sm:$0xff] %vm230, %v4415
      %4449 = vst.msk [vmem:[%s4434 + $0x70] sm:$0xff] %vm230, %v4416
      %4450 = vst.msk [vmem:[%s4434 + $0x78] sm:$0xff] %vm230, %v4417
      %4451 = vst.msk [vmem:[%s4434 + $0x80] sm:$0xff] %vm230, %v4418
      %4452 = vst.msk [vmem:[%s4434 + $0x88] sm:$0xff] %vm230, %v4419
      %4453 = vst.msk [vmem:[%s4434 + $0x90] sm:$0xff] %vm230, %v4420
      %4454 = vst.msk [vmem:[%s4434 + $0x98] sm:$0xff] %vm230, %v4421
      %4455 = vst.msk [vmem:[%s4434 + $0xa0] sm:$0xff] %vm230, %v4422
      %4456 = vst.msk [vmem:[%s4434 + $0xa8] sm:$0xff] %vm230, %v4423
      %4457 = vst.msk [vmem:[%s4434 + $0xb0] sm:$0xff] %vm230, %v4424
      %4458 = vst.msk [vmem:[%s4434 + $0xb8] sm:$0xff] %vm230, %v4425
      %4459 = vst.msk [vmem:[%s4434 + $0xc0] sm:$0xff] %vm230, %v4426
      %4460 = vst.msk [vmem:[%s4434 + $0xc8] sm:$0xff] %vm230, %v4427
      %4461 = vst.msk [vmem:[%s4434 + $0xd0] sm:$0xff] %vm230, %v4428
      %4462 = vst.msk [vmem:[%s4434 + $0xd8] sm:$0xff] %vm230, %v4429
      %4463 = vst.msk [vmem:[%s4434 + $0xe0] sm:$0xff] %vm230, %v4430
      %4464 = vst.msk [vmem:[%s4434 + $0xe8] sm:$0xff] %vm230, %v4431
      %4465 = vst.msk [vmem:[%s4434 + $0xf0] sm:$0xff] %vm230, %v4432
      %4466 = vst.msk [vmem:[%s4434 + $0xf8] sm:$0xff] %vm230, %v4433
      %s4467 = scalar_lea.vmem %s192, 512
      %v4468 = vld [vmem:[%s4467] sm:$0xff]
      %v4469 = vld [vmem:[%s4467 + $0x8] sm:$0xff]
      %v4470 = vld [vmem:[%s4467 + $0x10] sm:$0xff]
      %v4471 = vld [vmem:[%s4467 + $0x18] sm:$0xff]
      %v4472 = vld [vmem:[%s4467 + $0x20] sm:$0xff]
      %v4473 = vld [vmem:[%s4467 + $0x28] sm:$0xff]
      %v4474 = vld [vmem:[%s4467 + $0x30] sm:$0xff]
      %v4475 = vld [vmem:[%s4467 + $0x38] sm:$0xff]
      %v4476 = vld [vmem:[%s4467 + $0x40] sm:$0xff]
      %v4477 = vld [vmem:[%s4467 + $0x48] sm:$0xff]
      %v4478 = vld [vmem:[%s4467 + $0x50] sm:$0xff]
      %v4479 = vld [vmem:[%s4467 + $0x58] sm:$0xff]
      %v4480 = vld [vmem:[%s4467 + $0x60] sm:$0xff]
      %v4481 = vld [vmem:[%s4467 + $0x68] sm:$0xff]
      %v4482 = vld [vmem:[%s4467 + $0x70] sm:$0xff]
      %v4483 = vld [vmem:[%s4467 + $0x78] sm:$0xff]
      %v4484 = vld [vmem:[%s4467 + $0x80] sm:$0xff]
      %v4485 = vld [vmem:[%s4467 + $0x88] sm:$0xff]
      %v4486 = vld [vmem:[%s4467 + $0x90] sm:$0xff]
      %v4487 = vld [vmem:[%s4467 + $0x98] sm:$0xff]
      %v4488 = vld [vmem:[%s4467 + $0xa0] sm:$0xff]
      %v4489 = vld [vmem:[%s4467 + $0xa8] sm:$0xff]
      %v4490 = vld [vmem:[%s4467 + $0xb0] sm:$0xff]
      %v4491 = vld [vmem:[%s4467 + $0xb8] sm:$0xff]
      %v4492 = vld [vmem:[%s4467 + $0xc0] sm:$0xff]
      %v4493 = vld [vmem:[%s4467 + $0xc8] sm:$0xff]
      %v4494 = vld [vmem:[%s4467 + $0xd0] sm:$0xff]
      %v4495 = vld [vmem:[%s4467 + $0xd8] sm:$0xff]
      %v4496 = vld [vmem:[%s4467 + $0xe0] sm:$0xff]
      %v4497 = vld [vmem:[%s4467 + $0xe8] sm:$0xff]
      %v4498 = vld [vmem:[%s4467 + $0xf0] sm:$0xff]
      %v4499 = vld [vmem:[%s4467 + $0xf8] sm:$0xff]
      %v4500 = vld [vmem:[%s4434] sm:$0xff]
      %v4501 = vld [vmem:[%s4434 + $0x8] sm:$0xff]
      %v4502 = vld [vmem:[%s4434 + $0x10] sm:$0xff]
      %v4503 = vld [vmem:[%s4434 + $0x18] sm:$0xff]
      %v4504 = vld [vmem:[%s4434 + $0x20] sm:$0xff]
      %v4505 = vld [vmem:[%s4434 + $0x28] sm:$0xff]
      %v4506 = vld [vmem:[%s4434 + $0x30] sm:$0xff]
      %v4507 = vld [vmem:[%s4434 + $0x38] sm:$0xff]
      %v4508 = vld [vmem:[%s4434 + $0x40] sm:$0xff]
      %v4509 = vld [vmem:[%s4434 + $0x48] sm:$0xff]
      %v4510 = vld [vmem:[%s4434 + $0x50] sm:$0xff]
      %v4511 = vld [vmem:[%s4434 + $0x58] sm:$0xff]
      %v4512 = vld [vmem:[%s4434 + $0x60] sm:$0xff]
      %v4513 = vld [vmem:[%s4434 + $0x68] sm:$0xff]
      %v4514 = vld [vmem:[%s4434 + $0x70] sm:$0xff]
      %v4515 = vld [vmem:[%s4434 + $0x78] sm:$0xff]
      %v4516 = vld [vmem:[%s4434 + $0x80] sm:$0xff]
      %v4517 = vld [vmem:[%s4434 + $0x88] sm:$0xff]
      %v4518 = vld [vmem:[%s4434 + $0x90] sm:$0xff]
      %v4519 = vld [vmem:[%s4434 + $0x98] sm:$0xff]
      %v4520 = vld [vmem:[%s4434 + $0xa0] sm:$0xff]
      %v4521 = vld [vmem:[%s4434 + $0xa8] sm:$0xff]
      %v4522 = vld [vmem:[%s4434 + $0xb0] sm:$0xff]
      %v4523 = vld [vmem:[%s4434 + $0xb8] sm:$0xff]
      %v4524 = vld [vmem:[%s4434 + $0xc0] sm:$0xff]
      %v4525 = vld [vmem:[%s4434 + $0xc8] sm:$0xff]
      %v4526 = vld [vmem:[%s4434 + $0xd0] sm:$0xff]
      %v4527 = vld [vmem:[%s4434 + $0xd8] sm:$0xff]
      %v4528 = vld [vmem:[%s4434 + $0xe0] sm:$0xff]
      %v4529 = vld [vmem:[%s4434 + $0xe8] sm:$0xff]
      %v4530 = vld [vmem:[%s4434 + $0xf0] sm:$0xff]
      %v4531 = vld [vmem:[%s4434 + $0xf8] sm:$0xff]
      %v4532 = vadd.f32 %v4468, %v4500
      %v4533 = vadd.f32 %v4469, %v4501
      %v4534 = vadd.f32 %v4470, %v4502
      %v4535 = vadd.f32 %v4471, %v4503
      %v4536 = vadd.f32 %v4472, %v4504
      %v4537 = vadd.f32 %v4473, %v4505
      %v4538 = vadd.f32 %v4474, %v4506
      %v4539 = vadd.f32 %v4475, %v4507
      %v4540 = vadd.f32 %v4476, %v4508
      %v4541 = vadd.f32 %v4477, %v4509
      %v4542 = vadd.f32 %v4478, %v4510
      %v4543 = vadd.f32 %v4479, %v4511
      %v4544 = vadd.f32 %v4480, %v4512
      %v4545 = vadd.f32 %v4481, %v4513
      %v4546 = vadd.f32 %v4482, %v4514
      %v4547 = vadd.f32 %v4483, %v4515
      %v4548 = vadd.f32 %v4484, %v4516
      %v4549 = vadd.f32 %v4485, %v4517
      %v4550 = vadd.f32 %v4486, %v4518
      %v4551 = vadd.f32 %v4487, %v4519
      %v4552 = vadd.f32 %v4488, %v4520
      %v4553 = vadd.f32 %v4489, %v4521
      %v4554 = vadd.f32 %v4490, %v4522
      %v4555 = vadd.f32 %v4491, %v4523
      %v4556 = vadd.f32 %v4492, %v4524
      %v4557 = vadd.f32 %v4493, %v4525
      %v4558 = vadd.f32 %v4494, %v4526
      %v4559 = vadd.f32 %v4495, %v4527
      %v4560 = vadd.f32 %v4496, %v4528
      %v4561 = vadd.f32 %v4497, %v4529
      %v4562 = vadd.f32 %v4498, %v4530
      %v4563 = vadd.f32 %v4499, %v4531
      %4564 = vst.msk [vmem:[#allocation2] sm:$0xff] %vm230, 0.0
      %4565 = vst.msk [vmem:[#allocation2 + $0x8] sm:$0xff] %vm230, 0.0
      %4566 = vst.msk [vmem:[#allocation2 + $0x10] sm:$0xff] %vm230, 0.0
      %4567 = vst.msk [vmem:[#allocation2 + $0x20] sm:$0xff] %vm230, 0.0
      %4568 = vst.msk [vmem:[#allocation2 + $0x28] sm:$0xff] %vm230, 0.0
      %4569 = vst.msk [vmem:[#allocation2 + $0x30] sm:$0xff] %vm230, 0.0
      %4570 = vst.msk [vmem:[#allocation2 + $0x40] sm:$0xff] %vm230, 0.0
      %4571 = vst.msk [vmem:[#allocation2 + $0x48] sm:$0xff] %vm230, 0.0
      %4572 = vst.msk [vmem:[#allocation2 + $0x50] sm:$0xff] %vm230, 0.0
      %4573 = vst.msk [vmem:[#allocation2 + $0x60] sm:$0xff] %vm230, 0.0
      %4574 = vst.msk [vmem:[#allocation2 + $0x68] sm:$0xff] %vm230, 0.0
      %4575 = vst.msk [vmem:[#allocation2 + $0x70] sm:$0xff] %vm230, 0.0
      %s4576 = scalar_lea.vmem [#allocation2], 640
      %4577 = vst.msk [vmem:[%s4576] sm:$0xff] %vm230, 0.0
      %4578 = vst.msk [vmem:[%s4576 + $0x8] sm:$0xff] %vm230, 0.0
      %4579 = vst.msk [vmem:[%s4576 + $0x10] sm:$0xff] %vm230, 0.0
      %4580 = vst.msk [vmem:[%s4576 + $0x20] sm:$0xff] %vm230, 0.0
      %4581 = vst.msk [vmem:[%s4576 + $0x28] sm:$0xff] %vm230, 0.0
      %4582 = vst.msk [vmem:[%s4576 + $0x30] sm:$0xff] %vm230, 0.0
      %4583 = vst.msk [vmem:[%s4576 + $0x40] sm:$0xff] %vm230, 0.0
      %4584 = vst.msk [vmem:[%s4576 + $0x48] sm:$0xff] %vm230, 0.0
      %4585 = vst.msk [vmem:[%s4576 + $0x50] sm:$0xff] %vm230, 0.0
      %4586 = vst.msk [vmem:[%s4576 + $0x60] sm:$0xff] %vm230, 0.0
      %4587 = vst.msk [vmem:[%s4576 + $0x68] sm:$0xff] %vm230, 0.0
      %4588 = vst.msk [vmem:[%s4576 + $0x70] sm:$0xff] %vm230, 0.0
      %4589 = vst.msk [vmem:[%s3713] sm:$0xf] %vm2396, 0.0
      %4590 = vst.msk [vmem:[%s3713 + $0x20] sm:$0xf] %vm2396, 0.0
      %4591 = vst.msk [vmem:[%s3713 + $0x40] sm:$0xf] %vm2396, 0.0
      %4592 = vst.msk [vmem:[%s3713 + $0x60] sm:$0xf] %vm2396, 0.0
      %4593 = vst.msk [vmem:[%s3713 + $0x80] sm:$0xf] %vm2396, 0.0
      %4594 = vst.msk [vmem:[%s3713 + $0xa0] sm:$0xf] %vm2396, 0.0
      %4595 = vst.msk [vmem:[%s3713 + $0xc0] sm:$0xf] %vm2396, 0.0
      %4596 = vst.msk [vmem:[%s3713 + $0xe0] sm:$0xf] %vm2396, 0.0
      %4597 = vst.msk [vmem:[%s3713 + $0x100] sm:$0xf] %vm2396, 0.0
      %4598 = vst.msk [vmem:[%s3713 + $0x120] sm:$0xf] %vm2396, 0.0
      %4599 = vst.msk [vmem:[%s3713 + $0x140] sm:$0xf] %vm2396, 0.0
      %4600 = vst.msk [vmem:[%s3713 + $0x160] sm:$0xf] %vm2396, 0.0
      %4601 = vst.msk [vmem:[%s3713 + $0x180] sm:$0xf] %vm2396, 0.0
      %4602 = vst.msk [vmem:[%s3713 + $0x1a0] sm:$0xf] %vm2396, 0.0
      %4603 = vst.msk [vmem:[%s3713 + $0x1c0] sm:$0xf] %vm2396, 0.0
      %4604 = vst.msk [vmem:[%s3713 + $0x1e0] sm:$0xf] %vm2396, 0.0
      %4605 = vst.msk [vmem:[%s3713 + $0x14] sm:$0xf] %vm2396, 0.0
      %4606 = vst.msk [vmem:[%s3713 + $0x34] sm:$0xf] %vm2396, 0.0
      %4607 = vst.msk [vmem:[%s3713 + $0x54] sm:$0xf] %vm2396, 0.0
      %4608 = vst.msk [vmem:[%s3713 + $0x74] sm:$0xf] %vm2396, 0.0
      %4609 = vst.msk [vmem:[%s3713 + $0x94] sm:$0xf] %vm2396, 0.0
      %4610 = vst.msk [vmem:[%s3713 + $0xb4] sm:$0xf] %vm2396, 0.0
      %4611 = vst.msk [vmem:[%s3713 + $0xd4] sm:$0xf] %vm2396, 0.0
      %4612 = vst.msk [vmem:[%s3713 + $0xf4] sm:$0xf] %vm2396, 0.0
      %4613 = vst.msk [vmem:[%s3713 + $0x114] sm:$0xf] %vm2396, 0.0
      %4614 = vst.msk [vmem:[%s3713 + $0x134] sm:$0xf] %vm2396, 0.0
      %4615 = vst.msk [vmem:[%s3713 + $0x154] sm:$0xf] %vm2396, 0.0
      %4616 = vst.msk [vmem:[%s3713 + $0x174] sm:$0xf] %vm2396, 0.0
      %4617 = vst.msk [vmem:[%s3713 + $0x194] sm:$0xf] %vm2396, 0.0
      %4618 = vst.msk [vmem:[%s3713 + $0x1b4] sm:$0xf] %vm2396, 0.0
      %4619 = vst.msk [vmem:[%s3713 + $0x1d4] sm:$0xf] %vm2396, 0.0
      %4620 = vst.msk [vmem:[%s3713 + $0x1f4] sm:$0xf] %vm2396, 0.0
      %4621 = vst.msk [vmem:[%s3713 + $0x4] sm:$0xff] %vm230, %v4532
      %4622 = vst.msk [vmem:[%s3713 + $0xc] sm:$0xff] %vm230, %v4533
      %4623 = vst.msk [vmem:[%s3713 + $0x24] sm:$0xff] %vm230, %v4534
      %4624 = vst.msk [vmem:[%s3713 + $0x2c] sm:$0xff] %vm230, %v4535
      %4625 = vst.msk [vmem:[%s3713 + $0x44] sm:$0xff] %vm230, %v4536
      %4626 = vst.msk [vmem:[%s3713 + $0x4c] sm:$0xff] %vm230, %v4537
      %4627 = vst.msk [vmem:[%s3713 + $0x64] sm:$0xff] %vm230, %v4538
      %4628 = vst.msk [vmem:[%s3713 + $0x6c] sm:$0xff] %vm230, %v4539
      %4629 = vst.msk [vmem:[%s3713 + $0x84] sm:$0xff] %vm230, %v4540
      %4630 = vst.msk [vmem:[%s3713 + $0x8c] sm:$0xff] %vm230, %v4541
      %4631 = vst.msk [vmem:[%s3713 + $0xa4] sm:$0xff] %vm230, %v4542
      %4632 = vst.msk [vmem:[%s3713 + $0xac] sm:$0xff] %vm230, %v4543
      %4633 = vst.msk [vmem:[%s3713 + $0xc4] sm:$0xff] %vm230, %v4544
      %4634 = vst.msk [vmem:[%s3713 + $0xcc] sm:$0xff] %vm230, %v4545
      %4635 = vst.msk [vmem:[%s3713 + $0xe4] sm:$0xff] %vm230, %v4546
      %4636 = vst.msk [vmem:[%s3713 + $0xec] sm:$0xff] %vm230, %v4547
      %4637 = vst.msk [vmem:[%s3713 + $0x104] sm:$0xff] %vm230, %v4548
      %4638 = vst.msk [vmem:[%s3713 + $0x10c] sm:$0xff] %vm230, %v4549
      %4639 = vst.msk [vmem:[%s3713 + $0x124] sm:$0xff] %vm230, %v4550
      %4640 = vst.msk [vmem:[%s3713 + $0x12c] sm:$0xff] %vm230, %v4551
      %4641 = vst.msk [vmem:[%s3713 + $0x144] sm:$0xff] %vm230, %v4552
      %4642 = vst.msk [vmem:[%s3713 + $0x14c] sm:$0xff] %vm230, %v4553
      %4643 = vst.msk [vmem:[%s3713 + $0x164] sm:$0xff] %vm230, %v4554
      %4644 = vst.msk [vmem:[%s3713 + $0x16c] sm:$0xff] %vm230, %v4555
      %4645 = vst.msk [vmem:[%s3713 + $0x184] sm:$0xff] %vm230, %v4556
      %4646 = vst.msk [vmem:[%s3713 + $0x18c] sm:$0xff] %vm230, %v4557
      %4647 = vst.msk [vmem:[%s3713 + $0x1a4] sm:$0xff] %vm230, %v4558
      %4648 = vst.msk [vmem:[%s3713 + $0x1ac] sm:$0xff] %vm230, %v4559
      %4649 = vst.msk [vmem:[%s3713 + $0x1c4] sm:$0xff] %vm230, %v4560
      %4650 = vst.msk [vmem:[%s3713 + $0x1cc] sm:$0xff] %vm230, %v4561
      %4651 = vst.msk [vmem:[%s3713 + $0x1e4] sm:$0xff] %vm230, %v4562
      %4652 = vst.msk [vmem:[%s3713 + $0x1ec] sm:$0xff] %vm230, %v4563
      %s4653 = scalar_lea.vmem %s2, 2
      %v4654 = vld [vmem:[%s4653] sm:$0x1]
      %v4655 = vld [vmem:[#allocation2] sm:$0xff]
      %v4656 = vld [vmem:[#allocation2 + $0x8] sm:$0xff]
      %v4657 = vld [vmem:[#allocation2 + $0x10] sm:$0xff]
      %v4658 = vld [vmem:[#allocation2 + $0x20] sm:$0xff]
      %v4659 = vld [vmem:[#allocation2 + $0x28] sm:$0xff]
      %v4660 = vld [vmem:[#allocation2 + $0x30] sm:$0xff]
      %v4661 = vld [vmem:[#allocation2 + $0x40] sm:$0xff]
      %v4662 = vld [vmem:[#allocation2 + $0x48] sm:$0xff]
      %v4663 = vld [vmem:[#allocation2 + $0x50] sm:$0xff]
      %v4664 = vld [vmem:[#allocation2 + $0x60] sm:$0xff]
      %v4665 = vld [vmem:[#allocation2 + $0x68] sm:$0xff]
      %v4666 = vld [vmem:[#allocation2 + $0x70] sm:$0xff]
      %v4667 = vld [vmem:[#allocation2 + $0x80] sm:$0xff]
      %v4668 = vld [vmem:[#allocation2 + $0x88] sm:$0xff]
      %v4669 = vld [vmem:[#allocation2 + $0x90] sm:$0xff]
      %v4670 = vld [vmem:[#allocation2 + $0xa0] sm:$0xff]
      %v4671 = vld [vmem:[#allocation2 + $0xa8] sm:$0xff]
      %v4672 = vld [vmem:[#allocation2 + $0xb0] sm:$0xff]
      %v4673 = vld [vmem:[#allocation2 + $0xc0] sm:$0xff]
      %v4674 = vld [vmem:[#allocation2 + $0xc8] sm:$0xff]
      %v4675 = vld [vmem:[#allocation2 + $0xd0] sm:$0xff]
      %v4676 = vld [vmem:[#allocation2 + $0xe0] sm:$0xff]
      %v4677 = vld [vmem:[#allocation2 + $0xe8] sm:$0xff]
      %v4678 = vld [vmem:[#allocation2 + $0xf0] sm:$0xff]
      %v4679 = vld [vmem:[#allocation2 + $0x100] sm:$0xff]
      %v4680 = vld [vmem:[#allocation2 + $0x108] sm:$0xff]
      %v4681 = vld [vmem:[#allocation2 + $0x110] sm:$0xff]
      %v4682 = vld [vmem:[#allocation2 + $0x120] sm:$0xff]
      %v4683 = vld [vmem:[#allocation2 + $0x128] sm:$0xff]
      %v4684 = vld [vmem:[#allocation2 + $0x130] sm:$0xff]
      %v4685 = vld [vmem:[#allocation2 + $0x140] sm:$0xff]
      %v4686 = vld [vmem:[#allocation2 + $0x148] sm:$0xff]
      %v4687 = vld [vmem:[#allocation2 + $0x150] sm:$0xff]
      %v4688 = vld [vmem:[#allocation2 + $0x160] sm:$0xff]
      %v4689 = vld [vmem:[#allocation2 + $0x168] sm:$0xff]
      %v4690 = vld [vmem:[#allocation2 + $0x170] sm:$0xff]
      %v4691 = vld [vmem:[#allocation2 + $0x180] sm:$0xff]
      %v4692 = vld [vmem:[#allocation2 + $0x188] sm:$0xff]
      %v4693 = vld [vmem:[#allocation2 + $0x190] sm:$0xff]
      %v4694 = vld [vmem:[#allocation2 + $0x1a0] sm:$0xff]
      %v4695 = vld [vmem:[#allocation2 + $0x1a8] sm:$0xff]
      %v4696 = vld [vmem:[#allocation2 + $0x1b0] sm:$0xff]
      %v4697 = vld [vmem:[#allocation2 + $0x1c0] sm:$0xff]
      %v4698 = vld [vmem:[#allocation2 + $0x1c8] sm:$0xff]
      %v4699 = vld [vmem:[#allocation2 + $0x1d0] sm:$0xff]
      %v4700 = vld [vmem:[#allocation2 + $0x1e0] sm:$0xff]
      %v4701 = vld [vmem:[#allocation2 + $0x1e8] sm:$0xff]
      %v4702 = vld [vmem:[#allocation2 + $0x1f0] sm:$0xff]
      %s4703 = scalar_lea.vmem %s1, 18
      %v4704 = vld [vmem:[%s4703] sm:$0x1]
      %v4706 = vlaneseq
      %v4707 = vshrl.u32 %v4706, 7
      %v4708 = vsub.s32 0, %v4707
      %v4709 = vrot.slane %v4704, %v4708
      %v4711 = vmul.f32 %v4655, %v4709
      %v4712 = vmul.f32 %v4656, %v4709
      %v4713 = vmul.f32 %v4658, %v4709
      %v4714 = vmul.f32 %v4659, %v4709
      %v4715 = vmul.f32 %v4661, %v4709
      %v4716 = vmul.f32 %v4662, %v4709
      %v4717 = vmul.f32 %v4664, %v4709
      %v4718 = vmul.f32 %v4665, %v4709
      %v4719 = vmul.f32 %v4667, %v4709
      %v4720 = vmul.f32 %v4668, %v4709
      %v4721 = vmul.f32 %v4670, %v4709
      %v4722 = vmul.f32 %v4671, %v4709
      %v4723 = vmul.f32 %v4673, %v4709
      %v4724 = vmul.f32 %v4674, %v4709
      %v4725 = vmul.f32 %v4676, %v4709
      %v4726 = vmul.f32 %v4677, %v4709
      %v4727 = vmul.f32 %v4679, %v4709
      %v4728 = vmul.f32 %v4680, %v4709
      %v4729 = vmul.f32 %v4682, %v4709
      %v4730 = vmul.f32 %v4683, %v4709
      %v4731 = vmul.f32 %v4685, %v4709
      %v4732 = vmul.f32 %v4686, %v4709
      %v4733 = vmul.f32 %v4688, %v4709
      %v4734 = vmul.f32 %v4689, %v4709
      %v4735 = vmul.f32 %v4691, %v4709
      %v4736 = vmul.f32 %v4692, %v4709
      %v4737 = vmul.f32 %v4694, %v4709
      %v4738 = vmul.f32 %v4695, %v4709
      %v4739 = vmul.f32 %v4697, %v4709
      %v4740 = vmul.f32 %v4698, %v4709
      %v4741 = vmul.f32 %v4700, %v4709
      %v4742 = vmul.f32 %v4701, %v4709
      %v4744 = vlaneseq
      %v4745 = vshrl.u32 %v4744, 7
      %v4746 = vsub.s32 0, %v4745
      %v4747 = vrot.slane %v4654, %v4746
      %v4749 = vadd.f32 %v4711, %v4747
      %v4750 = vadd.f32 %v4712, %v4747
      %v4751 = vadd.f32 %v4713, %v4747
      %v4752 = vadd.f32 %v4714, %v4747
      %v4753 = vadd.f32 %v4715, %v4747
      %v4754 = vadd.f32 %v4716, %v4747
      %v4755 = vadd.f32 %v4717, %v4747
      %v4756 = vadd.f32 %v4718, %v4747
      %v4757 = vadd.f32 %v4719, %v4747
      %v4758 = vadd.f32 %v4720, %v4747
      %v4759 = vadd.f32 %v4721, %v4747
      %v4760 = vadd.f32 %v4722, %v4747
      %v4761 = vadd.f32 %v4723, %v4747
      %v4762 = vadd.f32 %v4724, %v4747
      %v4763 = vadd.f32 %v4725, %v4747
      %v4764 = vadd.f32 %v4726, %v4747
      %v4765 = vadd.f32 %v4727, %v4747
      %v4766 = vadd.f32 %v4728, %v4747
      %v4767 = vadd.f32 %v4729, %v4747
      %v4768 = vadd.f32 %v4730, %v4747
      %v4769 = vadd.f32 %v4731, %v4747
      %v4770 = vadd.f32 %v4732, %v4747
      %v4771 = vadd.f32 %v4733, %v4747
      %v4772 = vadd.f32 %v4734, %v4747
      %v4773 = vadd.f32 %v4735, %v4747
      %v4774 = vadd.f32 %v4736, %v4747
      %v4775 = vadd.f32 %v4737, %v4747
      %v4776 = vadd.f32 %v4738, %v4747
      %v4777 = vadd.f32 %v4739, %v4747
      %v4778 = vadd.f32 %v4740, %v4747
      %v4779 = vadd.f32 %v4741, %v4747
      %v4780 = vadd.f32 %v4742, %v4747
      %s4781 = scalar_lea.vmem %s1, 19
      %v4782 = vld [vmem:[%s4781] sm:$0x1]
      %v4784 = vlaneseq
      %v4785 = vshrl.u32 %v4784, 7
      %v4786 = vsub.s32 0, %v4785
      %v4787 = vrot.slane %v4782, %v4786
      %v4789 = vmul.f32 %v4655, %v4787
      %v4790 = vmul.f32 %v4656, %v4787
      %v4791 = vmul.f32 %v4657, %v4787
      %v4792 = vmul.f32 %v4658, %v4787
      %v4793 = vmul.f32 %v4659, %v4787
      %v4794 = vmul.f32 %v4660, %v4787
      %v4795 = vmul.f32 %v4661, %v4787
      %v4796 = vmul.f32 %v4662, %v4787
      %v4797 = vmul.f32 %v4663, %v4787
      %v4798 = vmul.f32 %v4664, %v4787
      %v4799 = vmul.f32 %v4665, %v4787
      %v4800 = vmul.f32 %v4666, %v4787
      %v4801 = vmul.f32 %v4667, %v4787
      %v4802 = vmul.f32 %v4668, %v4787
      %v4803 = vmul.f32 %v4669, %v4787
      %v4804 = vmul.f32 %v4670, %v4787
      %v4805 = vmul.f32 %v4671, %v4787
      %v4806 = vmul.f32 %v4672, %v4787
      %v4807 = vmul.f32 %v4673, %v4787
      %v4808 = vmul.f32 %v4674, %v4787
      %v4809 = vmul.f32 %v4675, %v4787
      %v4810 = vmul.f32 %v4676, %v4787
      %v4811 = vmul.f32 %v4677, %v4787
      %v4812 = vmul.f32 %v4678, %v4787
      %v4813 = vmul.f32 %v4679, %v4787
      %v4814 = vmul.f32 %v4680, %v4787
      %v4815 = vmul.f32 %v4681, %v4787
      %v4816 = vmul.f32 %v4682, %v4787
      %v4817 = vmul.f32 %v4683, %v4787
      %v4818 = vmul.f32 %v4684, %v4787
      %v4819 = vmul.f32 %v4685, %v4787
      %v4820 = vmul.f32 %v4686, %v4787
      %v4821 = vmul.f32 %v4687, %v4787
      %v4822 = vmul.f32 %v4688, %v4787
      %v4823 = vmul.f32 %v4689, %v4787
      %v4824 = vmul.f32 %v4690, %v4787
      %v4825 = vmul.f32 %v4691, %v4787
      %v4826 = vmul.f32 %v4692, %v4787
      %v4827 = vmul.f32 %v4693, %v4787
      %v4828 = vmul.f32 %v4694, %v4787
      %v4829 = vmul.f32 %v4695, %v4787
      %v4830 = vmul.f32 %v4696, %v4787
      %v4831 = vmul.f32 %v4697, %v4787
      %v4832 = vmul.f32 %v4698, %v4787
      %v4833 = vmul.f32 %v4699, %v4787
      %v4834 = vmul.f32 %v4700, %v4787
      %v4835 = vmul.f32 %v4701, %v4787
      %v4836 = vmul.f32 %v4702, %v4787
      %v4885 = vrot.slane %v4789, 4
      %v4886 = vrot.slane %v4790, 4
      %v4887 = vsel %vm2952, %v4885, %v4886
      %v4888 = vrot.slane %v4791, 4
      %v4889 = vsel %vm2952, %v4886, %v4888
      %v4890 = vrot.slane %v4792, 4
      %v4891 = vrot.slane %v4793, 4
      %v4892 = vsel %vm2952, %v4890, %v4891
      %v4893 = vrot.slane %v4794, 4
      %v4894 = vsel %vm2952, %v4891, %v4893
      %v4895 = vrot.slane %v4795, 4
      %v4896 = vrot.slane %v4796, 4
      %v4897 = vsel %vm2952, %v4895, %v4896
      %v4898 = vrot.slane %v4797, 4
      %v4899 = vsel %vm2952, %v4896, %v4898
      %v4900 = vrot.slane %v4798, 4
      %v4901 = vrot.slane %v4799, 4
      %v4902 = vsel %vm2952, %v4900, %v4901
      %v4903 = vrot.slane %v4800, 4
      %v4904 = vsel %vm2952, %v4901, %v4903
      %v4905 = vrot.slane %v4801, 4
      %v4906 = vrot.slane %v4802, 4
      %v4907 = vsel %vm2952, %v4905, %v4906
      %v4908 = vrot.slane %v4803, 4
      %v4909 = vsel %vm2952, %v4906, %v4908
      %v4910 = vrot.slane %v4804, 4
      %v4911 = vrot.slane %v4805, 4
      %v4912 = vsel %vm2952, %v4910, %v4911
      %v4913 = vrot.slane %v4806, 4
      %v4914 = vsel %vm2952, %v4911, %v4913
      %v4915 = vrot.slane %v4807, 4
      %v4916 = vrot.slane %v4808, 4
      %v4917 = vsel %vm2952, %v4915, %v4916
      %v4918 = vrot.slane %v4809, 4
      %v4919 = vsel %vm2952, %v4916, %v4918
      %v4920 = vrot.slane %v4810, 4
      %v4921 = vrot.slane %v4811, 4
      %v4922 = vsel %vm2952, %v4920, %v4921
      %v4923 = vrot.slane %v4812, 4
      %v4924 = vsel %vm2952, %v4921, %v4923
      %v4925 = vrot.slane %v4813, 4
      %v4926 = vrot.slane %v4814, 4
      %v4927 = vsel %vm2952, %v4925, %v4926
      %v4928 = vrot.slane %v4815, 4
      %v4929 = vsel %vm2952, %v4926, %v4928
      %v4930 = vrot.slane %v4816, 4
      %v4931 = vrot.slane %v4817, 4
      %v4932 = vsel %vm2952, %v4930, %v4931
      %v4933 = vrot.slane %v4818, 4
      %v4934 = vsel %vm2952, %v4931, %v4933
      %v4935 = vrot.slane %v4819, 4
      %v4936 = vrot.slane %v4820, 4
      %v4937 = vsel %vm2952, %v4935, %v4936
      %v4938 = vrot.slane %v4821, 4
      %v4939 = vsel %vm2952, %v4936, %v4938
      %v4940 = vrot.slane %v4822, 4
      %v4941 = vrot.slane %v4823, 4
      %v4942 = vsel %vm2952, %v4940, %v4941
      %v4943 = vrot.slane %v4824, 4
      %v4944 = vsel %vm2952, %v4941, %v4943
      %v4945 = vrot.slane %v4825, 4
      %v4946 = vrot.slane %v4826, 4
      %v4947 = vsel %vm2952, %v4945, %v4946
      %v4948 = vrot.slane %v4827, 4
      %v4949 = vsel %vm2952, %v4946, %v4948
      %v4950 = vrot.slane %v4828, 4
      %v4951 = vrot.slane %v4829, 4
      %v4952 = vsel %vm2952, %v4950, %v4951
      %v4953 = vrot.slane %v4830, 4
      %v4954 = vsel %vm2952, %v4951, %v4953
      %v4955 = vrot.slane %v4831, 4
      %v4956 = vrot.slane %v4832, 4
      %v4957 = vsel %vm2952, %v4955, %v4956
      %v4958 = vrot.slane %v4833, 4
      %v4959 = vsel %vm2952, %v4956, %v4958
      %v4960 = vrot.slane %v4834, 4
      %v4961 = vrot.slane %v4835, 4
      %v4962 = vsel %vm2952, %v4960, %v4961
      %v4963 = vrot.slane %v4836, 4
      %v4964 = vsel %vm2952, %v4961, %v4963
      %v4997 = vadd.f32 %v4749, %v4887
      %v4998 = vadd.f32 %v4750, %v4889
      %v4999 = vadd.f32 %v4751, %v4892
      %v5000 = vadd.f32 %v4752, %v4894
      %v5001 = vadd.f32 %v4753, %v4897
      %v5002 = vadd.f32 %v4754, %v4899
      %v5003 = vadd.f32 %v4755, %v4902
      %v5004 = vadd.f32 %v4756, %v4904
      %v5005 = vadd.f32 %v4757, %v4907
      %v5006 = vadd.f32 %v4758, %v4909
      %v5007 = vadd.f32 %v4759, %v4912
      %v5008 = vadd.f32 %v4760, %v4914
      %v5009 = vadd.f32 %v4761, %v4917
      %v5010 = vadd.f32 %v4762, %v4919
      %v5011 = vadd.f32 %v4763, %v4922
      %v5012 = vadd.f32 %v4764, %v4924
      %v5013 = vadd.f32 %v4765, %v4927
      %v5014 = vadd.f32 %v4766, %v4929
      %v5015 = vadd.f32 %v4767, %v4932
      %v5016 = vadd.f32 %v4768, %v4934
      %v5017 = vadd.f32 %v4769, %v4937
      %v5018 = vadd.f32 %v4770, %v4939
      %v5019 = vadd.f32 %v4771, %v4942
      %v5020 = vadd.f32 %v4772, %v4944
      %v5021 = vadd.f32 %v4773, %v4947
      %v5022 = vadd.f32 %v4774, %v4949
      %v5023 = vadd.f32 %v4775, %v4952
      %v5024 = vadd.f32 %v4776, %v4954
      %v5025 = vadd.f32 %v4777, %v4957
      %v5026 = vadd.f32 %v4778, %v4959
      %v5027 = vadd.f32 %v4779, %v4962
      %v5028 = vadd.f32 %v4780, %v4964
      %s5029 = scalar_lea.vmem %s1, 20
      %v5030 = vld [vmem:[%s5029] sm:$0x1]
      %v5032 = vlaneseq
      %v5033 = vshrl.u32 %v5032, 7
      %v5034 = vsub.s32 0, %v5033
      %v5035 = vrot.slane %v5030, %v5034
      %v5037 = vmul.f32 %v4656, %v5035
      %v5038 = vmul.f32 %v4657, %v5035
      %v5039 = vmul.f32 %v4659, %v5035
      %v5040 = vmul.f32 %v4660, %v5035
      %v5041 = vmul.f32 %v4662, %v5035
      %v5042 = vmul.f32 %v4663, %v5035
      %v5043 = vmul.f32 %v4665, %v5035
      %v5044 = vmul.f32 %v4666, %v5035
      %v5045 = vmul.f32 %v4668, %v5035
      %v5046 = vmul.f32 %v4669, %v5035
      %v5047 = vmul.f32 %v4671, %v5035
      %v5048 = vmul.f32 %v4672, %v5035
      %v5049 = vmul.f32 %v4674, %v5035
      %v5050 = vmul.f32 %v4675, %v5035
      %v5051 = vmul.f32 %v4677, %v5035
      %v5052 = vmul.f32 %v4678, %v5035
      %v5053 = vmul.f32 %v4680, %v5035
      %v5054 = vmul.f32 %v4681, %v5035
      %v5055 = vmul.f32 %v4683, %v5035
      %v5056 = vmul.f32 %v4684, %v5035
      %v5057 = vmul.f32 %v4686, %v5035
      %v5058 = vmul.f32 %v4687, %v5035
      %v5059 = vmul.f32 %v4689, %v5035
      %v5060 = vmul.f32 %v4690, %v5035
      %v5061 = vmul.f32 %v4692, %v5035
      %v5062 = vmul.f32 %v4693, %v5035
      %v5063 = vmul.f32 %v4695, %v5035
      %v5064 = vmul.f32 %v4696, %v5035
      %v5065 = vmul.f32 %v4698, %v5035
      %v5066 = vmul.f32 %v4699, %v5035
      %v5067 = vmul.f32 %v4701, %v5035
      %v5068 = vmul.f32 %v4702, %v5035
      %v5069 = vadd.f32 %v4997, %v5037
      %v5070 = vadd.f32 %v4998, %v5038
      %v5071 = vadd.f32 %v4999, %v5039
      %v5072 = vadd.f32 %v5000, %v5040
      %v5073 = vadd.f32 %v5001, %v5041
      %v5074 = vadd.f32 %v5002, %v5042
      %v5075 = vadd.f32 %v5003, %v5043
      %v5076 = vadd.f32 %v5004, %v5044
      %v5077 = vadd.f32 %v5005, %v5045
      %v5078 = vadd.f32 %v5006, %v5046
      %v5079 = vadd.f32 %v5007, %v5047
      %v5080 = vadd.f32 %v5008, %v5048
      %v5081 = vadd.f32 %v5009, %v5049
      %v5082 = vadd.f32 %v5010, %v5050
      %v5083 = vadd.f32 %v5011, %v5051
      %v5084 = vadd.f32 %v5012, %v5052
      %v5085 = vadd.f32 %v5013, %v5053
      %v5086 = vadd.f32 %v5014, %v5054
      %v5087 = vadd.f32 %v5015, %v5055
      %v5088 = vadd.f32 %v5016, %v5056
      %v5089 = vadd.f32 %v5017, %v5057
      %v5090 = vadd.f32 %v5018, %v5058
      %v5091 = vadd.f32 %v5019, %v5059
      %v5092 = vadd.f32 %v5020, %v5060
      %v5093 = vadd.f32 %v5021, %v5061
      %v5094 = vadd.f32 %v5022, %v5062
      %v5095 = vadd.f32 %v5023, %v5063
      %v5096 = vadd.f32 %v5024, %v5064
      %v5097 = vadd.f32 %v5025, %v5065
      %v5098 = vadd.f32 %v5026, %v5066
      %v5099 = vadd.f32 %v5027, %v5067
      %v5100 = vadd.f32 %v5028, %v5068
      %v5101 = vld [vmem:[%s3713] sm:$0xff]
      %v5102 = vld [vmem:[%s3713 + $0x8] sm:$0xff]
      %v5103 = vld [vmem:[%s3713 + $0x10] sm:$0xff]
      %v5104 = vld [vmem:[%s3713 + $0x20] sm:$0xff]
      %v5105 = vld [vmem:[%s3713 + $0x28] sm:$0xff]
      %v5106 = vld [vmem:[%s3713 + $0x30] sm:$0xff]
      %v5107 = vld [vmem:[%s3713 + $0x40] sm:$0xff]
      %v5108 = vld [vmem:[%s3713 + $0x48] sm:$0xff]
      %v5109 = vld [vmem:[%s3713 + $0x50] sm:$0xff]
      %v5110 = vld [vmem:[%s3713 + $0x60] sm:$0xff]
      %v5111 = vld [vmem:[%s3713 + $0x68] sm:$0xff]
      %v5112 = vld [vmem:[%s3713 + $0x70] sm:$0xff]
      %v5113 = vld [vmem:[%s3713 + $0x80] sm:$0xff]
      %v5114 = vld [vmem:[%s3713 + $0x88] sm:$0xff]
      %v5115 = vld [vmem:[%s3713 + $0x90] sm:$0xff]
      %v5116 = vld [vmem:[%s3713 + $0xa0] sm:$0xff]
      %v5117 = vld [vmem:[%s3713 + $0xa8] sm:$0xff]
      %v5118 = vld [vmem:[%s3713 + $0xb0] sm:$0xff]
      %v5119 = vld [vmem:[%s3713 + $0xc0] sm:$0xff]
      %v5120 = vld [vmem:[%s3713 + $0xc8] sm:$0xff]
      %v5121 = vld [vmem:[%s3713 + $0xd0] sm:$0xff]
      %v5122 = vld [vmem:[%s3713 + $0xe0] sm:$0xff]
      %v5123 = vld [vmem:[%s3713 + $0xe8] sm:$0xff]
      %v5124 = vld [vmem:[%s3713 + $0xf0] sm:$0xff]
      %v5125 = vld [vmem:[%s3713 + $0x100] sm:$0xff]
      %v5126 = vld [vmem:[%s3713 + $0x108] sm:$0xff]
      %v5127 = vld [vmem:[%s3713 + $0x110] sm:$0xff]
      %v5128 = vld [vmem:[%s3713 + $0x120] sm:$0xff]
      %v5129 = vld [vmem:[%s3713 + $0x128] sm:$0xff]
      %v5130 = vld [vmem:[%s3713 + $0x130] sm:$0xff]
      %v5131 = vld [vmem:[%s3713 + $0x140] sm:$0xff]
      %v5132 = vld [vmem:[%s3713 + $0x148] sm:$0xff]
      %v5133 = vld [vmem:[%s3713 + $0x150] sm:$0xff]
      %v5134 = vld [vmem:[%s3713 + $0x160] sm:$0xff]
      %v5135 = vld [vmem:[%s3713 + $0x168] sm:$0xff]
      %v5136 = vld [vmem:[%s3713 + $0x170] sm:$0xff]
      %v5137 = vld [vmem:[%s3713 + $0x180] sm:$0xff]
      %v5138 = vld [vmem:[%s3713 + $0x188] sm:$0xff]
      %v5139 = vld [vmem:[%s3713 + $0x190] sm:$0xff]
      %v5140 = vld [vmem:[%s3713 + $0x1a0] sm:$0xff]
      %v5141 = vld [vmem:[%s3713 + $0x1a8] sm:$0xff]
      %v5142 = vld [vmem:[%s3713 + $0x1b0] sm:$0xff]
      %v5143 = vld [vmem:[%s3713 + $0x1c0] sm:$0xff]
      %v5144 = vld [vmem:[%s3713 + $0x1c8] sm:$0xff]
      %v5145 = vld [vmem:[%s3713 + $0x1d0] sm:$0xff]
      %v5146 = vld [vmem:[%s3713 + $0x1e0] sm:$0xff]
      %v5147 = vld [vmem:[%s3713 + $0x1e8] sm:$0xff]
      %v5148 = vld [vmem:[%s3713 + $0x1f0] sm:$0xff]
      %s5149 = scalar_lea.vmem %s1, 21
      %v5150 = vld [vmem:[%s5149] sm:$0x1]
      %v5152 = vlaneseq
      %v5153 = vshrl.u32 %v5152, 7
      %v5154 = vsub.s32 0, %v5153
      %v5155 = vrot.slane %v5150, %v5154
      %v5157 = vmul.f32 %v5101, %v5155
      %v5158 = vmul.f32 %v5102, %v5155
      %v5159 = vmul.f32 %v5104, %v5155
      %v5160 = vmul.f32 %v5105, %v5155
      %v5161 = vmul.f32 %v5107, %v5155
      %v5162 = vmul.f32 %v5108, %v5155
      %v5163 = vmul.f32 %v5110, %v5155
      %v5164 = vmul.f32 %v5111, %v5155
      %v5165 = vmul.f32 %v5113, %v5155
      %v5166 = vmul.f32 %v5114, %v5155
      %v5167 = vmul.f32 %v5116, %v5155
      %v5168 = vmul.f32 %v5117, %v5155
      %v5169 = vmul.f32 %v5119, %v5155
      %v5170 = vmul.f32 %v5120, %v5155
      %v5171 = vmul.f32 %v5122, %v5155
      %v5172 = vmul.f32 %v5123, %v5155
      %v5173 = vmul.f32 %v5125, %v5155
      %v5174 = vmul.f32 %v5126, %v5155
      %v5175 = vmul.f32 %v5128, %v5155
      %v5176 = vmul.f32 %v5129, %v5155
      %v5177 = vmul.f32 %v5131, %v5155
      %v5178 = vmul.f32 %v5132, %v5155
      %v5179 = vmul.f32 %v5134, %v5155
      %v5180 = vmul.f32 %v5135, %v5155
      %v5181 = vmul.f32 %v5137, %v5155
      %v5182 = vmul.f32 %v5138, %v5155
      %v5183 = vmul.f32 %v5140, %v5155
      %v5184 = vmul.f32 %v5141, %v5155
      %v5185 = vmul.f32 %v5143, %v5155
      %v5186 = vmul.f32 %v5144, %v5155
      %v5187 = vmul.f32 %v5146, %v5155
      %v5188 = vmul.f32 %v5147, %v5155
      %v5189 = vadd.f32 %v5069, %v5157
      %v5190 = vadd.f32 %v5070, %v5158
      %v5191 = vadd.f32 %v5071, %v5159
      %v5192 = vadd.f32 %v5072, %v5160
      %v5193 = vadd.f32 %v5073, %v5161
      %v5194 = vadd.f32 %v5074, %v5162
      %v5195 = vadd.f32 %v5075, %v5163
      %v5196 = vadd.f32 %v5076, %v5164
      %v5197 = vadd.f32 %v5077, %v5165
      %v5198 = vadd.f32 %v5078, %v5166
      %v5199 = vadd.f32 %v5079, %v5167
      %v5200 = vadd.f32 %v5080, %v5168
      %v5201 = vadd.f32 %v5081, %v5169
      %v5202 = vadd.f32 %v5082, %v5170
      %v5203 = vadd.f32 %v5083, %v5171
      %v5204 = vadd.f32 %v5084, %v5172
      %v5205 = vadd.f32 %v5085, %v5173
      %v5206 = vadd.f32 %v5086, %v5174
      %v5207 = vadd.f32 %v5087, %v5175
      %v5208 = vadd.f32 %v5088, %v5176
      %v5209 = vadd.f32 %v5089, %v5177
      %v5210 = vadd.f32 %v5090, %v5178
      %v5211 = vadd.f32 %v5091, %v5179
      %v5212 = vadd.f32 %v5092, %v5180
      %v5213 = vadd.f32 %v5093, %v5181
      %v5214 = vadd.f32 %v5094, %v5182
      %v5215 = vadd.f32 %v5095, %v5183
      %v5216 = vadd.f32 %v5096, %v5184
      %v5217 = vadd.f32 %v5097, %v5185
      %v5218 = vadd.f32 %v5098, %v5186
      %v5219 = vadd.f32 %v5099, %v5187
      %v5220 = vadd.f32 %v5100, %v5188
      %s5221 = scalar_lea.vmem %s1, 22
      %v5222 = vld [vmem:[%s5221] sm:$0x1]
      %v5224 = vlaneseq
      %v5225 = vshrl.u32 %v5224, 7
      %v5226 = vsub.s32 0, %v5225
      %v5227 = vrot.slane %v5222, %v5226
      %v5229 = vmul.f32 %v5101, %v5227
      %v5230 = vmul.f32 %v5102, %v5227
      %v5231 = vmul.f32 %v5103, %v5227
      %v5232 = vmul.f32 %v5104, %v5227
      %v5233 = vmul.f32 %v5105, %v5227
      %v5234 = vmul.f32 %v5106, %v5227
      %v5235 = vmul.f32 %v5107, %v5227
      %v5236 = vmul.f32 %v5108, %v5227
      %v5237 = vmul.f32 %v5109, %v5227
      %v5238 = vmul.f32 %v5110, %v5227
      %v5239 = vmul.f32 %v5111, %v5227
      %v5240 = vmul.f32 %v5112, %v5227
      %v5241 = vmul.f32 %v5113, %v5227
      %v5242 = vmul.f32 %v5114, %v5227
      %v5243 = vmul.f32 %v5115, %v5227
      %v5244 = vmul.f32 %v5116, %v5227
      %v5245 = vmul.f32 %v5117, %v5227
      %v5246 = vmul.f32 %v5118, %v5227
      %v5247 = vmul.f32 %v5119, %v5227
      %v5248 = vmul.f32 %v5120, %v5227
      %v5249 = vmul.f32 %v5121, %v5227
      %v5250 = vmul.f32 %v5122, %v5227
      %v5251 = vmul.f32 %v5123, %v5227
      %v5252 = vmul.f32 %v5124, %v5227
      %v5253 = vmul.f32 %v5125, %v5227
      %v5254 = vmul.f32 %v5126, %v5227
      %v5255 = vmul.f32 %v5127, %v5227
      %v5256 = vmul.f32 %v5128, %v5227
      %v5257 = vmul.f32 %v5129, %v5227
      %v5258 = vmul.f32 %v5130, %v5227
      %v5259 = vmul.f32 %v5131, %v5227
      %v5260 = vmul.f32 %v5132, %v5227
      %v5261 = vmul.f32 %v5133, %v5227
      %v5262 = vmul.f32 %v5134, %v5227
      %v5263 = vmul.f32 %v5135, %v5227
      %v5264 = vmul.f32 %v5136, %v5227
      %v5265 = vmul.f32 %v5137, %v5227
      %v5266 = vmul.f32 %v5138, %v5227
      %v5267 = vmul.f32 %v5139, %v5227
      %v5268 = vmul.f32 %v5140, %v5227
      %v5269 = vmul.f32 %v5141, %v5227
      %v5270 = vmul.f32 %v5142, %v5227
      %v5271 = vmul.f32 %v5143, %v5227
      %v5272 = vmul.f32 %v5144, %v5227
      %v5273 = vmul.f32 %v5145, %v5227
      %v5274 = vmul.f32 %v5146, %v5227
      %v5275 = vmul.f32 %v5147, %v5227
      %v5276 = vmul.f32 %v5148, %v5227
      %v5325 = vrot.slane %v5229, 4
      %v5326 = vrot.slane %v5230, 4
      %v5327 = vsel %vm2952, %v5325, %v5326
      %v5328 = vrot.slane %v5231, 4
      %v5329 = vsel %vm2952, %v5326, %v5328
      %v5330 = vrot.slane %v5232, 4
      %v5331 = vrot.slane %v5233, 4
      %v5332 = vsel %vm2952, %v5330, %v5331
      %v5333 = vrot.slane %v5234, 4
      %v5334 = vsel %vm2952, %v5331, %v5333
      %v5335 = vrot.slane %v5235, 4
      %v5336 = vrot.slane %v5236, 4
      %v5337 = vsel %vm2952, %v5335, %v5336
      %v5338 = vrot.slane %v5237, 4
      %v5339 = vsel %vm2952, %v5336, %v5338
      %v5340 = vrot.slane %v5238, 4
      %v5341 = vrot.slane %v5239, 4
      %v5342 = vsel %vm2952, %v5340, %v5341
      %v5343 = vrot.slane %v5240, 4
      %v5344 = vsel %vm2952, %v5341, %v5343
      %v5345 = vrot.slane %v5241, 4
      %v5346 = vrot.slane %v5242, 4
      %v5347 = vsel %vm2952, %v5345, %v5346
      %v5348 = vrot.slane %v5243, 4
      %v5349 = vsel %vm2952, %v5346, %v5348
      %v5350 = vrot.slane %v5244, 4
      %v5351 = vrot.slane %v5245, 4
      %v5352 = vsel %vm2952, %v5350, %v5351
      %v5353 = vrot.slane %v5246, 4
      %v5354 = vsel %vm2952, %v5351, %v5353
      %v5355 = vrot.slane %v5247, 4
      %v5356 = vrot.slane %v5248, 4
      %v5357 = vsel %vm2952, %v5355, %v5356
      %v5358 = vrot.slane %v5249, 4
      %v5359 = vsel %vm2952, %v5356, %v5358
      %v5360 = vrot.slane %v5250, 4
      %v5361 = vrot.slane %v5251, 4
      %v5362 = vsel %vm2952, %v5360, %v5361
      %v5363 = vrot.slane %v5252, 4
      %v5364 = vsel %vm2952, %v5361, %v5363
      %v5365 = vrot.slane %v5253, 4
      %v5366 = vrot.slane %v5254, 4
      %v5367 = vsel %vm2952, %v5365, %v5366
      %v5368 = vrot.slane %v5255, 4
      %v5369 = vsel %vm2952, %v5366, %v5368
      %v5370 = vrot.slane %v5256, 4
      %v5371 = vrot.slane %v5257, 4
      %v5372 = vsel %vm2952, %v5370, %v5371
      %v5373 = vrot.slane %v5258, 4
      %v5374 = vsel %vm2952, %v5371, %v5373
      %v5375 = vrot.slane %v5259, 4
      %v5376 = vrot.slane %v5260, 4
      %v5377 = vsel %vm2952, %v5375, %v5376
      %v5378 = vrot.slane %v5261, 4
      %v5379 = vsel %vm2952, %v5376, %v5378
      %v5380 = vrot.slane %v5262, 4
      %v5381 = vrot.slane %v5263, 4
      %v5382 = vsel %vm2952, %v5380, %v5381
      %v5383 = vrot.slane %v5264, 4
      %v5384 = vsel %vm2952, %v5381, %v5383
      %v5385 = vrot.slane %v5265, 4
      %v5386 = vrot.slane %v5266, 4
      %v5387 = vsel %vm2952, %v5385, %v5386
      %v5388 = vrot.slane %v5267, 4
      %v5389 = vsel %vm2952, %v5386, %v5388
      %v5390 = vrot.slane %v5268, 4
      %v5391 = vrot.slane %v5269, 4
      %v5392 = vsel %vm2952, %v5390, %v5391
      %v5393 = vrot.slane %v5270, 4
      %v5394 = vsel %vm2952, %v5391, %v5393
      %v5395 = vrot.slane %v5271, 4
      %v5396 = vrot.slane %v5272, 4
      %v5397 = vsel %vm2952, %v5395, %v5396
      %v5398 = vrot.slane %v5273, 4
      %v5399 = vsel %vm2952, %v5396, %v5398
      %v5400 = vrot.slane %v5274, 4
      %v5401 = vrot.slane %v5275, 4
      %v5402 = vsel %vm2952, %v5400, %v5401
      %v5403 = vrot.slane %v5276, 4
      %v5404 = vsel %vm2952, %v5401, %v5403
      %v5437 = vadd.f32 %v5189, %v5327
      %v5438 = vadd.f32 %v5190, %v5329
      %v5439 = vadd.f32 %v5191, %v5332
      %v5440 = vadd.f32 %v5192, %v5334
      %v5441 = vadd.f32 %v5193, %v5337
      %v5442 = vadd.f32 %v5194, %v5339
      %v5443 = vadd.f32 %v5195, %v5342
      %v5444 = vadd.f32 %v5196, %v5344
      %v5445 = vadd.f32 %v5197, %v5347
      %v5446 = vadd.f32 %v5198, %v5349
      %v5447 = vadd.f32 %v5199, %v5352
      %v5448 = vadd.f32 %v5200, %v5354
      %v5449 = vadd.f32 %v5201, %v5357
      %v5450 = vadd.f32 %v5202, %v5359
      %v5451 = vadd.f32 %v5203, %v5362
      %v5452 = vadd.f32 %v5204, %v5364
      %v5453 = vadd.f32 %v5205, %v5367
      %v5454 = vadd.f32 %v5206, %v5369
      %v5455 = vadd.f32 %v5207, %v5372
      %v5456 = vadd.f32 %v5208, %v5374
      %v5457 = vadd.f32 %v5209, %v5377
      %v5458 = vadd.f32 %v5210, %v5379
      %v5459 = vadd.f32 %v5211, %v5382
      %v5460 = vadd.f32 %v5212, %v5384
      %v5461 = vadd.f32 %v5213, %v5387
      %v5462 = vadd.f32 %v5214, %v5389
      %v5463 = vadd.f32 %v5215, %v5392
      %v5464 = vadd.f32 %v5216, %v5394
      %v5465 = vadd.f32 %v5217, %v5397
      %v5466 = vadd.f32 %v5218, %v5399
      %v5467 = vadd.f32 %v5219, %v5402
      %v5468 = vadd.f32 %v5220, %v5404
      %s5469 = scalar_lea.vmem %s1, 23
      %v5470 = vld [vmem:[%s5469] sm:$0x1]
      %v5472 = vlaneseq
      %v5473 = vshrl.u32 %v5472, 7
      %v5474 = vsub.s32 0, %v5473
      %v5475 = vrot.slane %v5470, %v5474
      %v5477 = vmul.f32 %v5102, %v5475
      %v5478 = vmul.f32 %v5103, %v5475
      %v5479 = vmul.f32 %v5105, %v5475
      %v5480 = vmul.f32 %v5106, %v5475
      %v5481 = vmul.f32 %v5108, %v5475
      %v5482 = vmul.f32 %v5109, %v5475
      %v5483 = vmul.f32 %v5111, %v5475
      %v5484 = vmul.f32 %v5112, %v5475
      %v5485 = vmul.f32 %v5114, %v5475
      %v5486 = vmul.f32 %v5115, %v5475
      %v5487 = vmul.f32 %v5117, %v5475
      %v5488 = vmul.f32 %v5118, %v5475
      %v5489 = vmul.f32 %v5120, %v5475
      %v5490 = vmul.f32 %v5121, %v5475
      %v5491 = vmul.f32 %v5123, %v5475
      %v5492 = vmul.f32 %v5124, %v5475
      %v5493 = vmul.f32 %v5126, %v5475
      %v5494 = vmul.f32 %v5127, %v5475
      %v5495 = vmul.f32 %v5129, %v5475
      %v5496 = vmul.f32 %v5130, %v5475
      %v5497 = vmul.f32 %v5132, %v5475
      %v5498 = vmul.f32 %v5133, %v5475
      %v5499 = vmul.f32 %v5135, %v5475
      %v5500 = vmul.f32 %v5136, %v5475
      %v5501 = vmul.f32 %v5138, %v5475
      %v5502 = vmul.f32 %v5139, %v5475
      %v5503 = vmul.f32 %v5141, %v5475
      %v5504 = vmul.f32 %v5142, %v5475
      %v5505 = vmul.f32 %v5144, %v5475
      %v5506 = vmul.f32 %v5145, %v5475
      %v5507 = vmul.f32 %v5147, %v5475
      %v5508 = vmul.f32 %v5148, %v5475
      %v5509 = vadd.f32 %v5437, %v5477
      %v5510 = vadd.f32 %v5438, %v5478
      %v5511 = vadd.f32 %v5439, %v5479
      %v5512 = vadd.f32 %v5440, %v5480
      %v5513 = vadd.f32 %v5441, %v5481
      %v5514 = vadd.f32 %v5442, %v5482
      %v5515 = vadd.f32 %v5443, %v5483
      %v5516 = vadd.f32 %v5444, %v5484
      %v5517 = vadd.f32 %v5445, %v5485
      %v5518 = vadd.f32 %v5446, %v5486
      %v5519 = vadd.f32 %v5447, %v5487
      %v5520 = vadd.f32 %v5448, %v5488
      %v5521 = vadd.f32 %v5449, %v5489
      %v5522 = vadd.f32 %v5450, %v5490
      %v5523 = vadd.f32 %v5451, %v5491
      %v5524 = vadd.f32 %v5452, %v5492
      %v5525 = vadd.f32 %v5453, %v5493
      %v5526 = vadd.f32 %v5454, %v5494
      %v5527 = vadd.f32 %v5455, %v5495
      %v5528 = vadd.f32 %v5456, %v5496
      %v5529 = vadd.f32 %v5457, %v5497
      %v5530 = vadd.f32 %v5458, %v5498
      %v5531 = vadd.f32 %v5459, %v5499
      %v5532 = vadd.f32 %v5460, %v5500
      %v5533 = vadd.f32 %v5461, %v5501
      %v5534 = vadd.f32 %v5462, %v5502
      %v5535 = vadd.f32 %v5463, %v5503
      %v5536 = vadd.f32 %v5464, %v5504
      %v5537 = vadd.f32 %v5465, %v5505
      %v5538 = vadd.f32 %v5466, %v5506
      %v5539 = vadd.f32 %v5467, %v5507
      %v5540 = vadd.f32 %v5468, %v5508
      %s5541 = scalar_lea.vmem [#allocation2], 256
      %v5542 = vld [vmem:[%s5541] sm:$0xff]
      %v5543 = vld [vmem:[%s5541 + $0x8] sm:$0xff]
      %v5544 = vld [vmem:[%s5541 + $0x10] sm:$0xff]
      %v5545 = vld [vmem:[%s5541 + $0x20] sm:$0xff]
      %v5546 = vld [vmem:[%s5541 + $0x28] sm:$0xff]
      %v5547 = vld [vmem:[%s5541 + $0x30] sm:$0xff]
      %v5548 = vld [vmem:[%s5541 + $0x40] sm:$0xff]
      %v5549 = vld [vmem:[%s5541 + $0x48] sm:$0xff]
      %v5550 = vld [vmem:[%s5541 + $0x50] sm:$0xff]
      %v5551 = vld [vmem:[%s5541 + $0x60] sm:$0xff]
      %v5552 = vld [vmem:[%s5541 + $0x68] sm:$0xff]
      %v5553 = vld [vmem:[%s5541 + $0x70] sm:$0xff]
      %v5554 = vld [vmem:[%s5541 + $0x80] sm:$0xff]
      %v5555 = vld [vmem:[%s5541 + $0x88] sm:$0xff]
      %v5556 = vld [vmem:[%s5541 + $0x90] sm:$0xff]
      %v5557 = vld [vmem:[%s5541 + $0xa0] sm:$0xff]
      %v5558 = vld [vmem:[%s5541 + $0xa8] sm:$0xff]
      %v5559 = vld [vmem:[%s5541 + $0xb0] sm:$0xff]
      %v5560 = vld [vmem:[%s5541 + $0xc0] sm:$0xff]
      %v5561 = vld [vmem:[%s5541 + $0xc8] sm:$0xff]
      %v5562 = vld [vmem:[%s5541 + $0xd0] sm:$0xff]
      %v5563 = vld [vmem:[%s5541 + $0xe0] sm:$0xff]
      %v5564 = vld [vmem:[%s5541 + $0xe8] sm:$0xff]
      %v5565 = vld [vmem:[%s5541 + $0xf0] sm:$0xff]
      %v5566 = vld [vmem:[%s5541 + $0x100] sm:$0xff]
      %v5567 = vld [vmem:[%s5541 + $0x108] sm:$0xff]
      %v5568 = vld [vmem:[%s5541 + $0x110] sm:$0xff]
      %v5569 = vld [vmem:[%s5541 + $0x120] sm:$0xff]
      %v5570 = vld [vmem:[%s5541 + $0x128] sm:$0xff]
      %v5571 = vld [vmem:[%s5541 + $0x130] sm:$0xff]
      %v5572 = vld [vmem:[%s5541 + $0x140] sm:$0xff]
      %v5573 = vld [vmem:[%s5541 + $0x148] sm:$0xff]
      %v5574 = vld [vmem:[%s5541 + $0x150] sm:$0xff]
      %v5575 = vld [vmem:[%s5541 + $0x160] sm:$0xff]
      %v5576 = vld [vmem:[%s5541 + $0x168] sm:$0xff]
      %v5577 = vld [vmem:[%s5541 + $0x170] sm:$0xff]
      %v5578 = vld [vmem:[%s5541 + $0x180] sm:$0xff]
      %v5579 = vld [vmem:[%s5541 + $0x188] sm:$0xff]
      %v5580 = vld [vmem:[%s5541 + $0x190] sm:$0xff]
      %v5581 = vld [vmem:[%s5541 + $0x1a0] sm:$0xff]
      %v5582 = vld [vmem:[%s5541 + $0x1a8] sm:$0xff]
      %v5583 = vld [vmem:[%s5541 + $0x1b0] sm:$0xff]
      %v5584 = vld [vmem:[%s5541 + $0x1c0] sm:$0xff]
      %v5585 = vld [vmem:[%s5541 + $0x1c8] sm:$0xff]
      %v5586 = vld [vmem:[%s5541 + $0x1d0] sm:$0xff]
      %v5587 = vld [vmem:[%s5541 + $0x1e0] sm:$0xff]
      %v5588 = vld [vmem:[%s5541 + $0x1e8] sm:$0xff]
      %v5589 = vld [vmem:[%s5541 + $0x1f0] sm:$0xff]
      %s5590 = scalar_lea.vmem %s1, 24
      %v5591 = vld [vmem:[%s5590] sm:$0x1]
      %v5593 = vlaneseq
      %v5594 = vshrl.u32 %v5593, 7
      %v5595 = vsub.s32 0, %v5594
      %v5596 = vrot.slane %v5591, %v5595
      %v5598 = vmul.f32 %v5542, %v5596
      %v5599 = vmul.f32 %v5543, %v5596
      %v5600 = vmul.f32 %v5545, %v5596
      %v5601 = vmul.f32 %v5546, %v5596
      %v5602 = vmul.f32 %v5548, %v5596
      %v5603 = vmul.f32 %v5549, %v5596
      %v5604 = vmul.f32 %v5551, %v5596
      %v5605 = vmul.f32 %v5552, %v5596
      %v5606 = vmul.f32 %v5554, %v5596
      %v5607 = vmul.f32 %v5555, %v5596
      %v5608 = vmul.f32 %v5557, %v5596
      %v5609 = vmul.f32 %v5558, %v5596
      %v5610 = vmul.f32 %v5560, %v5596
      %v5611 = vmul.f32 %v5561, %v5596
      %v5612 = vmul.f32 %v5563, %v5596
      %v5613 = vmul.f32 %v5564, %v5596
      %v5614 = vmul.f32 %v5566, %v5596
      %v5615 = vmul.f32 %v5567, %v5596
      %v5616 = vmul.f32 %v5569, %v5596
      %v5617 = vmul.f32 %v5570, %v5596
      %v5618 = vmul.f32 %v5572, %v5596
      %v5619 = vmul.f32 %v5573, %v5596
      %v5620 = vmul.f32 %v5575, %v5596
      %v5621 = vmul.f32 %v5576, %v5596
      %v5622 = vmul.f32 %v5578, %v5596
      %v5623 = vmul.f32 %v5579, %v5596
      %v5624 = vmul.f32 %v5581, %v5596
      %v5625 = vmul.f32 %v5582, %v5596
      %v5626 = vmul.f32 %v5584, %v5596
      %v5627 = vmul.f32 %v5585, %v5596
      %v5628 = vmul.f32 %v5587, %v5596
      %v5629 = vmul.f32 %v5588, %v5596
      %v5630 = vadd.f32 %v5509, %v5598
      %v5631 = vadd.f32 %v5510, %v5599
      %v5632 = vadd.f32 %v5511, %v5600
      %v5633 = vadd.f32 %v5512, %v5601
      %v5634 = vadd.f32 %v5513, %v5602
      %v5635 = vadd.f32 %v5514, %v5603
      %v5636 = vadd.f32 %v5515, %v5604
      %v5637 = vadd.f32 %v5516, %v5605
      %v5638 = vadd.f32 %v5517, %v5606
      %v5639 = vadd.f32 %v5518, %v5607
      %v5640 = vadd.f32 %v5519, %v5608
      %v5641 = vadd.f32 %v5520, %v5609
      %v5642 = vadd.f32 %v5521, %v5610
      %v5643 = vadd.f32 %v5522, %v5611
      %v5644 = vadd.f32 %v5523, %v5612
      %v5645 = vadd.f32 %v5524, %v5613
      %v5646 = vadd.f32 %v5525, %v5614
      %v5647 = vadd.f32 %v5526, %v5615
      %v5648 = vadd.f32 %v5527, %v5616
      %v5649 = vadd.f32 %v5528, %v5617
      %v5650 = vadd.f32 %v5529, %v5618
      %v5651 = vadd.f32 %v5530, %v5619
      %v5652 = vadd.f32 %v5531, %v5620
      %v5653 = vadd.f32 %v5532, %v5621
      %v5654 = vadd.f32 %v5533, %v5622
      %v5655 = vadd.f32 %v5534, %v5623
      %v5656 = vadd.f32 %v5535, %v5624
      %v5657 = vadd.f32 %v5536, %v5625
      %v5658 = vadd.f32 %v5537, %v5626
      %v5659 = vadd.f32 %v5538, %v5627
      %v5660 = vadd.f32 %v5539, %v5628
      %v5661 = vadd.f32 %v5540, %v5629
      %s5662 = scalar_lea.vmem %s1, 25
      %v5663 = vld [vmem:[%s5662] sm:$0x1]
      %v5665 = vlaneseq
      %v5666 = vshrl.u32 %v5665, 7
      %v5667 = vsub.s32 0, %v5666
      %v5668 = vrot.slane %v5663, %v5667
      %v5670 = vmul.f32 %v5542, %v5668
      %v5671 = vmul.f32 %v5543, %v5668
      %v5672 = vmul.f32 %v5544, %v5668
      %v5673 = vmul.f32 %v5545, %v5668
      %v5674 = vmul.f32 %v5546, %v5668
      %v5675 = vmul.f32 %v5547, %v5668
      %v5676 = vmul.f32 %v5548, %v5668
      %v5677 = vmul.f32 %v5549, %v5668
      %v5678 = vmul.f32 %v5550, %v5668
      %v5679 = vmul.f32 %v5551, %v5668
      %v5680 = vmul.f32 %v5552, %v5668
      %v5681 = vmul.f32 %v5553, %v5668
      %v5682 = vmul.f32 %v5554, %v5668
      %v5683 = vmul.f32 %v5555, %v5668
      %v5684 = vmul.f32 %v5556, %v5668
      %v5685 = vmul.f32 %v5557, %v5668
      %v5686 = vmul.f32 %v5558, %v5668
      %v5687 = vmul.f32 %v5559, %v5668
      %v5688 = vmul.f32 %v5560, %v5668
      %v5689 = vmul.f32 %v5561, %v5668
      %v5690 = vmul.f32 %v5562, %v5668
      %v5691 = vmul.f32 %v5563, %v5668
      %v5692 = vmul.f32 %v5564, %v5668
      %v5693 = vmul.f32 %v5565, %v5668
      %v5694 = vmul.f32 %v5566, %v5668
      %v5695 = vmul.f32 %v5567, %v5668
      %v5696 = vmul.f32 %v5568, %v5668
      %v5697 = vmul.f32 %v5569, %v5668
      %v5698 = vmul.f32 %v5570, %v5668
      %v5699 = vmul.f32 %v5571, %v5668
      %v5700 = vmul.f32 %v5572, %v5668
      %v5701 = vmul.f32 %v5573, %v5668
      %v5702 = vmul.f32 %v5574, %v5668
      %v5703 = vmul.f32 %v5575, %v5668
      %v5704 = vmul.f32 %v5576, %v5668
      %v5705 = vmul.f32 %v5577, %v5668
      %v5706 = vmul.f32 %v5578, %v5668
      %v5707 = vmul.f32 %v5579, %v5668
      %v5708 = vmul.f32 %v5580, %v5668
      %v5709 = vmul.f32 %v5581, %v5668
      %v5710 = vmul.f32 %v5582, %v5668
      %v5711 = vmul.f32 %v5583, %v5668
      %v5712 = vmul.f32 %v5584, %v5668
      %v5713 = vmul.f32 %v5585, %v5668
      %v5714 = vmul.f32 %v5586, %v5668
      %v5715 = vmul.f32 %v5587, %v5668
      %v5716 = vmul.f32 %v5588, %v5668
      %v5717 = vmul.f32 %v5589, %v5668
      %v5766 = vrot.slane %v5670, 4
      %v5767 = vrot.slane %v5671, 4
      %v5768 = vsel %vm2952, %v5766, %v5767
      %v5769 = vrot.slane %v5672, 4
      %v5770 = vsel %vm2952, %v5767, %v5769
      %v5771 = vrot.slane %v5673, 4
      %v5772 = vrot.slane %v5674, 4
      %v5773 = vsel %vm2952, %v5771, %v5772
      %v5774 = vrot.slane %v5675, 4
      %v5775 = vsel %vm2952, %v5772, %v5774
      %v5776 = vrot.slane %v5676, 4
      %v5777 = vrot.slane %v5677, 4
      %v5778 = vsel %vm2952, %v5776, %v5777
      %v5779 = vrot.slane %v5678, 4
      %v5780 = vsel %vm2952, %v5777, %v5779
      %v5781 = vrot.slane %v5679, 4
      %v5782 = vrot.slane %v5680, 4
      %v5783 = vsel %vm2952, %v5781, %v5782
      %v5784 = vrot.slane %v5681, 4
      %v5785 = vsel %vm2952, %v5782, %v5784
      %v5786 = vrot.slane %v5682, 4
      %v5787 = vrot.slane %v5683, 4
      %v5788 = vsel %vm2952, %v5786, %v5787
      %v5789 = vrot.slane %v5684, 4
      %v5790 = vsel %vm2952, %v5787, %v5789
      %v5791 = vrot.slane %v5685, 4
      %v5792 = vrot.slane %v5686, 4
      %v5793 = vsel %vm2952, %v5791, %v5792
      %v5794 = vrot.slane %v5687, 4
      %v5795 = vsel %vm2952, %v5792, %v5794
      %v5796 = vrot.slane %v5688, 4
      %v5797 = vrot.slane %v5689, 4
      %v5798 = vsel %vm2952, %v5796, %v5797
      %v5799 = vrot.slane %v5690, 4
      %v5800 = vsel %vm2952, %v5797, %v5799
      %v5801 = vrot.slane %v5691, 4
      %v5802 = vrot.slane %v5692, 4
      %v5803 = vsel %vm2952, %v5801, %v5802
      %v5804 = vrot.slane %v5693, 4
      %v5805 = vsel %vm2952, %v5802, %v5804
      %v5806 = vrot.slane %v5694, 4
      %v5807 = vrot.slane %v5695, 4
      %v5808 = vsel %vm2952, %v5806, %v5807
      %v5809 = vrot.slane %v5696, 4
      %v5810 = vsel %vm2952, %v5807, %v5809
      %v5811 = vrot.slane %v5697, 4
      %v5812 = vrot.slane %v5698, 4
      %v5813 = vsel %vm2952, %v5811, %v5812
      %v5814 = vrot.slane %v5699, 4
      %v5815 = vsel %vm2952, %v5812, %v5814
      %v5816 = vrot.slane %v5700, 4
      %v5817 = vrot.slane %v5701, 4
      %v5818 = vsel %vm2952, %v5816, %v5817
      %v5819 = vrot.slane %v5702, 4
      %v5820 = vsel %vm2952, %v5817, %v5819
      %v5821 = vrot.slane %v5703, 4
      %v5822 = vrot.slane %v5704, 4
      %v5823 = vsel %vm2952, %v5821, %v5822
      %v5824 = vrot.slane %v5705, 4
      %v5825 = vsel %vm2952, %v5822, %v5824
      %v5826 = vrot.slane %v5706, 4
      %v5827 = vrot.slane %v5707, 4
      %v5828 = vsel %vm2952, %v5826, %v5827
      %v5829 = vrot.slane %v5708, 4
      %v5830 = vsel %vm2952, %v5827, %v5829
      %v5831 = vrot.slane %v5709, 4
      %v5832 = vrot.slane %v5710, 4
      %v5833 = vsel %vm2952, %v5831, %v5832
      %v5834 = vrot.slane %v5711, 4
      %v5835 = vsel %vm2952, %v5832, %v5834
      %v5836 = vrot.slane %v5712, 4
      %v5837 = vrot.slane %v5713, 4
      %v5838 = vsel %vm2952, %v5836, %v5837
      %v5839 = vrot.slane %v5714, 4
      %v5840 = vsel %vm2952, %v5837, %v5839
      %v5841 = vrot.slane %v5715, 4
      %v5842 = vrot.slane %v5716, 4
      %v5843 = vsel %vm2952, %v5841, %v5842
      %v5844 = vrot.slane %v5717, 4
      %v5845 = vsel %vm2952, %v5842, %v5844
      %v5878 = vadd.f32 %v5630, %v5768
      %v5879 = vadd.f32 %v5631, %v5770
      %v5880 = vadd.f32 %v5632, %v5773
      %v5881 = vadd.f32 %v5633, %v5775
      %v5882 = vadd.f32 %v5634, %v5778
      %v5883 = vadd.f32 %v5635, %v5780
      %v5884 = vadd.f32 %v5636, %v5783
      %v5885 = vadd.f32 %v5637, %v5785
      %v5886 = vadd.f32 %v5638, %v5788
      %v5887 = vadd.f32 %v5639, %v5790
      %v5888 = vadd.f32 %v5640, %v5793
      %v5889 = vadd.f32 %v5641, %v5795
      %v5890 = vadd.f32 %v5642, %v5798
      %v5891 = vadd.f32 %v5643, %v5800
      %v5892 = vadd.f32 %v5644, %v5803
      %v5893 = vadd.f32 %v5645, %v5805
      %v5894 = vadd.f32 %v5646, %v5808
      %v5895 = vadd.f32 %v5647, %v5810
      %v5896 = vadd.f32 %v5648, %v5813
      %v5897 = vadd.f32 %v5649, %v5815
      %v5898 = vadd.f32 %v5650, %v5818
      %v5899 = vadd.f32 %v5651, %v5820
      %v5900 = vadd.f32 %v5652, %v5823
      %v5901 = vadd.f32 %v5653, %v5825
      %v5902 = vadd.f32 %v5654, %v5828
      %v5903 = vadd.f32 %v5655, %v5830
      %v5904 = vadd.f32 %v5656, %v5833
      %v5905 = vadd.f32 %v5657, %v5835
      %v5906 = vadd.f32 %v5658, %v5838
      %v5907 = vadd.f32 %v5659, %v5840
      %v5908 = vadd.f32 %v5660, %v5843
      %v5909 = vadd.f32 %v5661, %v5845
      %s5910 = scalar_lea.vmem %s1, 26
      %v5911 = vld [vmem:[%s5910] sm:$0x1]
      %v5913 = vlaneseq
      %v5914 = vshrl.u32 %v5913, 7
      %v5915 = vsub.s32 0, %v5914
      %v5916 = vrot.slane %v5911, %v5915
      %v5918 = vmul.f32 %v5543, %v5916
      %v5919 = vmul.f32 %v5544, %v5916
      %v5920 = vmul.f32 %v5546, %v5916
      %v5921 = vmul.f32 %v5547, %v5916
      %v5922 = vmul.f32 %v5549, %v5916
      %v5923 = vmul.f32 %v5550, %v5916
      %v5924 = vmul.f32 %v5552, %v5916
      %v5925 = vmul.f32 %v5553, %v5916
      %v5926 = vmul.f32 %v5555, %v5916
      %v5927 = vmul.f32 %v5556, %v5916
      %v5928 = vmul.f32 %v5558, %v5916
      %v5929 = vmul.f32 %v5559, %v5916
      %v5930 = vmul.f32 %v5561, %v5916
      %v5931 = vmul.f32 %v5562, %v5916
      %v5932 = vmul.f32 %v5564, %v5916
      %v5933 = vmul.f32 %v5565, %v5916
      %v5934 = vmul.f32 %v5567, %v5916
      %v5935 = vmul.f32 %v5568, %v5916
      %v5936 = vmul.f32 %v5570, %v5916
      %v5937 = vmul.f32 %v5571, %v5916
      %v5938 = vmul.f32 %v5573, %v5916
      %v5939 = vmul.f32 %v5574, %v5916
      %v5940 = vmul.f32 %v5576, %v5916
      %v5941 = vmul.f32 %v5577, %v5916
      %v5942 = vmul.f32 %v5579, %v5916
      %v5943 = vmul.f32 %v5580, %v5916
      %v5944 = vmul.f32 %v5582, %v5916
      %v5945 = vmul.f32 %v5583, %v5916
      %v5946 = vmul.f32 %v5585, %v5916
      %v5947 = vmul.f32 %v5586, %v5916
      %v5948 = vmul.f32 %v5588, %v5916
      %v5949 = vmul.f32 %v5589, %v5916
      %v5950 = vadd.f32 %v5878, %v5918
      %v5951 = vadd.f32 %v5879, %v5919
      %v5952 = vadd.f32 %v5880, %v5920
      %v5953 = vadd.f32 %v5881, %v5921
      %v5954 = vadd.f32 %v5882, %v5922
      %v5955 = vadd.f32 %v5883, %v5923
      %v5956 = vadd.f32 %v5884, %v5924
      %v5957 = vadd.f32 %v5885, %v5925
      %v5958 = vadd.f32 %v5886, %v5926
      %v5959 = vadd.f32 %v5887, %v5927
      %v5960 = vadd.f32 %v5888, %v5928
      %v5961 = vadd.f32 %v5889, %v5929
      %v5962 = vadd.f32 %v5890, %v5930
      %v5963 = vadd.f32 %v5891, %v5931
      %v5964 = vadd.f32 %v5892, %v5932
      %v5965 = vadd.f32 %v5893, %v5933
      %v5966 = vadd.f32 %v5894, %v5934
      %v5967 = vadd.f32 %v5895, %v5935
      %v5968 = vadd.f32 %v5896, %v5936
      %v5969 = vadd.f32 %v5897, %v5937
      %v5970 = vadd.f32 %v5898, %v5938
      %v5971 = vadd.f32 %v5899, %v5939
      %v5972 = vadd.f32 %v5900, %v5940
      %v5973 = vadd.f32 %v5901, %v5941
      %v5974 = vadd.f32 %v5902, %v5942
      %v5975 = vadd.f32 %v5903, %v5943
      %v5976 = vadd.f32 %v5904, %v5944
      %v5977 = vadd.f32 %v5905, %v5945
      %v5978 = vadd.f32 %v5906, %v5946
      %v5979 = vadd.f32 %v5907, %v5947
      %v5980 = vadd.f32 %v5908, %v5948
      %v5981 = vadd.f32 %v5909, %v5949
      %s5982 = scalar_lea.vmem %s3, 2
      %v5983 = vld [vmem:[%s5982] sm:$0x1]
      %vm5984 = vcmp.ge.f32.partialorder %v5950, 0.0
      %vm5985 = vcmp.ge.f32.partialorder %v5951, 0.0
      %vm5986 = vcmp.ge.f32.partialorder %v5952, 0.0
      %vm5987 = vcmp.ge.f32.partialorder %v5953, 0.0
      %vm5988 = vcmp.ge.f32.partialorder %v5954, 0.0
      %vm5989 = vcmp.ge.f32.partialorder %v5955, 0.0
      %vm5990 = vcmp.ge.f32.partialorder %v5956, 0.0
      %vm5991 = vcmp.ge.f32.partialorder %v5957, 0.0
      %vm5992 = vcmp.ge.f32.partialorder %v5958, 0.0
      %vm5993 = vcmp.ge.f32.partialorder %v5959, 0.0
      %vm5994 = vcmp.ge.f32.partialorder %v5960, 0.0
      %vm5995 = vcmp.ge.f32.partialorder %v5961, 0.0
      %vm5996 = vcmp.ge.f32.partialorder %v5962, 0.0
      %vm5997 = vcmp.ge.f32.partialorder %v5963, 0.0
      %vm5998 = vcmp.ge.f32.partialorder %v5964, 0.0
      %vm5999 = vcmp.ge.f32.partialorder %v5965, 0.0
      %vm6000 = vcmp.ge.f32.partialorder %v5966, 0.0
      %vm6001 = vcmp.ge.f32.partialorder %v5967, 0.0
      %vm6002 = vcmp.ge.f32.partialorder %v5968, 0.0
      %vm6003 = vcmp.ge.f32.partialorder %v5969, 0.0
      %vm6004 = vcmp.ge.f32.partialorder %v5970, 0.0
      %vm6005 = vcmp.ge.f32.partialorder %v5971, 0.0
      %vm6006 = vcmp.ge.f32.partialorder %v5972, 0.0
      %vm6007 = vcmp.ge.f32.partialorder %v5973, 0.0
      %vm6008 = vcmp.ge.f32.partialorder %v5974, 0.0
      %vm6009 = vcmp.ge.f32.partialorder %v5975, 0.0
      %vm6010 = vcmp.ge.f32.partialorder %v5976, 0.0
      %vm6011 = vcmp.ge.f32.partialorder %v5977, 0.0
      %vm6012 = vcmp.ge.f32.partialorder %v5978, 0.0
      %vm6013 = vcmp.ge.f32.partialorder %v5979, 0.0
      %vm6014 = vcmp.ge.f32.partialorder %v5980, 0.0
      %vm6015 = vcmp.ge.f32.partialorder %v5981, 0.0
      %v6017 = vlaneseq
      %v6018 = vshrl.u32 %v6017, 7
      %v6019 = vsub.s32 0, %v6018
      %v6020 = vrot.slane %v5983, %v6019
      %v6022 = vmul.f32 %v5950, %v6020
      %v6023 = vmul.f32 %v5951, %v6020
      %v6024 = vmul.f32 %v5952, %v6020
      %v6025 = vmul.f32 %v5953, %v6020
      %v6026 = vmul.f32 %v5954, %v6020
      %v6027 = vmul.f32 %v5955, %v6020
      %v6028 = vmul.f32 %v5956, %v6020
      %v6029 = vmul.f32 %v5957, %v6020
      %v6030 = vmul.f32 %v5958, %v6020
      %v6031 = vmul.f32 %v5959, %v6020
      %v6032 = vmul.f32 %v5960, %v6020
      %v6033 = vmul.f32 %v5961, %v6020
      %v6034 = vmul.f32 %v5962, %v6020
      %v6035 = vmul.f32 %v5963, %v6020
      %v6036 = vmul.f32 %v5964, %v6020
      %v6037 = vmul.f32 %v5965, %v6020
      %v6038 = vmul.f32 %v5966, %v6020
      %v6039 = vmul.f32 %v5967, %v6020
      %v6040 = vmul.f32 %v5968, %v6020
      %v6041 = vmul.f32 %v5969, %v6020
      %v6042 = vmul.f32 %v5970, %v6020
      %v6043 = vmul.f32 %v5971, %v6020
      %v6044 = vmul.f32 %v5972, %v6020
      %v6045 = vmul.f32 %v5973, %v6020
      %v6046 = vmul.f32 %v5974, %v6020
      %v6047 = vmul.f32 %v5975, %v6020
      %v6048 = vmul.f32 %v5976, %v6020
      %v6049 = vmul.f32 %v5977, %v6020
      %v6050 = vmul.f32 %v5978, %v6020
      %v6051 = vmul.f32 %v5979, %v6020
      %v6052 = vmul.f32 %v5980, %v6020
      %v6053 = vmul.f32 %v5981, %v6020
      %v6054 = vsel %vm5984, %v5950, %v6022
      %v6055 = vsel %vm5985, %v5951, %v6023
      %v6056 = vsel %vm5986, %v5952, %v6024
      %v6057 = vsel %vm5987, %v5953, %v6025
      %v6058 = vsel %vm5988, %v5954, %v6026
      %v6059 = vsel %vm5989, %v5955, %v6027
      %v6060 = vsel %vm5990, %v5956, %v6028
      %v6061 = vsel %vm5991, %v5957, %v6029
      %v6062 = vsel %vm5992, %v5958, %v6030
      %v6063 = vsel %vm5993, %v5959, %v6031
      %v6064 = vsel %vm5994, %v5960, %v6032
      %v6065 = vsel %vm5995, %v5961, %v6033
      %v6066 = vsel %vm5996, %v5962, %v6034
      %v6067 = vsel %vm5997, %v5963, %v6035
      %v6068 = vsel %vm5998, %v5964, %v6036
      %v6069 = vsel %vm5999, %v5965, %v6037
      %v6070 = vsel %vm6000, %v5966, %v6038
      %v6071 = vsel %vm6001, %v5967, %v6039
      %v6072 = vsel %vm6002, %v5968, %v6040
      %v6073 = vsel %vm6003, %v5969, %v6041
      %v6074 = vsel %vm6004, %v5970, %v6042
      %v6075 = vsel %vm6005, %v5971, %v6043
      %v6076 = vsel %vm6006, %v5972, %v6044
      %v6077 = vsel %vm6007, %v5973, %v6045
      %v6078 = vsel %vm6008, %v5974, %v6046
      %v6079 = vsel %vm6009, %v5975, %v6047
      %v6080 = vsel %vm6010, %v5976, %v6048
      %v6081 = vsel %vm6011, %v5977, %v6049
      %v6082 = vsel %vm6012, %v5978, %v6050
      %v6083 = vsel %vm6013, %v5979, %v6051
      %v6084 = vsel %vm6014, %v5980, %v6052
      %v6085 = vsel %vm6015, %v5981, %v6053
      %s6086 = scalar_lea.vmem %s197, 512
      %6087 = vst.msk [vmem:[%s6086] sm:$0xff] %vm230, %v6054
      %6088 = vst.msk [vmem:[%s6086 + $0x8] sm:$0xff] %vm230, %v6055
      %6089 = vst.msk [vmem:[%s6086 + $0x10] sm:$0xff] %vm230, %v6056
      %6090 = vst.msk [vmem:[%s6086 + $0x18] sm:$0xff] %vm230, %v6057
      %6091 = vst.msk [vmem:[%s6086 + $0x20] sm:$0xff] %vm230, %v6058
      %6092 = vst.msk [vmem:[%s6086 + $0x28] sm:$0xff] %vm230, %v6059
      %6093 = vst.msk [vmem:[%s6086 + $0x30] sm:$0xff] %vm230, %v6060
      %6094 = vst.msk [vmem:[%s6086 + $0x38] sm:$0xff] %vm230, %v6061
      %6095 = vst.msk [vmem:[%s6086 + $0x40] sm:$0xff] %vm230, %v6062
      %6096 = vst.msk [vmem:[%s6086 + $0x48] sm:$0xff] %vm230, %v6063
      %6097 = vst.msk [vmem:[%s6086 + $0x50] sm:$0xff] %vm230, %v6064
      %6098 = vst.msk [vmem:[%s6086 + $0x58] sm:$0xff] %vm230, %v6065
      %6099 = vst.msk [vmem:[%s6086 + $0x60] sm:$0xff] %vm230, %v6066
      %6100 = vst.msk [vmem:[%s6086 + $0x68] sm:$0xff] %vm230, %v6067
      %6101 = vst.msk [vmem:[%s6086 + $0x70] sm:$0xff] %vm230, %v6068
      %6102 = vst.msk [vmem:[%s6086 + $0x78] sm:$0xff] %vm230, %v6069
      %6103 = vst.msk [vmem:[%s6086 + $0x80] sm:$0xff] %vm230, %v6070
      %6104 = vst.msk [vmem:[%s6086 + $0x88] sm:$0xff] %vm230, %v6071
      %6105 = vst.msk [vmem:[%s6086 + $0x90] sm:$0xff] %vm230, %v6072
      %6106 = vst.msk [vmem:[%s6086 + $0x98] sm:$0xff] %vm230, %v6073
      %6107 = vst.msk [vmem:[%s6086 + $0xa0] sm:$0xff] %vm230, %v6074
      %6108 = vst.msk [vmem:[%s6086 + $0xa8] sm:$0xff] %vm230, %v6075
      %6109 = vst.msk [vmem:[%s6086 + $0xb0] sm:$0xff] %vm230, %v6076
      %6110 = vst.msk [vmem:[%s6086 + $0xb8] sm:$0xff] %vm230, %v6077
      %6111 = vst.msk [vmem:[%s6086 + $0xc0] sm:$0xff] %vm230, %v6078
      %6112 = vst.msk [vmem:[%s6086 + $0xc8] sm:$0xff] %vm230, %v6079
      %6113 = vst.msk [vmem:[%s6086 + $0xd0] sm:$0xff] %vm230, %v6080
      %6114 = vst.msk [vmem:[%s6086 + $0xd8] sm:$0xff] %vm230, %v6081
      %6115 = vst.msk [vmem:[%s6086 + $0xe0] sm:$0xff] %vm230, %v6082
      %6116 = vst.msk [vmem:[%s6086 + $0xe8] sm:$0xff] %vm230, %v6083
      %6117 = vst.msk [vmem:[%s6086 + $0xf0] sm:$0xff] %vm230, %v6084
      %6118 = vst.msk [vmem:[%s6086 + $0xf8] sm:$0xff] %vm230, %v6085
      %s6119 = scalar_lea.vmem %s192, 768
      %v6120 = vld [vmem:[%s6119] sm:$0xff]
      %v6121 = vld [vmem:[%s6119 + $0x8] sm:$0xff]
      %v6122 = vld [vmem:[%s6119 + $0x10] sm:$0xff]
      %v6123 = vld [vmem:[%s6119 + $0x18] sm:$0xff]
      %v6124 = vld [vmem:[%s6119 + $0x20] sm:$0xff]
      %v6125 = vld [vmem:[%s6119 + $0x28] sm:$0xff]
      %v6126 = vld [vmem:[%s6119 + $0x30] sm:$0xff]
      %v6127 = vld [vmem:[%s6119 + $0x38] sm:$0xff]
      %v6128 = vld [vmem:[%s6119 + $0x40] sm:$0xff]
      %v6129 = vld [vmem:[%s6119 + $0x48] sm:$0xff]
      %v6130 = vld [vmem:[%s6119 + $0x50] sm:$0xff]
      %v6131 = vld [vmem:[%s6119 + $0x58] sm:$0xff]
      %v6132 = vld [vmem:[%s6119 + $0x60] sm:$0xff]
      %v6133 = vld [vmem:[%s6119 + $0x68] sm:$0xff]
      %v6134 = vld [vmem:[%s6119 + $0x70] sm:$0xff]
      %v6135 = vld [vmem:[%s6119 + $0x78] sm:$0xff]
      %v6136 = vld [vmem:[%s6119 + $0x80] sm:$0xff]
      %v6137 = vld [vmem:[%s6119 + $0x88] sm:$0xff]
      %v6138 = vld [vmem:[%s6119 + $0x90] sm:$0xff]
      %v6139 = vld [vmem:[%s6119 + $0x98] sm:$0xff]
      %v6140 = vld [vmem:[%s6119 + $0xa0] sm:$0xff]
      %v6141 = vld [vmem:[%s6119 + $0xa8] sm:$0xff]
      %v6142 = vld [vmem:[%s6119 + $0xb0] sm:$0xff]
      %v6143 = vld [vmem:[%s6119 + $0xb8] sm:$0xff]
      %v6144 = vld [vmem:[%s6119 + $0xc0] sm:$0xff]
      %v6145 = vld [vmem:[%s6119 + $0xc8] sm:$0xff]
      %v6146 = vld [vmem:[%s6119 + $0xd0] sm:$0xff]
      %v6147 = vld [vmem:[%s6119 + $0xd8] sm:$0xff]
      %v6148 = vld [vmem:[%s6119 + $0xe0] sm:$0xff]
      %v6149 = vld [vmem:[%s6119 + $0xe8] sm:$0xff]
      %v6150 = vld [vmem:[%s6119 + $0xf0] sm:$0xff]
      %v6151 = vld [vmem:[%s6119 + $0xf8] sm:$0xff]
      %v6152 = vld [vmem:[%s6086] sm:$0xff]
      %v6153 = vld [vmem:[%s6086 + $0x8] sm:$0xff]
      %v6154 = vld [vmem:[%s6086 + $0x10] sm:$0xff]
      %v6155 = vld [vmem:[%s6086 + $0x18] sm:$0xff]
      %v6156 = vld [vmem:[%s6086 + $0x20] sm:$0xff]
      %v6157 = vld [vmem:[%s6086 + $0x28] sm:$0xff]
      %v6158 = vld [vmem:[%s6086 + $0x30] sm:$0xff]
      %v6159 = vld [vmem:[%s6086 + $0x38] sm:$0xff]
      %v6160 = vld [vmem:[%s6086 + $0x40] sm:$0xff]
      %v6161 = vld [vmem:[%s6086 + $0x48] sm:$0xff]
      %v6162 = vld [vmem:[%s6086 + $0x50] sm:$0xff]
      %v6163 = vld [vmem:[%s6086 + $0x58] sm:$0xff]
      %v6164 = vld [vmem:[%s6086 + $0x60] sm:$0xff]
      %v6165 = vld [vmem:[%s6086 + $0x68] sm:$0xff]
      %v6166 = vld [vmem:[%s6086 + $0x70] sm:$0xff]
      %v6167 = vld [vmem:[%s6086 + $0x78] sm:$0xff]
      %v6168 = vld [vmem:[%s6086 + $0x80] sm:$0xff]
      %v6169 = vld [vmem:[%s6086 + $0x88] sm:$0xff]
      %v6170 = vld [vmem:[%s6086 + $0x90] sm:$0xff]
      %v6171 = vld [vmem:[%s6086 + $0x98] sm:$0xff]
      %v6172 = vld [vmem:[%s6086 + $0xa0] sm:$0xff]
      %v6173 = vld [vmem:[%s6086 + $0xa8] sm:$0xff]
      %v6174 = vld [vmem:[%s6086 + $0xb0] sm:$0xff]
      %v6175 = vld [vmem:[%s6086 + $0xb8] sm:$0xff]
      %v6176 = vld [vmem:[%s6086 + $0xc0] sm:$0xff]
      %v6177 = vld [vmem:[%s6086 + $0xc8] sm:$0xff]
      %v6178 = vld [vmem:[%s6086 + $0xd0] sm:$0xff]
      %v6179 = vld [vmem:[%s6086 + $0xd8] sm:$0xff]
      %v6180 = vld [vmem:[%s6086 + $0xe0] sm:$0xff]
      %v6181 = vld [vmem:[%s6086 + $0xe8] sm:$0xff]
      %v6182 = vld [vmem:[%s6086 + $0xf0] sm:$0xff]
      %v6183 = vld [vmem:[%s6086 + $0xf8] sm:$0xff]
      %v6184 = vadd.f32 %v6120, %v6152
      %v6185 = vadd.f32 %v6121, %v6153
      %v6186 = vadd.f32 %v6122, %v6154
      %v6187 = vadd.f32 %v6123, %v6155
      %v6188 = vadd.f32 %v6124, %v6156
      %v6189 = vadd.f32 %v6125, %v6157
      %v6190 = vadd.f32 %v6126, %v6158
      %v6191 = vadd.f32 %v6127, %v6159
      %v6192 = vadd.f32 %v6128, %v6160
      %v6193 = vadd.f32 %v6129, %v6161
      %v6194 = vadd.f32 %v6130, %v6162
      %v6195 = vadd.f32 %v6131, %v6163
      %v6196 = vadd.f32 %v6132, %v6164
      %v6197 = vadd.f32 %v6133, %v6165
      %v6198 = vadd.f32 %v6134, %v6166
      %v6199 = vadd.f32 %v6135, %v6167
      %v6200 = vadd.f32 %v6136, %v6168
      %v6201 = vadd.f32 %v6137, %v6169
      %v6202 = vadd.f32 %v6138, %v6170
      %v6203 = vadd.f32 %v6139, %v6171
      %v6204 = vadd.f32 %v6140, %v6172
      %v6205 = vadd.f32 %v6141, %v6173
      %v6206 = vadd.f32 %v6142, %v6174
      %v6207 = vadd.f32 %v6143, %v6175
      %v6208 = vadd.f32 %v6144, %v6176
      %v6209 = vadd.f32 %v6145, %v6177
      %v6210 = vadd.f32 %v6146, %v6178
      %v6211 = vadd.f32 %v6147, %v6179
      %v6212 = vadd.f32 %v6148, %v6180
      %v6213 = vadd.f32 %v6149, %v6181
      %v6214 = vadd.f32 %v6150, %v6182
      %v6215 = vadd.f32 %v6151, %v6183
      %6216 = vst.msk [vmem:[#allocation2] sm:$0xff] %vm230, 0.0
      %6217 = vst.msk [vmem:[#allocation2 + $0x8] sm:$0xff] %vm230, 0.0
      %6218 = vst.msk [vmem:[#allocation2 + $0x10] sm:$0xff] %vm230, 0.0
      %6219 = vst.msk [vmem:[#allocation2 + $0x18] sm:$0xf] %vm2396, 0.0
      %6220 = vst.msk [vmem:[#allocation2 + $0x20] sm:$0xff] %vm230, 0.0
      %6221 = vst.msk [vmem:[#allocation2 + $0x28] sm:$0xff] %vm230, 0.0
      %6222 = vst.msk [vmem:[#allocation2 + $0x30] sm:$0xff] %vm230, 0.0
      %6223 = vst.msk [vmem:[#allocation2 + $0x38] sm:$0xf] %vm2396, 0.0
      %6224 = vst.msk [vmem:[#allocation2 + $0x40] sm:$0xff] %vm230, 0.0
      %6225 = vst.msk [vmem:[#allocation2 + $0x48] sm:$0xff] %vm230, 0.0
      %6226 = vst.msk [vmem:[#allocation2 + $0x50] sm:$0xff] %vm230, 0.0
      %6227 = vst.msk [vmem:[#allocation2 + $0x58] sm:$0xf] %vm2396, 0.0
      %6228 = vst.msk [vmem:[#allocation2 + $0x60] sm:$0xff] %vm230, 0.0
      %6229 = vst.msk [vmem:[#allocation2 + $0x68] sm:$0xff] %vm230, 0.0
      %6230 = vst.msk [vmem:[#allocation2 + $0x70] sm:$0xff] %vm230, 0.0
      %6231 = vst.msk [vmem:[#allocation2 + $0x78] sm:$0xf] %vm2396, 0.0
      %6232 = vst.msk [vmem:[#allocation2 + $0x80] sm:$0xff] %vm230, 0.0
      %6233 = vst.msk [vmem:[#allocation2 + $0x88] sm:$0xff] %vm230, 0.0
      %6234 = vst.msk [vmem:[#allocation2 + $0x90] sm:$0xff] %vm230, 0.0
      %6235 = vst.msk [vmem:[#allocation2 + $0x98] sm:$0xf] %vm2396, 0.0
      %6236 = vst.msk [vmem:[#allocation2 + $0xa0] sm:$0xff] %vm230, 0.0
      %6237 = vst.msk [vmem:[#allocation2 + $0xa8] sm:$0xff] %vm230, 0.0
      %6238 = vst.msk [vmem:[#allocation2 + $0xb0] sm:$0xff] %vm230, 0.0
      %6239 = vst.msk [vmem:[#allocation2 + $0xb8] sm:$0xf] %vm2396, 0.0
      %s6240 = scalar_lea.vmem [#allocation2], 704
      %6241 = vst.msk [vmem:[%s6240] sm:$0xff] %vm230, 0.0
      %6242 = vst.msk [vmem:[%s6240 + $0x8] sm:$0xff] %vm230, 0.0
      %6243 = vst.msk [vmem:[%s6240 + $0x10] sm:$0xff] %vm230, 0.0
      %6244 = vst.msk [vmem:[%s6240 + $0x18] sm:$0xf] %vm2396, 0.0
      %6245 = vst.msk [vmem:[%s6240 + $0x20] sm:$0xff] %vm230, 0.0
      %6246 = vst.msk [vmem:[%s6240 + $0x28] sm:$0xff] %vm230, 0.0
      %6247 = vst.msk [vmem:[%s6240 + $0x30] sm:$0xff] %vm230, 0.0
      %6248 = vst.msk [vmem:[%s6240 + $0x38] sm:$0xf] %vm2396, 0.0
      %6249 = vst.msk [vmem:[%s6240 + $0x40] sm:$0xff] %vm230, 0.0
      %6250 = vst.msk [vmem:[%s6240 + $0x48] sm:$0xff] %vm230, 0.0
      %6251 = vst.msk [vmem:[%s6240 + $0x50] sm:$0xff] %vm230, 0.0
      %6252 = vst.msk [vmem:[%s6240 + $0x58] sm:$0xf] %vm2396, 0.0
      %6253 = vst.msk [vmem:[%s6240 + $0x60] sm:$0xff] %vm230, 0.0
      %6254 = vst.msk [vmem:[%s6240 + $0x68] sm:$0xff] %vm230, 0.0
      %6255 = vst.msk [vmem:[%s6240 + $0x70] sm:$0xff] %vm230, 0.0
      %6256 = vst.msk [vmem:[%s6240 + $0x78] sm:$0xf] %vm2396, 0.0
      %6257 = vst.msk [vmem:[%s6240 + $0x80] sm:$0xff] %vm230, 0.0
      %6258 = vst.msk [vmem:[%s6240 + $0x88] sm:$0xff] %vm230, 0.0
      %6259 = vst.msk [vmem:[%s6240 + $0x90] sm:$0xff] %vm230, 0.0
      %6260 = vst.msk [vmem:[%s6240 + $0x98] sm:$0xf] %vm2396, 0.0
      %6261 = vst.msk [vmem:[%s6240 + $0xa0] sm:$0xff] %vm230, 0.0
      %6262 = vst.msk [vmem:[%s6240 + $0xa8] sm:$0xff] %vm230, 0.0
      %6263 = vst.msk [vmem:[%s6240 + $0xb0] sm:$0xff] %vm230, 0.0
      %6264 = vst.msk [vmem:[%s6240 + $0xb8] sm:$0xf] %vm2396, 0.0
      %s6265 = scalar_lea.vmem [#allocation2], 192
      %vm6266 = vcmask 324608
      %6267 = vst.msk [vmem:[%s6265] sm:$0x3f] %vm6266, 0.0
      %6268 = vst.msk [vmem:[%s6265 + $0x20] sm:$0x3f] %vm6266, 0.0
      %6269 = vst.msk [vmem:[%s6265 + $0x40] sm:$0x3f] %vm6266, 0.0
      %6270 = vst.msk [vmem:[%s6265 + $0x60] sm:$0x3f] %vm6266, 0.0
      %6271 = vst.msk [vmem:[%s6265 + $0x80] sm:$0x3f] %vm6266, 0.0
      %6272 = vst.msk [vmem:[%s6265 + $0xa0] sm:$0x3f] %vm6266, 0.0
      %6273 = vst.msk [vmem:[%s6265 + $0xc0] sm:$0x3f] %vm6266, 0.0
      %6274 = vst.msk [vmem:[%s6265 + $0xe0] sm:$0x3f] %vm6266, 0.0
      %6275 = vst.msk [vmem:[%s6265 + $0x100] sm:$0x3f] %vm6266, 0.0
      %6276 = vst.msk [vmem:[%s6265 + $0x120] sm:$0x3f] %vm6266, 0.0
      %6277 = vst.msk [vmem:[%s6265 + $0x140] sm:$0x3f] %vm6266, 0.0
      %6278 = vst.msk [vmem:[%s6265 + $0x160] sm:$0x3f] %vm6266, 0.0
      %6279 = vst.msk [vmem:[%s6265 + $0x180] sm:$0x3f] %vm6266, 0.0
      %6280 = vst.msk [vmem:[%s6265 + $0x1a0] sm:$0x3f] %vm6266, 0.0
      %6281 = vst.msk [vmem:[%s6265 + $0x1c0] sm:$0x3f] %vm6266, 0.0
      %6282 = vst.msk [vmem:[%s6265 + $0x1e0] sm:$0x3f] %vm6266, 0.0
      %6283 = vst.msk [vmem:[%s6265 + $0x16] sm:$0x3f] %vm6266, 0.0
      %6284 = vst.msk [vmem:[%s6265 + $0x36] sm:$0x3f] %vm6266, 0.0
      %6285 = vst.msk [vmem:[%s6265 + $0x56] sm:$0x3f] %vm6266, 0.0
      %6286 = vst.msk [vmem:[%s6265 + $0x76] sm:$0x3f] %vm6266, 0.0
      %6287 = vst.msk [vmem:[%s6265 + $0x96] sm:$0x3f] %vm6266, 0.0
      %6288 = vst.msk [vmem:[%s6265 + $0xb6] sm:$0x3f] %vm6266, 0.0
      %6289 = vst.msk [vmem:[%s6265 + $0xd6] sm:$0x3f] %vm6266, 0.0
      %6290 = vst.msk [vmem:[%s6265 + $0xf6] sm:$0x3f] %vm6266, 0.0
      %6291 = vst.msk [vmem:[%s6265 + $0x116] sm:$0x3f] %vm6266, 0.0
      %6292 = vst.msk [vmem:[%s6265 + $0x136] sm:$0x3f] %vm6266, 0.0
      %6293 = vst.msk [vmem:[%s6265 + $0x156] sm:$0x3f] %vm6266, 0.0
      %6294 = vst.msk [vmem:[%s6265 + $0x176] sm:$0x3f] %vm6266, 0.0
      %6295 = vst.msk [vmem:[%s6265 + $0x196] sm:$0x3f] %vm6266, 0.0
      %6296 = vst.msk [vmem:[%s6265 + $0x1b6] sm:$0x3f] %vm6266, 0.0
      %6297 = vst.msk [vmem:[%s6265 + $0x1d6] sm:$0x3f] %vm6266, 0.0
      %6298 = vst.msk [vmem:[%s6265 + $0x1f6] sm:$0x3f] %vm6266, 0.0
      %6299 = vst.msk [vmem:[%s6265 + $0x6] sm:$0xff] %vm230, %v6184
      %6300 = vst.msk [vmem:[%s6265 + $0xe] sm:$0xff] %vm230, %v6185
      %6301 = vst.msk [vmem:[%s6265 + $0x26] sm:$0xff] %vm230, %v6186
      %6302 = vst.msk [vmem:[%s6265 + $0x2e] sm:$0xff] %vm230, %v6187
      %6303 = vst.msk [vmem:[%s6265 + $0x46] sm:$0xff] %vm230, %v6188
      %6304 = vst.msk [vmem:[%s6265 + $0x4e] sm:$0xff] %vm230, %v6189
      %6305 = vst.msk [vmem:[%s6265 + $0x66] sm:$0xff] %vm230, %v6190
      %6306 = vst.msk [vmem:[%s6265 + $0x6e] sm:$0xff] %vm230, %v6191
      %6307 = vst.msk [vmem:[%s6265 + $0x86] sm:$0xff] %vm230, %v6192
      %6308 = vst.msk [vmem:[%s6265 + $0x8e] sm:$0xff] %vm230, %v6193
      %6309 = vst.msk [vmem:[%s6265 + $0xa6] sm:$0xff] %vm230, %v6194
      %6310 = vst.msk [vmem:[%s6265 + $0xae] sm:$0xff] %vm230, %v6195
      %6311 = vst.msk [vmem:[%s6265 + $0xc6] sm:$0xff] %vm230, %v6196
      %6312 = vst.msk [vmem:[%s6265 + $0xce] sm:$0xff] %vm230, %v6197
      %6313 = vst.msk [vmem:[%s6265 + $0xe6] sm:$0xff] %vm230, %v6198
      %6314 = vst.msk [vmem:[%s6265 + $0xee] sm:$0xff] %vm230, %v6199
      %6315 = vst.msk [vmem:[%s6265 + $0x106] sm:$0xff] %vm230, %v6200
      %6316 = vst.msk [vmem:[%s6265 + $0x10e] sm:$0xff] %vm230, %v6201
      %6317 = vst.msk [vmem:[%s6265 + $0x126] sm:$0xff] %vm230, %v6202
      %6318 = vst.msk [vmem:[%s6265 + $0x12e] sm:$0xff] %vm230, %v6203
      %6319 = vst.msk [vmem:[%s6265 + $0x146] sm:$0xff] %vm230, %v6204
      %6320 = vst.msk [vmem:[%s6265 + $0x14e] sm:$0xff] %vm230, %v6205
      %6321 = vst.msk [vmem:[%s6265 + $0x166] sm:$0xff] %vm230, %v6206
      %6322 = vst.msk [vmem:[%s6265 + $0x16e] sm:$0xff] %vm230, %v6207
      %6323 = vst.msk [vmem:[%s6265 + $0x186] sm:$0xff] %vm230, %v6208
      %6324 = vst.msk [vmem:[%s6265 + $0x18e] sm:$0xff] %vm230, %v6209
      %6325 = vst.msk [vmem:[%s6265 + $0x1a6] sm:$0xff] %vm230, %v6210
      %6326 = vst.msk [vmem:[%s6265 + $0x1ae] sm:$0xff] %vm230, %v6211
      %6327 = vst.msk [vmem:[%s6265 + $0x1c6] sm:$0xff] %vm230, %v6212
      %6328 = vst.msk [vmem:[%s6265 + $0x1ce] sm:$0xff] %vm230, %v6213
      %6329 = vst.msk [vmem:[%s6265 + $0x1e6] sm:$0xff] %vm230, %v6214
      %6330 = vst.msk [vmem:[%s6265 + $0x1ee] sm:$0xff] %vm230, %v6215
      %s6331 = scalar_lea.vmem %s2, 3
      %v6332 = vld [vmem:[%s6331] sm:$0x1]
      %v6333 = vld [vmem:[#allocation2] sm:$0xff]
      %v6334 = vld [vmem:[#allocation2 + $0x8] sm:$0xff]
      %v6335 = vld [vmem:[#allocation2 + $0x10] sm:$0xff]
      %v6336 = vld [vmem:[#allocation2 + $0x18] sm:$0xf]
      %v6337 = vld [vmem:[#allocation2 + $0x20] sm:$0xff]
      %v6338 = vld [vmem:[#allocation2 + $0x28] sm:$0xff]
      %v6339 = vld [vmem:[#allocation2 + $0x30] sm:$0xff]
      %v6340 = vld [vmem:[#allocation2 + $0x38] sm:$0xf]
      %v6341 = vld [vmem:[#allocation2 + $0x40] sm:$0xff]
      %v6342 = vld [vmem:[#allocation2 + $0x48] sm:$0xff]
      %v6343 = vld [vmem:[#allocation2 + $0x50] sm:$0xff]
      %v6344 = vld [vmem:[#allocation2 + $0x58] sm:$0xf]
      %v6345 = vld [vmem:[#allocation2 + $0x60] sm:$0xff]
      %v6346 = vld [vmem:[#allocation2 + $0x68] sm:$0xff]
      %v6347 = vld [vmem:[#allocation2 + $0x70] sm:$0xff]
      %v6348 = vld [vmem:[#allocation2 + $0x78] sm:$0xf]
      %v6349 = vld [vmem:[#allocation2 + $0x80] sm:$0xff]
      %v6350 = vld [vmem:[#allocation2 + $0x88] sm:$0xff]
      %v6351 = vld [vmem:[#allocation2 + $0x90] sm:$0xff]
      %v6352 = vld [vmem:[#allocation2 + $0x98] sm:$0xf]
      %v6353 = vld [vmem:[#allocation2 + $0xa0] sm:$0xff]
      %v6354 = vld [vmem:[#allocation2 + $0xa8] sm:$0xff]
      %v6355 = vld [vmem:[#allocation2 + $0xb0] sm:$0xff]
      %v6356 = vld [vmem:[#allocation2 + $0xb8] sm:$0xf]
      %v6357 = vld [vmem:[#allocation2 + $0xc0] sm:$0xff]
      %v6358 = vld [vmem:[#allocation2 + $0xc8] sm:$0xff]
      %v6359 = vld [vmem:[#allocation2 + $0xd0] sm:$0xff]
      %v6360 = vld [vmem:[#allocation2 + $0xd8] sm:$0xf]
      %v6361 = vld [vmem:[#allocation2 + $0xe0] sm:$0xff]
      %v6362 = vld [vmem:[#allocation2 + $0xe8] sm:$0xff]
      %v6363 = vld [vmem:[#allocation2 + $0xf0] sm:$0xff]
      %v6364 = vld [vmem:[#allocation2 + $0xf8] sm:$0xf]
      %v6365 = vld [vmem:[#allocation2 + $0x100] sm:$0xff]
      %v6366 = vld [vmem:[#allocation2 + $0x108] sm:$0xff]
      %v6367 = vld [vmem:[#allocation2 + $0x110] sm:$0xff]
      %v6368 = vld [vmem:[#allocation2 + $0x118] sm:$0xf]
      %v6369 = vld [vmem:[#allocation2 + $0x120] sm:$0xff]
      %v6370 = vld [vmem:[#allocation2 + $0x128] sm:$0xff]
      %v6371 = vld [vmem:[#allocation2 + $0x130] sm:$0xff]
      %v6372 = vld [vmem:[#allocation2 + $0x138] sm:$0xf]
      %v6373 = vld [vmem:[#allocation2 + $0x140] sm:$0xff]
      %v6374 = vld [vmem:[#allocation2 + $0x148] sm:$0xff]
      %v6375 = vld [vmem:[#allocation2 + $0x150] sm:$0xff]
      %v6376 = vld [vmem:[#allocation2 + $0x158] sm:$0xf]
      %v6377 = vld [vmem:[#allocation2 + $0x160] sm:$0xff]
      %v6378 = vld [vmem:[#allocation2 + $0x168] sm:$0xff]
      %v6379 = vld [vmem:[#allocation2 + $0x170] sm:$0xff]
      %v6380 = vld [vmem:[#allocation2 + $0x178] sm:$0xf]
      %v6381 = vld [vmem:[#allocation2 + $0x180] sm:$0xff]
      %v6382 = vld [vmem:[#allocation2 + $0x188] sm:$0xff]
      %v6383 = vld [vmem:[#allocation2 + $0x190] sm:$0xff]
      %v6384 = vld [vmem:[#allocation2 + $0x198] sm:$0xf]
      %v6385 = vld [vmem:[#allocation2 + $0x1a0] sm:$0xff]
      %v6386 = vld [vmem:[#allocation2 + $0x1a8] sm:$0xff]
      %v6387 = vld [vmem:[#allocation2 + $0x1b0] sm:$0xff]
      %v6388 = vld [vmem:[#allocation2 + $0x1b8] sm:$0xf]
      %v6389 = vld [vmem:[#allocation2 + $0x1c0] sm:$0xff]
      %v6390 = vld [vmem:[#allocation2 + $0x1c8] sm:$0xff]
      %v6391 = vld [vmem:[#allocation2 + $0x1d0] sm:$0xff]
      %v6392 = vld [vmem:[#allocation2 + $0x1d8] sm:$0xf]
      %v6393 = vld [vmem:[#allocation2 + $0x1e0] sm:$0xff]
      %v6394 = vld [vmem:[#allocation2 + $0x1e8] sm:$0xff]
      %v6395 = vld [vmem:[#allocation2 + $0x1f0] sm:$0xff]
      %v6396 = vld [vmem:[#allocation2 + $0x1f8] sm:$0xf]
      %s6397 = scalar_lea.vmem %s1, 27
      %v6398 = vld [vmem:[%s6397] sm:$0x1]
      %v6400 = vlaneseq
      %v6401 = vshrl.u32 %v6400, 7
      %v6402 = vsub.s32 0, %v6401
      %v6403 = vrot.slane %v6398, %v6402
      %v6405 = vmul.f32 %v6333, %v6403
      %v6406 = vmul.f32 %v6334, %v6403
      %v6407 = vmul.f32 %v6337, %v6403
      %v6408 = vmul.f32 %v6338, %v6403
      %v6409 = vmul.f32 %v6341, %v6403
      %v6410 = vmul.f32 %v6342, %v6403
      %v6411 = vmul.f32 %v6345, %v6403
      %v6412 = vmul.f32 %v6346, %v6403
      %v6413 = vmul.f32 %v6349, %v6403
      %v6414 = vmul.f32 %v6350, %v6403
      %v6415 = vmul.f32 %v6353, %v6403
      %v6416 = vmul.f32 %v6354, %v6403
      %v6417 = vmul.f32 %v6357, %v6403
      %v6418 = vmul.f32 %v6358, %v6403
      %v6419 = vmul.f32 %v6361, %v6403
      %v6420 = vmul.f32 %v6362, %v6403
      %v6421 = vmul.f32 %v6365, %v6403
      %v6422 = vmul.f32 %v6366, %v6403
      %v6423 = vmul.f32 %v6369, %v6403
      %v6424 = vmul.f32 %v6370, %v6403
      %v6425 = vmul.f32 %v6373, %v6403
      %v6426 = vmul.f32 %v6374, %v6403
      %v6427 = vmul.f32 %v6377, %v6403
      %v6428 = vmul.f32 %v6378, %v6403
      %v6429 = vmul.f32 %v6381, %v6403
      %v6430 = vmul.f32 %v6382, %v6403
      %v6431 = vmul.f32 %v6385, %v6403
      %v6432 = vmul.f32 %v6386, %v6403
      %v6433 = vmul.f32 %v6389, %v6403
      %v6434 = vmul.f32 %v6390, %v6403
      %v6435 = vmul.f32 %v6393, %v6403
      %v6436 = vmul.f32 %v6394, %v6403
      %v6438 = vlaneseq
      %v6439 = vshrl.u32 %v6438, 7
      %v6440 = vsub.s32 0, %v6439
      %v6441 = vrot.slane %v6332, %v6440
      %v6443 = vadd.f32 %v6405, %v6441
      %v6444 = vadd.f32 %v6406, %v6441
      %v6445 = vadd.f32 %v6407, %v6441
      %v6446 = vadd.f32 %v6408, %v6441
      %v6447 = vadd.f32 %v6409, %v6441
      %v6448 = vadd.f32 %v6410, %v6441
      %v6449 = vadd.f32 %v6411, %v6441
      %v6450 = vadd.f32 %v6412, %v6441
      %v6451 = vadd.f32 %v6413, %v6441
      %v6452 = vadd.f32 %v6414, %v6441
      %v6453 = vadd.f32 %v6415, %v6441
      %v6454 = vadd.f32 %v6416, %v6441
      %v6455 = vadd.f32 %v6417, %v6441
      %v6456 = vadd.f32 %v6418, %v6441
      %v6457 = vadd.f32 %v6419, %v6441
      %v6458 = vadd.f32 %v6420, %v6441
      %v6459 = vadd.f32 %v6421, %v6441
      %v6460 = vadd.f32 %v6422, %v6441
      %v6461 = vadd.f32 %v6423, %v6441
      %v6462 = vadd.f32 %v6424, %v6441
      %v6463 = vadd.f32 %v6425, %v6441
      %v6464 = vadd.f32 %v6426, %v6441
      %v6465 = vadd.f32 %v6427, %v6441
      %v6466 = vadd.f32 %v6428, %v6441
      %v6467 = vadd.f32 %v6429, %v6441
      %v6468 = vadd.f32 %v6430, %v6441
      %v6469 = vadd.f32 %v6431, %v6441
      %v6470 = vadd.f32 %v6432, %v6441
      %v6471 = vadd.f32 %v6433, %v6441
      %v6472 = vadd.f32 %v6434, %v6441
      %v6473 = vadd.f32 %v6435, %v6441
      %v6474 = vadd.f32 %v6436, %v6441
      %s6475 = scalar_lea.vmem %s1, 28
      %v6476 = vld [vmem:[%s6475] sm:$0x1]
      %v6478 = vlaneseq
      %v6479 = vshrl.u32 %v6478, 7
      %v6480 = vsub.s32 0, %v6479
      %v6481 = vrot.slane %v6476, %v6480
      %v6483 = vmul.f32 %v6333, %v6481
      %v6484 = vmul.f32 %v6334, %v6481
      %v6485 = vmul.f32 %v6335, %v6481
      %v6486 = vmul.f32 %v6337, %v6481
      %v6487 = vmul.f32 %v6338, %v6481
      %v6488 = vmul.f32 %v6339, %v6481
      %v6489 = vmul.f32 %v6341, %v6481
      %v6490 = vmul.f32 %v6342, %v6481
      %v6491 = vmul.f32 %v6343, %v6481
      %v6492 = vmul.f32 %v6345, %v6481
      %v6493 = vmul.f32 %v6346, %v6481
      %v6494 = vmul.f32 %v6347, %v6481
      %v6495 = vmul.f32 %v6349, %v6481
      %v6496 = vmul.f32 %v6350, %v6481
      %v6497 = vmul.f32 %v6351, %v6481
      %v6498 = vmul.f32 %v6353, %v6481
      %v6499 = vmul.f32 %v6354, %v6481
      %v6500 = vmul.f32 %v6355, %v6481
      %v6501 = vmul.f32 %v6357, %v6481
      %v6502 = vmul.f32 %v6358, %v6481
      %v6503 = vmul.f32 %v6359, %v6481
      %v6504 = vmul.f32 %v6361, %v6481
      %v6505 = vmul.f32 %v6362, %v6481
      %v6506 = vmul.f32 %v6363, %v6481
      %v6507 = vmul.f32 %v6365, %v6481
      %v6508 = vmul.f32 %v6366, %v6481
      %v6509 = vmul.f32 %v6367, %v6481
      %v6510 = vmul.f32 %v6369, %v6481
      %v6511 = vmul.f32 %v6370, %v6481
      %v6512 = vmul.f32 %v6371, %v6481
      %v6513 = vmul.f32 %v6373, %v6481
      %v6514 = vmul.f32 %v6374, %v6481
      %v6515 = vmul.f32 %v6375, %v6481
      %v6516 = vmul.f32 %v6377, %v6481
      %v6517 = vmul.f32 %v6378, %v6481
      %v6518 = vmul.f32 %v6379, %v6481
      %v6519 = vmul.f32 %v6381, %v6481
      %v6520 = vmul.f32 %v6382, %v6481
      %v6521 = vmul.f32 %v6383, %v6481
      %v6522 = vmul.f32 %v6385, %v6481
      %v6523 = vmul.f32 %v6386, %v6481
      %v6524 = vmul.f32 %v6387, %v6481
      %v6525 = vmul.f32 %v6389, %v6481
      %v6526 = vmul.f32 %v6390, %v6481
      %v6527 = vmul.f32 %v6391, %v6481
      %v6528 = vmul.f32 %v6393, %v6481
      %v6529 = vmul.f32 %v6394, %v6481
      %v6530 = vmul.f32 %v6395, %v6481
      %vm6579 = vcmask 1041408
      %v6580 = vrot.slane %v6483, 6
      %v6581 = vrot.slane %v6484, 6
      %v6582 = vsel %vm6579, %v6580, %v6581
      %v6583 = vrot.slane %v6485, 6
      %v6584 = vsel %vm6579, %v6581, %v6583
      %v6585 = vrot.slane %v6486, 6
      %v6586 = vrot.slane %v6487, 6
      %v6587 = vsel %vm6579, %v6585, %v6586
      %v6588 = vrot.slane %v6488, 6
      %v6589 = vsel %vm6579, %v6586, %v6588
      %v6590 = vrot.slane %v6489, 6
      %v6591 = vrot.slane %v6490, 6
      %v6592 = vsel %vm6579, %v6590, %v6591
      %v6593 = vrot.slane %v6491, 6
      %v6594 = vsel %vm6579, %v6591, %v6593
      %v6595 = vrot.slane %v6492, 6
      %v6596 = vrot.slane %v6493, 6
      %v6597 = vsel %vm6579, %v6595, %v6596
      %v6598 = vrot.slane %v6494, 6
      %v6599 = vsel %vm6579, %v6596, %v6598
      %v6600 = vrot.slane %v6495, 6
      %v6601 = vrot.slane %v6496, 6
      %v6602 = vsel %vm6579, %v6600, %v6601
      %v6603 = vrot.slane %v6497, 6
      %v6604 = vsel %vm6579, %v6601, %v6603
      %v6605 = vrot.slane %v6498, 6
      %v6606 = vrot.slane %v6499, 6
      %v6607 = vsel %vm6579, %v6605, %v6606
      %v6608 = vrot.slane %v6500, 6
      %v6609 = vsel %vm6579, %v6606, %v6608
      %v6610 = vrot.slane %v6501, 6
      %v6611 = vrot.slane %v6502, 6
      %v6612 = vsel %vm6579, %v6610, %v6611
      %v6613 = vrot.slane %v6503, 6
      %v6614 = vsel %vm6579, %v6611, %v6613
      %v6615 = vrot.slane %v6504, 6
      %v6616 = vrot.slane %v6505, 6
      %v6617 = vsel %vm6579, %v6615, %v6616
      %v6618 = vrot.slane %v6506, 6
      %v6619 = vsel %vm6579, %v6616, %v6618
      %v6620 = vrot.slane %v6507, 6
      %v6621 = vrot.slane %v6508, 6
      %v6622 = vsel %vm6579, %v6620, %v6621
      %v6623 = vrot.slane %v6509, 6
      %v6624 = vsel %vm6579, %v6621, %v6623
      %v6625 = vrot.slane %v6510, 6
      %v6626 = vrot.slane %v6511, 6
      %v6627 = vsel %vm6579, %v6625, %v6626
      %v6628 = vrot.slane %v6512, 6
      %v6629 = vsel %vm6579, %v6626, %v6628
      %v6630 = vrot.slane %v6513, 6
      %v6631 = vrot.slane %v6514, 6
      %v6632 = vsel %vm6579, %v6630, %v6631
      %v6633 = vrot.slane %v6515, 6
      %v6634 = vsel %vm6579, %v6631, %v6633
      %v6635 = vrot.slane %v6516, 6
      %v6636 = vrot.slane %v6517, 6
      %v6637 = vsel %vm6579, %v6635, %v6636
      %v6638 = vrot.slane %v6518, 6
      %v6639 = vsel %vm6579, %v6636, %v6638
      %v6640 = vrot.slane %v6519, 6
      %v6641 = vrot.slane %v6520, 6
      %v6642 = vsel %vm6579, %v6640, %v6641
      %v6643 = vrot.slane %v6521, 6
      %v6644 = vsel %vm6579, %v6641, %v6643
      %v6645 = vrot.slane %v6522, 6
      %v6646 = vrot.slane %v6523, 6
      %v6647 = vsel %vm6579, %v6645, %v6646
      %v6648 = vrot.slane %v6524, 6
      %v6649 = vsel %vm6579, %v6646, %v6648
      %v6650 = vrot.slane %v6525, 6
      %v6651 = vrot.slane %v6526, 6
      %v6652 = vsel %vm6579, %v6650, %v6651
      %v6653 = vrot.slane %v6527, 6
      %v6654 = vsel %vm6579, %v6651, %v6653
      %v6655 = vrot.slane %v6528, 6
      %v6656 = vrot.slane %v6529, 6
      %v6657 = vsel %vm6579, %v6655, %v6656
      %v6658 = vrot.slane %v6530, 6
      %v6659 = vsel %vm6579, %v6656, %v6658
      %v6692 = vadd.f32 %v6443, %v6582
      %v6693 = vadd.f32 %v6444, %v6584
      %v6694 = vadd.f32 %v6445, %v6587
      %v6695 = vadd.f32 %v6446, %v6589
      %v6696 = vadd.f32 %v6447, %v6592
      %v6697 = vadd.f32 %v6448, %v6594
      %v6698 = vadd.f32 %v6449, %v6597
      %v6699 = vadd.f32 %v6450, %v6599
      %v6700 = vadd.f32 %v6451, %v6602
      %v6701 = vadd.f32 %v6452, %v6604
      %v6702 = vadd.f32 %v6453, %v6607
      %v6703 = vadd.f32 %v6454, %v6609
      %v6704 = vadd.f32 %v6455, %v6612
      %v6705 = vadd.f32 %v6456, %v6614
      %v6706 = vadd.f32 %v6457, %v6617
      %v6707 = vadd.f32 %v6458, %v6619
      %v6708 = vadd.f32 %v6459, %v6622
      %v6709 = vadd.f32 %v6460, %v6624
      %v6710 = vadd.f32 %v6461, %v6627
      %v6711 = vadd.f32 %v6462, %v6629
      %v6712 = vadd.f32 %v6463, %v6632
      %v6713 = vadd.f32 %v6464, %v6634
      %v6714 = vadd.f32 %v6465, %v6637
      %v6715 = vadd.f32 %v6466, %v6639
      %v6716 = vadd.f32 %v6467, %v6642
      %v6717 = vadd.f32 %v6468, %v6644
      %v6718 = vadd.f32 %v6469, %v6647
      %v6719 = vadd.f32 %v6470, %v6649
      %v6720 = vadd.f32 %v6471, %v6652
      %v6721 = vadd.f32 %v6472, %v6654
      %v6722 = vadd.f32 %v6473, %v6657
      %v6723 = vadd.f32 %v6474, %v6659
      %s6724 = scalar_lea.vmem %s1, 29
      %v6725 = vld [vmem:[%s6724] sm:$0x1]
      %v6727 = vlaneseq
      %v6728 = vshrl.u32 %v6727, 7
      %v6729 = vsub.s32 0, %v6728
      %v6730 = vrot.slane %v6725, %v6729
      %v6732 = vmul.f32 %v6334, %v6730
      %v6733 = vmul.f32 %v6335, %v6730
      %v6734 = vmul.f32 %v6336, %v6730
      %v6735 = vmul.f32 %v6338, %v6730
      %v6736 = vmul.f32 %v6339, %v6730
      %v6737 = vmul.f32 %v6340, %v6730
      %v6738 = vmul.f32 %v6342, %v6730
      %v6739 = vmul.f32 %v6343, %v6730
      %v6740 = vmul.f32 %v6344, %v6730
      %v6741 = vmul.f32 %v6346, %v6730
      %v6742 = vmul.f32 %v6347, %v6730
      %v6743 = vmul.f32 %v6348, %v6730
      %v6744 = vmul.f32 %v6350, %v6730
      %v6745 = vmul.f32 %v6351, %v6730
      %v6746 = vmul.f32 %v6352, %v6730
      %v6747 = vmul.f32 %v6354, %v6730
      %v6748 = vmul.f32 %v6355, %v6730
      %v6749 = vmul.f32 %v6356, %v6730
      %v6750 = vmul.f32 %v6358, %v6730
      %v6751 = vmul.f32 %v6359, %v6730
      %v6752 = vmul.f32 %v6360, %v6730
      %v6753 = vmul.f32 %v6362, %v6730
      %v6754 = vmul.f32 %v6363, %v6730
      %v6755 = vmul.f32 %v6364, %v6730
      %v6756 = vmul.f32 %v6366, %v6730
      %v6757 = vmul.f32 %v6367, %v6730
      %v6758 = vmul.f32 %v6368, %v6730
      %v6759 = vmul.f32 %v6370, %v6730
      %v6760 = vmul.f32 %v6371, %v6730
      %v6761 = vmul.f32 %v6372, %v6730
      %v6762 = vmul.f32 %v6374, %v6730
      %v6763 = vmul.f32 %v6375, %v6730
      %v6764 = vmul.f32 %v6376, %v6730
      %v6765 = vmul.f32 %v6378, %v6730
      %v6766 = vmul.f32 %v6379, %v6730
      %v6767 = vmul.f32 %v6380, %v6730
      %v6768 = vmul.f32 %v6382, %v6730
      %v6769 = vmul.f32 %v6383, %v6730
      %v6770 = vmul.f32 %v6384, %v6730
      %v6771 = vmul.f32 %v6386, %v6730
      %v6772 = vmul.f32 %v6387, %v6730
      %v6773 = vmul.f32 %v6388, %v6730
      %v6774 = vmul.f32 %v6390, %v6730
      %v6775 = vmul.f32 %v6391, %v6730
      %v6776 = vmul.f32 %v6392, %v6730
      %v6777 = vmul.f32 %v6394, %v6730
      %v6778 = vmul.f32 %v6395, %v6730
      %v6779 = vmul.f32 %v6396, %v6730
      %v6828 = vrot.slane %v6732, 4
      %v6829 = vrot.slane %v6733, 4
      %v6830 = vsel %vm2952, %v6828, %v6829
      %v6831 = vrot.slane %v6734, 4
      %v6832 = vsel %vm2952, %v6829, %v6831
      %v6833 = vrot.slane %v6735, 4
      %v6834 = vrot.slane %v6736, 4
      %v6835 = vsel %vm2952, %v6833, %v6834
      %v6836 = vrot.slane %v6737, 4
      %v6837 = vsel %vm2952, %v6834, %v6836
      %v6838 = vrot.slane %v6738, 4
      %v6839 = vrot.slane %v6739, 4
      %v6840 = vsel %vm2952, %v6838, %v6839
      %v6841 = vrot.slane %v6740, 4
      %v6842 = vsel %vm2952, %v6839, %v6841
      %v6843 = vrot.slane %v6741, 4
      %v6844 = vrot.slane %v6742, 4
      %v6845 = vsel %vm2952, %v6843, %v6844
      %v6846 = vrot.slane %v6743, 4
      %v6847 = vsel %vm2952, %v6844, %v6846
      %v6848 = vrot.slane %v6744, 4
      %v6849 = vrot.slane %v6745, 4
      %v6850 = vsel %vm2952, %v6848, %v6849
      %v6851 = vrot.slane %v6746, 4
      %v6852 = vsel %vm2952, %v6849, %v6851
      %v6853 = vrot.slane %v6747, 4
      %v6854 = vrot.slane %v6748, 4
      %v6855 = vsel %vm2952, %v6853, %v6854
      %v6856 = vrot.slane %v6749, 4
      %v6857 = vsel %vm2952, %v6854, %v6856
      %v6858 = vrot.slane %v6750, 4
      %v6859 = vrot.slane %v6751, 4
      %v6860 = vsel %vm2952, %v6858, %v6859
      %v6861 = vrot.slane %v6752, 4
      %v6862 = vsel %vm2952, %v6859, %v6861
      %v6863 = vrot.slane %v6753, 4
      %v6864 = vrot.slane %v6754, 4
      %v6865 = vsel %vm2952, %v6863, %v6864
      %v6866 = vrot.slane %v6755, 4
      %v6867 = vsel %vm2952, %v6864, %v6866
      %v6868 = vrot.slane %v6756, 4
      %v6869 = vrot.slane %v6757, 4
      %v6870 = vsel %vm2952, %v6868, %v6869
      %v6871 = vrot.slane %v6758, 4
      %v6872 = vsel %vm2952, %v6869, %v6871
      %v6873 = vrot.slane %v6759, 4
      %v6874 = vrot.slane %v6760, 4
      %v6875 = vsel %vm2952, %v6873, %v6874
      %v6876 = vrot.slane %v6761, 4
      %v6877 = vsel %vm2952, %v6874, %v6876
      %v6878 = vrot.slane %v6762, 4
      %v6879 = vrot.slane %v6763, 4
      %v6880 = vsel %vm2952, %v6878, %v6879
      %v6881 = vrot.slane %v6764, 4
      %v6882 = vsel %vm2952, %v6879, %v6881
      %v6883 = vrot.slane %v6765, 4
      %v6884 = vrot.slane %v6766, 4
      %v6885 = vsel %vm2952, %v6883, %v6884
      %v6886 = vrot.slane %v6767, 4
      %v6887 = vsel %vm2952, %v6884, %v6886
      %v6888 = vrot.slane %v6768, 4
      %v6889 = vrot.slane %v6769, 4
      %v6890 = vsel %vm2952, %v6888, %v6889
      %v6891 = vrot.slane %v6770, 4
      %v6892 = vsel %vm2952, %v6889, %v6891
      %v6893 = vrot.slane %v6771, 4
      %v6894 = vrot.slane %v6772, 4
      %v6895 = vsel %vm2952, %v6893, %v6894
      %v6896 = vrot.slane %v6773, 4
      %v6897 = vsel %vm2952, %v6894, %v6896
      %v6898 = vrot.slane %v6774, 4
      %v6899 = vrot.slane %v6775, 4
      %v6900 = vsel %vm2952, %v6898, %v6899
      %v6901 = vrot.slane %v6776, 4
      %v6902 = vsel %vm2952, %v6899, %v6901
      %v6903 = vrot.slane %v6777, 4
      %v6904 = vrot.slane %v6778, 4
      %v6905 = vsel %vm2952, %v6903, %v6904
      %v6906 = vrot.slane %v6779, 4
      %v6907 = vsel %vm2952, %v6904, %v6906
      %v6940 = vadd.f32 %v6692, %v6830
      %v6941 = vadd.f32 %v6693, %v6832
      %v6942 = vadd.f32 %v6694, %v6835
      %v6943 = vadd.f32 %v6695, %v6837
      %v6944 = vadd.f32 %v6696, %v6840
      %v6945 = vadd.f32 %v6697, %v6842
      %v6946 = vadd.f32 %v6698, %v6845
      %v6947 = vadd.f32 %v6699, %v6847
      %v6948 = vadd.f32 %v6700, %v6850
      %v6949 = vadd.f32 %v6701, %v6852
      %v6950 = vadd.f32 %v6702, %v6855
      %v6951 = vadd.f32 %v6703, %v6857
      %v6952 = vadd.f32 %v6704, %v6860
      %v6953 = vadd.f32 %v6705, %v6862
      %v6954 = vadd.f32 %v6706, %v6865
      %v6955 = vadd.f32 %v6707, %v6867
      %v6956 = vadd.f32 %v6708, %v6870
      %v6957 = vadd.f32 %v6709, %v6872
      %v6958 = vadd.f32 %v6710, %v6875
      %v6959 = vadd.f32 %v6711, %v6877
      %v6960 = vadd.f32 %v6712, %v6880
      %v6961 = vadd.f32 %v6713, %v6882
      %v6962 = vadd.f32 %v6714, %v6885
      %v6963 = vadd.f32 %v6715, %v6887
      %v6964 = vadd.f32 %v6716, %v6890
      %v6965 = vadd.f32 %v6717, %v6892
      %v6966 = vadd.f32 %v6718, %v6895
      %v6967 = vadd.f32 %v6719, %v6897
      %v6968 = vadd.f32 %v6720, %v6900
      %v6969 = vadd.f32 %v6721, %v6902
      %v6970 = vadd.f32 %v6722, %v6905
      %v6971 = vadd.f32 %v6723, %v6907
      %v6972 = vld [vmem:[%s6265] sm:$0xff]
      %v6973 = vld [vmem:[%s6265 + $0x8] sm:$0xff]
      %v6974 = vld [vmem:[%s6265 + $0x10] sm:$0xff]
      %v6975 = vld [vmem:[%s6265 + $0x18] sm:$0xf]
      %v6976 = vld [vmem:[%s6265 + $0x20] sm:$0xff]
      %v6977 = vld [vmem:[%s6265 + $0x28] sm:$0xff]
      %v6978 = vld [vmem:[%s6265 + $0x30] sm:$0xff]
      %v6979 = vld [vmem:[%s6265 + $0x38] sm:$0xf]
      %v6980 = vld [vmem:[%s6265 + $0x40] sm:$0xff]
      %v6981 = vld [vmem:[%s6265 + $0x48] sm:$0xff]
      %v6982 = vld [vmem:[%s6265 + $0x50] sm:$0xff]
      %v6983 = vld [vmem:[%s6265 + $0x58] sm:$0xf]
      %v6984 = vld [vmem:[%s6265 + $0x60] sm:$0xff]
      %v6985 = vld [vmem:[%s6265 + $0x68] sm:$0xff]
      %v6986 = vld [vmem:[%s6265 + $0x70] sm:$0xff]
      %v6987 = vld [vmem:[%s6265 + $0x78] sm:$0xf]
      %v6988 = vld [vmem:[%s6265 + $0x80] sm:$0xff]
      %v6989 = vld [vmem:[%s6265 + $0x88] sm:$0xff]
      %v6990 = vld [vmem:[%s6265 + $0x90] sm:$0xff]
      %v6991 = vld [vmem:[%s6265 + $0x98] sm:$0xf]
      %v6992 = vld [vmem:[%s6265 + $0xa0] sm:$0xff]
      %v6993 = vld [vmem:[%s6265 + $0xa8] sm:$0xff]
      %v6994 = vld [vmem:[%s6265 + $0xb0] sm:$0xff]
      %v6995 = vld [vmem:[%s6265 + $0xb8] sm:$0xf]
      %v6996 = vld [vmem:[%s6265 + $0xc0] sm:$0xff]
      %v6997 = vld [vmem:[%s6265 + $0xc8] sm:$0xff]
      %v6998 = vld [vmem:[%s6265 + $0xd0] sm:$0xff]
      %v6999 = vld [vmem:[%s6265 + $0xd8] sm:$0xf]
      %v7000 = vld [vmem:[%s6265 + $0xe0] sm:$0xff]
      %v7001 = vld [vmem:[%s6265 + $0xe8] sm:$0xff]
      %v7002 = vld [vmem:[%s6265 + $0xf0] sm:$0xff]
      %v7003 = vld [vmem:[%s6265 + $0xf8] sm:$0xf]
      %v7004 = vld [vmem:[%s6265 + $0x100] sm:$0xff]
      %v7005 = vld [vmem:[%s6265 + $0x108] sm:$0xff]
      %v7006 = vld [vmem:[%s6265 + $0x110] sm:$0xff]
      %v7007 = vld [vmem:[%s6265 + $0x118] sm:$0xf]
      %v7008 = vld [vmem:[%s6265 + $0x120] sm:$0xff]
      %v7009 = vld [vmem:[%s6265 + $0x128] sm:$0xff]
      %v7010 = vld [vmem:[%s6265 + $0x130] sm:$0xff]
      %v7011 = vld [vmem:[%s6265 + $0x138] sm:$0xf]
      %v7012 = vld [vmem:[%s6265 + $0x140] sm:$0xff]
      %v7013 = vld [vmem:[%s6265 + $0x148] sm:$0xff]
      %v7014 = vld [vmem:[%s6265 + $0x150] sm:$0xff]
      %v7015 = vld [vmem:[%s6265 + $0x158] sm:$0xf]
      %v7016 = vld [vmem:[%s6265 + $0x160] sm:$0xff]
      %v7017 = vld [vmem:[%s6265 + $0x168] sm:$0xff]
      %v7018 = vld [vmem:[%s6265 + $0x170] sm:$0xff]
      %v7019 = vld [vmem:[%s6265 + $0x178] sm:$0xf]
      %v7020 = vld [vmem:[%s6265 + $0x180] sm:$0xff]
      %v7021 = vld [vmem:[%s6265 + $0x188] sm:$0xff]
      %v7022 = vld [vmem:[%s6265 + $0x190] sm:$0xff]
      %v7023 = vld [vmem:[%s6265 + $0x198] sm:$0xf]
      %v7024 = vld [vmem:[%s6265 + $0x1a0] sm:$0xff]
      %v7025 = vld [vmem:[%s6265 + $0x1a8] sm:$0xff]
      %v7026 = vld [vmem:[%s6265 + $0x1b0] sm:$0xff]
      %v7027 = vld [vmem:[%s6265 + $0x1b8] sm:$0xf]
      %v7028 = vld [vmem:[%s6265 + $0x1c0] sm:$0xff]
      %v7029 = vld [vmem:[%s6265 + $0x1c8] sm:$0xff]
      %v7030 = vld [vmem:[%s6265 + $0x1d0] sm:$0xff]
      %v7031 = vld [vmem:[%s6265 + $0x1d8] sm:$0xf]
      %v7032 = vld [vmem:[%s6265 + $0x1e0] sm:$0xff]
      %v7033 = vld [vmem:[%s6265 + $0x1e8] sm:$0xff]
      %v7034 = vld [vmem:[%s6265 + $0x1f0] sm:$0xff]
      %v7035 = vld [vmem:[%s6265 + $0x1f8] sm:$0xf]
      %s7036 = scalar_lea.vmem %s1, 30
      %v7037 = vld [vmem:[%s7036] sm:$0x1]
      %v7039 = vlaneseq
      %v7040 = vshrl.u32 %v7039, 7
      %v7041 = vsub.s32 0, %v7040
      %v7042 = vrot.slane %v7037, %v7041
      %v7044 = vmul.f32 %v6972, %v7042
      %v7045 = vmul.f32 %v6973, %v7042
      %v7046 = vmul.f32 %v6976, %v7042
      %v7047 = vmul.f32 %v6977, %v7042
      %v7048 = vmul.f32 %v6980, %v7042
      %v7049 = vmul.f32 %v6981, %v7042
      %v7050 = vmul.f32 %v6984, %v7042
      %v7051 = vmul.f32 %v6985, %v7042
      %v7052 = vmul.f32 %v6988, %v7042
      %v7053 = vmul.f32 %v6989, %v7042
      %v7054 = vmul.f32 %v6992, %v7042
      %v7055 = vmul.f32 %v6993, %v7042
      %v7056 = vmul.f32 %v6996, %v7042
      %v7057 = vmul.f32 %v6997, %v7042
      %v7058 = vmul.f32 %v7000, %v7042
      %v7059 = vmul.f32 %v7001, %v7042
      %v7060 = vmul.f32 %v7004, %v7042
      %v7061 = vmul.f32 %v7005, %v7042
      %v7062 = vmul.f32 %v7008, %v7042
      %v7063 = vmul.f32 %v7009, %v7042
      %v7064 = vmul.f32 %v7012, %v7042
      %v7065 = vmul.f32 %v7013, %v7042
      %v7066 = vmul.f32 %v7016, %v7042
      %v7067 = vmul.f32 %v7017, %v7042
      %v7068 = vmul.f32 %v7020, %v7042
      %v7069 = vmul.f32 %v7021, %v7042
      %v7070 = vmul.f32 %v7024, %v7042
      %v7071 = vmul.f32 %v7025, %v7042
      %v7072 = vmul.f32 %v7028, %v7042
      %v7073 = vmul.f32 %v7029, %v7042
      %v7074 = vmul.f32 %v7032, %v7042
      %v7075 = vmul.f32 %v7033, %v7042
      %v7076 = vadd.f32 %v6940, %v7044
      %v7077 = vadd.f32 %v6941, %v7045
      %v7078 = vadd.f32 %v6942, %v7046
      %v7079 = vadd.f32 %v6943, %v7047
      %v7080 = vadd.f32 %v6944, %v7048
      %v7081 = vadd.f32 %v6945, %v7049
      %v7082 = vadd.f32 %v6946, %v7050
      %v7083 = vadd.f32 %v6947, %v7051
      %v7084 = vadd.f32 %v6948, %v7052
      %v7085 = vadd.f32 %v6949, %v7053
      %v7086 = vadd.f32 %v6950, %v7054
      %v7087 = vadd.f32 %v6951, %v7055
      %v7088 = vadd.f32 %v6952, %v7056
      %v7089 = vadd.f32 %v6953, %v7057
      %v7090 = vadd.f32 %v6954, %v7058
      %v7091 = vadd.f32 %v6955, %v7059
      %v7092 = vadd.f32 %v6956, %v7060
      %v7093 = vadd.f32 %v6957, %v7061
      %v7094 = vadd.f32 %v6958, %v7062
      %v7095 = vadd.f32 %v6959, %v7063
      %v7096 = vadd.f32 %v6960, %v7064
      %v7097 = vadd.f32 %v6961, %v7065
      %v7098 = vadd.f32 %v6962, %v7066
      %v7099 = vadd.f32 %v6963, %v7067
      %v7100 = vadd.f32 %v6964, %v7068
      %v7101 = vadd.f32 %v6965, %v7069
      %v7102 = vadd.f32 %v6966, %v7070
      %v7103 = vadd.f32 %v6967, %v7071
      %v7104 = vadd.f32 %v6968, %v7072
      %v7105 = vadd.f32 %v6969, %v7073
      %v7106 = vadd.f32 %v6970, %v7074
      %v7107 = vadd.f32 %v6971, %v7075
      %s7108 = scalar_lea.vmem %s1, 31
      %v7109 = vld [vmem:[%s7108] sm:$0x1]
      %v7111 = vlaneseq
      %v7112 = vshrl.u32 %v7111, 7
      %v7113 = vsub.s32 0, %v7112
      %v7114 = vrot.slane %v7109, %v7113
      %v7116 = vmul.f32 %v6972, %v7114
      %v7117 = vmul.f32 %v6973, %v7114
      %v7118 = vmul.f32 %v6974, %v7114
      %v7119 = vmul.f32 %v6976, %v7114
      %v7120 = vmul.f32 %v6977, %v7114
      %v7121 = vmul.f32 %v6978, %v7114
      %v7122 = vmul.f32 %v6980, %v7114
      %v7123 = vmul.f32 %v6981, %v7114
      %v7124 = vmul.f32 %v6982, %v7114
      %v7125 = vmul.f32 %v6984, %v7114
      %v7126 = vmul.f32 %v6985, %v7114
      %v7127 = vmul.f32 %v6986, %v7114
      %v7128 = vmul.f32 %v6988, %v7114
      %v7129 = vmul.f32 %v6989, %v7114
      %v7130 = vmul.f32 %v6990, %v7114
      %v7131 = vmul.f32 %v6992, %v7114
      %v7132 = vmul.f32 %v6993, %v7114
      %v7133 = vmul.f32 %v6994, %v7114
      %v7134 = vmul.f32 %v6996, %v7114
      %v7135 = vmul.f32 %v6997, %v7114
      %v7136 = vmul.f32 %v6998, %v7114
      %v7137 = vmul.f32 %v7000, %v7114
      %v7138 = vmul.f32 %v7001, %v7114
      %v7139 = vmul.f32 %v7002, %v7114
      %v7140 = vmul.f32 %v7004, %v7114
      %v7141 = vmul.f32 %v7005, %v7114
      %v7142 = vmul.f32 %v7006, %v7114
      %v7143 = vmul.f32 %v7008, %v7114
      %v7144 = vmul.f32 %v7009, %v7114
      %v7145 = vmul.f32 %v7010, %v7114
      %v7146 = vmul.f32 %v7012, %v7114
      %v7147 = vmul.f32 %v7013, %v7114
      %v7148 = vmul.f32 %v7014, %v7114
      %v7149 = vmul.f32 %v7016, %v7114
      %v7150 = vmul.f32 %v7017, %v7114
      %v7151 = vmul.f32 %v7018, %v7114
      %v7152 = vmul.f32 %v7020, %v7114
      %v7153 = vmul.f32 %v7021, %v7114
      %v7154 = vmul.f32 %v7022, %v7114
      %v7155 = vmul.f32 %v7024, %v7114
      %v7156 = vmul.f32 %v7025, %v7114
      %v7157 = vmul.f32 %v7026, %v7114
      %v7158 = vmul.f32 %v7028, %v7114
      %v7159 = vmul.f32 %v7029, %v7114
      %v7160 = vmul.f32 %v7030, %v7114
      %v7161 = vmul.f32 %v7032, %v7114
      %v7162 = vmul.f32 %v7033, %v7114
      %v7163 = vmul.f32 %v7034, %v7114
      %v7212 = vrot.slane %v7116, 6
      %v7213 = vrot.slane %v7117, 6
      %v7214 = vsel %vm6579, %v7212, %v7213
      %v7215 = vrot.slane %v7118, 6
      %v7216 = vsel %vm6579, %v7213, %v7215
      %v7217 = vrot.slane %v7119, 6
      %v7218 = vrot.slane %v7120, 6
      %v7219 = vsel %vm6579, %v7217, %v7218
      %v7220 = vrot.slane %v7121, 6
      %v7221 = vsel %vm6579, %v7218, %v7220
      %v7222 = vrot.slane %v7122, 6
      %v7223 = vrot.slane %v7123, 6
      %v7224 = vsel %vm6579, %v7222, %v7223
      %v7225 = vrot.slane %v7124, 6
      %v7226 = vsel %vm6579, %v7223, %v7225
      %v7227 = vrot.slane %v7125, 6
      %v7228 = vrot.slane %v7126, 6
      %v7229 = vsel %vm6579, %v7227, %v7228
      %v7230 = vrot.slane %v7127, 6
      %v7231 = vsel %vm6579, %v7228, %v7230
      %v7232 = vrot.slane %v7128, 6
      %v7233 = vrot.slane %v7129, 6
      %v7234 = vsel %vm6579, %v7232, %v7233
      %v7235 = vrot.slane %v7130, 6
      %v7236 = vsel %vm6579, %v7233, %v7235
      %v7237 = vrot.slane %v7131, 6
      %v7238 = vrot.slane %v7132, 6
      %v7239 = vsel %vm6579, %v7237, %v7238
      %v7240 = vrot.slane %v7133, 6
      %v7241 = vsel %vm6579, %v7238, %v7240
      %v7242 = vrot.slane %v7134, 6
      %v7243 = vrot.slane %v7135, 6
      %v7244 = vsel %vm6579, %v7242, %v7243
      %v7245 = vrot.slane %v7136, 6
      %v7246 = vsel %vm6579, %v7243, %v7245
      %v7247 = vrot.slane %v7137, 6
      %v7248 = vrot.slane %v7138, 6
      %v7249 = vsel %vm6579, %v7247, %v7248
      %v7250 = vrot.slane %v7139, 6
      %v7251 = vsel %vm6579, %v7248, %v7250
      %v7252 = vrot.slane %v7140, 6
      %v7253 = vrot.slane %v7141, 6
      %v7254 = vsel %vm6579, %v7252, %v7253
      %v7255 = vrot.slane %v7142, 6
      %v7256 = vsel %vm6579, %v7253, %v7255
      %v7257 = vrot.slane %v7143, 6
      %v7258 = vrot.slane %v7144, 6
      %v7259 = vsel %vm6579, %v7257, %v7258
      %v7260 = vrot.slane %v7145, 6
      %v7261 = vsel %vm6579, %v7258, %v7260
      %v7262 = vrot.slane %v7146, 6
      %v7263 = vrot.slane %v7147, 6
      %v7264 = vsel %vm6579, %v7262, %v7263
      %v7265 = vrot.slane %v7148, 6
      %v7266 = vsel %vm6579, %v7263, %v7265
      %v7267 = vrot.slane %v7149, 6
      %v7268 = vrot.slane %v7150, 6
      %v7269 = vsel %vm6579, %v7267, %v7268
      %v7270 = vrot.slane %v7151, 6
      %v7271 = vsel %vm6579, %v7268, %v7270
      %v7272 = vrot.slane %v7152, 6
      %v7273 = vrot.slane %v7153, 6
      %v7274 = vsel %vm6579, %v7272, %v7273
      %v7275 = vrot.slane %v7154, 6
      %v7276 = vsel %vm6579, %v7273, %v7275
      %v7277 = vrot.slane %v7155, 6
      %v7278 = vrot.slane %v7156, 6
      %v7279 = vsel %vm6579, %v7277, %v7278
      %v7280 = vrot.slane %v7157, 6
      %v7281 = vsel %vm6579, %v7278, %v7280
      %v7282 = vrot.slane %v7158, 6
      %v7283 = vrot.slane %v7159, 6
      %v7284 = vsel %vm6579, %v7282, %v7283
      %v7285 = vrot.slane %v7160, 6
      %v7286 = vsel %vm6579, %v7283, %v7285
      %v7287 = vrot.slane %v7161, 6
      %v7288 = vrot.slane %v7162, 6
      %v7289 = vsel %vm6579, %v7287, %v7288
      %v7290 = vrot.slane %v7163, 6
      %v7291 = vsel %vm6579, %v7288, %v7290
      %v7324 = vadd.f32 %v7076, %v7214
      %v7325 = vadd.f32 %v7077, %v7216
      %v7326 = vadd.f32 %v7078, %v7219
      %v7327 = vadd.f32 %v7079, %v7221
      %v7328 = vadd.f32 %v7080, %v7224
      %v7329 = vadd.f32 %v7081, %v7226
      %v7330 = vadd.f32 %v7082, %v7229
      %v7331 = vadd.f32 %v7083, %v7231
      %v7332 = vadd.f32 %v7084, %v7234
      %v7333 = vadd.f32 %v7085, %v7236
      %v7334 = vadd.f32 %v7086, %v7239
      %v7335 = vadd.f32 %v7087, %v7241
      %v7336 = vadd.f32 %v7088, %v7244
      %v7337 = vadd.f32 %v7089, %v7246
      %v7338 = vadd.f32 %v7090, %v7249
      %v7339 = vadd.f32 %v7091, %v7251
      %v7340 = vadd.f32 %v7092, %v7254
      %v7341 = vadd.f32 %v7093, %v7256
      %v7342 = vadd.f32 %v7094, %v7259
      %v7343 = vadd.f32 %v7095, %v7261
      %v7344 = vadd.f32 %v7096, %v7264
      %v7345 = vadd.f32 %v7097, %v7266
      %v7346 = vadd.f32 %v7098, %v7269
      %v7347 = vadd.f32 %v7099, %v7271
      %v7348 = vadd.f32 %v7100, %v7274
      %v7349 = vadd.f32 %v7101, %v7276
      %v7350 = vadd.f32 %v7102, %v7279
      %v7351 = vadd.f32 %v7103, %v7281
      %v7352 = vadd.f32 %v7104, %v7284
      %v7353 = vadd.f32 %v7105, %v7286
      %v7354 = vadd.f32 %v7106, %v7289
      %v7355 = vadd.f32 %v7107, %v7291
      %s7356 = scalar_lea.vmem %s1, 32
      %v7357 = vld [vmem:[%s7356] sm:$0x1]
      %v7359 = vlaneseq
      %v7360 = vshrl.u32 %v7359, 7
      %v7361 = vsub.s32 0, %v7360
      %v7362 = vrot.slane %v7357, %v7361
      %v7364 = vmul.f32 %v6973, %v7362
      %v7365 = vmul.f32 %v6974, %v7362
      %v7366 = vmul.f32 %v6975, %v7362
      %v7367 = vmul.f32 %v6977, %v7362
      %v7368 = vmul.f32 %v6978, %v7362
      %v7369 = vmul.f32 %v6979, %v7362
      %v7370 = vmul.f32 %v6981, %v7362
      %v7371 = vmul.f32 %v6982, %v7362
      %v7372 = vmul.f32 %v6983, %v7362
      %v7373 = vmul.f32 %v6985, %v7362
      %v7374 = vmul.f32 %v6986, %v7362
      %v7375 = vmul.f32 %v6987, %v7362
      %v7376 = vmul.f32 %v6989, %v7362
      %v7377 = vmul.f32 %v6990, %v7362
      %v7378 = vmul.f32 %v6991, %v7362
      %v7379 = vmul.f32 %v6993, %v7362
      %v7380 = vmul.f32 %v6994, %v7362
      %v7381 = vmul.f32 %v6995, %v7362
      %v7382 = vmul.f32 %v6997, %v7362
      %v7383 = vmul.f32 %v6998, %v7362
      %v7384 = vmul.f32 %v6999, %v7362
      %v7385 = vmul.f32 %v7001, %v7362
      %v7386 = vmul.f32 %v7002, %v7362
      %v7387 = vmul.f32 %v7003, %v7362
      %v7388 = vmul.f32 %v7005, %v7362
      %v7389 = vmul.f32 %v7006, %v7362
      %v7390 = vmul.f32 %v7007, %v7362
      %v7391 = vmul.f32 %v7009, %v7362
      %v7392 = vmul.f32 %v7010, %v7362
      %v7393 = vmul.f32 %v7011, %v7362
      %v7394 = vmul.f32 %v7013, %v7362
      %v7395 = vmul.f32 %v7014, %v7362
      %v7396 = vmul.f32 %v7015, %v7362
      %v7397 = vmul.f32 %v7017, %v7362
      %v7398 = vmul.f32 %v7018, %v7362
      %v7399 = vmul.f32 %v7019, %v7362
      %v7400 = vmul.f32 %v7021, %v7362
      %v7401 = vmul.f32 %v7022, %v7362
      %v7402 = vmul.f32 %v7023, %v7362
      %v7403 = vmul.f32 %v7025, %v7362
      %v7404 = vmul.f32 %v7026, %v7362
      %v7405 = vmul.f32 %v7027, %v7362
      %v7406 = vmul.f32 %v7029, %v7362
      %v7407 = vmul.f32 %v7030, %v7362
      %v7408 = vmul.f32 %v7031, %v7362
      %v7409 = vmul.f32 %v7033, %v7362
      %v7410 = vmul.f32 %v7034, %v7362
      %v7411 = vmul.f32 %v7035, %v7362
      %v7460 = vrot.slane %v7364, 4
      %v7461 = vrot.slane %v7365, 4
      %v7462 = vsel %vm2952, %v7460, %v7461
      %v7463 = vrot.slane %v7366, 4
      %v7464 = vsel %vm2952, %v7461, %v7463
      %v7465 = vrot.slane %v7367, 4
      %v7466 = vrot.slane %v7368, 4
      %v7467 = vsel %vm2952, %v7465, %v7466
      %v7468 = vrot.slane %v7369, 4
      %v7469 = vsel %vm2952, %v7466, %v7468
      %v7470 = vrot.slane %v7370, 4
      %v7471 = vrot.slane %v7371, 4
      %v7472 = vsel %vm2952, %v7470, %v7471
      %v7473 = vrot.slane %v7372, 4
      %v7474 = vsel %vm2952, %v7471, %v7473
      %v7475 = vrot.slane %v7373, 4
      %v7476 = vrot.slane %v7374, 4
      %v7477 = vsel %vm2952, %v7475, %v7476
      %v7478 = vrot.slane %v7375, 4
      %v7479 = vsel %vm2952, %v7476, %v7478
      %v7480 = vrot.slane %v7376, 4
      %v7481 = vrot.slane %v7377, 4
      %v7482 = vsel %vm2952, %v7480, %v7481
      %v7483 = vrot.slane %v7378, 4
      %v7484 = vsel %vm2952, %v7481, %v7483
      %v7485 = vrot.slane %v7379, 4
      %v7486 = vrot.slane %v7380, 4
      %v7487 = vsel %vm2952, %v7485, %v7486
      %v7488 = vrot.slane %v7381, 4
      %v7489 = vsel %vm2952, %v7486, %v7488
      %v7490 = vrot.slane %v7382, 4
      %v7491 = vrot.slane %v7383, 4
      %v7492 = vsel %vm2952, %v7490, %v7491
      %v7493 = vrot.slane %v7384, 4
      %v7494 = vsel %vm2952, %v7491, %v7493
      %v7495 = vrot.slane %v7385, 4
      %v7496 = vrot.slane %v7386, 4
      %v7497 = vsel %vm2952, %v7495, %v7496
      %v7498 = vrot.slane %v7387, 4
      %v7499 = vsel %vm2952, %v7496, %v7498
      %v7500 = vrot.slane %v7388, 4
      %v7501 = vrot.slane %v7389, 4
      %v7502 = vsel %vm2952, %v7500, %v7501
      %v7503 = vrot.slane %v7390, 4
      %v7504 = vsel %vm2952, %v7501, %v7503
      %v7505 = vrot.slane %v7391, 4
      %v7506 = vrot.slane %v7392, 4
      %v7507 = vsel %vm2952, %v7505, %v7506
      %v7508 = vrot.slane %v7393, 4
      %v7509 = vsel %vm2952, %v7506, %v7508
      %v7510 = vrot.slane %v7394, 4
      %v7511 = vrot.slane %v7395, 4
      %v7512 = vsel %vm2952, %v7510, %v7511
      %v7513 = vrot.slane %v7396, 4
      %v7514 = vsel %vm2952, %v7511, %v7513
      %v7515 = vrot.slane %v7397, 4
      %v7516 = vrot.slane %v7398, 4
      %v7517 = vsel %vm2952, %v7515, %v7516
      %v7518 = vrot.slane %v7399, 4
      %v7519 = vsel %vm2952, %v7516, %v7518
      %v7520 = vrot.slane %v7400, 4
      %v7521 = vrot.slane %v7401, 4
      %v7522 = vsel %vm2952, %v7520, %v7521
      %v7523 = vrot.slane %v7402, 4
      %v7524 = vsel %vm2952, %v7521, %v7523
      %v7525 = vrot.slane %v7403, 4
      %v7526 = vrot.slane %v7404, 4
      %v7527 = vsel %vm2952, %v7525, %v7526
      %v7528 = vrot.slane %v7405, 4
      %v7529 = vsel %vm2952, %v7526, %v7528
      %v7530 = vrot.slane %v7406, 4
      %v7531 = vrot.slane %v7407, 4
      %v7532 = vsel %vm2952, %v7530, %v7531
      %v7533 = vrot.slane %v7408, 4
      %v7534 = vsel %vm2952, %v7531, %v7533
      %v7535 = vrot.slane %v7409, 4
      %v7536 = vrot.slane %v7410, 4
      %v7537 = vsel %vm2952, %v7535, %v7536
      %v7538 = vrot.slane %v7411, 4
      %v7539 = vsel %vm2952, %v7536, %v7538
      %v7572 = vadd.f32 %v7324, %v7462
      %v7573 = vadd.f32 %v7325, %v7464
      %v7574 = vadd.f32 %v7326, %v7467
      %v7575 = vadd.f32 %v7327, %v7469
      %v7576 = vadd.f32 %v7328, %v7472
      %v7577 = vadd.f32 %v7329, %v7474
      %v7578 = vadd.f32 %v7330, %v7477
      %v7579 = vadd.f32 %v7331, %v7479
      %v7580 = vadd.f32 %v7332, %v7482
      %v7581 = vadd.f32 %v7333, %v7484
      %v7582 = vadd.f32 %v7334, %v7487
      %v7583 = vadd.f32 %v7335, %v7489
      %v7584 = vadd.f32 %v7336, %v7492
      %v7585 = vadd.f32 %v7337, %v7494
      %v7586 = vadd.f32 %v7338, %v7497
      %v7587 = vadd.f32 %v7339, %v7499
      %v7588 = vadd.f32 %v7340, %v7502
      %v7589 = vadd.f32 %v7341, %v7504
      %v7590 = vadd.f32 %v7342, %v7507
      %v7591 = vadd.f32 %v7343, %v7509
      %v7592 = vadd.f32 %v7344, %v7512
      %v7593 = vadd.f32 %v7345, %v7514
      %v7594 = vadd.f32 %v7346, %v7517
      %v7595 = vadd.f32 %v7347, %v7519
      %v7596 = vadd.f32 %v7348, %v7522
      %v7597 = vadd.f32 %v7349, %v7524
      %v7598 = vadd.f32 %v7350, %v7527
      %v7599 = vadd.f32 %v7351, %v7529
      %v7600 = vadd.f32 %v7352, %v7532
      %v7601 = vadd.f32 %v7353, %v7534
      %v7602 = vadd.f32 %v7354, %v7537
      %v7603 = vadd.f32 %v7355, %v7539
      %s7604 = scalar_lea.vmem [#allocation2], 384
      %v7605 = vld [vmem:[%s7604] sm:$0xff]
      %v7606 = vld [vmem:[%s7604 + $0x8] sm:$0xff]
      %v7607 = vld [vmem:[%s7604 + $0x10] sm:$0xff]
      %v7608 = vld [vmem:[%s7604 + $0x18] sm:$0xf]
      %v7609 = vld [vmem:[%s7604 + $0x20] sm:$0xff]
      %v7610 = vld [vmem:[%s7604 + $0x28] sm:$0xff]
      %v7611 = vld [vmem:[%s7604 + $0x30] sm:$0xff]
      %v7612 = vld [vmem:[%s7604 + $0x38] sm:$0xf]
      %v7613 = vld [vmem:[%s7604 + $0x40] sm:$0xff]
      %v7614 = vld [vmem:[%s7604 + $0x48] sm:$0xff]
      %v7615 = vld [vmem:[%s7604 + $0x50] sm:$0xff]
      %v7616 = vld [vmem:[%s7604 + $0x58] sm:$0xf]
      %v7617 = vld [vmem:[%s7604 + $0x60] sm:$0xff]
      %v7618 = vld [vmem:[%s7604 + $0x68] sm:$0xff]
      %v7619 = vld [vmem:[%s7604 + $0x70] sm:$0xff]
      %v7620 = vld [vmem:[%s7604 + $0x78] sm:$0xf]
      %v7621 = vld [vmem:[%s7604 + $0x80] sm:$0xff]
      %v7622 = vld [vmem:[%s7604 + $0x88] sm:$0xff]
      %v7623 = vld [vmem:[%s7604 + $0x90] sm:$0xff]
      %v7624 = vld [vmem:[%s7604 + $0x98] sm:$0xf]
      %v7625 = vld [vmem:[%s7604 + $0xa0] sm:$0xff]
      %v7626 = vld [vmem:[%s7604 + $0xa8] sm:$0xff]
      %v7627 = vld [vmem:[%s7604 + $0xb0] sm:$0xff]
      %v7628 = vld [vmem:[%s7604 + $0xb8] sm:$0xf]
      %v7629 = vld [vmem:[%s7604 + $0xc0] sm:$0xff]
      %v7630 = vld [vmem:[%s7604 + $0xc8] sm:$0xff]
      %v7631 = vld [vmem:[%s7604 + $0xd0] sm:$0xff]
      %v7632 = vld [vmem:[%s7604 + $0xd8] sm:$0xf]
      %v7633 = vld [vmem:[%s7604 + $0xe0] sm:$0xff]
      %v7634 = vld [vmem:[%s7604 + $0xe8] sm:$0xff]
      %v7635 = vld [vmem:[%s7604 + $0xf0] sm:$0xff]
      %v7636 = vld [vmem:[%s7604 + $0xf8] sm:$0xf]
      %v7637 = vld [vmem:[%s7604 + $0x100] sm:$0xff]
      %v7638 = vld [vmem:[%s7604 + $0x108] sm:$0xff]
      %v7639 = vld [vmem:[%s7604 + $0x110] sm:$0xff]
      %v7640 = vld [vmem:[%s7604 + $0x118] sm:$0xf]
      %v7641 = vld [vmem:[%s7604 + $0x120] sm:$0xff]
      %v7642 = vld [vmem:[%s7604 + $0x128] sm:$0xff]
      %v7643 = vld [vmem:[%s7604 + $0x130] sm:$0xff]
      %v7644 = vld [vmem:[%s7604 + $0x138] sm:$0xf]
      %v7645 = vld [vmem:[%s7604 + $0x140] sm:$0xff]
      %v7646 = vld [vmem:[%s7604 + $0x148] sm:$0xff]
      %v7647 = vld [vmem:[%s7604 + $0x150] sm:$0xff]
      %v7648 = vld [vmem:[%s7604 + $0x158] sm:$0xf]
      %v7649 = vld [vmem:[%s7604 + $0x160] sm:$0xff]
      %v7650 = vld [vmem:[%s7604 + $0x168] sm:$0xff]
      %v7651 = vld [vmem:[%s7604 + $0x170] sm:$0xff]
      %v7652 = vld [vmem:[%s7604 + $0x178] sm:$0xf]
      %v7653 = vld [vmem:[%s7604 + $0x180] sm:$0xff]
      %v7654 = vld [vmem:[%s7604 + $0x188] sm:$0xff]
      %v7655 = vld [vmem:[%s7604 + $0x190] sm:$0xff]
      %v7656 = vld [vmem:[%s7604 + $0x198] sm:$0xf]
      %v7657 = vld [vmem:[%s7604 + $0x1a0] sm:$0xff]
      %v7658 = vld [vmem:[%s7604 + $0x1a8] sm:$0xff]
      %v7659 = vld [vmem:[%s7604 + $0x1b0] sm:$0xff]
      %v7660 = vld [vmem:[%s7604 + $0x1b8] sm:$0xf]
      %v7661 = vld [vmem:[%s7604 + $0x1c0] sm:$0xff]
      %v7662 = vld [vmem:[%s7604 + $0x1c8] sm:$0xff]
      %v7663 = vld [vmem:[%s7604 + $0x1d0] sm:$0xff]
      %v7664 = vld [vmem:[%s7604 + $0x1d8] sm:$0xf]
      %v7665 = vld [vmem:[%s7604 + $0x1e0] sm:$0xff]
      %v7666 = vld [vmem:[%s7604 + $0x1e8] sm:$0xff]
      %v7667 = vld [vmem:[%s7604 + $0x1f0] sm:$0xff]
      %v7668 = vld [vmem:[%s7604 + $0x1f8] sm:$0xf]
      %s7669 = scalar_lea.vmem %s1, 33
      %v7670 = vld [vmem:[%s7669] sm:$0x1]
      %v7672 = vlaneseq
      %v7673 = vshrl.u32 %v7672, 7
      %v7674 = vsub.s32 0, %v7673
      %v7675 = vrot.slane %v7670, %v7674
      %v7677 = vmul.f32 %v7605, %v7675
      %v7678 = vmul.f32 %v7606, %v7675
      %v7679 = vmul.f32 %v7609, %v7675
      %v7680 = vmul.f32 %v7610, %v7675
      %v7681 = vmul.f32 %v7613, %v7675
      %v7682 = vmul.f32 %v7614, %v7675
      %v7683 = vmul.f32 %v7617, %v7675
      %v7684 = vmul.f32 %v7618, %v7675
      %v7685 = vmul.f32 %v7621, %v7675
      %v7686 = vmul.f32 %v7622, %v7675
      %v7687 = vmul.f32 %v7625, %v7675
      %v7688 = vmul.f32 %v7626, %v7675
      %v7689 = vmul.f32 %v7629, %v7675
      %v7690 = vmul.f32 %v7630, %v7675
      %v7691 = vmul.f32 %v7633, %v7675
      %v7692 = vmul.f32 %v7634, %v7675
      %v7693 = vmul.f32 %v7637, %v7675
      %v7694 = vmul.f32 %v7638, %v7675
      %v7695 = vmul.f32 %v7641, %v7675
      %v7696 = vmul.f32 %v7642, %v7675
      %v7697 = vmul.f32 %v7645, %v7675
      %v7698 = vmul.f32 %v7646, %v7675
      %v7699 = vmul.f32 %v7649, %v7675
      %v7700 = vmul.f32 %v7650, %v7675
      %v7701 = vmul.f32 %v7653, %v7675
      %v7702 = vmul.f32 %v7654, %v7675
      %v7703 = vmul.f32 %v7657, %v7675
      %v7704 = vmul.f32 %v7658, %v7675
      %v7705 = vmul.f32 %v7661, %v7675
      %v7706 = vmul.f32 %v7662, %v7675
      %v7707 = vmul.f32 %v7665, %v7675
      %v7708 = vmul.f32 %v7666, %v7675
      %v7709 = vadd.f32 %v7572, %v7677
      %v7710 = vadd.f32 %v7573, %v7678
      %v7711 = vadd.f32 %v7574, %v7679
      %v7712 = vadd.f32 %v7575, %v7680
      %v7713 = vadd.f32 %v7576, %v7681
      %v7714 = vadd.f32 %v7577, %v7682
      %v7715 = vadd.f32 %v7578, %v7683
      %v7716 = vadd.f32 %v7579, %v7684
      %v7717 = vadd.f32 %v7580, %v7685
      %v7718 = vadd.f32 %v7581, %v7686
      %v7719 = vadd.f32 %v7582, %v7687
      %v7720 = vadd.f32 %v7583, %v7688
      %v7721 = vadd.f32 %v7584, %v7689
      %v7722 = vadd.f32 %v7585, %v7690
      %v7723 = vadd.f32 %v7586, %v7691
      %v7724 = vadd.f32 %v7587, %v7692
      %v7725 = vadd.f32 %v7588, %v7693
      %v7726 = vadd.f32 %v7589, %v7694
      %v7727 = vadd.f32 %v7590, %v7695
      %v7728 = vadd.f32 %v7591, %v7696
      %v7729 = vadd.f32 %v7592, %v7697
      %v7730 = vadd.f32 %v7593, %v7698
      %v7731 = vadd.f32 %v7594, %v7699
      %v7732 = vadd.f32 %v7595, %v7700
      %v7733 = vadd.f32 %v7596, %v7701
      %v7734 = vadd.f32 %v7597, %v7702
      %v7735 = vadd.f32 %v7598, %v7703
      %v7736 = vadd.f32 %v7599, %v7704
      %v7737 = vadd.f32 %v7600, %v7705
      %v7738 = vadd.f32 %v7601, %v7706
      %v7739 = vadd.f32 %v7602, %v7707
      %v7740 = vadd.f32 %v7603, %v7708
      %s7741 = scalar_lea.vmem %s1, 34
      %v7742 = vld [vmem:[%s7741] sm:$0x1]
      %v7744 = vlaneseq
      %v7745 = vshrl.u32 %v7744, 7
      %v7746 = vsub.s32 0, %v7745
      %v7747 = vrot.slane %v7742, %v7746
      %v7749 = vmul.f32 %v7605, %v7747
      %v7750 = vmul.f32 %v7606, %v7747
      %v7751 = vmul.f32 %v7607, %v7747
      %v7752 = vmul.f32 %v7609, %v7747
      %v7753 = vmul.f32 %v7610, %v7747
      %v7754 = vmul.f32 %v7611, %v7747
      %v7755 = vmul.f32 %v7613, %v7747
      %v7756 = vmul.f32 %v7614, %v7747
      %v7757 = vmul.f32 %v7615, %v7747
      %v7758 = vmul.f32 %v7617, %v7747
      %v7759 = vmul.f32 %v7618, %v7747
      %v7760 = vmul.f32 %v7619, %v7747
      %v7761 = vmul.f32 %v7621, %v7747
      %v7762 = vmul.f32 %v7622, %v7747
      %v7763 = vmul.f32 %v7623, %v7747
      %v7764 = vmul.f32 %v7625, %v7747
      %v7765 = vmul.f32 %v7626, %v7747
      %v7766 = vmul.f32 %v7627, %v7747
      %v7767 = vmul.f32 %v7629, %v7747
      %v7768 = vmul.f32 %v7630, %v7747
      %v7769 = vmul.f32 %v7631, %v7747
      %v7770 = vmul.f32 %v7633, %v7747
      %v7771 = vmul.f32 %v7634, %v7747
      %v7772 = vmul.f32 %v7635, %v7747
      %v7773 = vmul.f32 %v7637, %v7747
      %v7774 = vmul.f32 %v7638, %v7747
      %v7775 = vmul.f32 %v7639, %v7747
      %v7776 = vmul.f32 %v7641, %v7747
      %v7777 = vmul.f32 %v7642, %v7747
      %v7778 = vmul.f32 %v7643, %v7747
      %v7779 = vmul.f32 %v7645, %v7747
      %v7780 = vmul.f32 %v7646, %v7747
      %v7781 = vmul.f32 %v7647, %v7747
      %v7782 = vmul.f32 %v7649, %v7747
      %v7783 = vmul.f32 %v7650, %v7747
      %v7784 = vmul.f32 %v7651, %v7747
      %v7785 = vmul.f32 %v7653, %v7747
      %v7786 = vmul.f32 %v7654, %v7747
      %v7787 = vmul.f32 %v7655, %v7747
      %v7788 = vmul.f32 %v7657, %v7747
      %v7789 = vmul.f32 %v7658, %v7747
      %v7790 = vmul.f32 %v7659, %v7747
      %v7791 = vmul.f32 %v7661, %v7747
      %v7792 = vmul.f32 %v7662, %v7747
      %v7793 = vmul.f32 %v7663, %v7747
      %v7794 = vmul.f32 %v7665, %v7747
      %v7795 = vmul.f32 %v7666, %v7747
      %v7796 = vmul.f32 %v7667, %v7747
      %v7845 = vrot.slane %v7749, 6
      %v7846 = vrot.slane %v7750, 6
      %v7847 = vsel %vm6579, %v7845, %v7846
      %v7848 = vrot.slane %v7751, 6
      %v7849 = vsel %vm6579, %v7846, %v7848
      %v7850 = vrot.slane %v7752, 6
      %v7851 = vrot.slane %v7753, 6
      %v7852 = vsel %vm6579, %v7850, %v7851
      %v7853 = vrot.slane %v7754, 6
      %v7854 = vsel %vm6579, %v7851, %v7853
      %v7855 = vrot.slane %v7755, 6
      %v7856 = vrot.slane %v7756, 6
      %v7857 = vsel %vm6579, %v7855, %v7856
      %v7858 = vrot.slane %v7757, 6
      %v7859 = vsel %vm6579, %v7856, %v7858
      %v7860 = vrot.slane %v7758, 6
      %v7861 = vrot.slane %v7759, 6
      %v7862 = vsel %vm6579, %v7860, %v7861
      %v7863 = vrot.slane %v7760, 6
      %v7864 = vsel %vm6579, %v7861, %v7863
      %v7865 = vrot.slane %v7761, 6
      %v7866 = vrot.slane %v7762, 6
      %v7867 = vsel %vm6579, %v7865, %v7866
      %v7868 = vrot.slane %v7763, 6
      %v7869 = vsel %vm6579, %v7866, %v7868
      %v7870 = vrot.slane %v7764, 6
      %v7871 = vrot.slane %v7765, 6
      %v7872 = vsel %vm6579, %v7870, %v7871
      %v7873 = vrot.slane %v7766, 6
      %v7874 = vsel %vm6579, %v7871, %v7873
      %v7875 = vrot.slane %v7767, 6
      %v7876 = vrot.slane %v7768, 6
      %v7877 = vsel %vm6579, %v7875, %v7876
      %v7878 = vrot.slane %v7769, 6
      %v7879 = vsel %vm6579, %v7876, %v7878
      %v7880 = vrot.slane %v7770, 6
      %v7881 = vrot.slane %v7771, 6
      %v7882 = vsel %vm6579, %v7880, %v7881
      %v7883 = vrot.slane %v7772, 6
      %v7884 = vsel %vm6579, %v7881, %v7883
      %v7885 = vrot.slane %v7773, 6
      %v7886 = vrot.slane %v7774, 6
      %v7887 = vsel %vm6579, %v7885, %v7886
      %v7888 = vrot.slane %v7775, 6
      %v7889 = vsel %vm6579, %v7886, %v7888
      %v7890 = vrot.slane %v7776, 6
      %v7891 = vrot.slane %v7777, 6
      %v7892 = vsel %vm6579, %v7890, %v7891
      %v7893 = vrot.slane %v7778, 6
      %v7894 = vsel %vm6579, %v7891, %v7893
      %v7895 = vrot.slane %v7779, 6
      %v7896 = vrot.slane %v7780, 6
      %v7897 = vsel %vm6579, %v7895, %v7896
      %v7898 = vrot.slane %v7781, 6
      %v7899 = vsel %vm6579, %v7896, %v7898
      %v7900 = vrot.slane %v7782, 6
      %v7901 = vrot.slane %v7783, 6
      %v7902 = vsel %vm6579, %v7900, %v7901
      %v7903 = vrot.slane %v7784, 6
      %v7904 = vsel %vm6579, %v7901, %v7903
      %v7905 = vrot.slane %v7785, 6
      %v7906 = vrot.slane %v7786, 6
      %v7907 = vsel %vm6579, %v7905, %v7906
      %v7908 = vrot.slane %v7787, 6
      %v7909 = vsel %vm6579, %v7906, %v7908
      %v7910 = vrot.slane %v7788, 6
      %v7911 = vrot.slane %v7789, 6
      %v7912 = vsel %vm6579, %v7910, %v7911
      %v7913 = vrot.slane %v7790, 6
      %v7914 = vsel %vm6579, %v7911, %v7913
      %v7915 = vrot.slane %v7791, 6
      %v7916 = vrot.slane %v7792, 6
      %v7917 = vsel %vm6579, %v7915, %v7916
      %v7918 = vrot.slane %v7793, 6
      %v7919 = vsel %vm6579, %v7916, %v7918
      %v7920 = vrot.slane %v7794, 6
      %v7921 = vrot.slane %v7795, 6
      %v7922 = vsel %vm6579, %v7920, %v7921
      %v7923 = vrot.slane %v7796, 6
      %v7924 = vsel %vm6579, %v7921, %v7923
      %v7957 = vadd.f32 %v7709, %v7847
      %v7958 = vadd.f32 %v7710, %v7849
      %v7959 = vadd.f32 %v7711, %v7852
      %v7960 = vadd.f32 %v7712, %v7854
      %v7961 = vadd.f32 %v7713, %v7857
      %v7962 = vadd.f32 %v7714, %v7859
      %v7963 = vadd.f32 %v7715, %v7862
      %v7964 = vadd.f32 %v7716, %v7864
      %v7965 = vadd.f32 %v7717, %v7867
      %v7966 = vadd.f32 %v7718, %v7869
      %v7967 = vadd.f32 %v7719, %v7872
      %v7968 = vadd.f32 %v7720, %v7874
      %v7969 = vadd.f32 %v7721, %v7877
      %v7970 = vadd.f32 %v7722, %v7879
      %v7971 = vadd.f32 %v7723, %v7882
      %v7972 = vadd.f32 %v7724, %v7884
      %v7973 = vadd.f32 %v7725, %v7887
      %v7974 = vadd.f32 %v7726, %v7889
      %v7975 = vadd.f32 %v7727, %v7892
      %v7976 = vadd.f32 %v7728, %v7894
      %v7977 = vadd.f32 %v7729, %v7897
      %v7978 = vadd.f32 %v7730, %v7899
      %v7979 = vadd.f32 %v7731, %v7902
      %v7980 = vadd.f32 %v7732, %v7904
      %v7981 = vadd.f32 %v7733, %v7907
      %v7982 = vadd.f32 %v7734, %v7909
      %v7983 = vadd.f32 %v7735, %v7912
      %v7984 = vadd.f32 %v7736, %v7914
      %v7985 = vadd.f32 %v7737, %v7917
      %v7986 = vadd.f32 %v7738, %v7919
      %v7987 = vadd.f32 %v7739, %v7922
      %v7988 = vadd.f32 %v7740, %v7924
      %s7989 = scalar_lea.vmem %s1, 35
      %v7990 = vld [vmem:[%s7989] sm:$0x1]
      %v7992 = vlaneseq
      %v7993 = vshrl.u32 %v7992, 7
      %v7994 = vsub.s32 0, %v7993
      %v7995 = vrot.slane %v7990, %v7994
      %v7997 = vmul.f32 %v7606, %v7995
      %v7998 = vmul.f32 %v7607, %v7995
      %v7999 = vmul.f32 %v7608, %v7995
      %v8000 = vmul.f32 %v7610, %v7995
      %v8001 = vmul.f32 %v7611, %v7995
      %v8002 = vmul.f32 %v7612, %v7995
      %v8003 = vmul.f32 %v7614, %v7995
      %v8004 = vmul.f32 %v7615, %v7995
      %v8005 = vmul.f32 %v7616, %v7995
      %v8006 = vmul.f32 %v7618, %v7995
      %v8007 = vmul.f32 %v7619, %v7995
      %v8008 = vmul.f32 %v7620, %v7995
      %v8009 = vmul.f32 %v7622, %v7995
      %v8010 = vmul.f32 %v7623, %v7995
      %v8011 = vmul.f32 %v7624, %v7995
      %v8012 = vmul.f32 %v7626, %v7995
      %v8013 = vmul.f32 %v7627, %v7995
      %v8014 = vmul.f32 %v7628, %v7995
      %v8015 = vmul.f32 %v7630, %v7995
      %v8016 = vmul.f32 %v7631, %v7995
      %v8017 = vmul.f32 %v7632, %v7995
      %v8018 = vmul.f32 %v7634, %v7995
      %v8019 = vmul.f32 %v7635, %v7995
      %v8020 = vmul.f32 %v7636, %v7995
      %v8021 = vmul.f32 %v7638, %v7995
      %v8022 = vmul.f32 %v7639, %v7995
      %v8023 = vmul.f32 %v7640, %v7995
      %v8024 = vmul.f32 %v7642, %v7995
      %v8025 = vmul.f32 %v7643, %v7995
      %v8026 = vmul.f32 %v7644, %v7995
      %v8027 = vmul.f32 %v7646, %v7995
      %v8028 = vmul.f32 %v7647, %v7995
      %v8029 = vmul.f32 %v7648, %v7995
      %v8030 = vmul.f32 %v7650, %v7995
      %v8031 = vmul.f32 %v7651, %v7995
      %v8032 = vmul.f32 %v7652, %v7995
      %v8033 = vmul.f32 %v7654, %v7995
      %v8034 = vmul.f32 %v7655, %v7995
      %v8035 = vmul.f32 %v7656, %v7995
      %v8036 = vmul.f32 %v7658, %v7995
      %v8037 = vmul.f32 %v7659, %v7995
      %v8038 = vmul.f32 %v7660, %v7995
      %v8039 = vmul.f32 %v7662, %v7995
      %v8040 = vmul.f32 %v7663, %v7995
      %v8041 = vmul.f32 %v7664, %v7995
      %v8042 = vmul.f32 %v7666, %v7995
      %v8043 = vmul.f32 %v7667, %v7995
      %v8044 = vmul.f32 %v7668, %v7995
      %v8093 = vrot.slane %v7997, 4
      %v8094 = vrot.slane %v7998, 4
      %v8095 = vsel %vm2952, %v8093, %v8094
      %v8096 = vrot.slane %v7999, 4
      %v8097 = vsel %vm2952, %v8094, %v8096
      %v8098 = vrot.slane %v8000, 4
      %v8099 = vrot.slane %v8001, 4
      %v8100 = vsel %vm2952, %v8098, %v8099
      %v8101 = vrot.slane %v8002, 4
      %v8102 = vsel %vm2952, %v8099, %v8101
      %v8103 = vrot.slane %v8003, 4
      %v8104 = vrot.slane %v8004, 4
      %v8105 = vsel %vm2952, %v8103, %v8104
      %v8106 = vrot.slane %v8005, 4
      %v8107 = vsel %vm2952, %v8104, %v8106
      %v8108 = vrot.slane %v8006, 4
      %v8109 = vrot.slane %v8007, 4
      %v8110 = vsel %vm2952, %v8108, %v8109
      %v8111 = vrot.slane %v8008, 4
      %v8112 = vsel %vm2952, %v8109, %v8111
      %v8113 = vrot.slane %v8009, 4
      %v8114 = vrot.slane %v8010, 4
      %v8115 = vsel %vm2952, %v8113, %v8114
      %v8116 = vrot.slane %v8011, 4
      %v8117 = vsel %vm2952, %v8114, %v8116
      %v8118 = vrot.slane %v8012, 4
      %v8119 = vrot.slane %v8013, 4
      %v8120 = vsel %vm2952, %v8118, %v8119
      %v8121 = vrot.slane %v8014, 4
      %v8122 = vsel %vm2952, %v8119, %v8121
      %v8123 = vrot.slane %v8015, 4
      %v8124 = vrot.slane %v8016, 4
      %v8125 = vsel %vm2952, %v8123, %v8124
      %v8126 = vrot.slane %v8017, 4
      %v8127 = vsel %vm2952, %v8124, %v8126
      %v8128 = vrot.slane %v8018, 4
      %v8129 = vrot.slane %v8019, 4
      %v8130 = vsel %vm2952, %v8128, %v8129
      %v8131 = vrot.slane %v8020, 4
      %v8132 = vsel %vm2952, %v8129, %v8131
      %v8133 = vrot.slane %v8021, 4
      %v8134 = vrot.slane %v8022, 4
      %v8135 = vsel %vm2952, %v8133, %v8134
      %v8136 = vrot.slane %v8023, 4
      %v8137 = vsel %vm2952, %v8134, %v8136
      %v8138 = vrot.slane %v8024, 4
      %v8139 = vrot.slane %v8025, 4
      %v8140 = vsel %vm2952, %v8138, %v8139
      %v8141 = vrot.slane %v8026, 4
      %v8142 = vsel %vm2952, %v8139, %v8141
      %v8143 = vrot.slane %v8027, 4
      %v8144 = vrot.slane %v8028, 4
      %v8145 = vsel %vm2952, %v8143, %v8144
      %v8146 = vrot.slane %v8029, 4
      %v8147 = vsel %vm2952, %v8144, %v8146
      %v8148 = vrot.slane %v8030, 4
      %v8149 = vrot.slane %v8031, 4
      %v8150 = vsel %vm2952, %v8148, %v8149
      %v8151 = vrot.slane %v8032, 4
      %v8152 = vsel %vm2952, %v8149, %v8151
      %v8153 = vrot.slane %v8033, 4
      %v8154 = vrot.slane %v8034, 4
      %v8155 = vsel %vm2952, %v8153, %v8154
      %v8156 = vrot.slane %v8035, 4
      %v8157 = vsel %vm2952, %v8154, %v8156
      %v8158 = vrot.slane %v8036, 4
      %v8159 = vrot.slane %v8037, 4
      %v8160 = vsel %vm2952, %v8158, %v8159
      %v8161 = vrot.slane %v8038, 4
      %v8162 = vsel %vm2952, %v8159, %v8161
      %v8163 = vrot.slane %v8039, 4
      %v8164 = vrot.slane %v8040, 4
      %v8165 = vsel %vm2952, %v8163, %v8164
      %v8166 = vrot.slane %v8041, 4
      %v8167 = vsel %vm2952, %v8164, %v8166
      %v8168 = vrot.slane %v8042, 4
      %v8169 = vrot.slane %v8043, 4
      %v8170 = vsel %vm2952, %v8168, %v8169
      %v8171 = vrot.slane %v8044, 4
      %v8172 = vsel %vm2952, %v8169, %v8171
      %v8205 = vadd.f32 %v7957, %v8095
      %v8206 = vadd.f32 %v7958, %v8097
      %v8207 = vadd.f32 %v7959, %v8100
      %v8208 = vadd.f32 %v7960, %v8102
      %v8209 = vadd.f32 %v7961, %v8105
      %v8210 = vadd.f32 %v7962, %v8107
      %v8211 = vadd.f32 %v7963, %v8110
      %v8212 = vadd.f32 %v7964, %v8112
      %v8213 = vadd.f32 %v7965, %v8115
      %v8214 = vadd.f32 %v7966, %v8117
      %v8215 = vadd.f32 %v7967, %v8120
      %v8216 = vadd.f32 %v7968, %v8122
      %v8217 = vadd.f32 %v7969, %v8125
      %v8218 = vadd.f32 %v7970, %v8127
      %v8219 = vadd.f32 %v7971, %v8130
      %v8220 = vadd.f32 %v7972, %v8132
      %v8221 = vadd.f32 %v7973, %v8135
      %v8222 = vadd.f32 %v7974, %v8137
      %v8223 = vadd.f32 %v7975, %v8140
      %v8224 = vadd.f32 %v7976, %v8142
      %v8225 = vadd.f32 %v7977, %v8145
      %v8226 = vadd.f32 %v7978, %v8147
      %v8227 = vadd.f32 %v7979, %v8150
      %v8228 = vadd.f32 %v7980, %v8152
      %v8229 = vadd.f32 %v7981, %v8155
      %v8230 = vadd.f32 %v7982, %v8157
      %v8231 = vadd.f32 %v7983, %v8160
      %v8232 = vadd.f32 %v7984, %v8162
      %v8233 = vadd.f32 %v7985, %v8165
      %v8234 = vadd.f32 %v7986, %v8167
      %v8235 = vadd.f32 %v7987, %v8170
      %v8236 = vadd.f32 %v7988, %v8172
      %s8237 = scalar_lea.vmem %s3, 3
      %v8238 = vld [vmem:[%s8237] sm:$0x1]
      %vm8239 = vcmp.ge.f32.partialorder %v8205, 0.0
      %vm8240 = vcmp.ge.f32.partialorder %v8206, 0.0
      %vm8241 = vcmp.ge.f32.partialorder %v8207, 0.0
      %vm8242 = vcmp.ge.f32.partialorder %v8208, 0.0
      %vm8243 = vcmp.ge.f32.partialorder %v8209, 0.0
      %vm8244 = vcmp.ge.f32.partialorder %v8210, 0.0
      %vm8245 = vcmp.ge.f32.partialorder %v8211, 0.0
      %vm8246 = vcmp.ge.f32.partialorder %v8212, 0.0
      %vm8247 = vcmp.ge.f32.partialorder %v8213, 0.0
      %vm8248 = vcmp.ge.f32.partialorder %v8214, 0.0
      %vm8249 = vcmp.ge.f32.partialorder %v8215, 0.0
      %vm8250 = vcmp.ge.f32.partialorder %v8216, 0.0
      %vm8251 = vcmp.ge.f32.partialorder %v8217, 0.0
      %vm8252 = vcmp.ge.f32.partialorder %v8218, 0.0
      %vm8253 = vcmp.ge.f32.partialorder %v8219, 0.0
      %vm8254 = vcmp.ge.f32.partialorder %v8220, 0.0
      %vm8255 = vcmp.ge.f32.partialorder %v8221, 0.0
      %vm8256 = vcmp.ge.f32.partialorder %v8222, 0.0
      %vm8257 = vcmp.ge.f32.partialorder %v8223, 0.0
      %vm8258 = vcmp.ge.f32.partialorder %v8224, 0.0
      %vm8259 = vcmp.ge.f32.partialorder %v8225, 0.0
      %vm8260 = vcmp.ge.f32.partialorder %v8226, 0.0
      %vm8261 = vcmp.ge.f32.partialorder %v8227, 0.0
      %vm8262 = vcmp.ge.f32.partialorder %v8228, 0.0
      %vm8263 = vcmp.ge.f32.partialorder %v8229, 0.0
      %vm8264 = vcmp.ge.f32.partialorder %v8230, 0.0
      %vm8265 = vcmp.ge.f32.partialorder %v8231, 0.0
      %vm8266 = vcmp.ge.f32.partialorder %v8232, 0.0
      %vm8267 = vcmp.ge.f32.partialorder %v8233, 0.0
      %vm8268 = vcmp.ge.f32.partialorder %v8234, 0.0
      %vm8269 = vcmp.ge.f32.partialorder %v8235, 0.0
      %vm8270 = vcmp.ge.f32.partialorder %v8236, 0.0
      %v8272 = vlaneseq
      %v8273 = vshrl.u32 %v8272, 7
      %v8274 = vsub.s32 0, %v8273
      %v8275 = vrot.slane %v8238, %v8274
      %v8277 = vmul.f32 %v8205, %v8275
      %v8278 = vmul.f32 %v8206, %v8275
      %v8279 = vmul.f32 %v8207, %v8275
      %v8280 = vmul.f32 %v8208, %v8275
      %v8281 = vmul.f32 %v8209, %v8275
      %v8282 = vmul.f32 %v8210, %v8275
      %v8283 = vmul.f32 %v8211, %v8275
      %v8284 = vmul.f32 %v8212, %v8275
      %v8285 = vmul.f32 %v8213, %v8275
      %v8286 = vmul.f32 %v8214, %v8275
      %v8287 = vmul.f32 %v8215, %v8275
      %v8288 = vmul.f32 %v8216, %v8275
      %v8289 = vmul.f32 %v8217, %v8275
      %v8290 = vmul.f32 %v8218, %v8275
      %v8291 = vmul.f32 %v8219, %v8275
      %v8292 = vmul.f32 %v8220, %v8275
      %v8293 = vmul.f32 %v8221, %v8275
      %v8294 = vmul.f32 %v8222, %v8275
      %v8295 = vmul.f32 %v8223, %v8275
      %v8296 = vmul.f32 %v8224, %v8275
      %v8297 = vmul.f32 %v8225, %v8275
      %v8298 = vmul.f32 %v8226, %v8275
      %v8299 = vmul.f32 %v8227, %v8275
      %v8300 = vmul.f32 %v8228, %v8275
      %v8301 = vmul.f32 %v8229, %v8275
      %v8302 = vmul.f32 %v8230, %v8275
      %v8303 = vmul.f32 %v8231, %v8275
      %v8304 = vmul.f32 %v8232, %v8275
      %v8305 = vmul.f32 %v8233, %v8275
      %v8306 = vmul.f32 %v8234, %v8275
      %v8307 = vmul.f32 %v8235, %v8275
      %v8308 = vmul.f32 %v8236, %v8275
      %v8309 = vsel %vm8239, %v8205, %v8277
      %v8310 = vsel %vm8240, %v8206, %v8278
      %v8311 = vsel %vm8241, %v8207, %v8279
      %v8312 = vsel %vm8242, %v8208, %v8280
      %v8313 = vsel %vm8243, %v8209, %v8281
      %v8314 = vsel %vm8244, %v8210, %v8282
      %v8315 = vsel %vm8245, %v8211, %v8283
      %v8316 = vsel %vm8246, %v8212, %v8284
      %v8317 = vsel %vm8247, %v8213, %v8285
      %v8318 = vsel %vm8248, %v8214, %v8286
      %v8319 = vsel %vm8249, %v8215, %v8287
      %v8320 = vsel %vm8250, %v8216, %v8288
      %v8321 = vsel %vm8251, %v8217, %v8289
      %v8322 = vsel %vm8252, %v8218, %v8290
      %v8323 = vsel %vm8253, %v8219, %v8291
      %v8324 = vsel %vm8254, %v8220, %v8292
      %v8325 = vsel %vm8255, %v8221, %v8293
      %v8326 = vsel %vm8256, %v8222, %v8294
      %v8327 = vsel %vm8257, %v8223, %v8295
      %v8328 = vsel %vm8258, %v8224, %v8296
      %v8329 = vsel %vm8259, %v8225, %v8297
      %v8330 = vsel %vm8260, %v8226, %v8298
      %v8331 = vsel %vm8261, %v8227, %v8299
      %v8332 = vsel %vm8262, %v8228, %v8300
      %v8333 = vsel %vm8263, %v8229, %v8301
      %v8334 = vsel %vm8264, %v8230, %v8302
      %v8335 = vsel %vm8265, %v8231, %v8303
      %v8336 = vsel %vm8266, %v8232, %v8304
      %v8337 = vsel %vm8267, %v8233, %v8305
      %v8338 = vsel %vm8268, %v8234, %v8306
      %v8339 = vsel %vm8269, %v8235, %v8307
      %v8340 = vsel %vm8270, %v8236, %v8308
      %s8341 = scalar_lea.vmem %s197, 768
      %8342 = vst.msk [vmem:[%s8341] sm:$0xff] %vm230, %v8309
      %8343 = vst.msk [vmem:[%s8341 + $0x8] sm:$0xff] %vm230, %v8310
      %8344 = vst.msk [vmem:[%s8341 + $0x10] sm:$0xff] %vm230, %v8311
      %8345 = vst.msk [vmem:[%s8341 + $0x18] sm:$0xff] %vm230, %v8312
      %8346 = vst.msk [vmem:[%s8341 + $0x20] sm:$0xff] %vm230, %v8313
      %8347 = vst.msk [vmem:[%s8341 + $0x28] sm:$0xff] %vm230, %v8314
      %8348 = vst.msk [vmem:[%s8341 + $0x30] sm:$0xff] %vm230, %v8315
      %8349 = vst.msk [vmem:[%s8341 + $0x38] sm:$0xff] %vm230, %v8316
      %8350 = vst.msk [vmem:[%s8341 + $0x40] sm:$0xff] %vm230, %v8317
      %8351 = vst.msk [vmem:[%s8341 + $0x48] sm:$0xff] %vm230, %v8318
      %8352 = vst.msk [vmem:[%s8341 + $0x50] sm:$0xff] %vm230, %v8319
      %8353 = vst.msk [vmem:[%s8341 + $0x58] sm:$0xff] %vm230, %v8320
      %8354 = vst.msk [vmem:[%s8341 + $0x60] sm:$0xff] %vm230, %v8321
      %8355 = vst.msk [vmem:[%s8341 + $0x68] sm:$0xff] %vm230, %v8322
      %8356 = vst.msk [vmem:[%s8341 + $0x70] sm:$0xff] %vm230, %v8323
      %8357 = vst.msk [vmem:[%s8341 + $0x78] sm:$0xff] %vm230, %v8324
      %8358 = vst.msk [vmem:[%s8341 + $0x80] sm:$0xff] %vm230, %v8325
      %8359 = vst.msk [vmem:[%s8341 + $0x88] sm:$0xff] %vm230, %v8326
      %8360 = vst.msk [vmem:[%s8341 + $0x90] sm:$0xff] %vm230, %v8327
      %8361 = vst.msk [vmem:[%s8341 + $0x98] sm:$0xff] %vm230, %v8328
      %8362 = vst.msk [vmem:[%s8341 + $0xa0] sm:$0xff] %vm230, %v8329
      %8363 = vst.msk [vmem:[%s8341 + $0xa8] sm:$0xff] %vm230, %v8330
      %8364 = vst.msk [vmem:[%s8341 + $0xb0] sm:$0xff] %vm230, %v8331
      %8365 = vst.msk [vmem:[%s8341 + $0xb8] sm:$0xff] %vm230, %v8332
      %8366 = vst.msk [vmem:[%s8341 + $0xc0] sm:$0xff] %vm230, %v8333
      %8367 = vst.msk [vmem:[%s8341 + $0xc8] sm:$0xff] %vm230, %v8334
      %8368 = vst.msk [vmem:[%s8341 + $0xd0] sm:$0xff] %vm230, %v8335
      %8369 = vst.msk [vmem:[%s8341 + $0xd8] sm:$0xff] %vm230, %v8336
      %8370 = vst.msk [vmem:[%s8341 + $0xe0] sm:$0xff] %vm230, %v8337
      %8371 = vst.msk [vmem:[%s8341 + $0xe8] sm:$0xff] %vm230, %v8338
      %8372 = vst.msk [vmem:[%s8341 + $0xf0] sm:$0xff] %vm230, %v8339
      %8373 = vst.msk [vmem:[%s8341 + $0xf8] sm:$0xff] %vm230, %v8340
      %p8374 = scmp.lt.s32.totalorder %s15, 1
      %s8375 = scalar_select %p8374, %s15, 1
      %s8376 = smul.addr %s8375, 128
      %s8377 = smul.addr %s8376, 8
      %s8378 = scalar_lea.vmem %s4, %s8377
      // Predicated region
      $region37: #{pyramid_conv.1} parent=35 // pred_check
        %p8379 = pneg %p122
      $region38: #{pyramid_conv.1} parent=35 // pred_check_branch
        %8381 = sbr.rel (%p8379) target = $region40
      $region39: #{pyramid_conv.1} parent=35 // pred_region
        _
      $region40: #{pyramid_conv.1} parent=35 // pred_fallthru
        _
    $region36: #{pyramid_conv.1} parent=5 // pred_fallthru
      _
    %p8382 = scmp.le.s32.totalorder 2, %s10
    // Predicated region
    $region41: #{pyramid_conv.1} parent=5 // pred_check
      %p8383 = pneg %p8382
    $region42: #{pyramid_conv.1} parent=5 // pred_check_branch
      %8385 = sbr.rel (%p8383) target = $region44
    $region43: #{pyramid_conv.1} parent=5 // pred_region
      %s8386 = ssub.s32 %s10, 2
      // Predicated region
      $region45: #{pyramid_conv.1} parent=43 // pred_check
        %p8387 = pneg %p128
      $region46: #{pyramid_conv.1} parent=43 // pred_check_branch
        %8389 = sbr.rel (%p8387) target = $region48
      $region47: #{pyramid_conv.1} parent=43 // pred_region
        %p8390 = scmp.lt.s32.totalorder %s16, 1
        %s8391 = scalar_select %p8390, %s16, 1
        %s8392 = smul.addr %s8391, 128
        %s8393 = smul.addr %s8392, 8
        %s8394 = scalar_lea.vmem %s4, %s8393
      $region48: #{pyramid_conv.1} parent=43 // pred_fallthru
        _
    $region44: #{pyramid_conv.1} parent=5 // pred_fallthru
      _
  $region6: #{pyramid_conv.1} parent=0 // loop_footer
    %s14 = sadd.s32 1, %s10
  $region7: #{pyramid_conv.1} parent=0 // loop_footer_branch
    %9 = sbr.rel target = $region3
  $region8: #{pyramid_conv.1} parent=0 // loop_exit
    _

</llo_original>
